<compile_context>
chip_gen: v6e
topology: v6e:2x2x1
jax: 0.10.0
libtpu: 0.0.40
codegen_flags: <defaults>
</compile_context>

<pallas_src>
import functools

import jax
import jax.numpy as jnp
from jax.experimental import pallas as pl
from jax.experimental.pallas import tpu as pltpu

C_OUT, KH, KW = 10, 3, 3
H_IN = W_IN = 28
H_CONV = W_CONV = 26            # 28 - 3 + 1
H_POOL = W_POOL = 13
FLAT = C_OUT * H_POOL * W_POOL  # 1690
HIDDEN = 128
N_CLASSES = 10

CW = C_OUT * W_POOL             # 130  conv/pool width (oc*13 + pj)
SEG = 256                       # CW padded to a 2-vreg lane boundary
SLAB_ROWS = 4                   # image rows feeding one pooled row
SLAB_W = 128                    # 4*28 = 112, zero-padded to one vreg lane width
X_W = H_POOL * SLAB_W           # 1664  flattened slab width per image
K_CAT_N = 4 * SEG               # 1024  concatenated Toeplitz output width
K1 = H_POOL * SEG               # 3328  fc1 padded reduction length


def _round_up(n, m):
    return (n + m - 1) // m * m


def _cdiv(a, b):
    return (a + b - 1) // b


# ----------------------------- fused kernel -----------------------------
def fused_kernel(x_ref, k_ref, bc_ref, w1_ref, b1_ref, w2_ref, b2_ref, o_ref,
                 pooled_ref):
    # x_ref     : (TB, 1664)  bf16  13 lane-aligned 128-wide slabs per image
    # k_ref     : (128, 1024) bf16  [r0-even | r0-odd | r1-even | r1-odd] Toeplitz
    # bc_ref    : (1, 256)    f32   conv bias per pooled column (lanes 130.. = 0)
    # w1_ref    : (3328, 128) bf16  fc1 weight, rows match pooled scratch layout
    # b1_ref    : (1, 128) f32   w2_ref: (128, 10) bf16   b2_ref: (1, 10) f32
    # o_ref     : (TB, 10)    f32   softmax probabilities
    # pooled_ref: (TB, 3328)  bf16  VMEM scratch of pooled+ReLU activations
    bc = bc_ref[...]                                     # (1, 256) f32

    for pi in range(H_POOL):
        # One vreg-aligned 128-lane slab = image rows 2pi..2pi+3 (zero-padded).
        xa = x_ref[:, pi * SLAB_W:(pi + 1) * SLAB_W]     # (tb, 128) bf16
        # Single MXU op: all 4 (row, column-parity) conv variants at once.
        conv = jnp.dot(xa, k_ref[...],
                       preferred_element_type=jnp.float32)   # (tb, 1024) f32
        # 2x2/stride-2 max-pool over the four aligned 256-wide segments.
        p01 = jnp.maximum(conv[:, 0 * SEG:1 * SEG], conv[:, 1 * SEG:2 * SEG])
        p23 = jnp.maximum(conv[:, 2 * SEG:3 * SEG], conv[:, 3 * SEG:4 * SEG])
        # Bias add + ReLU commute with the per-channel max.
        pooled = jnp.maximum(jnp.maximum(p01, p23) + bc, 0.0)   # (tb, 256) f32
        # Aligned 256-lane bf16 store into the fc1 input scratch.
        pooled_ref[:, pi * SEG:(pi + 1) * SEG] = pooled.astype(jnp.bfloat16)

    # Single fc1 matmul over the padded K=3328 (zero lanes hit zero w1 rows).
    h = jnp.dot(pooled_ref[...], w1_ref[...],
                preferred_element_type=jnp.float32)          # (tb, 128) f32
    h = jnp.maximum(h + b1_ref[...], 0.0)
    # TODO(synk): train-mode stochastic dropout (p=0.2, pltpu.prng_*) not implemented;
    # eval/inference mode dropout is the identity, which is what is reproduced here.
    logits = jnp.dot(h.astype(jnp.bfloat16), w2_ref[...],
                     preferred_element_type=jnp.float32) + b2_ref[...]
    m = jnp.max(logits, axis=1, keepdims=True)
    e = jnp.exp(logits - m)
    denom = jnp.sum(e, axis=1, keepdims=True)
    o_ref[...] = e * pl.reciprocal(denom, approx=True)


# ----------------------------- wrapper -----------------------------
def forward(x_nchw, kparams, b_tile=512):
    k_cat, bias_pad, w1_pad, b1, w2t, b2 = kparams
    B = x_nchw.shape[0]

    # Pre-gather lane-aligned slabs: slab[b, pi, r*28+c] = x[b, 2pi+r, c], r<4.
    x_img = x_nchw.reshape(B, H_IN, W_IN).astype(jnp.float32)
    row_idx = (2 * jnp.arange(H_POOL)[:, None]
               + jnp.arange(SLAB_ROWS)[None, :]).reshape(-1)          # (52,)
    slab = x_img[:, row_idx, :].reshape(B, H_POOL, SLAB_ROWS * W_IN)  # (B,13,112)
    slab = jnp.pad(slab, ((0, 0), (0, 0), (0, SLAB_W - SLAB_ROWS * W_IN)))
    x_slab = slab.reshape(B, X_W).astype(jnp.bfloat16)                # (B, 1664)

    # Batch tiling: avoid nearly-empty last tiles; >=2 tiles for B>=16 so the
    # "parallel" batch axis can shard across both v7x TensorCores.
    n_tiles = max(1, _cdiv(B, b_tile))
    if B >= 16:
        n_tiles = max(n_tiles, 2)
    tb = _round_up(_cdiv(B, n_tiles), 8)
    pB = _round_up(B, tb)
    if pB != B:
        x_slab = jnp.pad(x_slab, ((0, pB - B), (0, 0)))

    # Per-tile VMEM estimate; only raise the scoped limit if we'd exceed the
    # default (matters on v7x with tb >= ~2048).
    est = (2 * tb * X_W * 2          # double-buffered bf16 x tile
           + tb * K1 * 2             # bf16 pooled scratch
           + tb * K_CAT_N * 4        # f32 conv temporary
           + 2 * tb * HIDDEN * 4     # h / logits temporaries
           + (SLAB_W * K_CAT_N + K1 * HIDDEN + HIDDEN * N_CLASSES) * 2
           + (1 << 20))
    cp_kwargs = dict(dimension_semantics=("parallel",))
    if est > 28 * (1 << 20):
        cp_kwargs["vmem_limit_bytes"] = min(est + (8 << 20), 60 * (1 << 20))
    compiler_params = pltpu.CompilerParams(**cp_kwargs)

    out = pl.pallas_call(
        fused_kernel,
        out_shape=jax.ShapeDtypeStruct((pB, N_CLASSES), jnp.float32),
        grid=(pB // tb,),
        in_specs=[
            pl.BlockSpec((tb, X_W), lambda b: (b, 0)),
            pl.BlockSpec((SLAB_W, K_CAT_N), lambda b: (0, 0)),     # resident
            pl.BlockSpec((1, SEG), lambda b: (0, 0)),              # resident
            pl.BlockSpec((K1, HIDDEN), lambda b: (0, 0)),          # resident
            pl.BlockSpec((1, HIDDEN), lambda b: (0, 0)),           # resident
            pl.BlockSpec((HIDDEN, N_CLASSES), lambda b: (0, 0)),   # resident
            pl.BlockSpec((1, N_CLASSES), lambda b: (0, 0)),        # resident
        ],
        out_specs=pl.BlockSpec((tb, N_CLASSES), lambda b: (b, 0)),
        scratch_shapes=[pltpu.VMEM((tb, K1), jnp.bfloat16)],
        compiler_params=compiler_params,
    )(x_slab, k_cat, bias_pad, w1_pad, b1, w2t, b2)
    return out[:B]


# ----------------------------- parameters -----------------------------
def init_params(key):
    """Torch-layout parameters (same init ranges as nn.Conv2d / nn.Linear)."""
    k1, k2, k3, k4, k5, k6 = jax.random.split(key, 6)
    bc = 1.0 / (1 * KH * KW) ** 0.5
    conv_w = jax.random.uniform(k1, (C_OUT, 1, KH, KW), jnp.float32, -bc, bc)
    conv_b = jax.random.uniform(k2, (C_OUT,), jnp.float32, -bc, bc)
    b1 = 1.0 / FLAT ** 0.5
    fc1_w = jax.random.uniform(k3, (HIDDEN, FLAT), jnp.float32, -b1, b1)   # (out, in)
    fc1_b = jax.random.uniform(k4, (HIDDEN,), jnp.float32, -b1, b1)
    b2 = 1.0 / HIDDEN ** 0.5
    fc2_w = jax.random.uniform(k5, (N_CLASSES, HIDDEN), jnp.float32, -b2, b2)
    fc2_b = jax.random.uniform(k6, (N_CLASSES,), jnp.float32, -b2, b2)
    return conv_w, conv_b, fc1_w, fc1_b, fc2_w, fc2_b


def prepare_params(params):
    """One-time transform of torch-layout params into kernel layout (hoisted)."""
    conv_w, conv_b, fc1_w, fc1_b, fc2_w, fc2_b = params
    w = conv_w[:, 0]                                   # (10, 3, 3)

    # Build one (128, 256) Toeplitz segment per (conv-row offset dr, col parity p):
    #   K[r*28 + c, oc*13 + pj] = w[oc, r-dr, c-(2pj+p)] when both offsets in [0,3).
    # Slab rows r index image rows 2pi+r; (x_slab_row @ K)[oc*13+pj] equals the
    # unbiased conv output at (row 2pi+dr, col 2pj+p) for channel oc.
    r = jnp.arange(SLAB_ROWS)[:, None, None, None]
    c = jnp.arange(W_IN)[None, :, None, None]
    oc = jnp.arange(C_OUT)[None, None, :, None]
    pj = jnp.arange(W_POOL)[None, None, None, :]
    segs = []
    for dr in (0, 1):
        for p in (0, 1):
            kh = r - dr
            kw = c - (2 * pj + p)
            valid = (kh >= 0) & (kh < KH) & (kw >= 0) & (kw < KW)
            vals = jnp.where(valid,
                             w[oc, jnp.clip(kh, 0, KH - 1), jnp.clip(kw, 0, KW - 1)],
                             0.0)
            seg = vals.reshape(SLAB_ROWS * W_IN, CW)                  # (112, 130)
            seg = jnp.pad(seg, ((0, SLAB_W - SLAB_ROWS * W_IN), (0, SEG - CW)))
            segs.append(seg)                                          # (128, 256)
    k_cat = jnp.concatenate(segs, axis=1).astype(jnp.bfloat16)        # (128, 1024)

    bias_pad = jnp.pad(jnp.repeat(conv_b, W_POOL), (0, SEG - CW))
    bias_pad = bias_pad.reshape(1, SEG).astype(jnp.float32)           # (1, 256)

    # fc1 weights, (in, out) and permuted so row (pi*256 + oc*13 + pj) matches the
    # pooled scratch layout; padded lanes (130..255 of each pi block) are zero rows.
    w1t = fc1_w.T.reshape(C_OUT, H_POOL, W_POOL, HIDDEN)              # [oc, pi, pj, :]
    w1p = jnp.transpose(w1t, (1, 0, 2, 3)).reshape(H_POOL, CW, HIDDEN)
    w1p = jnp.pad(w1p, ((0, 0), (0, SEG - CW), (0, 0))).reshape(K1, HIDDEN)
    w1_pad = w1p.astype(jnp.bfloat16)                                 # (3328, 128)

    b1 = fc1_b.reshape(1, HIDDEN).astype(jnp.float32)
    w2t = fc2_w.T.astype(jnp.bfloat16)                                # (128, 10)
    b2 = fc2_b.reshape(1, N_CLASSES).astype(jnp.float32)
    return k_cat, bias_pad, w1_pad, b1, w2t, b2


# ----------------------------- pure-JAX reference (for self-check) -----------------------------
def reference_forward(x_nchw, params):
    conv_w, conv_b, fc1_w, fc1_b, fc2_w, fc2_b = params
    x = x_nchw[:, 0]
    conv = sum(
        x[:, None, kh:kh + H_CONV, kw:kw + W_CONV]
        * conv_w[None, :, 0, kh, kw, None, None]
        for kh in range(KH) for kw in range(KW)
    ) + conv_b[None, :, None, None]
    a = jnp.maximum(conv, 0.0)
    a = a.reshape(x.shape[0], C_OUT, H_POOL, 2, W_POOL, 2).max(axis=(3, 5))
    flat = a.reshape(x.shape[0], FLAT)
    h = jnp.maximum(flat @ fc1_w.T + fc1_b, 0.0)
    logits = h @ fc2_w.T + fc2_b
    return jax.nn.softmax(logits, axis=1)


if __name__ == "__main__":
    key = jax.random.PRNGKey(0)
    kx, kp = jax.random.split(key)
    x = jax.random.normal(kx, (2, 1, 28, 28), jnp.float32)  # MNIST-sized input implied by fc1
    params = init_params(kp)
    kparams = prepare_params(params)

    fwd = jax.jit(functools.partial(forward, b_tile=512))
    out = jax.block_until_ready(fwd(x, kparams))

    assert out.shape == (2, N_CLASSES)
    assert bool(jnp.all(jnp.isfinite(out)))
    # approx reciprocal in the softmax: rows sum to 1 only to ~1e-3
    assert bool(jnp.allclose(jnp.sum(out, axis=1), 1.0, atol=2e-3))
    ref = reference_forward(x, params)
    # bf16 MXU operands: compare probabilities at 1e-2 absolute tolerance
    assert bool(jnp.allclose(out, ref, atol=1e-2)), "mismatch vs pure-JAX reference"
    print("KERNEL_OK")
</pallas_src>

<mosaic_0001>
module attributes {stable_mosaic.version = 11 : i64} {
  func.func @fused_kernel(%arg0: i32, %arg1: memref<8x1664xbf16, #tpu.memory_space<vmem>>, %arg2: memref<128x1024xbf16, #tpu.memory_space<vmem>>, %arg3: memref<1x256xf32, #tpu.memory_space<vmem>>, %arg4: memref<3328x128xbf16, #tpu.memory_space<vmem>>, %arg5: memref<1x128xf32, #tpu.memory_space<vmem>>, %arg6: memref<128x10xbf16, #tpu.memory_space<vmem>>, %arg7: memref<1x10xf32, #tpu.memory_space<vmem>>, %arg8: memref<8x10xf32, #tpu.memory_space<vmem>>, %arg9: memref<8x3328xbf16, #tpu.memory_space<vmem>>) attributes {dimension_semantics = [#tpu.dimension_semantics<parallel>], iteration_bounds = array<i64: 1>, scalar_prefetch = 0 : i64, scratch_operands = 1 : i64, tpu.core_type = #tpu.core_type<tc>, window_params = [{transform_indices = @transform_0, window_bounds = array<i64: 8, 1664>}, {pipeline_mode = #tpu.pipeline_mode<synchronous>, transform_indices = @transform_1, window_bounds = array<i64: 128, 1024>}, {pipeline_mode = #tpu.pipeline_mode<synchronous>, transform_indices = @transform_2, window_bounds = array<i64: 1, 256>}, {pipeline_mode = #tpu.pipeline_mode<synchronous>, transform_indices = @transform_3, window_bounds = array<i64: 3328, 128>}, {pipeline_mode = #tpu.pipeline_mode<synchronous>, transform_indices = @transform_4, window_bounds = array<i64: 1, 128>}, {pipeline_mode = #tpu.pipeline_mode<synchronous>, transform_indices = @transform_5, window_bounds = array<i64: 128, 10>}, {pipeline_mode = #tpu.pipeline_mode<synchronous>, transform_indices = @transform_6, window_bounds = array<i64: 1, 10>}, {transform_indices = @transform_7, window_bounds = array<i64: 8, 10>}]} {
    %c0 = arith.constant 0 : index
    %c0_0 = arith.constant 0 : index
    %0 = vector.load %arg3[%c0, %c0_0] : memref<1x256xf32, #tpu.memory_space<vmem>>, vector<1x256xf32>
    %c0_1 = arith.constant 0 : index
    %c0_2 = arith.constant 0 : index
    %1 = vector.load %arg1[%c0_1, %c0_2] : memref<8x1664xbf16, #tpu.memory_space<vmem>>, vector<8x128xbf16>
    %c0_3 = arith.constant 0 : index
    %c0_4 = arith.constant 0 : index
    %2 = vector.load %arg2[%c0_3, %c0_4] : memref<128x1024xbf16, #tpu.memory_space<vmem>>, vector<128x1024xbf16>
    %cst = arith.constant dense<0.000000e+00> : vector<8x1024xf32>
    %3 = tpu.matmul %1, %2, %cst {dimension_numbers = #tpu.dot_dimension_numbers<[1], [0], [0], [1], [0, 0, 1, 1], [], []>} : vector<8x128xbf16>, vector<128x1024xbf16>, vector<8x1024xf32> -> vector<8x1024xf32>
    %4 = vector.extract_strided_slice %3 {offsets = [0, 0], sizes = [8, 256], strides = [1, 1]} : vector<8x1024xf32> to vector<8x256xf32>
    %5 = vector.extract_strided_slice %3 {offsets = [0, 256], sizes = [8, 256], strides = [1, 1]} : vector<8x1024xf32> to vector<8x256xf32>
    %6 = arith.maximumf %4, %5 : vector<8x256xf32>
    %7 = vector.extract_strided_slice %3 {offsets = [0, 512], sizes = [8, 256], strides = [1, 1]} : vector<8x1024xf32> to vector<8x256xf32>
    %8 = vector.extract_strided_slice %3 {offsets = [0, 768], sizes = [8, 256], strides = [1, 1]} : vector<8x1024xf32> to vector<8x256xf32>
    %9 = arith.maximumf %7, %8 : vector<8x256xf32>
    %10 = arith.maximumf %6, %9 : vector<8x256xf32>
    %11 = vector.broadcast %0 : vector<1x256xf32> to vector<8x256xf32>
    %12 = arith.addf %10, %11 : vector<8x256xf32>
    %cst_5 = arith.constant 0.000000e+00 : f32
    %13 = vector.broadcast %cst_5 : f32 to vector<8x256xf32>
    %14 = arith.maximumf %12, %13 : vector<8x256xf32>
    %15 = arith.truncf %14 : vector<8x256xf32> to vector<8x256xbf16>
    %c0_6 = arith.constant 0 : index
    %c0_7 = arith.constant 0 : index
    %16 = vector.load %arg9[%c0_6, %c0_7] : memref<8x3328xbf16, #tpu.memory_space<vmem>>, vector<8x256xbf16>
    tpu.vector_store %arg9[%c0_6, %c0_7], %15 {strides = array<i32>} : memref<8x3328xbf16, #tpu.memory_space<vmem>>, vector<8x256xbf16>,
    %c0_8 = arith.constant 0 : index
    %c128 = arith.constant 128 : index
    %17 = vector.load %arg1[%c0_8, %c128] : memref<8x1664xbf16, #tpu.memory_space<vmem>>, vector<8x128xbf16>
    %c0_9 = arith.constant 0 : index
    %c0_10 = arith.constant 0 : index
    %18 = vector.load %arg2[%c0_9, %c0_10] : memref<128x1024xbf16, #tpu.memory_space<vmem>>, vector<128x1024xbf16>
    %cst_11 = arith.constant dense<0.000000e+00> : vector<8x1024xf32>
    %19 = tpu.matmul %17, %18, %cst_11 {dimension_numbers = #tpu.dot_dimension_numbers<[1], [0], [0], [1], [0, 0, 1, 1], [], []>} : vector<8x128xbf16>, vector<128x1024xbf16>, vector<8x1024xf32> -> vector<8x1024xf32>
    %20 = vector.extract_strided_slice %19 {offsets = [0, 0], sizes = [8, 256], strides = [1, 1]} : vector<8x1024xf32> to vector<8x256xf32>
    %21 = vector.extract_strided_slice %19 {offsets = [0, 256], sizes = [8, 256], strides = [1, 1]} : vector<8x1024xf32> to vector<8x256xf32>
    %22 = arith.maximumf %20, %21 : vector<8x256xf32>
    %23 = vector.extract_strided_slice %19 {offsets = [0, 512], sizes = [8, 256], strides = [1, 1]} : vector<8x1024xf32> to vector<8x256xf32>
    %24 = vector.extract_strided_slice %19 {offsets = [0, 768], sizes = [8, 256], strides = [1, 1]} : vector<8x1024xf32> to vector<8x256xf32>
    %25 = arith.maximumf %23, %24 : vector<8x256xf32>
    %26 = arith.maximumf %22, %25 : vector<8x256xf32>
    %27 = vector.broadcast %0 : vector<1x256xf32> to vector<8x256xf32>
    %28 = arith.addf %26, %27 : vector<8x256xf32>
    %cst_12 = arith.constant 0.000000e+00 : f32
    %29 = vector.broadcast %cst_12 : f32 to vector<8x256xf32>
    %30 = arith.maximumf %28, %29 : vector<8x256xf32>
    %31 = arith.truncf %30 : vector<8x256xf32> to vector<8x256xbf16>
    %c0_13 = arith.constant 0 : index
    %c256 = arith.constant 256 : index
    %32 = vector.load %arg9[%c0_13, %c256] : memref<8x3328xbf16, #tpu.memory_space<vmem>>, vector<8x256xbf16>
    tpu.vector_store %arg9[%c0_13, %c256], %31 {strides = array<i32>} : memref<8x3328xbf16, #tpu.memory_space<vmem>>, vector<8x256xbf16>,
    %c0_14 = arith.constant 0 : index
    %c256_15 = arith.constant 256 : index
    %33 = vector.load %arg1[%c0_14, %c256_15] : memref<8x1664xbf16, #tpu.memory_space<vmem>>, vector<8x128xbf16>
    %c0_16 = arith.constant 0 : index
    %c0_17 = arith.constant 0 : index
    %34 = vector.load %arg2[%c0_16, %c0_17] : memref<128x1024xbf16, #tpu.memory_space<vmem>>, vector<128x1024xbf16>
    %cst_18 = arith.constant dense<0.000000e+00> : vector<8x1024xf32>
    %35 = tpu.matmul %33, %34, %cst_18 {dimension_numbers = #tpu.dot_dimension_numbers<[1], [0], [0], [1], [0, 0, 1, 1], [], []>} : vector<8x128xbf16>, vector<128x1024xbf16>, vector<8x1024xf32> -> vector<8x1024xf32>
    %36 = vector.extract_strided_slice %35 {offsets = [0, 0], sizes = [8, 256], strides = [1, 1]} : vector<8x1024xf32> to vector<8x256xf32>
    %37 = vector.extract_strided_slice %35 {offsets = [0, 256], sizes = [8, 256], strides = [1, 1]} : vector<8x1024xf32> to vector<8x256xf32>
    %38 = arith.maximumf %36, %37 : vector<8x256xf32>
    %39 = vector.extract_strided_slice %35 {offsets = [0, 512], sizes = [8, 256], strides = [1, 1]} : vector<8x1024xf32> to vector<8x256xf32>
    %40 = vector.extract_strided_slice %35 {offsets = [0, 768], sizes = [8, 256], strides = [1, 1]} : vector<8x1024xf32> to vector<8x256xf32>
    %41 = arith.maximumf %39, %40 : vector<8x256xf32>
    %42 = arith.maximumf %38, %41 : vector<8x256xf32>
    %43 = vector.broadcast %0 : vector<1x256xf32> to vector<8x256xf32>
    %44 = arith.addf %42, %43 : vector<8x256xf32>
    %cst_19 = arith.constant 0.000000e+00 : f32
    %45 = vector.broadcast %cst_19 : f32 to vector<8x256xf32>
    %46 = arith.maximumf %44, %45 : vector<8x256xf32>
    %47 = arith.truncf %46 : vector<8x256xf32> to vector<8x256xbf16>
    %c0_20 = arith.constant 0 : index
    %c512 = arith.constant 512 : index
    %48 = vector.load %arg9[%c0_20, %c512] : memref<8x3328xbf16, #tpu.memory_space<vmem>>, vector<8x256xbf16>
    tpu.vector_store %arg9[%c0_20, %c512], %47 {strides = array<i32>} : memref<8x3328xbf16, #tpu.memory_space<vmem>>, vector<8x256xbf16>,
    %c0_21 = arith.constant 0 : index
    %c384 = arith.constant 384 : index
    %49 = vector.load %arg1[%c0_21, %c384] : memref<8x1664xbf16, #tpu.memory_space<vmem>>, vector<8x128xbf16>
    %c0_22 = arith.constant 0 : index
    %c0_23 = arith.constant 0 : index
    %50 = vector.load %arg2[%c0_22, %c0_23] : memref<128x1024xbf16, #tpu.memory_space<vmem>>, vector<128x1024xbf16>
    %cst_24 = arith.constant dense<0.000000e+00> : vector<8x1024xf32>
    %51 = tpu.matmul %49, %50, %cst_24 {dimension_numbers = #tpu.dot_dimension_numbers<[1], [0], [0], [1], [0, 0, 1, 1], [], []>} : vector<8x128xbf16>, vector<128x1024xbf16>, vector<8x1024xf32> -> vector<8x1024xf32>
    %52 = vector.extract_strided_slice %51 {offsets = [0, 0], sizes = [8, 256], strides = [1, 1]} : vector<8x1024xf32> to vector<8x256xf32>
    %53 = vector.extract_strided_slice %51 {offsets = [0, 256], sizes = [8, 256], strides = [1, 1]} : vector<8x1024xf32> to vector<8x256xf32>
    %54 = arith.maximumf %52, %53 : vector<8x256xf32>
    %55 = vector.extract_strided_slice %51 {offsets = [0, 512], sizes = [8, 256], strides = [1, 1]} : vector<8x1024xf32> to vector<8x256xf32>
    %56 = vector.extract_strided_slice %51 {offsets = [0, 768], sizes = [8, 256], strides = [1, 1]} : vector<8x1024xf32> to vector<8x256xf32>
    %57 = arith.maximumf %55, %56 : vector<8x256xf32>
    %58 = arith.maximumf %54, %57 : vector<8x256xf32>
    %59 = vector.broadcast %0 : vector<1x256xf32> to vector<8x256xf32>
    %60 = arith.addf %58, %59 : vector<8x256xf32>
    %cst_25 = arith.constant 0.000000e+00 : f32
    %61 = vector.broadcast %cst_25 : f32 to vector<8x256xf32>
    %62 = arith.maximumf %60, %61 : vector<8x256xf32>
    %63 = arith.truncf %62 : vector<8x256xf32> to vector<8x256xbf16>
    %c0_26 = arith.constant 0 : index
    %c768 = arith.constant 768 : index
    %64 = vector.load %arg9[%c0_26, %c768] : memref<8x3328xbf16, #tpu.memory_space<vmem>>, vector<8x256xbf16>
    tpu.vector_store %arg9[%c0_26, %c768], %63 {strides = array<i32>} : memref<8x3328xbf16, #tpu.memory_space<vmem>>, vector<8x256xbf16>,
    %c0_27 = arith.constant 0 : index
    %c512_28 = arith.constant 512 : index
    %65 = vector.load %arg1[%c0_27, %c512_28] : memref<8x1664xbf16, #tpu.memory_space<vmem>>, vector<8x128xbf16>
    %c0_29 = arith.constant 0 : index
    %c0_30 = arith.constant 0 : index
    %66 = vector.load %arg2[%c0_29, %c0_30] : memref<128x1024xbf16, #tpu.memory_space<vmem>>, vector<128x1024xbf16>
    %cst_31 = arith.constant dense<0.000000e+00> : vector<8x1024xf32>
    %67 = tpu.matmul %65, %66, %cst_31 {dimension_numbers = #tpu.dot_dimension_numbers<[1], [0], [0], [1], [0, 0, 1, 1], [], []>} : vector<8x128xbf16>, vector<128x1024xbf16>, vector<8x1024xf32> -> vector<8x1024xf32>
    %68 = vector.extract_strided_slice %67 {offsets = [0, 0], sizes = [8, 256], strides = [1, 1]} : vector<8x1024xf32> to vector<8x256xf32>
    %69 = vector.extract_strided_slice %67 {offsets = [0, 256], sizes = [8, 256], strides = [1, 1]} : vector<8x1024xf32> to vector<8x256xf32>
    %70 = arith.maximumf %68, %69 : vector<8x256xf32>
    %71 = vector.extract_strided_slice %67 {offsets = [0, 512], sizes = [8, 256], strides = [1, 1]} : vector<8x1024xf32> to vector<8x256xf32>
    %72 = vector.extract_strided_slice %67 {offsets = [0, 768], sizes = [8, 256], strides = [1, 1]} : vector<8x1024xf32> to vector<8x256xf32>
    %73 = arith.maximumf %71, %72 : vector<8x256xf32>
    %74 = arith.maximumf %70, %73 : vector<8x256xf32>
    %75 = vector.broadcast %0 : vector<1x256xf32> to vector<8x256xf32>
    %76 = arith.addf %74, %75 : vector<8x256xf32>
    %cst_32 = arith.constant 0.000000e+00 : f32
    %77 = vector.broadcast %cst_32 : f32 to vector<8x256xf32>
    %78 = arith.maximumf %76, %77 : vector<8x256xf32>
    %79 = arith.truncf %78 : vector<8x256xf32> to vector<8x256xbf16>
    %c0_33 = arith.constant 0 : index
    %c1024 = arith.constant 1024 : index
    %80 = vector.load %arg9[%c0_33, %c1024] : memref<8x3328xbf16, #tpu.memory_space<vmem>>, vector<8x256xbf16>
    tpu.vector_store %arg9[%c0_33, %c1024], %79 {strides = array<i32>} : memref<8x3328xbf16, #tpu.memory_space<vmem>>, vector<8x256xbf16>,
    %c0_34 = arith.constant 0 : index
    %c640 = arith.constant 640 : index
    %81 = vector.load %arg1[%c0_34, %c640] : memref<8x1664xbf16, #tpu.memory_space<vmem>>, vector<8x128xbf16>
    %c0_35 = arith.constant 0 : index
    %c0_36 = arith.constant 0 : index
    %82 = vector.load %arg2[%c0_35, %c0_36] : memref<128x1024xbf16, #tpu.memory_space<vmem>>, vector<128x1024xbf16>
    %cst_37 = arith.constant dense<0.000000e+00> : vector<8x1024xf32>
    %83 = tpu.matmul %81, %82, %cst_37 {dimension_numbers = #tpu.dot_dimension_numbers<[1], [0], [0], [1], [0, 0, 1, 1], [], []>} : vector<8x128xbf16>, vector<128x1024xbf16>, vector<8x1024xf32> -> vector<8x1024xf32>
    %84 = vector.extract_strided_slice %83 {offsets = [0, 0], sizes = [8, 256], strides = [1, 1]} : vector<8x1024xf32> to vector<8x256xf32>
    %85 = vector.extract_strided_slice %83 {offsets = [0, 256], sizes = [8, 256], strides = [1, 1]} : vector<8x1024xf32> to vector<8x256xf32>
    %86 = arith.maximumf %84, %85 : vector<8x256xf32>
    %87 = vector.extract_strided_slice %83 {offsets = [0, 512], sizes = [8, 256], strides = [1, 1]} : vector<8x1024xf32> to vector<8x256xf32>
    %88 = vector.extract_strided_slice %83 {offsets = [0, 768], sizes = [8, 256], strides = [1, 1]} : vector<8x1024xf32> to vector<8x256xf32>
    %89 = arith.maximumf %87, %88 : vector<8x256xf32>
    %90 = arith.maximumf %86, %89 : vector<8x256xf32>
    %91 = vector.broadcast %0 : vector<1x256xf32> to vector<8x256xf32>
    %92 = arith.addf %90, %91 : vector<8x256xf32>
    %cst_38 = arith.constant 0.000000e+00 : f32
    %93 = vector.broadcast %cst_38 : f32 to vector<8x256xf32>
    %94 = arith.maximumf %92, %93 : vector<8x256xf32>
    %95 = arith.truncf %94 : vector<8x256xf32> to vector<8x256xbf16>
    %c0_39 = arith.constant 0 : index
    %c1280 = arith.constant 1280 : index
    %96 = vector.load %arg9[%c0_39, %c1280] : memref<8x3328xbf16, #tpu.memory_space<vmem>>, vector<8x256xbf16>
    tpu.vector_store %arg9[%c0_39, %c1280], %95 {strides = array<i32>} : memref<8x3328xbf16, #tpu.memory_space<vmem>>, vector<8x256xbf16>,
    %c0_40 = arith.constant 0 : index
    %c768_41 = arith.constant 768 : index
    %97 = vector.load %arg1[%c0_40, %c768_41] : memref<8x1664xbf16, #tpu.memory_space<vmem>>, vector<8x128xbf16>
    %c0_42 = arith.constant 0 : index
    %c0_43 = arith.constant 0 : index
    %98 = vector.load %arg2[%c0_42, %c0_43] : memref<128x1024xbf16, #tpu.memory_space<vmem>>, vector<128x1024xbf16>
    %cst_44 = arith.constant dense<0.000000e+00> : vector<8x1024xf32>
    %99 = tpu.matmul %97, %98, %cst_44 {dimension_numbers = #tpu.dot_dimension_numbers<[1], [0], [0], [1], [0, 0, 1, 1], [], []>} : vector<8x128xbf16>, vector<128x1024xbf16>, vector<8x1024xf32> -> vector<8x1024xf32>
    %100 = vector.extract_strided_slice %99 {offsets = [0, 0], sizes = [8, 256], strides = [1, 1]} : vector<8x1024xf32> to vector<8x256xf32>
    %101 = vector.extract_strided_slice %99 {offsets = [0, 256], sizes = [8, 256], strides = [1, 1]} : vector<8x1024xf32> to vector<8x256xf32>
    %102 = arith.maximumf %100, %101 : vector<8x256xf32>
    %103 = vector.extract_strided_slice %99 {offsets = [0, 512], sizes = [8, 256], strides = [1, 1]} : vector<8x1024xf32> to vector<8x256xf32>
    %104 = vector.extract_strided_slice %99 {offsets = [0, 768], sizes = [8, 256], strides = [1, 1]} : vector<8x1024xf32> to vector<8x256xf32>
    %105 = arith.maximumf %103, %104 : vector<8x256xf32>
    %106 = arith.maximumf %102, %105 : vector<8x256xf32>
    %107 = vector.broadcast %0 : vector<1x256xf32> to vector<8x256xf32>
    %108 = arith.addf %106, %107 : vector<8x256xf32>
    %cst_45 = arith.constant 0.000000e+00 : f32
    %109 = vector.broadcast %cst_45 : f32 to vector<8x256xf32>
    %110 = arith.maximumf %108, %109 : vector<8x256xf32>
    %111 = arith.truncf %110 : vector<8x256xf32> to vector<8x256xbf16>
    %c0_46 = arith.constant 0 : index
    %c1536 = arith.constant 1536 : index
    %112 = vector.load %arg9[%c0_46, %c1536] : memref<8x3328xbf16, #tpu.memory_space<vmem>>, vector<8x256xbf16>
    tpu.vector_store %arg9[%c0_46, %c1536], %111 {strides = array<i32>} : memref<8x3328xbf16, #tpu.memory_space<vmem>>, vector<8x256xbf16>,
    %c0_47 = arith.constant 0 : index
    %c896 = arith.constant 896 : index
    %113 = vector.load %arg1[%c0_47, %c896] : memref<8x1664xbf16, #tpu.memory_space<vmem>>, vector<8x128xbf16>
    %c0_48 = arith.constant 0 : index
    %c0_49 = arith.constant 0 : index
    %114 = vector.load %arg2[%c0_48, %c0_49] : memref<128x1024xbf16, #tpu.memory_space<vmem>>, vector<128x1024xbf16>
    %cst_50 = arith.constant dense<0.000000e+00> : vector<8x1024xf32>
    %115 = tpu.matmul %113, %114, %cst_50 {dimension_numbers = #tpu.dot_dimension_numbers<[1], [0], [0], [1], [0, 0, 1, 1], [], []>} : vector<8x128xbf16>, vector<128x1024xbf16>, vector<8x1024xf32> -> vector<8x1024xf32>
    %116 = vector.extract_strided_slice %115 {offsets = [0, 0], sizes = [8, 256], strides = [1, 1]} : vector<8x1024xf32> to vector<8x256xf32>
    %117 = vector.extract_strided_slice %115 {offsets = [0, 256], sizes = [8, 256], strides = [1, 1]} : vector<8x1024xf32> to vector<8x256xf32>
    %118 = arith.maximumf %116, %117 : vector<8x256xf32>
    %119 = vector.extract_strided_slice %115 {offsets = [0, 512], sizes = [8, 256], strides = [1, 1]} : vector<8x1024xf32> to vector<8x256xf32>
    %120 = vector.extract_strided_slice %115 {offsets = [0, 768], sizes = [8, 256], strides = [1, 1]} : vector<8x1024xf32> to vector<8x256xf32>
    %121 = arith.maximumf %119, %120 : vector<8x256xf32>
    %122 = arith.maximumf %118, %121 : vector<8x256xf32>
    %123 = vector.broadcast %0 : vector<1x256xf32> to vector<8x256xf32>
    %124 = arith.addf %122, %123 : vector<8x256xf32>
    %cst_51 = arith.constant 0.000000e+00 : f32
    %125 = vector.broadcast %cst_51 : f32 to vector<8x256xf32>
    %126 = arith.maximumf %124, %125 : vector<8x256xf32>
    %127 = arith.truncf %126 : vector<8x256xf32> to vector<8x256xbf16>
    %c0_52 = arith.constant 0 : index
    %c1792 = arith.constant 1792 : index
    %128 = vector.load %arg9[%c0_52, %c1792] : memref<8x3328xbf16, #tpu.memory_space<vmem>>, vector<8x256xbf16>
    tpu.vector_store %arg9[%c0_52, %c1792], %127 {strides = array<i32>} : memref<8x3328xbf16, #tpu.memory_space<vmem>>, vector<8x256xbf16>,
    %c0_53 = arith.constant 0 : index
    %c1024_54 = arith.constant 1024 : index
    %129 = vector.load %arg1[%c0_53, %c1024_54] : memref<8x1664xbf16, #tpu.memory_space<vmem>>, vector<8x128xbf16>
    %c0_55 = arith.constant 0 : index
    %c0_56 = arith.constant 0 : index
    %130 = vector.load %arg2[%c0_55, %c0_56] : memref<128x1024xbf16, #tpu.memory_space<vmem>>, vector<128x1024xbf16>
    %cst_57 = arith.constant dense<0.000000e+00> : vector<8x1024xf32>
    %131 = tpu.matmul %129, %130, %cst_57 {dimension_numbers = #tpu.dot_dimension_numbers<[1], [0], [0], [1], [0, 0, 1, 1], [], []>} : vector<8x128xbf16>, vector<128x1024xbf16>, vector<8x1024xf32> -> vector<8x1024xf32>
    %132 = vector.extract_strided_slice %131 {offsets = [0, 0], sizes = [8, 256], strides = [1, 1]} : vector<8x1024xf32> to vector<8x256xf32>
    %133 = vector.extract_strided_slice %131 {offsets = [0, 256], sizes = [8, 256], strides = [1, 1]} : vector<8x1024xf32> to vector<8x256xf32>
    %134 = arith.maximumf %132, %133 : vector<8x256xf32>
    %135 = vector.extract_strided_slice %131 {offsets = [0, 512], sizes = [8, 256], strides = [1, 1]} : vector<8x1024xf32> to vector<8x256xf32>
    %136 = vector.extract_strided_slice %131 {offsets = [0, 768], sizes = [8, 256], strides = [1, 1]} : vector<8x1024xf32> to vector<8x256xf32>
    %137 = arith.maximumf %135, %136 : vector<8x256xf32>
    %138 = arith.maximumf %134, %137 : vector<8x256xf32>
    %139 = vector.broadcast %0 : vector<1x256xf32> to vector<8x256xf32>
    %140 = arith.addf %138, %139 : vector<8x256xf32>
    %cst_58 = arith.constant 0.000000e+00 : f32
    %141 = vector.broadcast %cst_58 : f32 to vector<8x256xf32>
    %142 = arith.maximumf %140, %141 : vector<8x256xf32>
    %143 = arith.truncf %142 : vector<8x256xf32> to vector<8x256xbf16>
    %c0_59 = arith.constant 0 : index
    %c2048 = arith.constant 2048 : index
    %144 = vector.load %arg9[%c0_59, %c2048] : memref<8x3328xbf16, #tpu.memory_space<vmem>>, vector<8x256xbf16>
    tpu.vector_store %arg9[%c0_59, %c2048], %143 {strides = array<i32>} : memref<8x3328xbf16, #tpu.memory_space<vmem>>, vector<8x256xbf16>,
    %c0_60 = arith.constant 0 : index
    %c1152 = arith.constant 1152 : index
    %145 = vector.load %arg1[%c0_60, %c1152] : memref<8x1664xbf16, #tpu.memory_space<vmem>>, vector<8x128xbf16>
    %c0_61 = arith.constant 0 : index
    %c0_62 = arith.constant 0 : index
    %146 = vector.load %arg2[%c0_61, %c0_62] : memref<128x1024xbf16, #tpu.memory_space<vmem>>, vector<128x1024xbf16>
    %cst_63 = arith.constant dense<0.000000e+00> : vector<8x1024xf32>
    %147 = tpu.matmul %145, %146, %cst_63 {dimension_numbers = #tpu.dot_dimension_numbers<[1], [0], [0], [1], [0, 0, 1, 1], [], []>} : vector<8x128xbf16>, vector<128x1024xbf16>, vector<8x1024xf32> -> vector<8x1024xf32>
    %148 = vector.extract_strided_slice %147 {offsets = [0, 0], sizes = [8, 256], strides = [1, 1]} : vector<8x1024xf32> to vector<8x256xf32>
    %149 = vector.extract_strided_slice %147 {offsets = [0, 256], sizes = [8, 256], strides = [1, 1]} : vector<8x1024xf32> to vector<8x256xf32>
    %150 = arith.maximumf %148, %149 : vector<8x256xf32>
    %151 = vector.extract_strided_slice %147 {offsets = [0, 512], sizes = [8, 256], strides = [1, 1]} : vector<8x1024xf32> to vector<8x256xf32>
    %152 = vector.extract_strided_slice %147 {offsets = [0, 768], sizes = [8, 256], strides = [1, 1]} : vector<8x1024xf32> to vector<8x256xf32>
    %153 = arith.maximumf %151, %152 : vector<8x256xf32>
    %154 = arith.maximumf %150, %153 : vector<8x256xf32>
    %155 = vector.broadcast %0 : vector<1x256xf32> to vector<8x256xf32>
    %156 = arith.addf %154, %155 : vector<8x256xf32>
    %cst_64 = arith.constant 0.000000e+00 : f32
    %157 = vector.broadcast %cst_64 : f32 to vector<8x256xf32>
    %158 = arith.maximumf %156, %157 : vector<8x256xf32>
    %159 = arith.truncf %158 : vector<8x256xf32> to vector<8x256xbf16>
    %c0_65 = arith.constant 0 : index
    %c2304 = arith.constant 2304 : index
    %160 = vector.load %arg9[%c0_65, %c2304] : memref<8x3328xbf16, #tpu.memory_space<vmem>>, vector<8x256xbf16>
    tpu.vector_store %arg9[%c0_65, %c2304], %159 {strides = array<i32>} : memref<8x3328xbf16, #tpu.memory_space<vmem>>, vector<8x256xbf16>,
    %c0_66 = arith.constant 0 : index
    %c1280_67 = arith.constant 1280 : index
    %161 = vector.load %arg1[%c0_66, %c1280_67] : memref<8x1664xbf16, #tpu.memory_space<vmem>>, vector<8x128xbf16>
    %c0_68 = arith.constant 0 : index
    %c0_69 = arith.constant 0 : index
    %162 = vector.load %arg2[%c0_68, %c0_69] : memref<128x1024xbf16, #tpu.memory_space<vmem>>, vector<128x1024xbf16>
    %cst_70 = arith.constant dense<0.000000e+00> : vector<8x1024xf32>
    %163 = tpu.matmul %161, %162, %cst_70 {dimension_numbers = #tpu.dot_dimension_numbers<[1], [0], [0], [1], [0, 0, 1, 1], [], []>} : vector<8x128xbf16>, vector<128x1024xbf16>, vector<8x1024xf32> -> vector<8x1024xf32>
    %164 = vector.extract_strided_slice %163 {offsets = [0, 0], sizes = [8, 256], strides = [1, 1]} : vector<8x1024xf32> to vector<8x256xf32>
    %165 = vector.extract_strided_slice %163 {offsets = [0, 256], sizes = [8, 256], strides = [1, 1]} : vector<8x1024xf32> to vector<8x256xf32>
    %166 = arith.maximumf %164, %165 : vector<8x256xf32>
    %167 = vector.extract_strided_slice %163 {offsets = [0, 512], sizes = [8, 256], strides = [1, 1]} : vector<8x1024xf32> to vector<8x256xf32>
    %168 = vector.extract_strided_slice %163 {offsets = [0, 768], sizes = [8, 256], strides = [1, 1]} : vector<8x1024xf32> to vector<8x256xf32>
    %169 = arith.maximumf %167, %168 : vector<8x256xf32>
    %170 = arith.maximumf %166, %169 : vector<8x256xf32>
    %171 = vector.broadcast %0 : vector<1x256xf32> to vector<8x256xf32>
    %172 = arith.addf %170, %171 : vector<8x256xf32>
    %cst_71 = arith.constant 0.000000e+00 : f32
    %173 = vector.broadcast %cst_71 : f32 to vector<8x256xf32>
    %174 = arith.maximumf %172, %173 : vector<8x256xf32>
    %175 = arith.truncf %174 : vector<8x256xf32> to vector<8x256xbf16>
    %c0_72 = arith.constant 0 : index
    %c2560 = arith.constant 2560 : index
    %176 = vector.load %arg9[%c0_72, %c2560] : memref<8x3328xbf16, #tpu.memory_space<vmem>>, vector<8x256xbf16>
    tpu.vector_store %arg9[%c0_72, %c2560], %175 {strides = array<i32>} : memref<8x3328xbf16, #tpu.memory_space<vmem>>, vector<8x256xbf16>,
    %c0_73 = arith.constant 0 : index
    %c1408 = arith.constant 1408 : index
    %177 = vector.load %arg1[%c0_73, %c1408] : memref<8x1664xbf16, #tpu.memory_space<vmem>>, vector<8x128xbf16>
    %c0_74 = arith.constant 0 : index
    %c0_75 = arith.constant 0 : index
    %178 = vector.load %arg2[%c0_74, %c0_75] : memref<128x1024xbf16, #tpu.memory_space<vmem>>, vector<128x1024xbf16>
    %cst_76 = arith.constant dense<0.000000e+00> : vector<8x1024xf32>
    %179 = tpu.matmul %177, %178, %cst_76 {dimension_numbers = #tpu.dot_dimension_numbers<[1], [0], [0], [1], [0, 0, 1, 1], [], []>} : vector<8x128xbf16>, vector<128x1024xbf16>, vector<8x1024xf32> -> vector<8x1024xf32>
    %180 = vector.extract_strided_slice %179 {offsets = [0, 0], sizes = [8, 256], strides = [1, 1]} : vector<8x1024xf32> to vector<8x256xf32>
    %181 = vector.extract_strided_slice %179 {offsets = [0, 256], sizes = [8, 256], strides = [1, 1]} : vector<8x1024xf32> to vector<8x256xf32>
    %182 = arith.maximumf %180, %181 : vector<8x256xf32>
    %183 = vector.extract_strided_slice %179 {offsets = [0, 512], sizes = [8, 256], strides = [1, 1]} : vector<8x1024xf32> to vector<8x256xf32>
    %184 = vector.extract_strided_slice %179 {offsets = [0, 768], sizes = [8, 256], strides = [1, 1]} : vector<8x1024xf32> to vector<8x256xf32>
    %185 = arith.maximumf %183, %184 : vector<8x256xf32>
    %186 = arith.maximumf %182, %185 : vector<8x256xf32>
    %187 = vector.broadcast %0 : vector<1x256xf32> to vector<8x256xf32>
    %188 = arith.addf %186, %187 : vector<8x256xf32>
    %cst_77 = arith.constant 0.000000e+00 : f32
    %189 = vector.broadcast %cst_77 : f32 to vector<8x256xf32>
    %190 = arith.maximumf %188, %189 : vector<8x256xf32>
    %191 = arith.truncf %190 : vector<8x256xf32> to vector<8x256xbf16>
    %c0_78 = arith.constant 0 : index
    %c2816 = arith.constant 2816 : index
    %192 = vector.load %arg9[%c0_78, %c2816] : memref<8x3328xbf16, #tpu.memory_space<vmem>>, vector<8x256xbf16>
    tpu.vector_store %arg9[%c0_78, %c2816], %191 {strides = array<i32>} : memref<8x3328xbf16, #tpu.memory_space<vmem>>, vector<8x256xbf16>,
    %c0_79 = arith.constant 0 : index
    %c1536_80 = arith.constant 1536 : index
    %193 = vector.load %arg1[%c0_79, %c1536_80] : memref<8x1664xbf16, #tpu.memory_space<vmem>>, vector<8x128xbf16>
    %c0_81 = arith.constant 0 : index
    %c0_82 = arith.constant 0 : index
    %194 = vector.load %arg2[%c0_81, %c0_82] : memref<128x1024xbf16, #tpu.memory_space<vmem>>, vector<128x1024xbf16>
    %cst_83 = arith.constant dense<0.000000e+00> : vector<8x1024xf32>
    %195 = tpu.matmul %193, %194, %cst_83 {dimension_numbers = #tpu.dot_dimension_numbers<[1], [0], [0], [1], [0, 0, 1, 1], [], []>} : vector<8x128xbf16>, vector<128x1024xbf16>, vector<8x1024xf32> -> vector<8x1024xf32>
    %196 = vector.extract_strided_slice %195 {offsets = [0, 0], sizes = [8, 256], strides = [1, 1]} : vector<8x1024xf32> to vector<8x256xf32>
    %197 = vector.extract_strided_slice %195 {offsets = [0, 256], sizes = [8, 256], strides = [1, 1]} : vector<8x1024xf32> to vector<8x256xf32>
    %198 = arith.maximumf %196, %197 : vector<8x256xf32>
    %199 = vector.extract_strided_slice %195 {offsets = [0, 512], sizes = [8, 256], strides = [1, 1]} : vector<8x1024xf32> to vector<8x256xf32>
    %200 = vector.extract_strided_slice %195 {offsets = [0, 768], sizes = [8, 256], strides = [1, 1]} : vector<8x1024xf32> to vector<8x256xf32>
    %201 = arith.maximumf %199, %200 : vector<8x256xf32>
    %202 = arith.maximumf %198, %201 : vector<8x256xf32>
    %203 = vector.broadcast %0 : vector<1x256xf32> to vector<8x256xf32>
    %204 = arith.addf %202, %203 : vector<8x256xf32>
    %cst_84 = arith.constant 0.000000e+00 : f32
    %205 = vector.broadcast %cst_84 : f32 to vector<8x256xf32>
    %206 = arith.maximumf %204, %205 : vector<8x256xf32>
    %207 = arith.truncf %206 : vector<8x256xf32> to vector<8x256xbf16>
    %c0_85 = arith.constant 0 : index
    %c3072 = arith.constant 3072 : index
    %208 = vector.load %arg9[%c0_85, %c3072] : memref<8x3328xbf16, #tpu.memory_space<vmem>>, vector<8x256xbf16>
    tpu.vector_store %arg9[%c0_85, %c3072], %207 {strides = array<i32>} : memref<8x3328xbf16, #tpu.memory_space<vmem>>, vector<8x256xbf16>,
    %c0_86 = arith.constant 0 : index
    %c0_87 = arith.constant 0 : index
    %209 = vector.load %arg9[%c0_86, %c0_87] : memref<8x3328xbf16, #tpu.memory_space<vmem>>, vector<8x3328xbf16>
    %c0_88 = arith.constant 0 : index
    %c0_89 = arith.constant 0 : index
    %210 = vector.load %arg4[%c0_88, %c0_89] : memref<3328x128xbf16, #tpu.memory_space<vmem>>, vector<3328x128xbf16>
    %cst_90 = arith.constant dense<0.000000e+00> : vector<8x128xf32>
    %211 = tpu.matmul %209, %210, %cst_90 {dimension_numbers = #tpu.dot_dimension_numbers<[1], [0], [0], [1], [0, 0, 1, 1], [], []>} : vector<8x3328xbf16>, vector<3328x128xbf16>, vector<8x128xf32> -> vector<8x128xf32>
    %c0_91 = arith.constant 0 : index
    %c0_92 = arith.constant 0 : index
    %212 = vector.load %arg5[%c0_91, %c0_92] : memref<1x128xf32, #tpu.memory_space<vmem>>, vector<1x128xf32>
    %213 = vector.broadcast %212 : vector<1x128xf32> to vector<8x128xf32>
    %214 = arith.addf %211, %213 : vector<8x128xf32>
    %cst_93 = arith.constant 0.000000e+00 : f32
    %215 = vector.broadcast %cst_93 : f32 to vector<8x128xf32>
    %216 = arith.maximumf %214, %215 : vector<8x128xf32>
    %217 = arith.truncf %216 : vector<8x128xf32> to vector<8x128xbf16>
    %c0_94 = arith.constant 0 : index
    %c0_95 = arith.constant 0 : index
    %218 = vector.load %arg6[%c0_94, %c0_95] : memref<128x10xbf16, #tpu.memory_space<vmem>>, vector<128x10xbf16>
    %cst_96 = arith.constant dense<0.000000e+00> : vector<8x10xf32>
    %219 = tpu.matmul %217, %218, %cst_96 {dimension_numbers = #tpu.dot_dimension_numbers<[1], [0], [0], [1], [0, 0, 1, 1], [], []>} : vector<8x128xbf16>, vector<128x10xbf16>, vector<8x10xf32> -> vector<8x10xf32>
    %c0_97 = arith.constant 0 : index
    %c0_98 = arith.constant 0 : index
    %220 = vector.load %arg7[%c0_97, %c0_98] : memref<1x10xf32, #tpu.memory_space<vmem>>, vector<1x10xf32>
    %221 = vector.broadcast %220 : vector<1x10xf32> to vector<8x10xf32>
    %222 = arith.addf %219, %221 : vector<8x10xf32>
    %cst_99 = arith.constant dense<0xFF800000> : vector<8xf32>
    %223 = vector.multi_reduction <maximumf>, %222, %cst_99 [1] : vector<8x10xf32> to vector<8xf32>
    %224 = vector.shape_cast %223 : vector<8xf32> to vector<8x1xf32>
    %225 = vector.broadcast %224 : vector<8x1xf32> to vector<8x10xf32>
    %226 = arith.subf %222, %225 : vector<8x10xf32>
    %227 = math.exp %226 : vector<8x10xf32>
    %cst_100 = arith.constant dense<0.000000e+00> : vector<8xf32>
    %228 = vector.multi_reduction <add>, %227, %cst_100 [1] : vector<8x10xf32> to vector<8xf32>
    %229 = vector.shape_cast %228 : vector<8xf32> to vector<8x1xf32>
    %230 = tpu.reciprocal %229 {approx = true} : vector<8x1xf32> -> vector<8x1xf32>
    %231 = vector.broadcast %230 : vector<8x1xf32> to vector<8x10xf32>
    %232 = arith.mulf %227, %231 : vector<8x10xf32>
    %c0_101 = arith.constant 0 : index
    %c0_102 = arith.constant 0 : index
    %233 = vector.load %arg8[%c0_101, %c0_102] : memref<8x10xf32, #tpu.memory_space<vmem>>, vector<8x10xf32>
    tpu.vector_store %arg8[%c0_101, %c0_102], %232 {strides = array<i32>} : memref<8x10xf32, #tpu.memory_space<vmem>>, vector<8x10xf32>,
    return
  }
  func.func @transform_0(%arg0: i32) -> (i32, i32) {
    %c0_i32 = arith.constant 0 : i32
    %c0_i32_0 = arith.constant 0 : i32
    return %arg0, %c0_i32 : i32, i32
  }
  func.func @transform_1(%arg0: i32) -> (i32, i32) {
    %c0_i32 = arith.constant 0 : i32
    %c0_i32_0 = arith.constant 0 : i32
    %c0_i32_1 = arith.constant 0 : i32
    return %c0_i32, %c0_i32_0 : i32, i32
  }
  func.func @transform_2(%arg0: i32) -> (i32, i32) {
    %c0_i32 = arith.constant 0 : i32
    %c0_i32_0 = arith.constant 0 : i32
    %c0_i32_1 = arith.constant 0 : i32
    return %c0_i32, %c0_i32_0 : i32, i32
  }
  func.func @transform_3(%arg0: i32) -> (i32, i32) {
    %c0_i32 = arith.constant 0 : i32
    %c0_i32_0 = arith.constant 0 : i32
    %c0_i32_1 = arith.constant 0 : i32
    return %c0_i32, %c0_i32_0 : i32, i32
  }
  func.func @transform_4(%arg0: i32) -> (i32, i32) {
    %c0_i32 = arith.constant 0 : i32
    %c0_i32_0 = arith.constant 0 : i32
    %c0_i32_1 = arith.constant 0 : i32
    return %c0_i32, %c0_i32_0 : i32, i32
  }
  func.func @transform_5(%arg0: i32) -> (i32, i32) {
    %c0_i32 = arith.constant 0 : i32
    %c0_i32_0 = arith.constant 0 : i32
    %c0_i32_1 = arith.constant 0 : i32
    return %c0_i32, %c0_i32_0 : i32, i32
  }
  func.func @transform_6(%arg0: i32) -> (i32, i32) {
    %c0_i32 = arith.constant 0 : i32
    %c0_i32_0 = arith.constant 0 : i32
    %c0_i32_1 = arith.constant 0 : i32
    return %c0_i32, %c0_i32_0 : i32, i32
  }
  func.func @transform_7(%arg0: i32) -> (i32, i32) {
    %c0_i32 = arith.constant 0 : i32
    %c0_i32_0 = arith.constant 0 : i32
    return %arg0, %c0_i32 : i32, i32
  }
}

</mosaic_0001>

<llo_original>
// kernel: forward.1
$region0: #{forward.1}
  #allocation0 [shape = 'u32[]', space=smem, size = 0x4, offset = 0x4, fixed_abs, tag = 'smem constant byte address 0x4 - core index']
  #allocation1 [shape = 'u32[144,128]{1,0:T(1,128)}', space=vmem, size = 0x12000, scoped, tag = 'internal scratch']
  #allocation2 [shape = 'bf16[8,3328]{1,0:T(8,128)(2,1)}', space=vmem, size = 0xd000, scoped, tag = 'scratch operand']
  %s0 = inlined_call_operand.vmem [shape: bf16[8,1664], index: 0, kind: input, shape index: {}]
  %s1 = inlined_call_operand.vmem [shape: bf16[128,1024], index: 1, kind: input, shape index: {}]
  %s2 = inlined_call_operand.vmem [shape: f32[1,256], index: 2, kind: input, shape index: {}]
  %s3 = inlined_call_operand.hbm [shape: bf16[3328,128], index: 3, kind: input, shape index: {}]
  %s4 = inlined_call_operand.vmem [shape: f32[1,128], index: 4, kind: input, shape index: {}]
  %s5 = inlined_call_operand.vmem [shape: bf16[128,10], index: 5, kind: input, shape index: {}]
  %s6 = inlined_call_operand.vmem [shape: f32[1,10], index: 6, kind: input, shape index: {}]
  %s7 = inlined_call_operand.vmem [shape: f32[8,10], index: 7, kind: output, shape index: {}]
  %s8 = sld [smem:[#allocation0]]
  $region42: #{forward.1} parent=0
    _
  %s10 = ssub.s32 1, %s8
  %s11 = scalar_select 0, %s10, %s8
  $region1: #{forward.1} parent=0
    #allocation3 [shape = 'u8[851968]{0}', space=vmem, size = 0xd0000, scoped, tag = 'input window, operand 3, single buffered']
    #allocation4 [shape = 's32[1]{0}', space=sflag, size = 0x4, scoped, tag = 'scoped memory for forward.1']
    %12 = vsyncpa [#allocation4], 0
    // Predicated region
    $region2: #{forward.1} parent=1 // pred_check
      _
    $region3: #{forward.1} parent=1 // pred_check_branch
      %14 = sbr.rel (0) target = $region5
    $region4: #{forward.1} parent=1 // pred_region
      _
    $region5: #{forward.1} parent=1 // pred_fallthru
      _
    // Predicated region
    $region6: #{forward.1} parent=1 // pred_check
      _
    $region7: #{forward.1} parent=1 // pred_check_branch
      %16 = sbr.rel (0) target = $region9
    $region8: #{forward.1} parent=1 // pred_region
      _
    $region9: #{forward.1} parent=1 // pred_fallthru
      _
    // Predicated region
    $region10: #{forward.1} parent=1 // pred_check
      _
    $region11: #{forward.1} parent=1 // pred_check_branch
      %18 = sbr.rel (0) target = $region13
    $region12: #{forward.1} parent=1 // pred_region
      _
    $region13: #{forward.1} parent=1 // pred_fallthru
      _
    // Predicated region
    $region14: #{forward.1} parent=1 // pred_check
      _
    $region15: #{forward.1} parent=1 // pred_check_branch
      %20 = sbr.rel (0) target = $region17
    $region16: #{forward.1} parent=1 // pred_region
      %s22 = ssub.s32 26624, 26624
      %23 = vsyncadd [#allocation4], %s22
      %s24 = sshll.u32 [#allocation3], 4
      %s25 = int_to_ptr.vmem [resolvable:$true] %s24
      %30 = dma.hbm_to_vmem [thread:$0]  %s3, 26624, %s25, [#allocation4], 64, 64, 4
    $region17: #{forward.1} parent=1 // pred_fallthru
      _
    // Predicated region
    $region18: #{forward.1} parent=1 // pred_check
      _
    $region19: #{forward.1} parent=1 // pred_check_branch
      %32 = sbr.rel (0) target = $region21
    $region20: #{forward.1} parent=1 // pred_region
      _
    $region21: #{forward.1} parent=1 // pred_fallthru
      _
    // Predicated region
    $region22: #{forward.1} parent=1 // pred_check
      _
    $region23: #{forward.1} parent=1 // pred_check_branch
      %34 = sbr.rel (0) target = $region25
    $region24: #{forward.1} parent=1 // pred_region
      _
    $region25: #{forward.1} parent=1 // pred_fallthru
      _
    // Predicated region
    $region26: #{forward.1} parent=1 // pred_check
      _
    $region27: #{forward.1} parent=1 // pred_check_branch
      %36 = sbr.rel (0) target = $region29
    $region28: #{forward.1} parent=1 // pred_region
      _
    $region29: #{forward.1} parent=1 // pred_fallthru
      _
    // Predicated region
    $region30: #{forward.1} parent=1 // pred_check
      _
    $region31: #{forward.1} parent=1 // pred_check_branch
      %38 = sbr.rel (0) target = $region33
    $region32: #{forward.1} parent=1 // pred_region
      %39 = dma.done [#allocation4], 26624
    $region33: #{forward.1} parent=1 // pred_fallthru
      _
    %v41 = vld [vmem:[%s2] sm:$0x3]
    %v42 = vld [vmem:[%s0] sm:$0xf]
    %v43 = vld [vmem:[%s1] sm:$0xff]
    %v44 = vld [vmem:[%s1 + $0x8] sm:$0xff]
    %v45 = vld [vmem:[%s1 + $0x10] sm:$0xff]
    %v46 = vld [vmem:[%s1 + $0x18] sm:$0xff]
    %v47 = vld [vmem:[%s1 + $0x20] sm:$0xff]
    %v48 = vld [vmem:[%s1 + $0x28] sm:$0xff]
    %v49 = vld [vmem:[%s1 + $0x30] sm:$0xff]
    %v50 = vld [vmem:[%s1 + $0x38] sm:$0xff]
    %v51 = vld [vmem:[%s1 + $0x40] sm:$0xff]
    %v52 = vld [vmem:[%s1 + $0x48] sm:$0xff]
    %v53 = vld [vmem:[%s1 + $0x50] sm:$0xff]
    %v54 = vld [vmem:[%s1 + $0x58] sm:$0xff]
    %v55 = vld [vmem:[%s1 + $0x60] sm:$0xff]
    %v56 = vld [vmem:[%s1 + $0x68] sm:$0xff]
    %v57 = vld [vmem:[%s1 + $0x70] sm:$0xff]
    %v58 = vld [vmem:[%s1 + $0x78] sm:$0xff]
    %v59 = vld [vmem:[%s1 + $0x80] sm:$0xff]
    %v60 = vld [vmem:[%s1 + $0x88] sm:$0xff]
    %v61 = vld [vmem:[%s1 + $0x90] sm:$0xff]
    %v62 = vld [vmem:[%s1 + $0x98] sm:$0xff]
    %v63 = vld [vmem:[%s1 + $0xa0] sm:$0xff]
    %v64 = vld [vmem:[%s1 + $0xa8] sm:$0xff]
    %v65 = vld [vmem:[%s1 + $0xb0] sm:$0xff]
    %v66 = vld [vmem:[%s1 + $0xb8] sm:$0xff]
    %v67 = vld [vmem:[%s1 + $0xc0] sm:$0xff]
    %v68 = vld [vmem:[%s1 + $0xc8] sm:$0xff]
    %v69 = vld [vmem:[%s1 + $0xd0] sm:$0xff]
    %v70 = vld [vmem:[%s1 + $0xd8] sm:$0xff]
    %v71 = vld [vmem:[%s1 + $0xe0] sm:$0xff]
    %v72 = vld [vmem:[%s1 + $0xe8] sm:$0xff]
    %v73 = vld [vmem:[%s1 + $0xf0] sm:$0xff]
    %v74 = vld [vmem:[%s1 + $0xf8] sm:$0xff]
    %v75 = vld [vmem:[%s1 + $0x100] sm:$0xff]
    %v76 = vld [vmem:[%s1 + $0x108] sm:$0xff]
    %v77 = vld [vmem:[%s1 + $0x110] sm:$0xff]
    %v78 = vld [vmem:[%s1 + $0x118] sm:$0xff]
    %v79 = vld [vmem:[%s1 + $0x120] sm:$0xff]
    %v80 = vld [vmem:[%s1 + $0x128] sm:$0xff]
    %v81 = vld [vmem:[%s1 + $0x130] sm:$0xff]
    %v82 = vld [vmem:[%s1 + $0x138] sm:$0xff]
    %v83 = vld [vmem:[%s1 + $0x140] sm:$0xff]
    %v84 = vld [vmem:[%s1 + $0x148] sm:$0xff]
    %v85 = vld [vmem:[%s1 + $0x150] sm:$0xff]
    %v86 = vld [vmem:[%s1 + $0x158] sm:$0xff]
    %v87 = vld [vmem:[%s1 + $0x160] sm:$0xff]
    %v88 = vld [vmem:[%s1 + $0x168] sm:$0xff]
    %v89 = vld [vmem:[%s1 + $0x170] sm:$0xff]
    %v90 = vld [vmem:[%s1 + $0x178] sm:$0xff]
    %v91 = vld [vmem:[%s1 + $0x180] sm:$0xff]
    %v92 = vld [vmem:[%s1 + $0x188] sm:$0xff]
    %v93 = vld [vmem:[%s1 + $0x190] sm:$0xff]
    %v94 = vld [vmem:[%s1 + $0x198] sm:$0xff]
    %v95 = vld [vmem:[%s1 + $0x1a0] sm:$0xff]
    %v96 = vld [vmem:[%s1 + $0x1a8] sm:$0xff]
    %v97 = vld [vmem:[%s1 + $0x1b0] sm:$0xff]
    %v98 = vld [vmem:[%s1 + $0x1b8] sm:$0xff]
    %v99 = vld [vmem:[%s1 + $0x1c0] sm:$0xff]
    %v100 = vld [vmem:[%s1 + $0x1c8] sm:$0xff]
    %v101 = vld [vmem:[%s1 + $0x1d0] sm:$0xff]
    %v102 = vld [vmem:[%s1 + $0x1d8] sm:$0xff]
    %v103 = vld [vmem:[%s1 + $0x1e0] sm:$0xff]
    %v104 = vld [vmem:[%s1 + $0x1e8] sm:$0xff]
    %v105 = vld [vmem:[%s1 + $0x1f0] sm:$0xff]
    %v106 = vld [vmem:[%s1 + $0x1f8] sm:$0xff]
    %v171 = vunpack.c.l.b16 %v43
    %v172 = vunpack.c.h.b16 %v43
    %v173 = vunpack.c.l.b16 %v44
    %v174 = vunpack.c.h.b16 %v44
    %v175 = vunpack.c.l.b16 %v45
    %v176 = vunpack.c.h.b16 %v45
    %v177 = vunpack.c.l.b16 %v46
    %v178 = vunpack.c.h.b16 %v46
    %v179 = vunpack.c.l.b16 %v47
    %v180 = vunpack.c.h.b16 %v47
    %v181 = vunpack.c.l.b16 %v48
    %v182 = vunpack.c.h.b16 %v48
    %v183 = vunpack.c.l.b16 %v49
    %v184 = vunpack.c.h.b16 %v49
    %v185 = vunpack.c.l.b16 %v50
    %v186 = vunpack.c.h.b16 %v50
    %v187 = vunpack.c.l.b16 %v51
    %v188 = vunpack.c.h.b16 %v51
    %v189 = vunpack.c.l.b16 %v52
    %v190 = vunpack.c.h.b16 %v52
    %v191 = vunpack.c.l.b16 %v53
    %v192 = vunpack.c.h.b16 %v53
    %v193 = vunpack.c.l.b16 %v54
    %v194 = vunpack.c.h.b16 %v54
    %v195 = vunpack.c.l.b16 %v55
    %v196 = vunpack.c.h.b16 %v55
    %v197 = vunpack.c.l.b16 %v56
    %v198 = vunpack.c.h.b16 %v56
    %v199 = vunpack.c.l.b16 %v57
    %v200 = vunpack.c.h.b16 %v57
    %v201 = vunpack.c.l.b16 %v58
    %v202 = vunpack.c.h.b16 %v58
    %v203 = vunpack.c.l.b16 %v59
    %v204 = vunpack.c.h.b16 %v59
    %v205 = vunpack.c.l.b16 %v60
    %v206 = vunpack.c.h.b16 %v60
    %v207 = vunpack.c.l.b16 %v61
    %v208 = vunpack.c.h.b16 %v61
    %v209 = vunpack.c.l.b16 %v62
    %v210 = vunpack.c.h.b16 %v62
    %v211 = vunpack.c.l.b16 %v63
    %v212 = vunpack.c.h.b16 %v63
    %v213 = vunpack.c.l.b16 %v64
    %v214 = vunpack.c.h.b16 %v64
    %v215 = vunpack.c.l.b16 %v65
    %v216 = vunpack.c.h.b16 %v65
    %v217 = vunpack.c.l.b16 %v66
    %v218 = vunpack.c.h.b16 %v66
    %v219 = vunpack.c.l.b16 %v67
    %v220 = vunpack.c.h.b16 %v67
    %v221 = vunpack.c.l.b16 %v68
    %v222 = vunpack.c.h.b16 %v68
    %v223 = vunpack.c.l.b16 %v69
    %v224 = vunpack.c.h.b16 %v69
    %v225 = vunpack.c.l.b16 %v70
    %v226 = vunpack.c.h.b16 %v70
    %v227 = vunpack.c.l.b16 %v71
    %v228 = vunpack.c.h.b16 %v71
    %v229 = vunpack.c.l.b16 %v72
    %v230 = vunpack.c.h.b16 %v72
    %v231 = vunpack.c.l.b16 %v73
    %v232 = vunpack.c.h.b16 %v73
    %v233 = vunpack.c.l.b16 %v74
    %v234 = vunpack.c.h.b16 %v74
    %v235 = vunpack.c.l.b16 %v75
    %v236 = vunpack.c.h.b16 %v75
    %v237 = vunpack.c.l.b16 %v76
    %v238 = vunpack.c.h.b16 %v76
    %v239 = vunpack.c.l.b16 %v77
    %v240 = vunpack.c.h.b16 %v77
    %v241 = vunpack.c.l.b16 %v78
    %v242 = vunpack.c.h.b16 %v78
    %v243 = vunpack.c.l.b16 %v79
    %v244 = vunpack.c.h.b16 %v79
    %v245 = vunpack.c.l.b16 %v80
    %v246 = vunpack.c.h.b16 %v80
    %v247 = vunpack.c.l.b16 %v81
    %v248 = vunpack.c.h.b16 %v81
    %v249 = vunpack.c.l.b16 %v82
    %v250 = vunpack.c.h.b16 %v82
    %v251 = vunpack.c.l.b16 %v83
    %v252 = vunpack.c.h.b16 %v83
    %v253 = vunpack.c.l.b16 %v84
    %v254 = vunpack.c.h.b16 %v84
    %v255 = vunpack.c.l.b16 %v85
    %v256 = vunpack.c.h.b16 %v85
    %v257 = vunpack.c.l.b16 %v86
    %v258 = vunpack.c.h.b16 %v86
    %v259 = vunpack.c.l.b16 %v87
    %v260 = vunpack.c.h.b16 %v87
    %v261 = vunpack.c.l.b16 %v88
    %v262 = vunpack.c.h.b16 %v88
    %v263 = vunpack.c.l.b16 %v89
    %v264 = vunpack.c.h.b16 %v89
    %v265 = vunpack.c.l.b16 %v90
    %v266 = vunpack.c.h.b16 %v90
    %v267 = vunpack.c.l.b16 %v91
    %v268 = vunpack.c.h.b16 %v91
    %v269 = vunpack.c.l.b16 %v92
    %v270 = vunpack.c.h.b16 %v92
    %v271 = vunpack.c.l.b16 %v93
    %v272 = vunpack.c.h.b16 %v93
    %v273 = vunpack.c.l.b16 %v94
    %v274 = vunpack.c.h.b16 %v94
    %v275 = vunpack.c.l.b16 %v95
    %v276 = vunpack.c.h.b16 %v95
    %v277 = vunpack.c.l.b16 %v96
    %v278 = vunpack.c.h.b16 %v96
    %v279 = vunpack.c.l.b16 %v97
    %v280 = vunpack.c.h.b16 %v97
    %v281 = vunpack.c.l.b16 %v98
    %v282 = vunpack.c.h.b16 %v98
    %v283 = vunpack.c.l.b16 %v99
    %v284 = vunpack.c.h.b16 %v99
    %v285 = vunpack.c.l.b16 %v100
    %v286 = vunpack.c.h.b16 %v100
    %v287 = vunpack.c.l.b16 %v101
    %v288 = vunpack.c.h.b16 %v101
    %v289 = vunpack.c.l.b16 %v102
    %v290 = vunpack.c.h.b16 %v102
    %v291 = vunpack.c.l.b16 %v103
    %v292 = vunpack.c.h.b16 %v103
    %v293 = vunpack.c.l.b16 %v104
    %v294 = vunpack.c.h.b16 %v104
    %v295 = vunpack.c.l.b16 %v105
    %v296 = vunpack.c.h.b16 %v105
    %v297 = vunpack.c.l.b16 %v106
    %v298 = vunpack.c.h.b16 %v106
    %v299 = vpack.c.b16 %v179, %v171
    %v300 = vpack.c.b16 %v180, %v172
    %v301 = vpack.c.b16 %v181, %v173
    %v302 = vpack.c.b16 %v182, %v174
    %v303 = vpack.c.b16 %v183, %v175
    %v304 = vpack.c.b16 %v184, %v176
    %v305 = vpack.c.b16 %v185, %v177
    %v306 = vpack.c.b16 %v186, %v178
    %v307 = vpack.c.b16 %v195, %v187
    %v308 = vpack.c.b16 %v196, %v188
    %v309 = vpack.c.b16 %v197, %v189
    %v310 = vpack.c.b16 %v198, %v190
    %v311 = vpack.c.b16 %v199, %v191
    %v312 = vpack.c.b16 %v200, %v192
    %v313 = vpack.c.b16 %v201, %v193
    %v314 = vpack.c.b16 %v202, %v194
    %v315 = vpack.c.b16 %v211, %v203
    %v316 = vpack.c.b16 %v212, %v204
    %v317 = vpack.c.b16 %v213, %v205
    %v318 = vpack.c.b16 %v214, %v206
    %v319 = vpack.c.b16 %v215, %v207
    %v320 = vpack.c.b16 %v216, %v208
    %v321 = vpack.c.b16 %v217, %v209
    %v322 = vpack.c.b16 %v218, %v210
    %v323 = vpack.c.b16 %v227, %v219
    %v324 = vpack.c.b16 %v228, %v220
    %v325 = vpack.c.b16 %v229, %v221
    %v326 = vpack.c.b16 %v230, %v222
    %v327 = vpack.c.b16 %v231, %v223
    %v328 = vpack.c.b16 %v232, %v224
    %v329 = vpack.c.b16 %v233, %v225
    %v330 = vpack.c.b16 %v234, %v226
    %v331 = vpack.c.b16 %v243, %v235
    %v332 = vpack.c.b16 %v244, %v236
    %v333 = vpack.c.b16 %v245, %v237
    %v334 = vpack.c.b16 %v246, %v238
    %v335 = vpack.c.b16 %v247, %v239
    %v336 = vpack.c.b16 %v248, %v240
    %v337 = vpack.c.b16 %v249, %v241
    %v338 = vpack.c.b16 %v250, %v242
    %v339 = vpack.c.b16 %v259, %v251
    %v340 = vpack.c.b16 %v260, %v252
    %v341 = vpack.c.b16 %v261, %v253
    %v342 = vpack.c.b16 %v262, %v254
    %v343 = vpack.c.b16 %v263, %v255
    %v344 = vpack.c.b16 %v264, %v256
    %v345 = vpack.c.b16 %v265, %v257
    %v346 = vpack.c.b16 %v266, %v258
    %v347 = vpack.c.b16 %v275, %v267
    %v348 = vpack.c.b16 %v276, %v268
    %v349 = vpack.c.b16 %v277, %v269
    %v350 = vpack.c.b16 %v278, %v270
    %v351 = vpack.c.b16 %v279, %v271
    %v352 = vpack.c.b16 %v280, %v272
    %v353 = vpack.c.b16 %v281, %v273
    %v354 = vpack.c.b16 %v282, %v274
    %v355 = vpack.c.b16 %v291, %v283
    %v356 = vpack.c.b16 %v292, %v284
    %v357 = vpack.c.b16 %v293, %v285
    %v358 = vpack.c.b16 %v294, %v286
    %v359 = vpack.c.b16 %v295, %v287
    %v360 = vpack.c.b16 %v296, %v288
    %v361 = vpack.c.b16 %v297, %v289
    %v362 = vpack.c.b16 %v298, %v290
    %427 = vmatprep.subr.bf16.mxu0 %v356
    %428 = vmatpush1.bf16.msra.mxu0 %v355
    %429 = vmatprep.subr.bf16.mxu0 %v348
    %430 = vmatpush1.bf16.msra.mxu0 %v347
    %431 = vmatprep.subr.bf16.mxu0 %v340
    %432 = vmatpush1.bf16.msra.mxu0 %v339
    %433 = vmatprep.subr.bf16.mxu0 %v332
    %434 = vmatpush1.bf16.msra.mxu0 %v331
    %435 = vmatprep.subr.bf16.mxu0 %v324
    %436 = vmatpush1.bf16.msra.mxu0 %v323
    %437 = vmatprep.subr.bf16.mxu0 %v316
    %438 = vmatpush1.bf16.msra.mxu0 %v315
    %439 = vmatprep.subr.bf16.mxu0 %v308
    %440 = vmatpush1.bf16.msra.mxu0 %v307
    %441 = vmatprep.subr.bf16.mxu0 %v300
    %442 = vmatpush1.bf16.msra.mxu0 %v299
    %443 = vmatprep.subr.bf16.mxu0 0
    %444 = vmatpush2.bf16.msra.mxu0 0
    %445 = vmatprep.subr.bf16.mxu0 0
    %446 = vmatpush2.bf16.msra.mxu0 0
    %447 = vmatprep.subr.bf16.mxu0 0
    %448 = vmatpush2.bf16.msra.mxu0 0
    %449 = vmatprep.subr.bf16.mxu0 0
    %450 = vmatpush2.bf16.msra.mxu0 0
    %451 = vmatprep.subr.bf16.mxu0 0
    %452 = vmatpush2.bf16.msra.mxu0 0
    %453 = vmatprep.subr.bf16.mxu0 0
    %454 = vmatpush2.bf16.msra.mxu0 0
    %455 = vmatprep.subr.bf16.mxu0 0
    %456 = vmatpush2.bf16.msra.mxu0 0
    %457 = vmatprep.subr.bf16.mxu0 0
    %458 = vmatpush2.bf16.msra.mxu0 0
    %459 = vmatprep.mubr.bf16.mxu0 0
    %460 = vmatmul.mubr.bf16.gmra.mxu0 %v42
    %v461 = vpop.f32.mrf.mxu0
    %v462 = vadd.f32 0.0, %v461
    %v463 = vpop.f32.mrf.mxu0
    %v464 = vadd.f32 0.0, %v463
    %v465 = vpop.f32.mrf.mxu0
    %v466 = vpop.f32.mrf.mxu0
    %467 = vdwg.mxu0
    %468 = vmatprep.subr.bf16.mxu0 %v358
    %469 = vmatpush1.bf16.msra.mxu0 %v357
    %470 = vmatprep.subr.bf16.mxu0 %v350
    %471 = vmatpush1.bf16.msra.mxu0 %v349
    %472 = vmatprep.subr.bf16.mxu0 %v342
    %473 = vmatpush1.bf16.msra.mxu0 %v341
    %474 = vmatprep.subr.bf16.mxu0 %v334
    %475 = vmatpush1.bf16.msra.mxu0 %v333
    %476 = vmatprep.subr.bf16.mxu0 %v326
    %477 = vmatpush1.bf16.msra.mxu0 %v325
    %478 = vmatprep.subr.bf16.mxu0 %v318
    %479 = vmatpush1.bf16.msra.mxu0 %v317
    %480 = vmatprep.subr.bf16.mxu0 %v310
    %481 = vmatpush1.bf16.msra.mxu0 %v309
    %482 = vmatprep.subr.bf16.mxu0 %v302
    %483 = vmatpush1.bf16.msra.mxu0 %v301
    %484 = vmatprep.subr.bf16.mxu0 0
    %485 = vmatpush2.bf16.msra.mxu0 0
    %486 = vmatprep.subr.bf16.mxu0 0
    %487 = vmatpush2.bf16.msra.mxu0 0
    %488 = vmatprep.subr.bf16.mxu0 0
    %489 = vmatpush2.bf16.msra.mxu0 0
    %490 = vmatprep.subr.bf16.mxu0 0
    %491 = vmatpush2.bf16.msra.mxu0 0
    %492 = vmatprep.subr.bf16.mxu0 0
    %493 = vmatpush2.bf16.msra.mxu0 0
    %494 = vmatprep.subr.bf16.mxu0 0
    %495 = vmatpush2.bf16.msra.mxu0 0
    %496 = vmatprep.subr.bf16.mxu0 0
    %497 = vmatpush2.bf16.msra.mxu0 0
    %498 = vmatprep.subr.bf16.mxu0 0
    %499 = vmatpush2.bf16.msra.mxu0 0
    %500 = vmatprep.mubr.bf16.mxu0 0
    %501 = vmatmul.mubr.bf16.gmra.mxu0 %v42
    %v502 = vpop.f32.mrf.mxu0
    %v503 = vadd.f32 0.0, %v502
    %v504 = vpop.f32.mrf.mxu0
    %v505 = vadd.f32 0.0, %v504
    %v506 = vpop.f32.mrf.mxu0
    %v507 = vpop.f32.mrf.mxu0
    %508 = vdwg.mxu0
    %509 = vmatprep.subr.bf16.mxu0 %v360
    %510 = vmatpush1.bf16.msra.mxu0 %v359
    %511 = vmatprep.subr.bf16.mxu0 %v352
    %512 = vmatpush1.bf16.msra.mxu0 %v351
    %513 = vmatprep.subr.bf16.mxu0 %v344
    %514 = vmatpush1.bf16.msra.mxu0 %v343
    %515 = vmatprep.subr.bf16.mxu0 %v336
    %516 = vmatpush1.bf16.msra.mxu0 %v335
    %517 = vmatprep.subr.bf16.mxu0 %v328
    %518 = vmatpush1.bf16.msra.mxu0 %v327
    %519 = vmatprep.subr.bf16.mxu0 %v320
    %520 = vmatpush1.bf16.msra.mxu0 %v319
    %521 = vmatprep.subr.bf16.mxu0 %v312
    %522 = vmatpush1.bf16.msra.mxu0 %v311
    %523 = vmatprep.subr.bf16.mxu0 %v304
    %524 = vmatpush1.bf16.msra.mxu0 %v303
    %525 = vmatprep.subr.bf16.mxu0 0
    %526 = vmatpush2.bf16.msra.mxu0 0
    %527 = vmatprep.subr.bf16.mxu0 0
    %528 = vmatpush2.bf16.msra.mxu0 0
    %529 = vmatprep.subr.bf16.mxu0 0
    %530 = vmatpush2.bf16.msra.mxu0 0
    %531 = vmatprep.subr.bf16.mxu0 0
    %532 = vmatpush2.bf16.msra.mxu0 0
    %533 = vmatprep.subr.bf16.mxu0 0
    %534 = vmatpush2.bf16.msra.mxu0 0
    %535 = vmatprep.subr.bf16.mxu0 0
    %536 = vmatpush2.bf16.msra.mxu0 0
    %537 = vmatprep.subr.bf16.mxu0 0
    %538 = vmatpush2.bf16.msra.mxu0 0
    %539 = vmatprep.subr.bf16.mxu0 0
    %540 = vmatpush2.bf16.msra.mxu0 0
    %541 = vmatprep.mubr.bf16.mxu0 0
    %542 = vmatmul.mubr.bf16.gmra.mxu0 %v42
    %v543 = vpop.f32.mrf.mxu0
    %v544 = vadd.f32 0.0, %v543
    %v545 = vpop.f32.mrf.mxu0
    %v546 = vadd.f32 0.0, %v545
    %v547 = vpop.f32.mrf.mxu0
    %v548 = vpop.f32.mrf.mxu0
    %549 = vdwg.mxu0
    %550 = vmatprep.subr.bf16.mxu0 %v362
    %551 = vmatpush1.bf16.msra.mxu0 %v361
    %552 = vmatprep.subr.bf16.mxu0 %v354
    %553 = vmatpush1.bf16.msra.mxu0 %v353
    %554 = vmatprep.subr.bf16.mxu0 %v346
    %555 = vmatpush1.bf16.msra.mxu0 %v345
    %556 = vmatprep.subr.bf16.mxu0 %v338
    %557 = vmatpush1.bf16.msra.mxu0 %v337
    %558 = vmatprep.subr.bf16.mxu0 %v330
    %559 = vmatpush1.bf16.msra.mxu0 %v329
    %560 = vmatprep.subr.bf16.mxu0 %v322
    %561 = vmatpush1.bf16.msra.mxu0 %v321
    %562 = vmatprep.subr.bf16.mxu0 %v314
    %563 = vmatpush1.bf16.msra.mxu0 %v313
    %564 = vmatprep.subr.bf16.mxu0 %v306
    %565 = vmatpush1.bf16.msra.mxu0 %v305
    %566 = vmatprep.subr.bf16.mxu0 0
    %567 = vmatpush2.bf16.msra.mxu0 0
    %568 = vmatprep.subr.bf16.mxu0 0
    %569 = vmatpush2.bf16.msra.mxu0 0
    %570 = vmatprep.subr.bf16.mxu0 0
    %571 = vmatpush2.bf16.msra.mxu0 0
    %572 = vmatprep.subr.bf16.mxu0 0
    %573 = vmatpush2.bf16.msra.mxu0 0
    %574 = vmatprep.subr.bf16.mxu0 0
    %575 = vmatpush2.bf16.msra.mxu0 0
    %576 = vmatprep.subr.bf16.mxu0 0
    %577 = vmatpush2.bf16.msra.mxu0 0
    %578 = vmatprep.subr.bf16.mxu0 0
    %579 = vmatpush2.bf16.msra.mxu0 0
    %580 = vmatprep.subr.bf16.mxu0 0
    %581 = vmatpush2.bf16.msra.mxu0 0
    %582 = vmatprep.mubr.bf16.mxu0 0
    %583 = vmatmul.mubr.bf16.gmra.mxu0 %v42
    %v584 = vpop.f32.mrf.mxu0
    %v585 = vadd.f32 0.0, %v584
    %v586 = vpop.f32.mrf.mxu0
    %v587 = vadd.f32 0.0, %v586
    %v588 = vpop.f32.mrf.mxu0
    %v589 = vpop.f32.mrf.mxu0
    %590 = vdwg.mxu0
    %v591 = vmax.f32 %v462, %v503
    %v592 = vmax.f32 %v464, %v505
    %v593 = vmax.f32 %v544, %v585
    %v594 = vmax.f32 %v546, %v587
    %v595 = vmax.f32 %v591, %v593
    %v596 = vmax.f32 %v592, %v594
    %v598 = vlaneseq
    %v599 = vshrl.u32 %v598, 7
    %v600 = vsub.s32 0, %v599
    %v601 = vrot.slane %v41, %v600
    %v602 = vlaneseq
    %v603 = vshrl.u32 %v602, 7
    %v604 = vsub.s32 1, %v603
    %v605 = vrot.slane %v41, %v604
    %v608 = vadd.f32 %v595, %v601
    %v609 = vadd.f32 %v596, %v605
    %v610 = vmax.f32 %v608, 0.0
    %v611 = vmax.f32 %v609, 0.0
    %v612 = vpack.c.bf16 %v610, %v610
    %v613 = vpack.c.bf16 %v611, %v611
    %v616 = vunpack.c.l.b16 %v612
    %v617 = vunpack.c.l.b16 %v613
    %v618 = vpack.c.b16 %v617, %v616
    %620 = vst [vmem:[#allocation2] sm:$0xff] %v618
    %v621 = vld [vmem:[%s0 + $0x4] sm:$0xf]
    %v622 = vld [vmem:[%s1] sm:$0xff]
    %v623 = vld [vmem:[%s1 + $0x8] sm:$0xff]
    %v624 = vld [vmem:[%s1 + $0x10] sm:$0xff]
    %v625 = vld [vmem:[%s1 + $0x18] sm:$0xff]
    %v626 = vld [vmem:[%s1 + $0x20] sm:$0xff]
    %v627 = vld [vmem:[%s1 + $0x28] sm:$0xff]
    %v628 = vld [vmem:[%s1 + $0x30] sm:$0xff]
    %v629 = vld [vmem:[%s1 + $0x38] sm:$0xff]
    %v630 = vld [vmem:[%s1 + $0x40] sm:$0xff]
    %v631 = vld [vmem:[%s1 + $0x48] sm:$0xff]
    %v632 = vld [vmem:[%s1 + $0x50] sm:$0xff]
    %v633 = vld [vmem:[%s1 + $0x58] sm:$0xff]
    %v634 = vld [vmem:[%s1 + $0x60] sm:$0xff]
    %v635 = vld [vmem:[%s1 + $0x68] sm:$0xff]
    %v636 = vld [vmem:[%s1 + $0x70] sm:$0xff]
    %v637 = vld [vmem:[%s1 + $0x78] sm:$0xff]
    %v638 = vld [vmem:[%s1 + $0x80] sm:$0xff]
    %v639 = vld [vmem:[%s1 + $0x88] sm:$0xff]
    %v640 = vld [vmem:[%s1 + $0x90] sm:$0xff]
    %v641 = vld [vmem:[%s1 + $0x98] sm:$0xff]
    %v642 = vld [vmem:[%s1 + $0xa0] sm:$0xff]
    %v643 = vld [vmem:[%s1 + $0xa8] sm:$0xff]
    %v644 = vld [vmem:[%s1 + $0xb0] sm:$0xff]
    %v645 = vld [vmem:[%s1 + $0xb8] sm:$0xff]
    %v646 = vld [vmem:[%s1 + $0xc0] sm:$0xff]
    %v647 = vld [vmem:[%s1 + $0xc8] sm:$0xff]
    %v648 = vld [vmem:[%s1 + $0xd0] sm:$0xff]
    %v649 = vld [vmem:[%s1 + $0xd8] sm:$0xff]
    %v650 = vld [vmem:[%s1 + $0xe0] sm:$0xff]
    %v651 = vld [vmem:[%s1 + $0xe8] sm:$0xff]
    %v652 = vld [vmem:[%s1 + $0xf0] sm:$0xff]
    %v653 = vld [vmem:[%s1 + $0xf8] sm:$0xff]
    %v654 = vld [vmem:[%s1 + $0x100] sm:$0xff]
    %v655 = vld [vmem:[%s1 + $0x108] sm:$0xff]
    %v656 = vld [vmem:[%s1 + $0x110] sm:$0xff]
    %v657 = vld [vmem:[%s1 + $0x118] sm:$0xff]
    %v658 = vld [vmem:[%s1 + $0x120] sm:$0xff]
    %v659 = vld [vmem:[%s1 + $0x128] sm:$0xff]
    %v660 = vld [vmem:[%s1 + $0x130] sm:$0xff]
    %v661 = vld [vmem:[%s1 + $0x138] sm:$0xff]
    %v662 = vld [vmem:[%s1 + $0x140] sm:$0xff]
    %v663 = vld [vmem:[%s1 + $0x148] sm:$0xff]
    %v664 = vld [vmem:[%s1 + $0x150] sm:$0xff]
    %v665 = vld [vmem:[%s1 + $0x158] sm:$0xff]
    %v666 = vld [vmem:[%s1 + $0x160] sm:$0xff]
    %v667 = vld [vmem:[%s1 + $0x168] sm:$0xff]
    %v668 = vld [vmem:[%s1 + $0x170] sm:$0xff]
    %v669 = vld [vmem:[%s1 + $0x178] sm:$0xff]
    %v670 = vld [vmem:[%s1 + $0x180] sm:$0xff]
    %v671 = vld [vmem:[%s1 + $0x188] sm:$0xff]
    %v672 = vld [vmem:[%s1 + $0x190] sm:$0xff]
    %v673 = vld [vmem:[%s1 + $0x198] sm:$0xff]
    %v674 = vld [vmem:[%s1 + $0x1a0] sm:$0xff]
    %v675 = vld [vmem:[%s1 + $0x1a8] sm:$0xff]
    %v676 = vld [vmem:[%s1 + $0x1b0] sm:$0xff]
    %v677 = vld [vmem:[%s1 + $0x1b8] sm:$0xff]
    %v678 = vld [vmem:[%s1 + $0x1c0] sm:$0xff]
    %v679 = vld [vmem:[%s1 + $0x1c8] sm:$0xff]
    %v680 = vld [vmem:[%s1 + $0x1d0] sm:$0xff]
    %v681 = vld [vmem:[%s1 + $0x1d8] sm:$0xff]
    %v682 = vld [vmem:[%s1 + $0x1e0] sm:$0xff]
    %v683 = vld [vmem:[%s1 + $0x1e8] sm:$0xff]
    %v684 = vld [vmem:[%s1 + $0x1f0] sm:$0xff]
    %v685 = vld [vmem:[%s1 + $0x1f8] sm:$0xff]
    %v750 = vunpack.c.l.b16 %v622
    %v751 = vunpack.c.h.b16 %v622
    %v752 = vunpack.c.l.b16 %v623
    %v753 = vunpack.c.h.b16 %v623
    %v754 = vunpack.c.l.b16 %v624
    %v755 = vunpack.c.h.b16 %v624
    %v756 = vunpack.c.l.b16 %v625
    %v757 = vunpack.c.h.b16 %v625
    %v758 = vunpack.c.l.b16 %v626
    %v759 = vunpack.c.h.b16 %v626
    %v760 = vunpack.c.l.b16 %v627
    %v761 = vunpack.c.h.b16 %v627
    %v762 = vunpack.c.l.b16 %v628
    %v763 = vunpack.c.h.b16 %v628
    %v764 = vunpack.c.l.b16 %v629
    %v765 = vunpack.c.h.b16 %v629
    %v766 = vunpack.c.l.b16 %v630
    %v767 = vunpack.c.h.b16 %v630
    %v768 = vunpack.c.l.b16 %v631
    %v769 = vunpack.c.h.b16 %v631
    %v770 = vunpack.c.l.b16 %v632
    %v771 = vunpack.c.h.b16 %v632
    %v772 = vunpack.c.l.b16 %v633
    %v773 = vunpack.c.h.b16 %v633
    %v774 = vunpack.c.l.b16 %v634
    %v775 = vunpack.c.h.b16 %v634
    %v776 = vunpack.c.l.b16 %v635
    %v777 = vunpack.c.h.b16 %v635
    %v778 = vunpack.c.l.b16 %v636
    %v779 = vunpack.c.h.b16 %v636
    %v780 = vunpack.c.l.b16 %v637
    %v781 = vunpack.c.h.b16 %v637
    %v782 = vunpack.c.l.b16 %v638
    %v783 = vunpack.c.h.b16 %v638
    %v784 = vunpack.c.l.b16 %v639
    %v785 = vunpack.c.h.b16 %v639
    %v786 = vunpack.c.l.b16 %v640
    %v787 = vunpack.c.h.b16 %v640
    %v788 = vunpack.c.l.b16 %v641
    %v789 = vunpack.c.h.b16 %v641
    %v790 = vunpack.c.l.b16 %v642
    %v791 = vunpack.c.h.b16 %v642
    %v792 = vunpack.c.l.b16 %v643
    %v793 = vunpack.c.h.b16 %v643
    %v794 = vunpack.c.l.b16 %v644
    %v795 = vunpack.c.h.b16 %v644
    %v796 = vunpack.c.l.b16 %v645
    %v797 = vunpack.c.h.b16 %v645
    %v798 = vunpack.c.l.b16 %v646
    %v799 = vunpack.c.h.b16 %v646
    %v800 = vunpack.c.l.b16 %v647
    %v801 = vunpack.c.h.b16 %v647
    %v802 = vunpack.c.l.b16 %v648
    %v803 = vunpack.c.h.b16 %v648
    %v804 = vunpack.c.l.b16 %v649
    %v805 = vunpack.c.h.b16 %v649
    %v806 = vunpack.c.l.b16 %v650
    %v807 = vunpack.c.h.b16 %v650
    %v808 = vunpack.c.l.b16 %v651
    %v809 = vunpack.c.h.b16 %v651
    %v810 = vunpack.c.l.b16 %v652
    %v811 = vunpack.c.h.b16 %v652
    %v812 = vunpack.c.l.b16 %v653
    %v813 = vunpack.c.h.b16 %v653
    %v814 = vunpack.c.l.b16 %v654
    %v815 = vunpack.c.h.b16 %v654
    %v816 = vunpack.c.l.b16 %v655
    %v817 = vunpack.c.h.b16 %v655
    %v818 = vunpack.c.l.b16 %v656
    %v819 = vunpack.c.h.b16 %v656
    %v820 = vunpack.c.l.b16 %v657
    %v821 = vunpack.c.h.b16 %v657
    %v822 = vunpack.c.l.b16 %v658
    %v823 = vunpack.c.h.b16 %v658
    %v824 = vunpack.c.l.b16 %v659
    %v825 = vunpack.c.h.b16 %v659
    %v826 = vunpack.c.l.b16 %v660
    %v827 = vunpack.c.h.b16 %v660
    %v828 = vunpack.c.l.b16 %v661
    %v829 = vunpack.c.h.b16 %v661
    %v830 = vunpack.c.l.b16 %v662
    %v831 = vunpack.c.h.b16 %v662
    %v832 = vunpack.c.l.b16 %v663
    %v833 = vunpack.c.h.b16 %v663
    %v834 = vunpack.c.l.b16 %v664
    %v835 = vunpack.c.h.b16 %v664
    %v836 = vunpack.c.l.b16 %v665
    %v837 = vunpack.c.h.b16 %v665
    %v838 = vunpack.c.l.b16 %v666
    %v839 = vunpack.c.h.b16 %v666
    %v840 = vunpack.c.l.b16 %v667
    %v841 = vunpack.c.h.b16 %v667
    %v842 = vunpack.c.l.b16 %v668
    %v843 = vunpack.c.h.b16 %v668
    %v844 = vunpack.c.l.b16 %v669
    %v845 = vunpack.c.h.b16 %v669
    %v846 = vunpack.c.l.b16 %v670
    %v847 = vunpack.c.h.b16 %v670
    %v848 = vunpack.c.l.b16 %v671
    %v849 = vunpack.c.h.b16 %v671
    %v850 = vunpack.c.l.b16 %v672
    %v851 = vunpack.c.h.b16 %v672
    %v852 = vunpack.c.l.b16 %v673
    %v853 = vunpack.c.h.b16 %v673
    %v854 = vunpack.c.l.b16 %v674
    %v855 = vunpack.c.h.b16 %v674
    %v856 = vunpack.c.l.b16 %v675
    %v857 = vunpack.c.h.b16 %v675
    %v858 = vunpack.c.l.b16 %v676
    %v859 = vunpack.c.h.b16 %v676
    %v860 = vunpack.c.l.b16 %v677
    %v861 = vunpack.c.h.b16 %v677
    %v862 = vunpack.c.l.b16 %v678
    %v863 = vunpack.c.h.b16 %v678
    %v864 = vunpack.c.l.b16 %v679
    %v865 = vunpack.c.h.b16 %v679
    %v866 = vunpack.c.l.b16 %v680
    %v867 = vunpack.c.h.b16 %v680
    %v868 = vunpack.c.l.b16 %v681
    %v869 = vunpack.c.h.b16 %v681
    %v870 = vunpack.c.l.b16 %v682
    %v871 = vunpack.c.h.b16 %v682
    %v872 = vunpack.c.l.b16 %v683
    %v873 = vunpack.c.h.b16 %v683
    %v874 = vunpack.c.l.b16 %v684
    %v875 = vunpack.c.h.b16 %v684
    %v876 = vunpack.c.l.b16 %v685
    %v877 = vunpack.c.h.b16 %v685
    %v878 = vpack.c.b16 %v758, %v750
    %v879 = vpack.c.b16 %v759, %v751
    %v880 = vpack.c.b16 %v760, %v752
    %v881 = vpack.c.b16 %v761, %v753
    %v882 = vpack.c.b16 %v762, %v754
    %v883 = vpack.c.b16 %v763, %v755
    %v884 = vpack.c.b16 %v764, %v756
    %v885 = vpack.c.b16 %v765, %v757
    %v886 = vpack.c.b16 %v774, %v766
    %v887 = vpack.c.b16 %v775, %v767
    %v888 = vpack.c.b16 %v776, %v768
    %v889 = vpack.c.b16 %v777, %v769
    %v890 = vpack.c.b16 %v778, %v770
    %v891 = vpack.c.b16 %v779, %v771
    %v892 = vpack.c.b16 %v780, %v772
    %v893 = vpack.c.b16 %v781, %v773
    %v894 = vpack.c.b16 %v790, %v782
    %v895 = vpack.c.b16 %v791, %v783
    %v896 = vpack.c.b16 %v792, %v784
    %v897 = vpack.c.b16 %v793, %v785
    %v898 = vpack.c.b16 %v794, %v786
    %v899 = vpack.c.b16 %v795, %v787
    %v900 = vpack.c.b16 %v796, %v788
    %v901 = vpack.c.b16 %v797, %v789
    %v902 = vpack.c.b16 %v806, %v798
    %v903 = vpack.c.b16 %v807, %v799
    %v904 = vpack.c.b16 %v808, %v800
    %v905 = vpack.c.b16 %v809, %v801
    %v906 = vpack.c.b16 %v810, %v802
    %v907 = vpack.c.b16 %v811, %v803
    %v908 = vpack.c.b16 %v812, %v804
    %v909 = vpack.c.b16 %v813, %v805
    %v910 = vpack.c.b16 %v822, %v814
    %v911 = vpack.c.b16 %v823, %v815
    %v912 = vpack.c.b16 %v824, %v816
    %v913 = vpack.c.b16 %v825, %v817
    %v914 = vpack.c.b16 %v826, %v818
    %v915 = vpack.c.b16 %v827, %v819
    %v916 = vpack.c.b16 %v828, %v820
    %v917 = vpack.c.b16 %v829, %v821
    %v918 = vpack.c.b16 %v838, %v830
    %v919 = vpack.c.b16 %v839, %v831
    %v920 = vpack.c.b16 %v840, %v832
    %v921 = vpack.c.b16 %v841, %v833
    %v922 = vpack.c.b16 %v842, %v834
    %v923 = vpack.c.b16 %v843, %v835
    %v924 = vpack.c.b16 %v844, %v836
    %v925 = vpack.c.b16 %v845, %v837
    %v926 = vpack.c.b16 %v854, %v846
    %v927 = vpack.c.b16 %v855, %v847
    %v928 = vpack.c.b16 %v856, %v848
    %v929 = vpack.c.b16 %v857, %v849
    %v930 = vpack.c.b16 %v858, %v850
    %v931 = vpack.c.b16 %v859, %v851
    %v932 = vpack.c.b16 %v860, %v852
    %v933 = vpack.c.b16 %v861, %v853
    %v934 = vpack.c.b16 %v870, %v862
    %v935 = vpack.c.b16 %v871, %v863
    %v936 = vpack.c.b16 %v872, %v864
    %v937 = vpack.c.b16 %v873, %v865
    %v938 = vpack.c.b16 %v874, %v866
    %v939 = vpack.c.b16 %v875, %v867
    %v940 = vpack.c.b16 %v876, %v868
    %v941 = vpack.c.b16 %v877, %v869
    %1006 = vmatprep.subr.bf16.mxu0 %v935
    %1007 = vmatpush1.bf16.msra.mxu0 %v934
    %1008 = vmatprep.subr.bf16.mxu0 %v927
    %1009 = vmatpush1.bf16.msra.mxu0 %v926
    %1010 = vmatprep.subr.bf16.mxu0 %v919
    %1011 = vmatpush1.bf16.msra.mxu0 %v918
    %1012 = vmatprep.subr.bf16.mxu0 %v911
    %1013 = vmatpush1.bf16.msra.mxu0 %v910
    %1014 = vmatprep.subr.bf16.mxu0 %v903
    %1015 = vmatpush1.bf16.msra.mxu0 %v902
    %1016 = vmatprep.subr.bf16.mxu0 %v895
    %1017 = vmatpush1.bf16.msra.mxu0 %v894
    %1018 = vmatprep.subr.bf16.mxu0 %v887
    %1019 = vmatpush1.bf16.msra.mxu0 %v886
    %1020 = vmatprep.subr.bf16.mxu0 %v879
    %1021 = vmatpush1.bf16.msra.mxu0 %v878
    %1022 = vmatprep.subr.bf16.mxu0 0
    %1023 = vmatpush2.bf16.msra.mxu0 0
    %1024 = vmatprep.subr.bf16.mxu0 0
    %1025 = vmatpush2.bf16.msra.mxu0 0
    %1026 = vmatprep.subr.bf16.mxu0 0
    %1027 = vmatpush2.bf16.msra.mxu0 0
    %1028 = vmatprep.subr.bf16.mxu0 0
    %1029 = vmatpush2.bf16.msra.mxu0 0
    %1030 = vmatprep.subr.bf16.mxu0 0
    %1031 = vmatpush2.bf16.msra.mxu0 0
    %1032 = vmatprep.subr.bf16.mxu0 0
    %1033 = vmatpush2.bf16.msra.mxu0 0
    %1034 = vmatprep.subr.bf16.mxu0 0
    %1035 = vmatpush2.bf16.msra.mxu0 0
    %1036 = vmatprep.subr.bf16.mxu0 0
    %1037 = vmatpush2.bf16.msra.mxu0 0
    %1038 = vmatprep.mubr.bf16.mxu0 0
    %1039 = vmatmul.mubr.bf16.gmra.mxu0 %v621
    %v1040 = vpop.f32.mrf.mxu0
    %v1041 = vadd.f32 0.0, %v1040
    %v1042 = vpop.f32.mrf.mxu0
    %v1043 = vadd.f32 0.0, %v1042
    %v1044 = vpop.f32.mrf.mxu0
    %v1045 = vpop.f32.mrf.mxu0
    %1046 = vdwg.mxu0
    %1047 = vmatprep.subr.bf16.mxu0 %v937
    %1048 = vmatpush1.bf16.msra.mxu0 %v936
    %1049 = vmatprep.subr.bf16.mxu0 %v929
    %1050 = vmatpush1.bf16.msra.mxu0 %v928
    %1051 = vmatprep.subr.bf16.mxu0 %v921
    %1052 = vmatpush1.bf16.msra.mxu0 %v920
    %1053 = vmatprep.subr.bf16.mxu0 %v913
    %1054 = vmatpush1.bf16.msra.mxu0 %v912
    %1055 = vmatprep.subr.bf16.mxu0 %v905
    %1056 = vmatpush1.bf16.msra.mxu0 %v904
    %1057 = vmatprep.subr.bf16.mxu0 %v897
    %1058 = vmatpush1.bf16.msra.mxu0 %v896
    %1059 = vmatprep.subr.bf16.mxu0 %v889
    %1060 = vmatpush1.bf16.msra.mxu0 %v888
    %1061 = vmatprep.subr.bf16.mxu0 %v881
    %1062 = vmatpush1.bf16.msra.mxu0 %v880
    %1063 = vmatprep.subr.bf16.mxu0 0
    %1064 = vmatpush2.bf16.msra.mxu0 0
    %1065 = vmatprep.subr.bf16.mxu0 0
    %1066 = vmatpush2.bf16.msra.mxu0 0
    %1067 = vmatprep.subr.bf16.mxu0 0
    %1068 = vmatpush2.bf16.msra.mxu0 0
    %1069 = vmatprep.subr.bf16.mxu0 0
    %1070 = vmatpush2.bf16.msra.mxu0 0
    %1071 = vmatprep.subr.bf16.mxu0 0
    %1072 = vmatpush2.bf16.msra.mxu0 0
    %1073 = vmatprep.subr.bf16.mxu0 0
    %1074 = vmatpush2.bf16.msra.mxu0 0
    %1075 = vmatprep.subr.bf16.mxu0 0
    %1076 = vmatpush2.bf16.msra.mxu0 0
    %1077 = vmatprep.subr.bf16.mxu0 0
    %1078 = vmatpush2.bf16.msra.mxu0 0
    %1079 = vmatprep.mubr.bf16.mxu0 0
    %1080 = vmatmul.mubr.bf16.gmra.mxu0 %v621
    %v1081 = vpop.f32.mrf.mxu0
    %v1082 = vadd.f32 0.0, %v1081
    %v1083 = vpop.f32.mrf.mxu0
    %v1084 = vadd.f32 0.0, %v1083
    %v1085 = vpop.f32.mrf.mxu0
    %v1086 = vpop.f32.mrf.mxu0
    %1087 = vdwg.mxu0
    %1088 = vmatprep.subr.bf16.mxu0 %v939
    %1089 = vmatpush1.bf16.msra.mxu0 %v938
    %1090 = vmatprep.subr.bf16.mxu0 %v931
    %1091 = vmatpush1.bf16.msra.mxu0 %v930
    %1092 = vmatprep.subr.bf16.mxu0 %v923
    %1093 = vmatpush1.bf16.msra.mxu0 %v922
    %1094 = vmatprep.subr.bf16.mxu0 %v915
    %1095 = vmatpush1.bf16.msra.mxu0 %v914
    %1096 = vmatprep.subr.bf16.mxu0 %v907
    %1097 = vmatpush1.bf16.msra.mxu0 %v906
    %1098 = vmatprep.subr.bf16.mxu0 %v899
    %1099 = vmatpush1.bf16.msra.mxu0 %v898
    %1100 = vmatprep.subr.bf16.mxu0 %v891
    %1101 = vmatpush1.bf16.msra.mxu0 %v890
    %1102 = vmatprep.subr.bf16.mxu0 %v883
    %1103 = vmatpush1.bf16.msra.mxu0 %v882
    %1104 = vmatprep.subr.bf16.mxu0 0
    %1105 = vmatpush2.bf16.msra.mxu0 0
    %1106 = vmatprep.subr.bf16.mxu0 0
    %1107 = vmatpush2.bf16.msra.mxu0 0
    %1108 = vmatprep.subr.bf16.mxu0 0
    %1109 = vmatpush2.bf16.msra.mxu0 0
    %1110 = vmatprep.subr.bf16.mxu0 0
    %1111 = vmatpush2.bf16.msra.mxu0 0
    %1112 = vmatprep.subr.bf16.mxu0 0
    %1113 = vmatpush2.bf16.msra.mxu0 0
    %1114 = vmatprep.subr.bf16.mxu0 0
    %1115 = vmatpush2.bf16.msra.mxu0 0
    %1116 = vmatprep.subr.bf16.mxu0 0
    %1117 = vmatpush2.bf16.msra.mxu0 0
    %1118 = vmatprep.subr.bf16.mxu0 0
    %1119 = vmatpush2.bf16.msra.mxu0 0
    %1120 = vmatprep.mubr.bf16.mxu0 0
    %1121 = vmatmul.mubr.bf16.gmra.mxu0 %v621
    %v1122 = vpop.f32.mrf.mxu0
    %v1123 = vadd.f32 0.0, %v1122
    %v1124 = vpop.f32.mrf.mxu0
    %v1125 = vadd.f32 0.0, %v1124
    %v1126 = vpop.f32.mrf.mxu0
    %v1127 = vpop.f32.mrf.mxu0
    %1128 = vdwg.mxu0
    %1129 = vmatprep.subr.bf16.mxu0 %v941
    %1130 = vmatpush1.bf16.msra.mxu0 %v940
    %1131 = vmatprep.subr.bf16.mxu0 %v933
    %1132 = vmatpush1.bf16.msra.mxu0 %v932
    %1133 = vmatprep.subr.bf16.mxu0 %v925
    %1134 = vmatpush1.bf16.msra.mxu0 %v924
    %1135 = vmatprep.subr.bf16.mxu0 %v917
    %1136 = vmatpush1.bf16.msra.mxu0 %v916
    %1137 = vmatprep.subr.bf16.mxu0 %v909
    %1138 = vmatpush1.bf16.msra.mxu0 %v908
    %1139 = vmatprep.subr.bf16.mxu0 %v901
    %1140 = vmatpush1.bf16.msra.mxu0 %v900
    %1141 = vmatprep.subr.bf16.mxu0 %v893
    %1142 = vmatpush1.bf16.msra.mxu0 %v892
    %1143 = vmatprep.subr.bf16.mxu0 %v885
    %1144 = vmatpush1.bf16.msra.mxu0 %v884
    %1145 = vmatprep.subr.bf16.mxu0 0
    %1146 = vmatpush2.bf16.msra.mxu0 0
    %1147 = vmatprep.subr.bf16.mxu0 0
    %1148 = vmatpush2.bf16.msra.mxu0 0
    %1149 = vmatprep.subr.bf16.mxu0 0
    %1150 = vmatpush2.bf16.msra.mxu0 0
    %1151 = vmatprep.subr.bf16.mxu0 0
    %1152 = vmatpush2.bf16.msra.mxu0 0
    %1153 = vmatprep.subr.bf16.mxu0 0
    %1154 = vmatpush2.bf16.msra.mxu0 0
    %1155 = vmatprep.subr.bf16.mxu0 0
    %1156 = vmatpush2.bf16.msra.mxu0 0
    %1157 = vmatprep.subr.bf16.mxu0 0
    %1158 = vmatpush2.bf16.msra.mxu0 0
    %1159 = vmatprep.subr.bf16.mxu0 0
    %1160 = vmatpush2.bf16.msra.mxu0 0
    %1161 = vmatprep.mubr.bf16.mxu0 0
    %1162 = vmatmul.mubr.bf16.gmra.mxu0 %v621
    %v1163 = vpop.f32.mrf.mxu0
    %v1164 = vadd.f32 0.0, %v1163
    %v1165 = vpop.f32.mrf.mxu0
    %v1166 = vadd.f32 0.0, %v1165
    %v1167 = vpop.f32.mrf.mxu0
    %v1168 = vpop.f32.mrf.mxu0
    %1169 = vdwg.mxu0
    %v1170 = vmax.f32 %v1041, %v1082
    %v1171 = vmax.f32 %v1043, %v1084
    %v1172 = vmax.f32 %v1123, %v1164
    %v1173 = vmax.f32 %v1125, %v1166
    %v1174 = vmax.f32 %v1170, %v1172
    %v1175 = vmax.f32 %v1171, %v1173
    %v1176 = vadd.f32 %v1174, %v601
    %v1177 = vadd.f32 %v1175, %v605
    %v1178 = vmax.f32 %v1176, 0.0
    %v1179 = vmax.f32 %v1177, 0.0
    %v1180 = vpack.c.bf16 %v1178, %v1178
    %v1181 = vpack.c.bf16 %v1179, %v1179
    %v1184 = vunpack.c.l.b16 %v1180
    %v1185 = vunpack.c.l.b16 %v1181
    %v1186 = vpack.c.b16 %v1185, %v1184
    %1188 = vst [vmem:[#allocation2 + $0x8] sm:$0xff] %v1186
    %v1189 = vld [vmem:[%s0 + $0x8] sm:$0xf]
    %v1190 = vld [vmem:[%s1] sm:$0xff]
    %v1191 = vld [vmem:[%s1 + $0x8] sm:$0xff]
    %v1192 = vld [vmem:[%s1 + $0x10] sm:$0xff]
    %v1193 = vld [vmem:[%s1 + $0x18] sm:$0xff]
    %v1194 = vld [vmem:[%s1 + $0x20] sm:$0xff]
    %v1195 = vld [vmem:[%s1 + $0x28] sm:$0xff]
    %v1196 = vld [vmem:[%s1 + $0x30] sm:$0xff]
    %v1197 = vld [vmem:[%s1 + $0x38] sm:$0xff]
    %v1198 = vld [vmem:[%s1 + $0x40] sm:$0xff]
    %v1199 = vld [vmem:[%s1 + $0x48] sm:$0xff]
    %v1200 = vld [vmem:[%s1 + $0x50] sm:$0xff]
    %v1201 = vld [vmem:[%s1 + $0x58] sm:$0xff]
    %v1202 = vld [vmem:[%s1 + $0x60] sm:$0xff]
    %v1203 = vld [vmem:[%s1 + $0x68] sm:$0xff]
    %v1204 = vld [vmem:[%s1 + $0x70] sm:$0xff]
    %v1205 = vld [vmem:[%s1 + $0x78] sm:$0xff]
    %v1206 = vld [vmem:[%s1 + $0x80] sm:$0xff]
    %v1207 = vld [vmem:[%s1 + $0x88] sm:$0xff]
    %v1208 = vld [vmem:[%s1 + $0x90] sm:$0xff]
    %v1209 = vld [vmem:[%s1 + $0x98] sm:$0xff]
    %v1210 = vld [vmem:[%s1 + $0xa0] sm:$0xff]
    %v1211 = vld [vmem:[%s1 + $0xa8] sm:$0xff]
    %v1212 = vld [vmem:[%s1 + $0xb0] sm:$0xff]
    %v1213 = vld [vmem:[%s1 + $0xb8] sm:$0xff]
    %v1214 = vld [vmem:[%s1 + $0xc0] sm:$0xff]
    %v1215 = vld [vmem:[%s1 + $0xc8] sm:$0xff]
    %v1216 = vld [vmem:[%s1 + $0xd0] sm:$0xff]
    %v1217 = vld [vmem:[%s1 + $0xd8] sm:$0xff]
    %v1218 = vld [vmem:[%s1 + $0xe0] sm:$0xff]
    %v1219 = vld [vmem:[%s1 + $0xe8] sm:$0xff]
    %v1220 = vld [vmem:[%s1 + $0xf0] sm:$0xff]
    %v1221 = vld [vmem:[%s1 + $0xf8] sm:$0xff]
    %v1222 = vld [vmem:[%s1 + $0x100] sm:$0xff]
    %v1223 = vld [vmem:[%s1 + $0x108] sm:$0xff]
    %v1224 = vld [vmem:[%s1 + $0x110] sm:$0xff]
    %v1225 = vld [vmem:[%s1 + $0x118] sm:$0xff]
    %v1226 = vld [vmem:[%s1 + $0x120] sm:$0xff]
    %v1227 = vld [vmem:[%s1 + $0x128] sm:$0xff]
    %v1228 = vld [vmem:[%s1 + $0x130] sm:$0xff]
    %v1229 = vld [vmem:[%s1 + $0x138] sm:$0xff]
    %v1230 = vld [vmem:[%s1 + $0x140] sm:$0xff]
    %v1231 = vld [vmem:[%s1 + $0x148] sm:$0xff]
    %v1232 = vld [vmem:[%s1 + $0x150] sm:$0xff]
    %v1233 = vld [vmem:[%s1 + $0x158] sm:$0xff]
    %v1234 = vld [vmem:[%s1 + $0x160] sm:$0xff]
    %v1235 = vld [vmem:[%s1 + $0x168] sm:$0xff]
    %v1236 = vld [vmem:[%s1 + $0x170] sm:$0xff]
    %v1237 = vld [vmem:[%s1 + $0x178] sm:$0xff]
    %v1238 = vld [vmem:[%s1 + $0x180] sm:$0xff]
    %v1239 = vld [vmem:[%s1 + $0x188] sm:$0xff]
    %v1240 = vld [vmem:[%s1 + $0x190] sm:$0xff]
    %v1241 = vld [vmem:[%s1 + $0x198] sm:$0xff]
    %v1242 = vld [vmem:[%s1 + $0x1a0] sm:$0xff]
    %v1243 = vld [vmem:[%s1 + $0x1a8] sm:$0xff]
    %v1244 = vld [vmem:[%s1 + $0x1b0] sm:$0xff]
    %v1245 = vld [vmem:[%s1 + $0x1b8] sm:$0xff]
    %v1246 = vld [vmem:[%s1 + $0x1c0] sm:$0xff]
    %v1247 = vld [vmem:[%s1 + $0x1c8] sm:$0xff]
    %v1248 = vld [vmem:[%s1 + $0x1d0] sm:$0xff]
    %v1249 = vld [vmem:[%s1 + $0x1d8] sm:$0xff]
    %v1250 = vld [vmem:[%s1 + $0x1e0] sm:$0xff]
    %v1251 = vld [vmem:[%s1 + $0x1e8] sm:$0xff]
    %v1252 = vld [vmem:[%s1 + $0x1f0] sm:$0xff]
    %v1253 = vld [vmem:[%s1 + $0x1f8] sm:$0xff]
    %v1318 = vunpack.c.l.b16 %v1190
    %v1319 = vunpack.c.h.b16 %v1190
    %v1320 = vunpack.c.l.b16 %v1191
    %v1321 = vunpack.c.h.b16 %v1191
    %v1322 = vunpack.c.l.b16 %v1192
    %v1323 = vunpack.c.h.b16 %v1192
    %v1324 = vunpack.c.l.b16 %v1193
    %v1325 = vunpack.c.h.b16 %v1193
    %v1326 = vunpack.c.l.b16 %v1194
    %v1327 = vunpack.c.h.b16 %v1194
    %v1328 = vunpack.c.l.b16 %v1195
    %v1329 = vunpack.c.h.b16 %v1195
    %v1330 = vunpack.c.l.b16 %v1196
    %v1331 = vunpack.c.h.b16 %v1196
    %v1332 = vunpack.c.l.b16 %v1197
    %v1333 = vunpack.c.h.b16 %v1197
    %v1334 = vunpack.c.l.b16 %v1198
    %v1335 = vunpack.c.h.b16 %v1198
    %v1336 = vunpack.c.l.b16 %v1199
    %v1337 = vunpack.c.h.b16 %v1199
    %v1338 = vunpack.c.l.b16 %v1200
    %v1339 = vunpack.c.h.b16 %v1200
    %v1340 = vunpack.c.l.b16 %v1201
    %v1341 = vunpack.c.h.b16 %v1201
    %v1342 = vunpack.c.l.b16 %v1202
    %v1343 = vunpack.c.h.b16 %v1202
    %v1344 = vunpack.c.l.b16 %v1203
    %v1345 = vunpack.c.h.b16 %v1203
    %v1346 = vunpack.c.l.b16 %v1204
    %v1347 = vunpack.c.h.b16 %v1204
    %v1348 = vunpack.c.l.b16 %v1205
    %v1349 = vunpack.c.h.b16 %v1205
    %v1350 = vunpack.c.l.b16 %v1206
    %v1351 = vunpack.c.h.b16 %v1206
    %v1352 = vunpack.c.l.b16 %v1207
    %v1353 = vunpack.c.h.b16 %v1207
    %v1354 = vunpack.c.l.b16 %v1208
    %v1355 = vunpack.c.h.b16 %v1208
    %v1356 = vunpack.c.l.b16 %v1209
    %v1357 = vunpack.c.h.b16 %v1209
    %v1358 = vunpack.c.l.b16 %v1210
    %v1359 = vunpack.c.h.b16 %v1210
    %v1360 = vunpack.c.l.b16 %v1211
    %v1361 = vunpack.c.h.b16 %v1211
    %v1362 = vunpack.c.l.b16 %v1212
    %v1363 = vunpack.c.h.b16 %v1212
    %v1364 = vunpack.c.l.b16 %v1213
    %v1365 = vunpack.c.h.b16 %v1213
    %v1366 = vunpack.c.l.b16 %v1214
    %v1367 = vunpack.c.h.b16 %v1214
    %v1368 = vunpack.c.l.b16 %v1215
    %v1369 = vunpack.c.h.b16 %v1215
    %v1370 = vunpack.c.l.b16 %v1216
    %v1371 = vunpack.c.h.b16 %v1216
    %v1372 = vunpack.c.l.b16 %v1217
    %v1373 = vunpack.c.h.b16 %v1217
    %v1374 = vunpack.c.l.b16 %v1218
    %v1375 = vunpack.c.h.b16 %v1218
    %v1376 = vunpack.c.l.b16 %v1219
    %v1377 = vunpack.c.h.b16 %v1219
    %v1378 = vunpack.c.l.b16 %v1220
    %v1379 = vunpack.c.h.b16 %v1220
    %v1380 = vunpack.c.l.b16 %v1221
    %v1381 = vunpack.c.h.b16 %v1221
    %v1382 = vunpack.c.l.b16 %v1222
    %v1383 = vunpack.c.h.b16 %v1222
    %v1384 = vunpack.c.l.b16 %v1223
    %v1385 = vunpack.c.h.b16 %v1223
    %v1386 = vunpack.c.l.b16 %v1224
    %v1387 = vunpack.c.h.b16 %v1224
    %v1388 = vunpack.c.l.b16 %v1225
    %v1389 = vunpack.c.h.b16 %v1225
    %v1390 = vunpack.c.l.b16 %v1226
    %v1391 = vunpack.c.h.b16 %v1226
    %v1392 = vunpack.c.l.b16 %v1227
    %v1393 = vunpack.c.h.b16 %v1227
    %v1394 = vunpack.c.l.b16 %v1228
    %v1395 = vunpack.c.h.b16 %v1228
    %v1396 = vunpack.c.l.b16 %v1229
    %v1397 = vunpack.c.h.b16 %v1229
    %v1398 = vunpack.c.l.b16 %v1230
    %v1399 = vunpack.c.h.b16 %v1230
    %v1400 = vunpack.c.l.b16 %v1231
    %v1401 = vunpack.c.h.b16 %v1231
    %v1402 = vunpack.c.l.b16 %v1232
    %v1403 = vunpack.c.h.b16 %v1232
    %v1404 = vunpack.c.l.b16 %v1233
    %v1405 = vunpack.c.h.b16 %v1233
    %v1406 = vunpack.c.l.b16 %v1234
    %v1407 = vunpack.c.h.b16 %v1234
    %v1408 = vunpack.c.l.b16 %v1235
    %v1409 = vunpack.c.h.b16 %v1235
    %v1410 = vunpack.c.l.b16 %v1236
    %v1411 = vunpack.c.h.b16 %v1236
    %v1412 = vunpack.c.l.b16 %v1237
    %v1413 = vunpack.c.h.b16 %v1237
    %v1414 = vunpack.c.l.b16 %v1238
    %v1415 = vunpack.c.h.b16 %v1238
    %v1416 = vunpack.c.l.b16 %v1239
    %v1417 = vunpack.c.h.b16 %v1239
    %v1418 = vunpack.c.l.b16 %v1240
    %v1419 = vunpack.c.h.b16 %v1240
    %v1420 = vunpack.c.l.b16 %v1241
    %v1421 = vunpack.c.h.b16 %v1241
    %v1422 = vunpack.c.l.b16 %v1242
    %v1423 = vunpack.c.h.b16 %v1242
    %v1424 = vunpack.c.l.b16 %v1243
    %v1425 = vunpack.c.h.b16 %v1243
    %v1426 = vunpack.c.l.b16 %v1244
    %v1427 = vunpack.c.h.b16 %v1244
    %v1428 = vunpack.c.l.b16 %v1245
    %v1429 = vunpack.c.h.b16 %v1245
    %v1430 = vunpack.c.l.b16 %v1246
    %v1431 = vunpack.c.h.b16 %v1246
    %v1432 = vunpack.c.l.b16 %v1247
    %v1433 = vunpack.c.h.b16 %v1247
    %v1434 = vunpack.c.l.b16 %v1248
    %v1435 = vunpack.c.h.b16 %v1248
    %v1436 = vunpack.c.l.b16 %v1249
    %v1437 = vunpack.c.h.b16 %v1249
    %v1438 = vunpack.c.l.b16 %v1250
    %v1439 = vunpack.c.h.b16 %v1250
    %v1440 = vunpack.c.l.b16 %v1251
    %v1441 = vunpack.c.h.b16 %v1251
    %v1442 = vunpack.c.l.b16 %v1252
    %v1443 = vunpack.c.h.b16 %v1252
    %v1444 = vunpack.c.l.b16 %v1253
    %v1445 = vunpack.c.h.b16 %v1253
    %v1446 = vpack.c.b16 %v1326, %v1318
    %v1447 = vpack.c.b16 %v1327, %v1319
    %v1448 = vpack.c.b16 %v1328, %v1320
    %v1449 = vpack.c.b16 %v1329, %v1321
    %v1450 = vpack.c.b16 %v1330, %v1322
    %v1451 = vpack.c.b16 %v1331, %v1323
    %v1452 = vpack.c.b16 %v1332, %v1324
    %v1453 = vpack.c.b16 %v1333, %v1325
    %v1454 = vpack.c.b16 %v1342, %v1334
    %v1455 = vpack.c.b16 %v1343, %v1335
    %v1456 = vpack.c.b16 %v1344, %v1336
    %v1457 = vpack.c.b16 %v1345, %v1337
    %v1458 = vpack.c.b16 %v1346, %v1338
    %v1459 = vpack.c.b16 %v1347, %v1339
    %v1460 = vpack.c.b16 %v1348, %v1340
    %v1461 = vpack.c.b16 %v1349, %v1341
    %v1462 = vpack.c.b16 %v1358, %v1350
    %v1463 = vpack.c.b16 %v1359, %v1351
    %v1464 = vpack.c.b16 %v1360, %v1352
    %v1465 = vpack.c.b16 %v1361, %v1353
    %v1466 = vpack.c.b16 %v1362, %v1354
    %v1467 = vpack.c.b16 %v1363, %v1355
    %v1468 = vpack.c.b16 %v1364, %v1356
    %v1469 = vpack.c.b16 %v1365, %v1357
    %v1470 = vpack.c.b16 %v1374, %v1366
    %v1471 = vpack.c.b16 %v1375, %v1367
    %v1472 = vpack.c.b16 %v1376, %v1368
    %v1473 = vpack.c.b16 %v1377, %v1369
    %v1474 = vpack.c.b16 %v1378, %v1370
    %v1475 = vpack.c.b16 %v1379, %v1371
    %v1476 = vpack.c.b16 %v1380, %v1372
    %v1477 = vpack.c.b16 %v1381, %v1373
    %v1478 = vpack.c.b16 %v1390, %v1382
    %v1479 = vpack.c.b16 %v1391, %v1383
    %v1480 = vpack.c.b16 %v1392, %v1384
    %v1481 = vpack.c.b16 %v1393, %v1385
    %v1482 = vpack.c.b16 %v1394, %v1386
    %v1483 = vpack.c.b16 %v1395, %v1387
    %v1484 = vpack.c.b16 %v1396, %v1388
    %v1485 = vpack.c.b16 %v1397, %v1389
    %v1486 = vpack.c.b16 %v1406, %v1398
    %v1487 = vpack.c.b16 %v1407, %v1399
    %v1488 = vpack.c.b16 %v1408, %v1400
    %v1489 = vpack.c.b16 %v1409, %v1401
    %v1490 = vpack.c.b16 %v1410, %v1402
    %v1491 = vpack.c.b16 %v1411, %v1403
    %v1492 = vpack.c.b16 %v1412, %v1404
    %v1493 = vpack.c.b16 %v1413, %v1405
    %v1494 = vpack.c.b16 %v1422, %v1414
    %v1495 = vpack.c.b16 %v1423, %v1415
    %v1496 = vpack.c.b16 %v1424, %v1416
    %v1497 = vpack.c.b16 %v1425, %v1417
    %v1498 = vpack.c.b16 %v1426, %v1418
    %v1499 = vpack.c.b16 %v1427, %v1419
    %v1500 = vpack.c.b16 %v1428, %v1420
    %v1501 = vpack.c.b16 %v1429, %v1421
    %v1502 = vpack.c.b16 %v1438, %v1430
    %v1503 = vpack.c.b16 %v1439, %v1431
    %v1504 = vpack.c.b16 %v1440, %v1432
    %v1505 = vpack.c.b16 %v1441, %v1433
    %v1506 = vpack.c.b16 %v1442, %v1434
    %v1507 = vpack.c.b16 %v1443, %v1435
    %v1508 = vpack.c.b16 %v1444, %v1436
    %v1509 = vpack.c.b16 %v1445, %v1437
    %1574 = vmatprep.subr.bf16.mxu0 %v1503
    %1575 = vmatpush1.bf16.msra.mxu0 %v1502
    %1576 = vmatprep.subr.bf16.mxu0 %v1495
    %1577 = vmatpush1.bf16.msra.mxu0 %v1494
    %1578 = vmatprep.subr.bf16.mxu0 %v1487
    %1579 = vmatpush1.bf16.msra.mxu0 %v1486
    %1580 = vmatprep.subr.bf16.mxu0 %v1479
    %1581 = vmatpush1.bf16.msra.mxu0 %v1478
    %1582 = vmatprep.subr.bf16.mxu0 %v1471
    %1583 = vmatpush1.bf16.msra.mxu0 %v1470
    %1584 = vmatprep.subr.bf16.mxu0 %v1463
    %1585 = vmatpush1.bf16.msra.mxu0 %v1462
    %1586 = vmatprep.subr.bf16.mxu0 %v1455
    %1587 = vmatpush1.bf16.msra.mxu0 %v1454
    %1588 = vmatprep.subr.bf16.mxu0 %v1447
    %1589 = vmatpush1.bf16.msra.mxu0 %v1446
    %1590 = vmatprep.subr.bf16.mxu0 0
    %1591 = vmatpush2.bf16.msra.mxu0 0
    %1592 = vmatprep.subr.bf16.mxu0 0
    %1593 = vmatpush2.bf16.msra.mxu0 0
    %1594 = vmatprep.subr.bf16.mxu0 0
    %1595 = vmatpush2.bf16.msra.mxu0 0
    %1596 = vmatprep.subr.bf16.mxu0 0
    %1597 = vmatpush2.bf16.msra.mxu0 0
    %1598 = vmatprep.subr.bf16.mxu0 0
    %1599 = vmatpush2.bf16.msra.mxu0 0
    %1600 = vmatprep.subr.bf16.mxu0 0
    %1601 = vmatpush2.bf16.msra.mxu0 0
    %1602 = vmatprep.subr.bf16.mxu0 0
    %1603 = vmatpush2.bf16.msra.mxu0 0
    %1604 = vmatprep.subr.bf16.mxu0 0
    %1605 = vmatpush2.bf16.msra.mxu0 0
    %1606 = vmatprep.mubr.bf16.mxu0 0
    %1607 = vmatmul.mubr.bf16.gmra.mxu0 %v1189
    %v1608 = vpop.f32.mrf.mxu0
    %v1609 = vadd.f32 0.0, %v1608
    %v1610 = vpop.f32.mrf.mxu0
    %v1611 = vadd.f32 0.0, %v1610
    %v1612 = vpop.f32.mrf.mxu0
    %v1613 = vpop.f32.mrf.mxu0
    %1614 = vdwg.mxu0
    %1615 = vmatprep.subr.bf16.mxu0 %v1505
    %1616 = vmatpush1.bf16.msra.mxu0 %v1504
    %1617 = vmatprep.subr.bf16.mxu0 %v1497
    %1618 = vmatpush1.bf16.msra.mxu0 %v1496
    %1619 = vmatprep.subr.bf16.mxu0 %v1489
    %1620 = vmatpush1.bf16.msra.mxu0 %v1488
    %1621 = vmatprep.subr.bf16.mxu0 %v1481
    %1622 = vmatpush1.bf16.msra.mxu0 %v1480
    %1623 = vmatprep.subr.bf16.mxu0 %v1473
    %1624 = vmatpush1.bf16.msra.mxu0 %v1472
    %1625 = vmatprep.subr.bf16.mxu0 %v1465
    %1626 = vmatpush1.bf16.msra.mxu0 %v1464
    %1627 = vmatprep.subr.bf16.mxu0 %v1457
    %1628 = vmatpush1.bf16.msra.mxu0 %v1456
    %1629 = vmatprep.subr.bf16.mxu0 %v1449
    %1630 = vmatpush1.bf16.msra.mxu0 %v1448
    %1631 = vmatprep.subr.bf16.mxu0 0
    %1632 = vmatpush2.bf16.msra.mxu0 0
    %1633 = vmatprep.subr.bf16.mxu0 0
    %1634 = vmatpush2.bf16.msra.mxu0 0
    %1635 = vmatprep.subr.bf16.mxu0 0
    %1636 = vmatpush2.bf16.msra.mxu0 0
    %1637 = vmatprep.subr.bf16.mxu0 0
    %1638 = vmatpush2.bf16.msra.mxu0 0
    %1639 = vmatprep.subr.bf16.mxu0 0
    %1640 = vmatpush2.bf16.msra.mxu0 0
    %1641 = vmatprep.subr.bf16.mxu0 0
    %1642 = vmatpush2.bf16.msra.mxu0 0
    %1643 = vmatprep.subr.bf16.mxu0 0
    %1644 = vmatpush2.bf16.msra.mxu0 0
    %1645 = vmatprep.subr.bf16.mxu0 0
    %1646 = vmatpush2.bf16.msra.mxu0 0
    %1647 = vmatprep.mubr.bf16.mxu0 0
    %1648 = vmatmul.mubr.bf16.gmra.mxu0 %v1189
    %v1649 = vpop.f32.mrf.mxu0
    %v1650 = vadd.f32 0.0, %v1649
    %v1651 = vpop.f32.mrf.mxu0
    %v1652 = vadd.f32 0.0, %v1651
    %v1653 = vpop.f32.mrf.mxu0
    %v1654 = vpop.f32.mrf.mxu0
    %1655 = vdwg.mxu0
    %1656 = vmatprep.subr.bf16.mxu0 %v1507
    %1657 = vmatpush1.bf16.msra.mxu0 %v1506
    %1658 = vmatprep.subr.bf16.mxu0 %v1499
    %1659 = vmatpush1.bf16.msra.mxu0 %v1498
    %1660 = vmatprep.subr.bf16.mxu0 %v1491
    %1661 = vmatpush1.bf16.msra.mxu0 %v1490
    %1662 = vmatprep.subr.bf16.mxu0 %v1483
    %1663 = vmatpush1.bf16.msra.mxu0 %v1482
    %1664 = vmatprep.subr.bf16.mxu0 %v1475
    %1665 = vmatpush1.bf16.msra.mxu0 %v1474
    %1666 = vmatprep.subr.bf16.mxu0 %v1467
    %1667 = vmatpush1.bf16.msra.mxu0 %v1466
    %1668 = vmatprep.subr.bf16.mxu0 %v1459
    %1669 = vmatpush1.bf16.msra.mxu0 %v1458
    %1670 = vmatprep.subr.bf16.mxu0 %v1451
    %1671 = vmatpush1.bf16.msra.mxu0 %v1450
    %1672 = vmatprep.subr.bf16.mxu0 0
    %1673 = vmatpush2.bf16.msra.mxu0 0
    %1674 = vmatprep.subr.bf16.mxu0 0
    %1675 = vmatpush2.bf16.msra.mxu0 0
    %1676 = vmatprep.subr.bf16.mxu0 0
    %1677 = vmatpush2.bf16.msra.mxu0 0
    %1678 = vmatprep.subr.bf16.mxu0 0
    %1679 = vmatpush2.bf16.msra.mxu0 0
    %1680 = vmatprep.subr.bf16.mxu0 0
    %1681 = vmatpush2.bf16.msra.mxu0 0
    %1682 = vmatprep.subr.bf16.mxu0 0
    %1683 = vmatpush2.bf16.msra.mxu0 0
    %1684 = vmatprep.subr.bf16.mxu0 0
    %1685 = vmatpush2.bf16.msra.mxu0 0
    %1686 = vmatprep.subr.bf16.mxu0 0
    %1687 = vmatpush2.bf16.msra.mxu0 0
    %1688 = vmatprep.mubr.bf16.mxu0 0
    %1689 = vmatmul.mubr.bf16.gmra.mxu0 %v1189
    %v1690 = vpop.f32.mrf.mxu0
    %v1691 = vadd.f32 0.0, %v1690
    %v1692 = vpop.f32.mrf.mxu0
    %v1693 = vadd.f32 0.0, %v1692
    %v1694 = vpop.f32.mrf.mxu0
    %v1695 = vpop.f32.mrf.mxu0
    %1696 = vdwg.mxu0
    %1697 = vmatprep.subr.bf16.mxu0 %v1509
    %1698 = vmatpush1.bf16.msra.mxu0 %v1508
    %1699 = vmatprep.subr.bf16.mxu0 %v1501
    %1700 = vmatpush1.bf16.msra.mxu0 %v1500
    %1701 = vmatprep.subr.bf16.mxu0 %v1493
    %1702 = vmatpush1.bf16.msra.mxu0 %v1492
    %1703 = vmatprep.subr.bf16.mxu0 %v1485
    %1704 = vmatpush1.bf16.msra.mxu0 %v1484
    %1705 = vmatprep.subr.bf16.mxu0 %v1477
    %1706 = vmatpush1.bf16.msra.mxu0 %v1476
    %1707 = vmatprep.subr.bf16.mxu0 %v1469
    %1708 = vmatpush1.bf16.msra.mxu0 %v1468
    %1709 = vmatprep.subr.bf16.mxu0 %v1461
    %1710 = vmatpush1.bf16.msra.mxu0 %v1460
    %1711 = vmatprep.subr.bf16.mxu0 %v1453
    %1712 = vmatpush1.bf16.msra.mxu0 %v1452
    %1713 = vmatprep.subr.bf16.mxu0 0
    %1714 = vmatpush2.bf16.msra.mxu0 0
    %1715 = vmatprep.subr.bf16.mxu0 0
    %1716 = vmatpush2.bf16.msra.mxu0 0
    %1717 = vmatprep.subr.bf16.mxu0 0
    %1718 = vmatpush2.bf16.msra.mxu0 0
    %1719 = vmatprep.subr.bf16.mxu0 0
    %1720 = vmatpush2.bf16.msra.mxu0 0
    %1721 = vmatprep.subr.bf16.mxu0 0
    %1722 = vmatpush2.bf16.msra.mxu0 0
    %1723 = vmatprep.subr.bf16.mxu0 0
    %1724 = vmatpush2.bf16.msra.mxu0 0
    %1725 = vmatprep.subr.bf16.mxu0 0
    %1726 = vmatpush2.bf16.msra.mxu0 0
    %1727 = vmatprep.subr.bf16.mxu0 0
    %1728 = vmatpush2.bf16.msra.mxu0 0
    %1729 = vmatprep.mubr.bf16.mxu0 0
    %1730 = vmatmul.mubr.bf16.gmra.mxu0 %v1189
    %v1731 = vpop.f32.mrf.mxu0
    %v1732 = vadd.f32 0.0, %v1731
    %v1733 = vpop.f32.mrf.mxu0
    %v1734 = vadd.f32 0.0, %v1733
    %v1735 = vpop.f32.mrf.mxu0
    %v1736 = vpop.f32.mrf.mxu0
    %1737 = vdwg.mxu0
    %v1738 = vmax.f32 %v1609, %v1650
    %v1739 = vmax.f32 %v1611, %v1652
    %v1740 = vmax.f32 %v1691, %v1732
    %v1741 = vmax.f32 %v1693, %v1734
    %v1742 = vmax.f32 %v1738, %v1740
    %v1743 = vmax.f32 %v1739, %v1741
    %v1744 = vadd.f32 %v1742, %v601
    %v1745 = vadd.f32 %v1743, %v605
    %v1746 = vmax.f32 %v1744, 0.0
    %v1747 = vmax.f32 %v1745, 0.0
    %v1748 = vpack.c.bf16 %v1746, %v1746
    %v1749 = vpack.c.bf16 %v1747, %v1747
    %v1752 = vunpack.c.l.b16 %v1748
    %v1753 = vunpack.c.l.b16 %v1749
    %v1754 = vpack.c.b16 %v1753, %v1752
    %1756 = vst [vmem:[#allocation2 + $0x10] sm:$0xff] %v1754
    %v1757 = vld [vmem:[%s0 + $0xc] sm:$0xf]
    %v1758 = vld [vmem:[%s1] sm:$0xff]
    %v1759 = vld [vmem:[%s1 + $0x8] sm:$0xff]
    %v1760 = vld [vmem:[%s1 + $0x10] sm:$0xff]
    %v1761 = vld [vmem:[%s1 + $0x18] sm:$0xff]
    %v1762 = vld [vmem:[%s1 + $0x20] sm:$0xff]
    %v1763 = vld [vmem:[%s1 + $0x28] sm:$0xff]
    %v1764 = vld [vmem:[%s1 + $0x30] sm:$0xff]
    %v1765 = vld [vmem:[%s1 + $0x38] sm:$0xff]
    %v1766 = vld [vmem:[%s1 + $0x40] sm:$0xff]
    %v1767 = vld [vmem:[%s1 + $0x48] sm:$0xff]
    %v1768 = vld [vmem:[%s1 + $0x50] sm:$0xff]
    %v1769 = vld [vmem:[%s1 + $0x58] sm:$0xff]
    %v1770 = vld [vmem:[%s1 + $0x60] sm:$0xff]
    %v1771 = vld [vmem:[%s1 + $0x68] sm:$0xff]
    %v1772 = vld [vmem:[%s1 + $0x70] sm:$0xff]
    %v1773 = vld [vmem:[%s1 + $0x78] sm:$0xff]
    %v1774 = vld [vmem:[%s1 + $0x80] sm:$0xff]
    %v1775 = vld [vmem:[%s1 + $0x88] sm:$0xff]
    %v1776 = vld [vmem:[%s1 + $0x90] sm:$0xff]
    %v1777 = vld [vmem:[%s1 + $0x98] sm:$0xff]
    %v1778 = vld [vmem:[%s1 + $0xa0] sm:$0xff]
    %v1779 = vld [vmem:[%s1 + $0xa8] sm:$0xff]
    %v1780 = vld [vmem:[%s1 + $0xb0] sm:$0xff]
    %v1781 = vld [vmem:[%s1 + $0xb8] sm:$0xff]
    %v1782 = vld [vmem:[%s1 + $0xc0] sm:$0xff]
    %v1783 = vld [vmem:[%s1 + $0xc8] sm:$0xff]
    %v1784 = vld [vmem:[%s1 + $0xd0] sm:$0xff]
    %v1785 = vld [vmem:[%s1 + $0xd8] sm:$0xff]
    %v1786 = vld [vmem:[%s1 + $0xe0] sm:$0xff]
    %v1787 = vld [vmem:[%s1 + $0xe8] sm:$0xff]
    %v1788 = vld [vmem:[%s1 + $0xf0] sm:$0xff]
    %v1789 = vld [vmem:[%s1 + $0xf8] sm:$0xff]
    %v1790 = vld [vmem:[%s1 + $0x100] sm:$0xff]
    %v1791 = vld [vmem:[%s1 + $0x108] sm:$0xff]
    %v1792 = vld [vmem:[%s1 + $0x110] sm:$0xff]
    %v1793 = vld [vmem:[%s1 + $0x118] sm:$0xff]
    %v1794 = vld [vmem:[%s1 + $0x120] sm:$0xff]
    %v1795 = vld [vmem:[%s1 + $0x128] sm:$0xff]
    %v1796 = vld [vmem:[%s1 + $0x130] sm:$0xff]
    %v1797 = vld [vmem:[%s1 + $0x138] sm:$0xff]
    %v1798 = vld [vmem:[%s1 + $0x140] sm:$0xff]
    %v1799 = vld [vmem:[%s1 + $0x148] sm:$0xff]
    %v1800 = vld [vmem:[%s1 + $0x150] sm:$0xff]
    %v1801 = vld [vmem:[%s1 + $0x158] sm:$0xff]
    %v1802 = vld [vmem:[%s1 + $0x160] sm:$0xff]
    %v1803 = vld [vmem:[%s1 + $0x168] sm:$0xff]
    %v1804 = vld [vmem:[%s1 + $0x170] sm:$0xff]
    %v1805 = vld [vmem:[%s1 + $0x178] sm:$0xff]
    %v1806 = vld [vmem:[%s1 + $0x180] sm:$0xff]
    %v1807 = vld [vmem:[%s1 + $0x188] sm:$0xff]
    %v1808 = vld [vmem:[%s1 + $0x190] sm:$0xff]
    %v1809 = vld [vmem:[%s1 + $0x198] sm:$0xff]
    %v1810 = vld [vmem:[%s1 + $0x1a0] sm:$0xff]
    %v1811 = vld [vmem:[%s1 + $0x1a8] sm:$0xff]
    %v1812 = vld [vmem:[%s1 + $0x1b0] sm:$0xff]
    %v1813 = vld [vmem:[%s1 + $0x1b8] sm:$0xff]
    %v1814 = vld [vmem:[%s1 + $0x1c0] sm:$0xff]
    %v1815 = vld [vmem:[%s1 + $0x1c8] sm:$0xff]
    %v1816 = vld [vmem:[%s1 + $0x1d0] sm:$0xff]
    %v1817 = vld [vmem:[%s1 + $0x1d8] sm:$0xff]
    %v1818 = vld [vmem:[%s1 + $0x1e0] sm:$0xff]
    %v1819 = vld [vmem:[%s1 + $0x1e8] sm:$0xff]
    %v1820 = vld [vmem:[%s1 + $0x1f0] sm:$0xff]
    %v1821 = vld [vmem:[%s1 + $0x1f8] sm:$0xff]
    %v1886 = vunpack.c.l.b16 %v1758
    %v1887 = vunpack.c.h.b16 %v1758
    %v1888 = vunpack.c.l.b16 %v1759
    %v1889 = vunpack.c.h.b16 %v1759
    %v1890 = vunpack.c.l.b16 %v1760
    %v1891 = vunpack.c.h.b16 %v1760
    %v1892 = vunpack.c.l.b16 %v1761
    %v1893 = vunpack.c.h.b16 %v1761
    %v1894 = vunpack.c.l.b16 %v1762
    %v1895 = vunpack.c.h.b16 %v1762
    %v1896 = vunpack.c.l.b16 %v1763
    %v1897 = vunpack.c.h.b16 %v1763
    %v1898 = vunpack.c.l.b16 %v1764
    %v1899 = vunpack.c.h.b16 %v1764
    %v1900 = vunpack.c.l.b16 %v1765
    %v1901 = vunpack.c.h.b16 %v1765
    %v1902 = vunpack.c.l.b16 %v1766
    %v1903 = vunpack.c.h.b16 %v1766
    %v1904 = vunpack.c.l.b16 %v1767
    %v1905 = vunpack.c.h.b16 %v1767
    %v1906 = vunpack.c.l.b16 %v1768
    %v1907 = vunpack.c.h.b16 %v1768
    %v1908 = vunpack.c.l.b16 %v1769
    %v1909 = vunpack.c.h.b16 %v1769
    %v1910 = vunpack.c.l.b16 %v1770
    %v1911 = vunpack.c.h.b16 %v1770
    %v1912 = vunpack.c.l.b16 %v1771
    %v1913 = vunpack.c.h.b16 %v1771
    %v1914 = vunpack.c.l.b16 %v1772
    %v1915 = vunpack.c.h.b16 %v1772
    %v1916 = vunpack.c.l.b16 %v1773
    %v1917 = vunpack.c.h.b16 %v1773
    %v1918 = vunpack.c.l.b16 %v1774
    %v1919 = vunpack.c.h.b16 %v1774
    %v1920 = vunpack.c.l.b16 %v1775
    %v1921 = vunpack.c.h.b16 %v1775
    %v1922 = vunpack.c.l.b16 %v1776
    %v1923 = vunpack.c.h.b16 %v1776
    %v1924 = vunpack.c.l.b16 %v1777
    %v1925 = vunpack.c.h.b16 %v1777
    %v1926 = vunpack.c.l.b16 %v1778
    %v1927 = vunpack.c.h.b16 %v1778
    %v1928 = vunpack.c.l.b16 %v1779
    %v1929 = vunpack.c.h.b16 %v1779
    %v1930 = vunpack.c.l.b16 %v1780
    %v1931 = vunpack.c.h.b16 %v1780
    %v1932 = vunpack.c.l.b16 %v1781
    %v1933 = vunpack.c.h.b16 %v1781
    %v1934 = vunpack.c.l.b16 %v1782
    %v1935 = vunpack.c.h.b16 %v1782
    %v1936 = vunpack.c.l.b16 %v1783
    %v1937 = vunpack.c.h.b16 %v1783
    %v1938 = vunpack.c.l.b16 %v1784
    %v1939 = vunpack.c.h.b16 %v1784
    %v1940 = vunpack.c.l.b16 %v1785
    %v1941 = vunpack.c.h.b16 %v1785
    %v1942 = vunpack.c.l.b16 %v1786
    %v1943 = vunpack.c.h.b16 %v1786
    %v1944 = vunpack.c.l.b16 %v1787
    %v1945 = vunpack.c.h.b16 %v1787
    %v1946 = vunpack.c.l.b16 %v1788
    %v1947 = vunpack.c.h.b16 %v1788
    %v1948 = vunpack.c.l.b16 %v1789
    %v1949 = vunpack.c.h.b16 %v1789
    %v1950 = vunpack.c.l.b16 %v1790
    %v1951 = vunpack.c.h.b16 %v1790
    %v1952 = vunpack.c.l.b16 %v1791
    %v1953 = vunpack.c.h.b16 %v1791
    %v1954 = vunpack.c.l.b16 %v1792
    %v1955 = vunpack.c.h.b16 %v1792
    %v1956 = vunpack.c.l.b16 %v1793
    %v1957 = vunpack.c.h.b16 %v1793
    %v1958 = vunpack.c.l.b16 %v1794
    %v1959 = vunpack.c.h.b16 %v1794
    %v1960 = vunpack.c.l.b16 %v1795
    %v1961 = vunpack.c.h.b16 %v1795
    %v1962 = vunpack.c.l.b16 %v1796
    %v1963 = vunpack.c.h.b16 %v1796
    %v1964 = vunpack.c.l.b16 %v1797
    %v1965 = vunpack.c.h.b16 %v1797
    %v1966 = vunpack.c.l.b16 %v1798
    %v1967 = vunpack.c.h.b16 %v1798
    %v1968 = vunpack.c.l.b16 %v1799
    %v1969 = vunpack.c.h.b16 %v1799
    %v1970 = vunpack.c.l.b16 %v1800
    %v1971 = vunpack.c.h.b16 %v1800
    %v1972 = vunpack.c.l.b16 %v1801
    %v1973 = vunpack.c.h.b16 %v1801
    %v1974 = vunpack.c.l.b16 %v1802
    %v1975 = vunpack.c.h.b16 %v1802
    %v1976 = vunpack.c.l.b16 %v1803
    %v1977 = vunpack.c.h.b16 %v1803
    %v1978 = vunpack.c.l.b16 %v1804
    %v1979 = vunpack.c.h.b16 %v1804
    %v1980 = vunpack.c.l.b16 %v1805
    %v1981 = vunpack.c.h.b16 %v1805
    %v1982 = vunpack.c.l.b16 %v1806
    %v1983 = vunpack.c.h.b16 %v1806
    %v1984 = vunpack.c.l.b16 %v1807
    %v1985 = vunpack.c.h.b16 %v1807
    %v1986 = vunpack.c.l.b16 %v1808
    %v1987 = vunpack.c.h.b16 %v1808
    %v1988 = vunpack.c.l.b16 %v1809
    %v1989 = vunpack.c.h.b16 %v1809
    %v1990 = vunpack.c.l.b16 %v1810
    %v1991 = vunpack.c.h.b16 %v1810
    %v1992 = vunpack.c.l.b16 %v1811
    %v1993 = vunpack.c.h.b16 %v1811
    %v1994 = vunpack.c.l.b16 %v1812
    %v1995 = vunpack.c.h.b16 %v1812
    %v1996 = vunpack.c.l.b16 %v1813
    %v1997 = vunpack.c.h.b16 %v1813
    %v1998 = vunpack.c.l.b16 %v1814
    %v1999 = vunpack.c.h.b16 %v1814
    %v2000 = vunpack.c.l.b16 %v1815
    %v2001 = vunpack.c.h.b16 %v1815
    %v2002 = vunpack.c.l.b16 %v1816
    %v2003 = vunpack.c.h.b16 %v1816
    %v2004 = vunpack.c.l.b16 %v1817
    %v2005 = vunpack.c.h.b16 %v1817
    %v2006 = vunpack.c.l.b16 %v1818
    %v2007 = vunpack.c.h.b16 %v1818
    %v2008 = vunpack.c.l.b16 %v1819
    %v2009 = vunpack.c.h.b16 %v1819
    %v2010 = vunpack.c.l.b16 %v1820
    %v2011 = vunpack.c.h.b16 %v1820
    %v2012 = vunpack.c.l.b16 %v1821
    %v2013 = vunpack.c.h.b16 %v1821
    %v2014 = vpack.c.b16 %v1894, %v1886
    %v2015 = vpack.c.b16 %v1895, %v1887
    %v2016 = vpack.c.b16 %v1896, %v1888
    %v2017 = vpack.c.b16 %v1897, %v1889
    %v2018 = vpack.c.b16 %v1898, %v1890
    %v2019 = vpack.c.b16 %v1899, %v1891
    %v2020 = vpack.c.b16 %v1900, %v1892
    %v2021 = vpack.c.b16 %v1901, %v1893
    %v2022 = vpack.c.b16 %v1910, %v1902
    %v2023 = vpack.c.b16 %v1911, %v1903
    %v2024 = vpack.c.b16 %v1912, %v1904
    %v2025 = vpack.c.b16 %v1913, %v1905
    %v2026 = vpack.c.b16 %v1914, %v1906
    %v2027 = vpack.c.b16 %v1915, %v1907
    %v2028 = vpack.c.b16 %v1916, %v1908
    %v2029 = vpack.c.b16 %v1917, %v1909
    %v2030 = vpack.c.b16 %v1926, %v1918
    %v2031 = vpack.c.b16 %v1927, %v1919
    %v2032 = vpack.c.b16 %v1928, %v1920
    %v2033 = vpack.c.b16 %v1929, %v1921
    %v2034 = vpack.c.b16 %v1930, %v1922
    %v2035 = vpack.c.b16 %v1931, %v1923
    %v2036 = vpack.c.b16 %v1932, %v1924
    %v2037 = vpack.c.b16 %v1933, %v1925
    %v2038 = vpack.c.b16 %v1942, %v1934
    %v2039 = vpack.c.b16 %v1943, %v1935
    %v2040 = vpack.c.b16 %v1944, %v1936
    %v2041 = vpack.c.b16 %v1945, %v1937
    %v2042 = vpack.c.b16 %v1946, %v1938
    %v2043 = vpack.c.b16 %v1947, %v1939
    %v2044 = vpack.c.b16 %v1948, %v1940
    %v2045 = vpack.c.b16 %v1949, %v1941
    %v2046 = vpack.c.b16 %v1958, %v1950
    %v2047 = vpack.c.b16 %v1959, %v1951
    %v2048 = vpack.c.b16 %v1960, %v1952
    %v2049 = vpack.c.b16 %v1961, %v1953
    %v2050 = vpack.c.b16 %v1962, %v1954
    %v2051 = vpack.c.b16 %v1963, %v1955
    %v2052 = vpack.c.b16 %v1964, %v1956
    %v2053 = vpack.c.b16 %v1965, %v1957
    %v2054 = vpack.c.b16 %v1974, %v1966
    %v2055 = vpack.c.b16 %v1975, %v1967
    %v2056 = vpack.c.b16 %v1976, %v1968
    %v2057 = vpack.c.b16 %v1977, %v1969
    %v2058 = vpack.c.b16 %v1978, %v1970
    %v2059 = vpack.c.b16 %v1979, %v1971
    %v2060 = vpack.c.b16 %v1980, %v1972
    %v2061 = vpack.c.b16 %v1981, %v1973
    %v2062 = vpack.c.b16 %v1990, %v1982
    %v2063 = vpack.c.b16 %v1991, %v1983
    %v2064 = vpack.c.b16 %v1992, %v1984
    %v2065 = vpack.c.b16 %v1993, %v1985
    %v2066 = vpack.c.b16 %v1994, %v1986
    %v2067 = vpack.c.b16 %v1995, %v1987
    %v2068 = vpack.c.b16 %v1996, %v1988
    %v2069 = vpack.c.b16 %v1997, %v1989
    %v2070 = vpack.c.b16 %v2006, %v1998
    %v2071 = vpack.c.b16 %v2007, %v1999
    %v2072 = vpack.c.b16 %v2008, %v2000
    %v2073 = vpack.c.b16 %v2009, %v2001
    %v2074 = vpack.c.b16 %v2010, %v2002
    %v2075 = vpack.c.b16 %v2011, %v2003
    %v2076 = vpack.c.b16 %v2012, %v2004
    %v2077 = vpack.c.b16 %v2013, %v2005
    %2142 = vmatprep.subr.bf16.mxu0 %v2071
    %2143 = vmatpush1.bf16.msra.mxu0 %v2070
    %2144 = vmatprep.subr.bf16.mxu0 %v2063
    %2145 = vmatpush1.bf16.msra.mxu0 %v2062
    %2146 = vmatprep.subr.bf16.mxu0 %v2055
    %2147 = vmatpush1.bf16.msra.mxu0 %v2054
    %2148 = vmatprep.subr.bf16.mxu0 %v2047
    %2149 = vmatpush1.bf16.msra.mxu0 %v2046
    %2150 = vmatprep.subr.bf16.mxu0 %v2039
    %2151 = vmatpush1.bf16.msra.mxu0 %v2038
    %2152 = vmatprep.subr.bf16.mxu0 %v2031
    %2153 = vmatpush1.bf16.msra.mxu0 %v2030
    %2154 = vmatprep.subr.bf16.mxu0 %v2023
    %2155 = vmatpush1.bf16.msra.mxu0 %v2022
    %2156 = vmatprep.subr.bf16.mxu0 %v2015
    %2157 = vmatpush1.bf16.msra.mxu0 %v2014
    %2158 = vmatprep.subr.bf16.mxu0 0
    %2159 = vmatpush2.bf16.msra.mxu0 0
    %2160 = vmatprep.subr.bf16.mxu0 0
    %2161 = vmatpush2.bf16.msra.mxu0 0
    %2162 = vmatprep.subr.bf16.mxu0 0
    %2163 = vmatpush2.bf16.msra.mxu0 0
    %2164 = vmatprep.subr.bf16.mxu0 0
    %2165 = vmatpush2.bf16.msra.mxu0 0
    %2166 = vmatprep.subr.bf16.mxu0 0
    %2167 = vmatpush2.bf16.msra.mxu0 0
    %2168 = vmatprep.subr.bf16.mxu0 0
    %2169 = vmatpush2.bf16.msra.mxu0 0
    %2170 = vmatprep.subr.bf16.mxu0 0
    %2171 = vmatpush2.bf16.msra.mxu0 0
    %2172 = vmatprep.subr.bf16.mxu0 0
    %2173 = vmatpush2.bf16.msra.mxu0 0
    %2174 = vmatprep.mubr.bf16.mxu0 0
    %2175 = vmatmul.mubr.bf16.gmra.mxu0 %v1757
    %v2176 = vpop.f32.mrf.mxu0
    %v2177 = vadd.f32 0.0, %v2176
    %v2178 = vpop.f32.mrf.mxu0
    %v2179 = vadd.f32 0.0, %v2178
    %v2180 = vpop.f32.mrf.mxu0
    %v2181 = vpop.f32.mrf.mxu0
    %2182 = vdwg.mxu0
    %2183 = vmatprep.subr.bf16.mxu0 %v2073
    %2184 = vmatpush1.bf16.msra.mxu0 %v2072
    %2185 = vmatprep.subr.bf16.mxu0 %v2065
    %2186 = vmatpush1.bf16.msra.mxu0 %v2064
    %2187 = vmatprep.subr.bf16.mxu0 %v2057
    %2188 = vmatpush1.bf16.msra.mxu0 %v2056
    %2189 = vmatprep.subr.bf16.mxu0 %v2049
    %2190 = vmatpush1.bf16.msra.mxu0 %v2048
    %2191 = vmatprep.subr.bf16.mxu0 %v2041
    %2192 = vmatpush1.bf16.msra.mxu0 %v2040
    %2193 = vmatprep.subr.bf16.mxu0 %v2033
    %2194 = vmatpush1.bf16.msra.mxu0 %v2032
    %2195 = vmatprep.subr.bf16.mxu0 %v2025
    %2196 = vmatpush1.bf16.msra.mxu0 %v2024
    %2197 = vmatprep.subr.bf16.mxu0 %v2017
    %2198 = vmatpush1.bf16.msra.mxu0 %v2016
    %2199 = vmatprep.subr.bf16.mxu0 0
    %2200 = vmatpush2.bf16.msra.mxu0 0
    %2201 = vmatprep.subr.bf16.mxu0 0
    %2202 = vmatpush2.bf16.msra.mxu0 0
    %2203 = vmatprep.subr.bf16.mxu0 0
    %2204 = vmatpush2.bf16.msra.mxu0 0
    %2205 = vmatprep.subr.bf16.mxu0 0
    %2206 = vmatpush2.bf16.msra.mxu0 0
    %2207 = vmatprep.subr.bf16.mxu0 0
    %2208 = vmatpush2.bf16.msra.mxu0 0
    %2209 = vmatprep.subr.bf16.mxu0 0
    %2210 = vmatpush2.bf16.msra.mxu0 0
    %2211 = vmatprep.subr.bf16.mxu0 0
    %2212 = vmatpush2.bf16.msra.mxu0 0
    %2213 = vmatprep.subr.bf16.mxu0 0
    %2214 = vmatpush2.bf16.msra.mxu0 0
    %2215 = vmatprep.mubr.bf16.mxu0 0
    %2216 = vmatmul.mubr.bf16.gmra.mxu0 %v1757
    %v2217 = vpop.f32.mrf.mxu0
    %v2218 = vadd.f32 0.0, %v2217
    %v2219 = vpop.f32.mrf.mxu0
    %v2220 = vadd.f32 0.0, %v2219
    %v2221 = vpop.f32.mrf.mxu0
    %v2222 = vpop.f32.mrf.mxu0
    %2223 = vdwg.mxu0
    %2224 = vmatprep.subr.bf16.mxu0 %v2075
    %2225 = vmatpush1.bf16.msra.mxu0 %v2074
    %2226 = vmatprep.subr.bf16.mxu0 %v2067
    %2227 = vmatpush1.bf16.msra.mxu0 %v2066
    %2228 = vmatprep.subr.bf16.mxu0 %v2059
    %2229 = vmatpush1.bf16.msra.mxu0 %v2058
    %2230 = vmatprep.subr.bf16.mxu0 %v2051
    %2231 = vmatpush1.bf16.msra.mxu0 %v2050
    %2232 = vmatprep.subr.bf16.mxu0 %v2043
    %2233 = vmatpush1.bf16.msra.mxu0 %v2042
    %2234 = vmatprep.subr.bf16.mxu0 %v2035
    %2235 = vmatpush1.bf16.msra.mxu0 %v2034
    %2236 = vmatprep.subr.bf16.mxu0 %v2027
    %2237 = vmatpush1.bf16.msra.mxu0 %v2026
    %2238 = vmatprep.subr.bf16.mxu0 %v2019
    %2239 = vmatpush1.bf16.msra.mxu0 %v2018
    %2240 = vmatprep.subr.bf16.mxu0 0
    %2241 = vmatpush2.bf16.msra.mxu0 0
    %2242 = vmatprep.subr.bf16.mxu0 0
    %2243 = vmatpush2.bf16.msra.mxu0 0
    %2244 = vmatprep.subr.bf16.mxu0 0
    %2245 = vmatpush2.bf16.msra.mxu0 0
    %2246 = vmatprep.subr.bf16.mxu0 0
    %2247 = vmatpush2.bf16.msra.mxu0 0
    %2248 = vmatprep.subr.bf16.mxu0 0
    %2249 = vmatpush2.bf16.msra.mxu0 0
    %2250 = vmatprep.subr.bf16.mxu0 0
    %2251 = vmatpush2.bf16.msra.mxu0 0
    %2252 = vmatprep.subr.bf16.mxu0 0
    %2253 = vmatpush2.bf16.msra.mxu0 0
    %2254 = vmatprep.subr.bf16.mxu0 0
    %2255 = vmatpush2.bf16.msra.mxu0 0
    %2256 = vmatprep.mubr.bf16.mxu0 0
    %2257 = vmatmul.mubr.bf16.gmra.mxu0 %v1757
    %v2258 = vpop.f32.mrf.mxu0
    %v2259 = vadd.f32 0.0, %v2258
    %v2260 = vpop.f32.mrf.mxu0
    %v2261 = vadd.f32 0.0, %v2260
    %v2262 = vpop.f32.mrf.mxu0
    %v2263 = vpop.f32.mrf.mxu0
    %2264 = vdwg.mxu0
    %2265 = vmatprep.subr.bf16.mxu0 %v2077
    %2266 = vmatpush1.bf16.msra.mxu0 %v2076
    %2267 = vmatprep.subr.bf16.mxu0 %v2069
    %2268 = vmatpush1.bf16.msra.mxu0 %v2068
    %2269 = vmatprep.subr.bf16.mxu0 %v2061
    %2270 = vmatpush1.bf16.msra.mxu0 %v2060
    %2271 = vmatprep.subr.bf16.mxu0 %v2053
    %2272 = vmatpush1.bf16.msra.mxu0 %v2052
    %2273 = vmatprep.subr.bf16.mxu0 %v2045
    %2274 = vmatpush1.bf16.msra.mxu0 %v2044
    %2275 = vmatprep.subr.bf16.mxu0 %v2037
    %2276 = vmatpush1.bf16.msra.mxu0 %v2036
    %2277 = vmatprep.subr.bf16.mxu0 %v2029
    %2278 = vmatpush1.bf16.msra.mxu0 %v2028
    %2279 = vmatprep.subr.bf16.mxu0 %v2021
    %2280 = vmatpush1.bf16.msra.mxu0 %v2020
    %2281 = vmatprep.subr.bf16.mxu0 0
    %2282 = vmatpush2.bf16.msra.mxu0 0
    %2283 = vmatprep.subr.bf16.mxu0 0
    %2284 = vmatpush2.bf16.msra.mxu0 0
    %2285 = vmatprep.subr.bf16.mxu0 0
    %2286 = vmatpush2.bf16.msra.mxu0 0
    %2287 = vmatprep.subr.bf16.mxu0 0
    %2288 = vmatpush2.bf16.msra.mxu0 0
    %2289 = vmatprep.subr.bf16.mxu0 0
    %2290 = vmatpush2.bf16.msra.mxu0 0
    %2291 = vmatprep.subr.bf16.mxu0 0
    %2292 = vmatpush2.bf16.msra.mxu0 0
    %2293 = vmatprep.subr.bf16.mxu0 0
    %2294 = vmatpush2.bf16.msra.mxu0 0
    %2295 = vmatprep.subr.bf16.mxu0 0
    %2296 = vmatpush2.bf16.msra.mxu0 0
    %2297 = vmatprep.mubr.bf16.mxu0 0
    %2298 = vmatmul.mubr.bf16.gmra.mxu0 %v1757
    %v2299 = vpop.f32.mrf.mxu0
    %v2300 = vadd.f32 0.0, %v2299
    %v2301 = vpop.f32.mrf.mxu0
    %v2302 = vadd.f32 0.0, %v2301
    %v2303 = vpop.f32.mrf.mxu0
    %v2304 = vpop.f32.mrf.mxu0
    %2305 = vdwg.mxu0
    %v2306 = vmax.f32 %v2177, %v2218
    %v2307 = vmax.f32 %v2179, %v2220
    %v2308 = vmax.f32 %v2259, %v2300
    %v2309 = vmax.f32 %v2261, %v2302
    %v2310 = vmax.f32 %v2306, %v2308
    %v2311 = vmax.f32 %v2307, %v2309
    %v2312 = vadd.f32 %v2310, %v601
    %v2313 = vadd.f32 %v2311, %v605
    %v2314 = vmax.f32 %v2312, 0.0
    %v2315 = vmax.f32 %v2313, 0.0
    %v2316 = vpack.c.bf16 %v2314, %v2314
    %v2317 = vpack.c.bf16 %v2315, %v2315
    %v2320 = vunpack.c.l.b16 %v2316
    %v2321 = vunpack.c.l.b16 %v2317
    %v2322 = vpack.c.b16 %v2321, %v2320
    %2324 = vst [vmem:[#allocation2 + $0x18] sm:$0xff] %v2322
    %v2325 = vld [vmem:[%s0 + $0x10] sm:$0xf]
    %v2326 = vld [vmem:[%s1] sm:$0xff]
    %v2327 = vld [vmem:[%s1 + $0x8] sm:$0xff]
    %v2328 = vld [vmem:[%s1 + $0x10] sm:$0xff]
    %v2329 = vld [vmem:[%s1 + $0x18] sm:$0xff]
    %v2330 = vld [vmem:[%s1 + $0x20] sm:$0xff]
    %v2331 = vld [vmem:[%s1 + $0x28] sm:$0xff]
    %v2332 = vld [vmem:[%s1 + $0x30] sm:$0xff]
    %v2333 = vld [vmem:[%s1 + $0x38] sm:$0xff]
    %v2334 = vld [vmem:[%s1 + $0x40] sm:$0xff]
    %v2335 = vld [vmem:[%s1 + $0x48] sm:$0xff]
    %v2336 = vld [vmem:[%s1 + $0x50] sm:$0xff]
    %v2337 = vld [vmem:[%s1 + $0x58] sm:$0xff]
    %v2338 = vld [vmem:[%s1 + $0x60] sm:$0xff]
    %v2339 = vld [vmem:[%s1 + $0x68] sm:$0xff]
    %v2340 = vld [vmem:[%s1 + $0x70] sm:$0xff]
    %v2341 = vld [vmem:[%s1 + $0x78] sm:$0xff]
    %v2342 = vld [vmem:[%s1 + $0x80] sm:$0xff]
    %v2343 = vld [vmem:[%s1 + $0x88] sm:$0xff]
    %v2344 = vld [vmem:[%s1 + $0x90] sm:$0xff]
    %v2345 = vld [vmem:[%s1 + $0x98] sm:$0xff]
    %v2346 = vld [vmem:[%s1 + $0xa0] sm:$0xff]
    %v2347 = vld [vmem:[%s1 + $0xa8] sm:$0xff]
    %v2348 = vld [vmem:[%s1 + $0xb0] sm:$0xff]
    %v2349 = vld [vmem:[%s1 + $0xb8] sm:$0xff]
    %v2350 = vld [vmem:[%s1 + $0xc0] sm:$0xff]
    %v2351 = vld [vmem:[%s1 + $0xc8] sm:$0xff]
    %v2352 = vld [vmem:[%s1 + $0xd0] sm:$0xff]
    %v2353 = vld [vmem:[%s1 + $0xd8] sm:$0xff]
    %v2354 = vld [vmem:[%s1 + $0xe0] sm:$0xff]
    %v2355 = vld [vmem:[%s1 + $0xe8] sm:$0xff]
    %v2356 = vld [vmem:[%s1 + $0xf0] sm:$0xff]
    %v2357 = vld [vmem:[%s1 + $0xf8] sm:$0xff]
    %v2358 = vld [vmem:[%s1 + $0x100] sm:$0xff]
    %v2359 = vld [vmem:[%s1 + $0x108] sm:$0xff]
    %v2360 = vld [vmem:[%s1 + $0x110] sm:$0xff]
    %v2361 = vld [vmem:[%s1 + $0x118] sm:$0xff]
    %v2362 = vld [vmem:[%s1 + $0x120] sm:$0xff]
    %v2363 = vld [vmem:[%s1 + $0x128] sm:$0xff]
    %v2364 = vld [vmem:[%s1 + $0x130] sm:$0xff]
    %v2365 = vld [vmem:[%s1 + $0x138] sm:$0xff]
    %v2366 = vld [vmem:[%s1 + $0x140] sm:$0xff]
    %v2367 = vld [vmem:[%s1 + $0x148] sm:$0xff]
    %v2368 = vld [vmem:[%s1 + $0x150] sm:$0xff]
    %v2369 = vld [vmem:[%s1 + $0x158] sm:$0xff]
    %v2370 = vld [vmem:[%s1 + $0x160] sm:$0xff]
    %v2371 = vld [vmem:[%s1 + $0x168] sm:$0xff]
    %v2372 = vld [vmem:[%s1 + $0x170] sm:$0xff]
    %v2373 = vld [vmem:[%s1 + $0x178] sm:$0xff]
    %v2374 = vld [vmem:[%s1 + $0x180] sm:$0xff]
    %v2375 = vld [vmem:[%s1 + $0x188] sm:$0xff]
    %v2376 = vld [vmem:[%s1 + $0x190] sm:$0xff]
    %v2377 = vld [vmem:[%s1 + $0x198] sm:$0xff]
    %v2378 = vld [vmem:[%s1 + $0x1a0] sm:$0xff]
    %v2379 = vld [vmem:[%s1 + $0x1a8] sm:$0xff]
    %v2380 = vld [vmem:[%s1 + $0x1b0] sm:$0xff]
    %v2381 = vld [vmem:[%s1 + $0x1b8] sm:$0xff]
    %v2382 = vld [vmem:[%s1 + $0x1c0] sm:$0xff]
    %v2383 = vld [vmem:[%s1 + $0x1c8] sm:$0xff]
    %v2384 = vld [vmem:[%s1 + $0x1d0] sm:$0xff]
    %v2385 = vld [vmem:[%s1 + $0x1d8] sm:$0xff]
    %v2386 = vld [vmem:[%s1 + $0x1e0] sm:$0xff]
    %v2387 = vld [vmem:[%s1 + $0x1e8] sm:$0xff]
    %v2388 = vld [vmem:[%s1 + $0x1f0] sm:$0xff]
    %v2389 = vld [vmem:[%s1 + $0x1f8] sm:$0xff]
    %v2454 = vunpack.c.l.b16 %v2326
    %v2455 = vunpack.c.h.b16 %v2326
    %v2456 = vunpack.c.l.b16 %v2327
    %v2457 = vunpack.c.h.b16 %v2327
    %v2458 = vunpack.c.l.b16 %v2328
    %v2459 = vunpack.c.h.b16 %v2328
    %v2460 = vunpack.c.l.b16 %v2329
    %v2461 = vunpack.c.h.b16 %v2329
    %v2462 = vunpack.c.l.b16 %v2330
    %v2463 = vunpack.c.h.b16 %v2330
    %v2464 = vunpack.c.l.b16 %v2331
    %v2465 = vunpack.c.h.b16 %v2331
    %v2466 = vunpack.c.l.b16 %v2332
    %v2467 = vunpack.c.h.b16 %v2332
    %v2468 = vunpack.c.l.b16 %v2333
    %v2469 = vunpack.c.h.b16 %v2333
    %v2470 = vunpack.c.l.b16 %v2334
    %v2471 = vunpack.c.h.b16 %v2334
    %v2472 = vunpack.c.l.b16 %v2335
    %v2473 = vunpack.c.h.b16 %v2335
    %v2474 = vunpack.c.l.b16 %v2336
    %v2475 = vunpack.c.h.b16 %v2336
    %v2476 = vunpack.c.l.b16 %v2337
    %v2477 = vunpack.c.h.b16 %v2337
    %v2478 = vunpack.c.l.b16 %v2338
    %v2479 = vunpack.c.h.b16 %v2338
    %v2480 = vunpack.c.l.b16 %v2339
    %v2481 = vunpack.c.h.b16 %v2339
    %v2482 = vunpack.c.l.b16 %v2340
    %v2483 = vunpack.c.h.b16 %v2340
    %v2484 = vunpack.c.l.b16 %v2341
    %v2485 = vunpack.c.h.b16 %v2341
    %v2486 = vunpack.c.l.b16 %v2342
    %v2487 = vunpack.c.h.b16 %v2342
    %v2488 = vunpack.c.l.b16 %v2343
    %v2489 = vunpack.c.h.b16 %v2343
    %v2490 = vunpack.c.l.b16 %v2344
    %v2491 = vunpack.c.h.b16 %v2344
    %v2492 = vunpack.c.l.b16 %v2345
    %v2493 = vunpack.c.h.b16 %v2345
    %v2494 = vunpack.c.l.b16 %v2346
    %v2495 = vunpack.c.h.b16 %v2346
    %v2496 = vunpack.c.l.b16 %v2347
    %v2497 = vunpack.c.h.b16 %v2347
    %v2498 = vunpack.c.l.b16 %v2348
    %v2499 = vunpack.c.h.b16 %v2348
    %v2500 = vunpack.c.l.b16 %v2349
    %v2501 = vunpack.c.h.b16 %v2349
    %v2502 = vunpack.c.l.b16 %v2350
    %v2503 = vunpack.c.h.b16 %v2350
    %v2504 = vunpack.c.l.b16 %v2351
    %v2505 = vunpack.c.h.b16 %v2351
    %v2506 = vunpack.c.l.b16 %v2352
    %v2507 = vunpack.c.h.b16 %v2352
    %v2508 = vunpack.c.l.b16 %v2353
    %v2509 = vunpack.c.h.b16 %v2353
    %v2510 = vunpack.c.l.b16 %v2354
    %v2511 = vunpack.c.h.b16 %v2354
    %v2512 = vunpack.c.l.b16 %v2355
    %v2513 = vunpack.c.h.b16 %v2355
    %v2514 = vunpack.c.l.b16 %v2356
    %v2515 = vunpack.c.h.b16 %v2356
    %v2516 = vunpack.c.l.b16 %v2357
    %v2517 = vunpack.c.h.b16 %v2357
    %v2518 = vunpack.c.l.b16 %v2358
    %v2519 = vunpack.c.h.b16 %v2358
    %v2520 = vunpack.c.l.b16 %v2359
    %v2521 = vunpack.c.h.b16 %v2359
    %v2522 = vunpack.c.l.b16 %v2360
    %v2523 = vunpack.c.h.b16 %v2360
    %v2524 = vunpack.c.l.b16 %v2361
    %v2525 = vunpack.c.h.b16 %v2361
    %v2526 = vunpack.c.l.b16 %v2362
    %v2527 = vunpack.c.h.b16 %v2362
    %v2528 = vunpack.c.l.b16 %v2363
    %v2529 = vunpack.c.h.b16 %v2363
    %v2530 = vunpack.c.l.b16 %v2364
    %v2531 = vunpack.c.h.b16 %v2364
    %v2532 = vunpack.c.l.b16 %v2365
    %v2533 = vunpack.c.h.b16 %v2365
    %v2534 = vunpack.c.l.b16 %v2366
    %v2535 = vunpack.c.h.b16 %v2366
    %v2536 = vunpack.c.l.b16 %v2367
    %v2537 = vunpack.c.h.b16 %v2367
    %v2538 = vunpack.c.l.b16 %v2368
    %v2539 = vunpack.c.h.b16 %v2368
    %v2540 = vunpack.c.l.b16 %v2369
    %v2541 = vunpack.c.h.b16 %v2369
    %v2542 = vunpack.c.l.b16 %v2370
    %v2543 = vunpack.c.h.b16 %v2370
    %v2544 = vunpack.c.l.b16 %v2371
    %v2545 = vunpack.c.h.b16 %v2371
    %v2546 = vunpack.c.l.b16 %v2372
    %v2547 = vunpack.c.h.b16 %v2372
    %v2548 = vunpack.c.l.b16 %v2373
    %v2549 = vunpack.c.h.b16 %v2373
    %v2550 = vunpack.c.l.b16 %v2374
    %v2551 = vunpack.c.h.b16 %v2374
    %v2552 = vunpack.c.l.b16 %v2375
    %v2553 = vunpack.c.h.b16 %v2375
    %v2554 = vunpack.c.l.b16 %v2376
    %v2555 = vunpack.c.h.b16 %v2376
    %v2556 = vunpack.c.l.b16 %v2377
    %v2557 = vunpack.c.h.b16 %v2377
    %v2558 = vunpack.c.l.b16 %v2378
    %v2559 = vunpack.c.h.b16 %v2378
    %v2560 = vunpack.c.l.b16 %v2379
    %v2561 = vunpack.c.h.b16 %v2379
    %v2562 = vunpack.c.l.b16 %v2380
    %v2563 = vunpack.c.h.b16 %v2380
    %v2564 = vunpack.c.l.b16 %v2381
    %v2565 = vunpack.c.h.b16 %v2381
    %v2566 = vunpack.c.l.b16 %v2382
    %v2567 = vunpack.c.h.b16 %v2382
    %v2568 = vunpack.c.l.b16 %v2383
    %v2569 = vunpack.c.h.b16 %v2383
    %v2570 = vunpack.c.l.b16 %v2384
    %v2571 = vunpack.c.h.b16 %v2384
    %v2572 = vunpack.c.l.b16 %v2385
    %v2573 = vunpack.c.h.b16 %v2385
    %v2574 = vunpack.c.l.b16 %v2386
    %v2575 = vunpack.c.h.b16 %v2386
    %v2576 = vunpack.c.l.b16 %v2387
    %v2577 = vunpack.c.h.b16 %v2387
    %v2578 = vunpack.c.l.b16 %v2388
    %v2579 = vunpack.c.h.b16 %v2388
    %v2580 = vunpack.c.l.b16 %v2389
    %v2581 = vunpack.c.h.b16 %v2389
    %v2582 = vpack.c.b16 %v2462, %v2454
    %v2583 = vpack.c.b16 %v2463, %v2455
    %v2584 = vpack.c.b16 %v2464, %v2456
    %v2585 = vpack.c.b16 %v2465, %v2457
    %v2586 = vpack.c.b16 %v2466, %v2458
    %v2587 = vpack.c.b16 %v2467, %v2459
    %v2588 = vpack.c.b16 %v2468, %v2460
    %v2589 = vpack.c.b16 %v2469, %v2461
    %v2590 = vpack.c.b16 %v2478, %v2470
    %v2591 = vpack.c.b16 %v2479, %v2471
    %v2592 = vpack.c.b16 %v2480, %v2472
    %v2593 = vpack.c.b16 %v2481, %v2473
    %v2594 = vpack.c.b16 %v2482, %v2474
    %v2595 = vpack.c.b16 %v2483, %v2475
    %v2596 = vpack.c.b16 %v2484, %v2476
    %v2597 = vpack.c.b16 %v2485, %v2477
    %v2598 = vpack.c.b16 %v2494, %v2486
    %v2599 = vpack.c.b16 %v2495, %v2487
    %v2600 = vpack.c.b16 %v2496, %v2488
    %v2601 = vpack.c.b16 %v2497, %v2489
    %v2602 = vpack.c.b16 %v2498, %v2490
    %v2603 = vpack.c.b16 %v2499, %v2491
    %v2604 = vpack.c.b16 %v2500, %v2492
    %v2605 = vpack.c.b16 %v2501, %v2493
    %v2606 = vpack.c.b16 %v2510, %v2502
    %v2607 = vpack.c.b16 %v2511, %v2503
    %v2608 = vpack.c.b16 %v2512, %v2504
    %v2609 = vpack.c.b16 %v2513, %v2505
    %v2610 = vpack.c.b16 %v2514, %v2506
    %v2611 = vpack.c.b16 %v2515, %v2507
    %v2612 = vpack.c.b16 %v2516, %v2508
    %v2613 = vpack.c.b16 %v2517, %v2509
    %v2614 = vpack.c.b16 %v2526, %v2518
    %v2615 = vpack.c.b16 %v2527, %v2519
    %v2616 = vpack.c.b16 %v2528, %v2520
    %v2617 = vpack.c.b16 %v2529, %v2521
    %v2618 = vpack.c.b16 %v2530, %v2522
    %v2619 = vpack.c.b16 %v2531, %v2523
    %v2620 = vpack.c.b16 %v2532, %v2524
    %v2621 = vpack.c.b16 %v2533, %v2525
    %v2622 = vpack.c.b16 %v2542, %v2534
    %v2623 = vpack.c.b16 %v2543, %v2535
    %v2624 = vpack.c.b16 %v2544, %v2536
    %v2625 = vpack.c.b16 %v2545, %v2537
    %v2626 = vpack.c.b16 %v2546, %v2538
    %v2627 = vpack.c.b16 %v2547, %v2539
    %v2628 = vpack.c.b16 %v2548, %v2540
    %v2629 = vpack.c.b16 %v2549, %v2541
    %v2630 = vpack.c.b16 %v2558, %v2550
    %v2631 = vpack.c.b16 %v2559, %v2551
    %v2632 = vpack.c.b16 %v2560, %v2552
    %v2633 = vpack.c.b16 %v2561, %v2553
    %v2634 = vpack.c.b16 %v2562, %v2554
    %v2635 = vpack.c.b16 %v2563, %v2555
    %v2636 = vpack.c.b16 %v2564, %v2556
    %v2637 = vpack.c.b16 %v2565, %v2557
    %v2638 = vpack.c.b16 %v2574, %v2566
    %v2639 = vpack.c.b16 %v2575, %v2567
    %v2640 = vpack.c.b16 %v2576, %v2568
    %v2641 = vpack.c.b16 %v2577, %v2569
    %v2642 = vpack.c.b16 %v2578, %v2570
    %v2643 = vpack.c.b16 %v2579, %v2571
    %v2644 = vpack.c.b16 %v2580, %v2572
    %v2645 = vpack.c.b16 %v2581, %v2573
    %2710 = vmatprep.subr.bf16.mxu0 %v2639
    %2711 = vmatpush1.bf16.msra.mxu0 %v2638
    %2712 = vmatprep.subr.bf16.mxu0 %v2631
    %2713 = vmatpush1.bf16.msra.mxu0 %v2630
    %2714 = vmatprep.subr.bf16.mxu0 %v2623
    %2715 = vmatpush1.bf16.msra.mxu0 %v2622
    %2716 = vmatprep.subr.bf16.mxu0 %v2615
    %2717 = vmatpush1.bf16.msra.mxu0 %v2614
    %2718 = vmatprep.subr.bf16.mxu0 %v2607
    %2719 = vmatpush1.bf16.msra.mxu0 %v2606
    %2720 = vmatprep.subr.bf16.mxu0 %v2599
    %2721 = vmatpush1.bf16.msra.mxu0 %v2598
    %2722 = vmatprep.subr.bf16.mxu0 %v2591
    %2723 = vmatpush1.bf16.msra.mxu0 %v2590
    %2724 = vmatprep.subr.bf16.mxu0 %v2583
    %2725 = vmatpush1.bf16.msra.mxu0 %v2582
    %2726 = vmatprep.subr.bf16.mxu0 0
    %2727 = vmatpush2.bf16.msra.mxu0 0
    %2728 = vmatprep.subr.bf16.mxu0 0
    %2729 = vmatpush2.bf16.msra.mxu0 0
    %2730 = vmatprep.subr.bf16.mxu0 0
    %2731 = vmatpush2.bf16.msra.mxu0 0
    %2732 = vmatprep.subr.bf16.mxu0 0
    %2733 = vmatpush2.bf16.msra.mxu0 0
    %2734 = vmatprep.subr.bf16.mxu0 0
    %2735 = vmatpush2.bf16.msra.mxu0 0
    %2736 = vmatprep.subr.bf16.mxu0 0
    %2737 = vmatpush2.bf16.msra.mxu0 0
    %2738 = vmatprep.subr.bf16.mxu0 0
    %2739 = vmatpush2.bf16.msra.mxu0 0
    %2740 = vmatprep.subr.bf16.mxu0 0
    %2741 = vmatpush2.bf16.msra.mxu0 0
    %2742 = vmatprep.mubr.bf16.mxu0 0
    %2743 = vmatmul.mubr.bf16.gmra.mxu0 %v2325
    %v2744 = vpop.f32.mrf.mxu0
    %v2745 = vadd.f32 0.0, %v2744
    %v2746 = vpop.f32.mrf.mxu0
    %v2747 = vadd.f32 0.0, %v2746
    %v2748 = vpop.f32.mrf.mxu0
    %v2749 = vpop.f32.mrf.mxu0
    %2750 = vdwg.mxu0
    %2751 = vmatprep.subr.bf16.mxu0 %v2641
    %2752 = vmatpush1.bf16.msra.mxu0 %v2640
    %2753 = vmatprep.subr.bf16.mxu0 %v2633
    %2754 = vmatpush1.bf16.msra.mxu0 %v2632
    %2755 = vmatprep.subr.bf16.mxu0 %v2625
    %2756 = vmatpush1.bf16.msra.mxu0 %v2624
    %2757 = vmatprep.subr.bf16.mxu0 %v2617
    %2758 = vmatpush1.bf16.msra.mxu0 %v2616
    %2759 = vmatprep.subr.bf16.mxu0 %v2609
    %2760 = vmatpush1.bf16.msra.mxu0 %v2608
    %2761 = vmatprep.subr.bf16.mxu0 %v2601
    %2762 = vmatpush1.bf16.msra.mxu0 %v2600
    %2763 = vmatprep.subr.bf16.mxu0 %v2593
    %2764 = vmatpush1.bf16.msra.mxu0 %v2592
    %2765 = vmatprep.subr.bf16.mxu0 %v2585
    %2766 = vmatpush1.bf16.msra.mxu0 %v2584
    %2767 = vmatprep.subr.bf16.mxu0 0
    %2768 = vmatpush2.bf16.msra.mxu0 0
    %2769 = vmatprep.subr.bf16.mxu0 0
    %2770 = vmatpush2.bf16.msra.mxu0 0
    %2771 = vmatprep.subr.bf16.mxu0 0
    %2772 = vmatpush2.bf16.msra.mxu0 0
    %2773 = vmatprep.subr.bf16.mxu0 0
    %2774 = vmatpush2.bf16.msra.mxu0 0
    %2775 = vmatprep.subr.bf16.mxu0 0
    %2776 = vmatpush2.bf16.msra.mxu0 0
    %2777 = vmatprep.subr.bf16.mxu0 0
    %2778 = vmatpush2.bf16.msra.mxu0 0
    %2779 = vmatprep.subr.bf16.mxu0 0
    %2780 = vmatpush2.bf16.msra.mxu0 0
    %2781 = vmatprep.subr.bf16.mxu0 0
    %2782 = vmatpush2.bf16.msra.mxu0 0
    %2783 = vmatprep.mubr.bf16.mxu0 0
    %2784 = vmatmul.mubr.bf16.gmra.mxu0 %v2325
    %v2785 = vpop.f32.mrf.mxu0
    %v2786 = vadd.f32 0.0, %v2785
    %v2787 = vpop.f32.mrf.mxu0
    %v2788 = vadd.f32 0.0, %v2787
    %v2789 = vpop.f32.mrf.mxu0
    %v2790 = vpop.f32.mrf.mxu0
    %2791 = vdwg.mxu0
    %2792 = vmatprep.subr.bf16.mxu0 %v2643
    %2793 = vmatpush1.bf16.msra.mxu0 %v2642
    %2794 = vmatprep.subr.bf16.mxu0 %v2635
    %2795 = vmatpush1.bf16.msra.mxu0 %v2634
    %2796 = vmatprep.subr.bf16.mxu0 %v2627
    %2797 = vmatpush1.bf16.msra.mxu0 %v2626
    %2798 = vmatprep.subr.bf16.mxu0 %v2619
    %2799 = vmatpush1.bf16.msra.mxu0 %v2618
    %2800 = vmatprep.subr.bf16.mxu0 %v2611
    %2801 = vmatpush1.bf16.msra.mxu0 %v2610
    %2802 = vmatprep.subr.bf16.mxu0 %v2603
    %2803 = vmatpush1.bf16.msra.mxu0 %v2602
    %2804 = vmatprep.subr.bf16.mxu0 %v2595
    %2805 = vmatpush1.bf16.msra.mxu0 %v2594
    %2806 = vmatprep.subr.bf16.mxu0 %v2587
    %2807 = vmatpush1.bf16.msra.mxu0 %v2586
    %2808 = vmatprep.subr.bf16.mxu0 0
    %2809 = vmatpush2.bf16.msra.mxu0 0
    %2810 = vmatprep.subr.bf16.mxu0 0
    %2811 = vmatpush2.bf16.msra.mxu0 0
    %2812 = vmatprep.subr.bf16.mxu0 0
    %2813 = vmatpush2.bf16.msra.mxu0 0
    %2814 = vmatprep.subr.bf16.mxu0 0
    %2815 = vmatpush2.bf16.msra.mxu0 0
    %2816 = vmatprep.subr.bf16.mxu0 0
    %2817 = vmatpush2.bf16.msra.mxu0 0
    %2818 = vmatprep.subr.bf16.mxu0 0
    %2819 = vmatpush2.bf16.msra.mxu0 0
    %2820 = vmatprep.subr.bf16.mxu0 0
    %2821 = vmatpush2.bf16.msra.mxu0 0
    %2822 = vmatprep.subr.bf16.mxu0 0
    %2823 = vmatpush2.bf16.msra.mxu0 0
    %2824 = vmatprep.mubr.bf16.mxu0 0
    %2825 = vmatmul.mubr.bf16.gmra.mxu0 %v2325
    %v2826 = vpop.f32.mrf.mxu0
    %v2827 = vadd.f32 0.0, %v2826
    %v2828 = vpop.f32.mrf.mxu0
    %v2829 = vadd.f32 0.0, %v2828
    %v2830 = vpop.f32.mrf.mxu0
    %v2831 = vpop.f32.mrf.mxu0
    %2832 = vdwg.mxu0
    %2833 = vmatprep.subr.bf16.mxu0 %v2645
    %2834 = vmatpush1.bf16.msra.mxu0 %v2644
    %2835 = vmatprep.subr.bf16.mxu0 %v2637
    %2836 = vmatpush1.bf16.msra.mxu0 %v2636
    %2837 = vmatprep.subr.bf16.mxu0 %v2629
    %2838 = vmatpush1.bf16.msra.mxu0 %v2628
    %2839 = vmatprep.subr.bf16.mxu0 %v2621
    %2840 = vmatpush1.bf16.msra.mxu0 %v2620
    %2841 = vmatprep.subr.bf16.mxu0 %v2613
    %2842 = vmatpush1.bf16.msra.mxu0 %v2612
    %2843 = vmatprep.subr.bf16.mxu0 %v2605
    %2844 = vmatpush1.bf16.msra.mxu0 %v2604
    %2845 = vmatprep.subr.bf16.mxu0 %v2597
    %2846 = vmatpush1.bf16.msra.mxu0 %v2596
    %2847 = vmatprep.subr.bf16.mxu0 %v2589
    %2848 = vmatpush1.bf16.msra.mxu0 %v2588
    %2849 = vmatprep.subr.bf16.mxu0 0
    %2850 = vmatpush2.bf16.msra.mxu0 0
    %2851 = vmatprep.subr.bf16.mxu0 0
    %2852 = vmatpush2.bf16.msra.mxu0 0
    %2853 = vmatprep.subr.bf16.mxu0 0
    %2854 = vmatpush2.bf16.msra.mxu0 0
    %2855 = vmatprep.subr.bf16.mxu0 0
    %2856 = vmatpush2.bf16.msra.mxu0 0
    %2857 = vmatprep.subr.bf16.mxu0 0
    %2858 = vmatpush2.bf16.msra.mxu0 0
    %2859 = vmatprep.subr.bf16.mxu0 0
    %2860 = vmatpush2.bf16.msra.mxu0 0
    %2861 = vmatprep.subr.bf16.mxu0 0
    %2862 = vmatpush2.bf16.msra.mxu0 0
    %2863 = vmatprep.subr.bf16.mxu0 0
    %2864 = vmatpush2.bf16.msra.mxu0 0
    %2865 = vmatprep.mubr.bf16.mxu0 0
    %2866 = vmatmul.mubr.bf16.gmra.mxu0 %v2325
    %v2867 = vpop.f32.mrf.mxu0
    %v2868 = vadd.f32 0.0, %v2867
    %v2869 = vpop.f32.mrf.mxu0
    %v2870 = vadd.f32 0.0, %v2869
    %v2871 = vpop.f32.mrf.mxu0
    %v2872 = vpop.f32.mrf.mxu0
    %2873 = vdwg.mxu0
    %v2874 = vmax.f32 %v2745, %v2786
    %v2875 = vmax.f32 %v2747, %v2788
    %v2876 = vmax.f32 %v2827, %v2868
    %v2877 = vmax.f32 %v2829, %v2870
    %v2878 = vmax.f32 %v2874, %v2876
    %v2879 = vmax.f32 %v2875, %v2877
    %v2880 = vadd.f32 %v2878, %v601
    %v2881 = vadd.f32 %v2879, %v605
    %v2882 = vmax.f32 %v2880, 0.0
    %v2883 = vmax.f32 %v2881, 0.0
    %v2884 = vpack.c.bf16 %v2882, %v2882
    %v2885 = vpack.c.bf16 %v2883, %v2883
    %v2888 = vunpack.c.l.b16 %v2884
    %v2889 = vunpack.c.l.b16 %v2885
    %v2890 = vpack.c.b16 %v2889, %v2888
    %2892 = vst [vmem:[#allocation2 + $0x20] sm:$0xff] %v2890
    %v2893 = vld [vmem:[%s0 + $0x14] sm:$0xf]
    %v2894 = vld [vmem:[%s1] sm:$0xff]
    %v2895 = vld [vmem:[%s1 + $0x8] sm:$0xff]
    %v2896 = vld [vmem:[%s1 + $0x10] sm:$0xff]
    %v2897 = vld [vmem:[%s1 + $0x18] sm:$0xff]
    %v2898 = vld [vmem:[%s1 + $0x20] sm:$0xff]
    %v2899 = vld [vmem:[%s1 + $0x28] sm:$0xff]
    %v2900 = vld [vmem:[%s1 + $0x30] sm:$0xff]
    %v2901 = vld [vmem:[%s1 + $0x38] sm:$0xff]
    %v2902 = vld [vmem:[%s1 + $0x40] sm:$0xff]
    %v2903 = vld [vmem:[%s1 + $0x48] sm:$0xff]
    %v2904 = vld [vmem:[%s1 + $0x50] sm:$0xff]
    %v2905 = vld [vmem:[%s1 + $0x58] sm:$0xff]
    %v2906 = vld [vmem:[%s1 + $0x60] sm:$0xff]
    %v2907 = vld [vmem:[%s1 + $0x68] sm:$0xff]
    %v2908 = vld [vmem:[%s1 + $0x70] sm:$0xff]
    %v2909 = vld [vmem:[%s1 + $0x78] sm:$0xff]
    %v2910 = vld [vmem:[%s1 + $0x80] sm:$0xff]
    %v2911 = vld [vmem:[%s1 + $0x88] sm:$0xff]
    %v2912 = vld [vmem:[%s1 + $0x90] sm:$0xff]
    %v2913 = vld [vmem:[%s1 + $0x98] sm:$0xff]
    %v2914 = vld [vmem:[%s1 + $0xa0] sm:$0xff]
    %v2915 = vld [vmem:[%s1 + $0xa8] sm:$0xff]
    %v2916 = vld [vmem:[%s1 + $0xb0] sm:$0xff]
    %v2917 = vld [vmem:[%s1 + $0xb8] sm:$0xff]
    %v2918 = vld [vmem:[%s1 + $0xc0] sm:$0xff]
    %v2919 = vld [vmem:[%s1 + $0xc8] sm:$0xff]
    %v2920 = vld [vmem:[%s1 + $0xd0] sm:$0xff]
    %v2921 = vld [vmem:[%s1 + $0xd8] sm:$0xff]
    %v2922 = vld [vmem:[%s1 + $0xe0] sm:$0xff]
    %v2923 = vld [vmem:[%s1 + $0xe8] sm:$0xff]
    %v2924 = vld [vmem:[%s1 + $0xf0] sm:$0xff]
    %v2925 = vld [vmem:[%s1 + $0xf8] sm:$0xff]
    %v2926 = vld [vmem:[%s1 + $0x100] sm:$0xff]
    %v2927 = vld [vmem:[%s1 + $0x108] sm:$0xff]
    %v2928 = vld [vmem:[%s1 + $0x110] sm:$0xff]
    %v2929 = vld [vmem:[%s1 + $0x118] sm:$0xff]
    %v2930 = vld [vmem:[%s1 + $0x120] sm:$0xff]
    %v2931 = vld [vmem:[%s1 + $0x128] sm:$0xff]
    %v2932 = vld [vmem:[%s1 + $0x130] sm:$0xff]
    %v2933 = vld [vmem:[%s1 + $0x138] sm:$0xff]
    %v2934 = vld [vmem:[%s1 + $0x140] sm:$0xff]
    %v2935 = vld [vmem:[%s1 + $0x148] sm:$0xff]
    %v2936 = vld [vmem:[%s1 + $0x150] sm:$0xff]
    %v2937 = vld [vmem:[%s1 + $0x158] sm:$0xff]
    %v2938 = vld [vmem:[%s1 + $0x160] sm:$0xff]
    %v2939 = vld [vmem:[%s1 + $0x168] sm:$0xff]
    %v2940 = vld [vmem:[%s1 + $0x170] sm:$0xff]
    %v2941 = vld [vmem:[%s1 + $0x178] sm:$0xff]
    %v2942 = vld [vmem:[%s1 + $0x180] sm:$0xff]
    %v2943 = vld [vmem:[%s1 + $0x188] sm:$0xff]
    %v2944 = vld [vmem:[%s1 + $0x190] sm:$0xff]
    %v2945 = vld [vmem:[%s1 + $0x198] sm:$0xff]
    %v2946 = vld [vmem:[%s1 + $0x1a0] sm:$0xff]
    %v2947 = vld [vmem:[%s1 + $0x1a8] sm:$0xff]
    %v2948 = vld [vmem:[%s1 + $0x1b0] sm:$0xff]
    %v2949 = vld [vmem:[%s1 + $0x1b8] sm:$0xff]
    %v2950 = vld [vmem:[%s1 + $0x1c0] sm:$0xff]
    %v2951 = vld [vmem:[%s1 + $0x1c8] sm:$0xff]
    %v2952 = vld [vmem:[%s1 + $0x1d0] sm:$0xff]
    %v2953 = vld [vmem:[%s1 + $0x1d8] sm:$0xff]
    %v2954 = vld [vmem:[%s1 + $0x1e0] sm:$0xff]
    %v2955 = vld [vmem:[%s1 + $0x1e8] sm:$0xff]
    %v2956 = vld [vmem:[%s1 + $0x1f0] sm:$0xff]
    %v2957 = vld [vmem:[%s1 + $0x1f8] sm:$0xff]
    %v3022 = vunpack.c.l.b16 %v2894
    %v3023 = vunpack.c.h.b16 %v2894
    %v3024 = vunpack.c.l.b16 %v2895
    %v3025 = vunpack.c.h.b16 %v2895
    %v3026 = vunpack.c.l.b16 %v2896
    %v3027 = vunpack.c.h.b16 %v2896
    %v3028 = vunpack.c.l.b16 %v2897
    %v3029 = vunpack.c.h.b16 %v2897
    %v3030 = vunpack.c.l.b16 %v2898
    %v3031 = vunpack.c.h.b16 %v2898
    %v3032 = vunpack.c.l.b16 %v2899
    %v3033 = vunpack.c.h.b16 %v2899
    %v3034 = vunpack.c.l.b16 %v2900
    %v3035 = vunpack.c.h.b16 %v2900
    %v3036 = vunpack.c.l.b16 %v2901
    %v3037 = vunpack.c.h.b16 %v2901
    %v3038 = vunpack.c.l.b16 %v2902
    %v3039 = vunpack.c.h.b16 %v2902
    %v3040 = vunpack.c.l.b16 %v2903
    %v3041 = vunpack.c.h.b16 %v2903
    %v3042 = vunpack.c.l.b16 %v2904
    %v3043 = vunpack.c.h.b16 %v2904
    %v3044 = vunpack.c.l.b16 %v2905
    %v3045 = vunpack.c.h.b16 %v2905
    %v3046 = vunpack.c.l.b16 %v2906
    %v3047 = vunpack.c.h.b16 %v2906
    %v3048 = vunpack.c.l.b16 %v2907
    %v3049 = vunpack.c.h.b16 %v2907
    %v3050 = vunpack.c.l.b16 %v2908
    %v3051 = vunpack.c.h.b16 %v2908
    %v3052 = vunpack.c.l.b16 %v2909
    %v3053 = vunpack.c.h.b16 %v2909
    %v3054 = vunpack.c.l.b16 %v2910
    %v3055 = vunpack.c.h.b16 %v2910
    %v3056 = vunpack.c.l.b16 %v2911
    %v3057 = vunpack.c.h.b16 %v2911
    %v3058 = vunpack.c.l.b16 %v2912
    %v3059 = vunpack.c.h.b16 %v2912
    %v3060 = vunpack.c.l.b16 %v2913
    %v3061 = vunpack.c.h.b16 %v2913
    %v3062 = vunpack.c.l.b16 %v2914
    %v3063 = vunpack.c.h.b16 %v2914
    %v3064 = vunpack.c.l.b16 %v2915
    %v3065 = vunpack.c.h.b16 %v2915
    %v3066 = vunpack.c.l.b16 %v2916
    %v3067 = vunpack.c.h.b16 %v2916
    %v3068 = vunpack.c.l.b16 %v2917
    %v3069 = vunpack.c.h.b16 %v2917
    %v3070 = vunpack.c.l.b16 %v2918
    %v3071 = vunpack.c.h.b16 %v2918
    %v3072 = vunpack.c.l.b16 %v2919
    %v3073 = vunpack.c.h.b16 %v2919
    %v3074 = vunpack.c.l.b16 %v2920
    %v3075 = vunpack.c.h.b16 %v2920
    %v3076 = vunpack.c.l.b16 %v2921
    %v3077 = vunpack.c.h.b16 %v2921
    %v3078 = vunpack.c.l.b16 %v2922
    %v3079 = vunpack.c.h.b16 %v2922
    %v3080 = vunpack.c.l.b16 %v2923
    %v3081 = vunpack.c.h.b16 %v2923
    %v3082 = vunpack.c.l.b16 %v2924
    %v3083 = vunpack.c.h.b16 %v2924
    %v3084 = vunpack.c.l.b16 %v2925
    %v3085 = vunpack.c.h.b16 %v2925
    %v3086 = vunpack.c.l.b16 %v2926
    %v3087 = vunpack.c.h.b16 %v2926
    %v3088 = vunpack.c.l.b16 %v2927
    %v3089 = vunpack.c.h.b16 %v2927
    %v3090 = vunpack.c.l.b16 %v2928
    %v3091 = vunpack.c.h.b16 %v2928
    %v3092 = vunpack.c.l.b16 %v2929
    %v3093 = vunpack.c.h.b16 %v2929
    %v3094 = vunpack.c.l.b16 %v2930
    %v3095 = vunpack.c.h.b16 %v2930
    %v3096 = vunpack.c.l.b16 %v2931
    %v3097 = vunpack.c.h.b16 %v2931
    %v3098 = vunpack.c.l.b16 %v2932
    %v3099 = vunpack.c.h.b16 %v2932
    %v3100 = vunpack.c.l.b16 %v2933
    %v3101 = vunpack.c.h.b16 %v2933
    %v3102 = vunpack.c.l.b16 %v2934
    %v3103 = vunpack.c.h.b16 %v2934
    %v3104 = vunpack.c.l.b16 %v2935
    %v3105 = vunpack.c.h.b16 %v2935
    %v3106 = vunpack.c.l.b16 %v2936
    %v3107 = vunpack.c.h.b16 %v2936
    %v3108 = vunpack.c.l.b16 %v2937
    %v3109 = vunpack.c.h.b16 %v2937
    %v3110 = vunpack.c.l.b16 %v2938
    %v3111 = vunpack.c.h.b16 %v2938
    %v3112 = vunpack.c.l.b16 %v2939
    %v3113 = vunpack.c.h.b16 %v2939
    %v3114 = vunpack.c.l.b16 %v2940
    %v3115 = vunpack.c.h.b16 %v2940
    %v3116 = vunpack.c.l.b16 %v2941
    %v3117 = vunpack.c.h.b16 %v2941
    %v3118 = vunpack.c.l.b16 %v2942
    %v3119 = vunpack.c.h.b16 %v2942
    %v3120 = vunpack.c.l.b16 %v2943
    %v3121 = vunpack.c.h.b16 %v2943
    %v3122 = vunpack.c.l.b16 %v2944
    %v3123 = vunpack.c.h.b16 %v2944
    %v3124 = vunpack.c.l.b16 %v2945
    %v3125 = vunpack.c.h.b16 %v2945
    %v3126 = vunpack.c.l.b16 %v2946
    %v3127 = vunpack.c.h.b16 %v2946
    %v3128 = vunpack.c.l.b16 %v2947
    %v3129 = vunpack.c.h.b16 %v2947
    %v3130 = vunpack.c.l.b16 %v2948
    %v3131 = vunpack.c.h.b16 %v2948
    %v3132 = vunpack.c.l.b16 %v2949
    %v3133 = vunpack.c.h.b16 %v2949
    %v3134 = vunpack.c.l.b16 %v2950
    %v3135 = vunpack.c.h.b16 %v2950
    %v3136 = vunpack.c.l.b16 %v2951
    %v3137 = vunpack.c.h.b16 %v2951
    %v3138 = vunpack.c.l.b16 %v2952
    %v3139 = vunpack.c.h.b16 %v2952
    %v3140 = vunpack.c.l.b16 %v2953
    %v3141 = vunpack.c.h.b16 %v2953
    %v3142 = vunpack.c.l.b16 %v2954
    %v3143 = vunpack.c.h.b16 %v2954
    %v3144 = vunpack.c.l.b16 %v2955
    %v3145 = vunpack.c.h.b16 %v2955
    %v3146 = vunpack.c.l.b16 %v2956
    %v3147 = vunpack.c.h.b16 %v2956
    %v3148 = vunpack.c.l.b16 %v2957
    %v3149 = vunpack.c.h.b16 %v2957
    %v3150 = vpack.c.b16 %v3030, %v3022
    %v3151 = vpack.c.b16 %v3031, %v3023
    %v3152 = vpack.c.b16 %v3032, %v3024
    %v3153 = vpack.c.b16 %v3033, %v3025
    %v3154 = vpack.c.b16 %v3034, %v3026
    %v3155 = vpack.c.b16 %v3035, %v3027
    %v3156 = vpack.c.b16 %v3036, %v3028
    %v3157 = vpack.c.b16 %v3037, %v3029
    %v3158 = vpack.c.b16 %v3046, %v3038
    %v3159 = vpack.c.b16 %v3047, %v3039
    %v3160 = vpack.c.b16 %v3048, %v3040
    %v3161 = vpack.c.b16 %v3049, %v3041
    %v3162 = vpack.c.b16 %v3050, %v3042
    %v3163 = vpack.c.b16 %v3051, %v3043
    %v3164 = vpack.c.b16 %v3052, %v3044
    %v3165 = vpack.c.b16 %v3053, %v3045
    %v3166 = vpack.c.b16 %v3062, %v3054
    %v3167 = vpack.c.b16 %v3063, %v3055
    %v3168 = vpack.c.b16 %v3064, %v3056
    %v3169 = vpack.c.b16 %v3065, %v3057
    %v3170 = vpack.c.b16 %v3066, %v3058
    %v3171 = vpack.c.b16 %v3067, %v3059
    %v3172 = vpack.c.b16 %v3068, %v3060
    %v3173 = vpack.c.b16 %v3069, %v3061
    %v3174 = vpack.c.b16 %v3078, %v3070
    %v3175 = vpack.c.b16 %v3079, %v3071
    %v3176 = vpack.c.b16 %v3080, %v3072
    %v3177 = vpack.c.b16 %v3081, %v3073
    %v3178 = vpack.c.b16 %v3082, %v3074
    %v3179 = vpack.c.b16 %v3083, %v3075
    %v3180 = vpack.c.b16 %v3084, %v3076
    %v3181 = vpack.c.b16 %v3085, %v3077
    %v3182 = vpack.c.b16 %v3094, %v3086
    %v3183 = vpack.c.b16 %v3095, %v3087
    %v3184 = vpack.c.b16 %v3096, %v3088
    %v3185 = vpack.c.b16 %v3097, %v3089
    %v3186 = vpack.c.b16 %v3098, %v3090
    %v3187 = vpack.c.b16 %v3099, %v3091
    %v3188 = vpack.c.b16 %v3100, %v3092
    %v3189 = vpack.c.b16 %v3101, %v3093
    %v3190 = vpack.c.b16 %v3110, %v3102
    %v3191 = vpack.c.b16 %v3111, %v3103
    %v3192 = vpack.c.b16 %v3112, %v3104
    %v3193 = vpack.c.b16 %v3113, %v3105
    %v3194 = vpack.c.b16 %v3114, %v3106
    %v3195 = vpack.c.b16 %v3115, %v3107
    %v3196 = vpack.c.b16 %v3116, %v3108
    %v3197 = vpack.c.b16 %v3117, %v3109
    %v3198 = vpack.c.b16 %v3126, %v3118
    %v3199 = vpack.c.b16 %v3127, %v3119
    %v3200 = vpack.c.b16 %v3128, %v3120
    %v3201 = vpack.c.b16 %v3129, %v3121
    %v3202 = vpack.c.b16 %v3130, %v3122
    %v3203 = vpack.c.b16 %v3131, %v3123
    %v3204 = vpack.c.b16 %v3132, %v3124
    %v3205 = vpack.c.b16 %v3133, %v3125
    %v3206 = vpack.c.b16 %v3142, %v3134
    %v3207 = vpack.c.b16 %v3143, %v3135
    %v3208 = vpack.c.b16 %v3144, %v3136
    %v3209 = vpack.c.b16 %v3145, %v3137
    %v3210 = vpack.c.b16 %v3146, %v3138
    %v3211 = vpack.c.b16 %v3147, %v3139
    %v3212 = vpack.c.b16 %v3148, %v3140
    %v3213 = vpack.c.b16 %v3149, %v3141
    %3278 = vmatprep.subr.bf16.mxu0 %v3207
    %3279 = vmatpush1.bf16.msra.mxu0 %v3206
    %3280 = vmatprep.subr.bf16.mxu0 %v3199
    %3281 = vmatpush1.bf16.msra.mxu0 %v3198
    %3282 = vmatprep.subr.bf16.mxu0 %v3191
    %3283 = vmatpush1.bf16.msra.mxu0 %v3190
    %3284 = vmatprep.subr.bf16.mxu0 %v3183
    %3285 = vmatpush1.bf16.msra.mxu0 %v3182
    %3286 = vmatprep.subr.bf16.mxu0 %v3175
    %3287 = vmatpush1.bf16.msra.mxu0 %v3174
    %3288 = vmatprep.subr.bf16.mxu0 %v3167
    %3289 = vmatpush1.bf16.msra.mxu0 %v3166
    %3290 = vmatprep.subr.bf16.mxu0 %v3159
    %3291 = vmatpush1.bf16.msra.mxu0 %v3158
    %3292 = vmatprep.subr.bf16.mxu0 %v3151
    %3293 = vmatpush1.bf16.msra.mxu0 %v3150
    %3294 = vmatprep.subr.bf16.mxu0 0
    %3295 = vmatpush2.bf16.msra.mxu0 0
    %3296 = vmatprep.subr.bf16.mxu0 0
    %3297 = vmatpush2.bf16.msra.mxu0 0
    %3298 = vmatprep.subr.bf16.mxu0 0
    %3299 = vmatpush2.bf16.msra.mxu0 0
    %3300 = vmatprep.subr.bf16.mxu0 0
    %3301 = vmatpush2.bf16.msra.mxu0 0
    %3302 = vmatprep.subr.bf16.mxu0 0
    %3303 = vmatpush2.bf16.msra.mxu0 0
    %3304 = vmatprep.subr.bf16.mxu0 0
    %3305 = vmatpush2.bf16.msra.mxu0 0
    %3306 = vmatprep.subr.bf16.mxu0 0
    %3307 = vmatpush2.bf16.msra.mxu0 0
    %3308 = vmatprep.subr.bf16.mxu0 0
    %3309 = vmatpush2.bf16.msra.mxu0 0
    %3310 = vmatprep.mubr.bf16.mxu0 0
    %3311 = vmatmul.mubr.bf16.gmra.mxu0 %v2893
    %v3312 = vpop.f32.mrf.mxu0
    %v3313 = vadd.f32 0.0, %v3312
    %v3314 = vpop.f32.mrf.mxu0
    %v3315 = vadd.f32 0.0, %v3314
    %v3316 = vpop.f32.mrf.mxu0
    %v3317 = vpop.f32.mrf.mxu0
    %3318 = vdwg.mxu0
    %3319 = vmatprep.subr.bf16.mxu0 %v3209
    %3320 = vmatpush1.bf16.msra.mxu0 %v3208
    %3321 = vmatprep.subr.bf16.mxu0 %v3201
    %3322 = vmatpush1.bf16.msra.mxu0 %v3200
    %3323 = vmatprep.subr.bf16.mxu0 %v3193
    %3324 = vmatpush1.bf16.msra.mxu0 %v3192
    %3325 = vmatprep.subr.bf16.mxu0 %v3185
    %3326 = vmatpush1.bf16.msra.mxu0 %v3184
    %3327 = vmatprep.subr.bf16.mxu0 %v3177
    %3328 = vmatpush1.bf16.msra.mxu0 %v3176
    %3329 = vmatprep.subr.bf16.mxu0 %v3169
    %3330 = vmatpush1.bf16.msra.mxu0 %v3168
    %3331 = vmatprep.subr.bf16.mxu0 %v3161
    %3332 = vmatpush1.bf16.msra.mxu0 %v3160
    %3333 = vmatprep.subr.bf16.mxu0 %v3153
    %3334 = vmatpush1.bf16.msra.mxu0 %v3152
    %3335 = vmatprep.subr.bf16.mxu0 0
    %3336 = vmatpush2.bf16.msra.mxu0 0
    %3337 = vmatprep.subr.bf16.mxu0 0
    %3338 = vmatpush2.bf16.msra.mxu0 0
    %3339 = vmatprep.subr.bf16.mxu0 0
    %3340 = vmatpush2.bf16.msra.mxu0 0
    %3341 = vmatprep.subr.bf16.mxu0 0
    %3342 = vmatpush2.bf16.msra.mxu0 0
    %3343 = vmatprep.subr.bf16.mxu0 0
    %3344 = vmatpush2.bf16.msra.mxu0 0
    %3345 = vmatprep.subr.bf16.mxu0 0
    %3346 = vmatpush2.bf16.msra.mxu0 0
    %3347 = vmatprep.subr.bf16.mxu0 0
    %3348 = vmatpush2.bf16.msra.mxu0 0
    %3349 = vmatprep.subr.bf16.mxu0 0
    %3350 = vmatpush2.bf16.msra.mxu0 0
    %3351 = vmatprep.mubr.bf16.mxu0 0
    %3352 = vmatmul.mubr.bf16.gmra.mxu0 %v2893
    %v3353 = vpop.f32.mrf.mxu0
    %v3354 = vadd.f32 0.0, %v3353
    %v3355 = vpop.f32.mrf.mxu0
    %v3356 = vadd.f32 0.0, %v3355
    %v3357 = vpop.f32.mrf.mxu0
    %v3358 = vpop.f32.mrf.mxu0
    %3359 = vdwg.mxu0
    %3360 = vmatprep.subr.bf16.mxu0 %v3211
    %3361 = vmatpush1.bf16.msra.mxu0 %v3210
    %3362 = vmatprep.subr.bf16.mxu0 %v3203
    %3363 = vmatpush1.bf16.msra.mxu0 %v3202
    %3364 = vmatprep.subr.bf16.mxu0 %v3195
    %3365 = vmatpush1.bf16.msra.mxu0 %v3194
    %3366 = vmatprep.subr.bf16.mxu0 %v3187
    %3367 = vmatpush1.bf16.msra.mxu0 %v3186
    %3368 = vmatprep.subr.bf16.mxu0 %v3179
    %3369 = vmatpush1.bf16.msra.mxu0 %v3178
    %3370 = vmatprep.subr.bf16.mxu0 %v3171
    %3371 = vmatpush1.bf16.msra.mxu0 %v3170
    %3372 = vmatprep.subr.bf16.mxu0 %v3163
    %3373 = vmatpush1.bf16.msra.mxu0 %v3162
    %3374 = vmatprep.subr.bf16.mxu0 %v3155
    %3375 = vmatpush1.bf16.msra.mxu0 %v3154
    %3376 = vmatprep.subr.bf16.mxu0 0
    %3377 = vmatpush2.bf16.msra.mxu0 0
    %3378 = vmatprep.subr.bf16.mxu0 0
    %3379 = vmatpush2.bf16.msra.mxu0 0
    %3380 = vmatprep.subr.bf16.mxu0 0
    %3381 = vmatpush2.bf16.msra.mxu0 0
    %3382 = vmatprep.subr.bf16.mxu0 0
    %3383 = vmatpush2.bf16.msra.mxu0 0
    %3384 = vmatprep.subr.bf16.mxu0 0
    %3385 = vmatpush2.bf16.msra.mxu0 0
    %3386 = vmatprep.subr.bf16.mxu0 0
    %3387 = vmatpush2.bf16.msra.mxu0 0
    %3388 = vmatprep.subr.bf16.mxu0 0
    %3389 = vmatpush2.bf16.msra.mxu0 0
    %3390 = vmatprep.subr.bf16.mxu0 0
    %3391 = vmatpush2.bf16.msra.mxu0 0
    %3392 = vmatprep.mubr.bf16.mxu0 0
    %3393 = vmatmul.mubr.bf16.gmra.mxu0 %v2893
    %v3394 = vpop.f32.mrf.mxu0
    %v3395 = vadd.f32 0.0, %v3394
    %v3396 = vpop.f32.mrf.mxu0
    %v3397 = vadd.f32 0.0, %v3396
    %v3398 = vpop.f32.mrf.mxu0
    %v3399 = vpop.f32.mrf.mxu0
    %3400 = vdwg.mxu0
    %3401 = vmatprep.subr.bf16.mxu0 %v3213
    %3402 = vmatpush1.bf16.msra.mxu0 %v3212
    %3403 = vmatprep.subr.bf16.mxu0 %v3205
    %3404 = vmatpush1.bf16.msra.mxu0 %v3204
    %3405 = vmatprep.subr.bf16.mxu0 %v3197
    %3406 = vmatpush1.bf16.msra.mxu0 %v3196
    %3407 = vmatprep.subr.bf16.mxu0 %v3189
    %3408 = vmatpush1.bf16.msra.mxu0 %v3188
    %3409 = vmatprep.subr.bf16.mxu0 %v3181
    %3410 = vmatpush1.bf16.msra.mxu0 %v3180
    %3411 = vmatprep.subr.bf16.mxu0 %v3173
    %3412 = vmatpush1.bf16.msra.mxu0 %v3172
    %3413 = vmatprep.subr.bf16.mxu0 %v3165
    %3414 = vmatpush1.bf16.msra.mxu0 %v3164
    %3415 = vmatprep.subr.bf16.mxu0 %v3157
    %3416 = vmatpush1.bf16.msra.mxu0 %v3156
    %3417 = vmatprep.subr.bf16.mxu0 0
    %3418 = vmatpush2.bf16.msra.mxu0 0
    %3419 = vmatprep.subr.bf16.mxu0 0
    %3420 = vmatpush2.bf16.msra.mxu0 0
    %3421 = vmatprep.subr.bf16.mxu0 0
    %3422 = vmatpush2.bf16.msra.mxu0 0
    %3423 = vmatprep.subr.bf16.mxu0 0
    %3424 = vmatpush2.bf16.msra.mxu0 0
    %3425 = vmatprep.subr.bf16.mxu0 0
    %3426 = vmatpush2.bf16.msra.mxu0 0
    %3427 = vmatprep.subr.bf16.mxu0 0
    %3428 = vmatpush2.bf16.msra.mxu0 0
    %3429 = vmatprep.subr.bf16.mxu0 0
    %3430 = vmatpush2.bf16.msra.mxu0 0
    %3431 = vmatprep.subr.bf16.mxu0 0
    %3432 = vmatpush2.bf16.msra.mxu0 0
    %3433 = vmatprep.mubr.bf16.mxu0 0
    %3434 = vmatmul.mubr.bf16.gmra.mxu0 %v2893
    %v3435 = vpop.f32.mrf.mxu0
    %v3436 = vadd.f32 0.0, %v3435
    %v3437 = vpop.f32.mrf.mxu0
    %v3438 = vadd.f32 0.0, %v3437
    %v3439 = vpop.f32.mrf.mxu0
    %v3440 = vpop.f32.mrf.mxu0
    %3441 = vdwg.mxu0
    %v3442 = vmax.f32 %v3313, %v3354
    %v3443 = vmax.f32 %v3315, %v3356
    %v3444 = vmax.f32 %v3395, %v3436
    %v3445 = vmax.f32 %v3397, %v3438
    %v3446 = vmax.f32 %v3442, %v3444
    %v3447 = vmax.f32 %v3443, %v3445
    %v3448 = vadd.f32 %v3446, %v601
    %v3449 = vadd.f32 %v3447, %v605
    %v3450 = vmax.f32 %v3448, 0.0
    %v3451 = vmax.f32 %v3449, 0.0
    %v3452 = vpack.c.bf16 %v3450, %v3450
    %v3453 = vpack.c.bf16 %v3451, %v3451
    %v3456 = vunpack.c.l.b16 %v3452
    %v3457 = vunpack.c.l.b16 %v3453
    %v3458 = vpack.c.b16 %v3457, %v3456
    %3460 = vst [vmem:[#allocation2 + $0x28] sm:$0xff] %v3458
    %v3461 = vld [vmem:[%s0 + $0x18] sm:$0xf]
    %v3462 = vld [vmem:[%s1] sm:$0xff]
    %v3463 = vld [vmem:[%s1 + $0x8] sm:$0xff]
    %v3464 = vld [vmem:[%s1 + $0x10] sm:$0xff]
    %v3465 = vld [vmem:[%s1 + $0x18] sm:$0xff]
    %v3466 = vld [vmem:[%s1 + $0x20] sm:$0xff]
    %v3467 = vld [vmem:[%s1 + $0x28] sm:$0xff]
    %v3468 = vld [vmem:[%s1 + $0x30] sm:$0xff]
    %v3469 = vld [vmem:[%s1 + $0x38] sm:$0xff]
    %v3470 = vld [vmem:[%s1 + $0x40] sm:$0xff]
    %v3471 = vld [vmem:[%s1 + $0x48] sm:$0xff]
    %v3472 = vld [vmem:[%s1 + $0x50] sm:$0xff]
    %v3473 = vld [vmem:[%s1 + $0x58] sm:$0xff]
    %v3474 = vld [vmem:[%s1 + $0x60] sm:$0xff]
    %v3475 = vld [vmem:[%s1 + $0x68] sm:$0xff]
    %v3476 = vld [vmem:[%s1 + $0x70] sm:$0xff]
    %v3477 = vld [vmem:[%s1 + $0x78] sm:$0xff]
    %v3478 = vld [vmem:[%s1 + $0x80] sm:$0xff]
    %v3479 = vld [vmem:[%s1 + $0x88] sm:$0xff]
    %v3480 = vld [vmem:[%s1 + $0x90] sm:$0xff]
    %v3481 = vld [vmem:[%s1 + $0x98] sm:$0xff]
    %v3482 = vld [vmem:[%s1 + $0xa0] sm:$0xff]
    %v3483 = vld [vmem:[%s1 + $0xa8] sm:$0xff]
    %v3484 = vld [vmem:[%s1 + $0xb0] sm:$0xff]
    %v3485 = vld [vmem:[%s1 + $0xb8] sm:$0xff]
    %v3486 = vld [vmem:[%s1 + $0xc0] sm:$0xff]
    %v3487 = vld [vmem:[%s1 + $0xc8] sm:$0xff]
    %v3488 = vld [vmem:[%s1 + $0xd0] sm:$0xff]
    %v3489 = vld [vmem:[%s1 + $0xd8] sm:$0xff]
    %v3490 = vld [vmem:[%s1 + $0xe0] sm:$0xff]
    %v3491 = vld [vmem:[%s1 + $0xe8] sm:$0xff]
    %v3492 = vld [vmem:[%s1 + $0xf0] sm:$0xff]
    %v3493 = vld [vmem:[%s1 + $0xf8] sm:$0xff]
    %v3494 = vld [vmem:[%s1 + $0x100] sm:$0xff]
    %v3495 = vld [vmem:[%s1 + $0x108] sm:$0xff]
    %v3496 = vld [vmem:[%s1 + $0x110] sm:$0xff]
    %v3497 = vld [vmem:[%s1 + $0x118] sm:$0xff]
    %v3498 = vld [vmem:[%s1 + $0x120] sm:$0xff]
    %v3499 = vld [vmem:[%s1 + $0x128] sm:$0xff]
    %v3500 = vld [vmem:[%s1 + $0x130] sm:$0xff]
    %v3501 = vld [vmem:[%s1 + $0x138] sm:$0xff]
    %v3502 = vld [vmem:[%s1 + $0x140] sm:$0xff]
    %v3503 = vld [vmem:[%s1 + $0x148] sm:$0xff]
    %v3504 = vld [vmem:[%s1 + $0x150] sm:$0xff]
    %v3505 = vld [vmem:[%s1 + $0x158] sm:$0xff]
    %v3506 = vld [vmem:[%s1 + $0x160] sm:$0xff]
    %v3507 = vld [vmem:[%s1 + $0x168] sm:$0xff]
    %v3508 = vld [vmem:[%s1 + $0x170] sm:$0xff]
    %v3509 = vld [vmem:[%s1 + $0x178] sm:$0xff]
    %v3510 = vld [vmem:[%s1 + $0x180] sm:$0xff]
    %v3511 = vld [vmem:[%s1 + $0x188] sm:$0xff]
    %v3512 = vld [vmem:[%s1 + $0x190] sm:$0xff]
    %v3513 = vld [vmem:[%s1 + $0x198] sm:$0xff]
    %v3514 = vld [vmem:[%s1 + $0x1a0] sm:$0xff]
    %v3515 = vld [vmem:[%s1 + $0x1a8] sm:$0xff]
    %v3516 = vld [vmem:[%s1 + $0x1b0] sm:$0xff]
    %v3517 = vld [vmem:[%s1 + $0x1b8] sm:$0xff]
    %v3518 = vld [vmem:[%s1 + $0x1c0] sm:$0xff]
    %v3519 = vld [vmem:[%s1 + $0x1c8] sm:$0xff]
    %v3520 = vld [vmem:[%s1 + $0x1d0] sm:$0xff]
    %v3521 = vld [vmem:[%s1 + $0x1d8] sm:$0xff]
    %v3522 = vld [vmem:[%s1 + $0x1e0] sm:$0xff]
    %v3523 = vld [vmem:[%s1 + $0x1e8] sm:$0xff]
    %v3524 = vld [vmem:[%s1 + $0x1f0] sm:$0xff]
    %v3525 = vld [vmem:[%s1 + $0x1f8] sm:$0xff]
    %v3590 = vunpack.c.l.b16 %v3462
    %v3591 = vunpack.c.h.b16 %v3462
    %v3592 = vunpack.c.l.b16 %v3463
    %v3593 = vunpack.c.h.b16 %v3463
    %v3594 = vunpack.c.l.b16 %v3464
    %v3595 = vunpack.c.h.b16 %v3464
    %v3596 = vunpack.c.l.b16 %v3465
    %v3597 = vunpack.c.h.b16 %v3465
    %v3598 = vunpack.c.l.b16 %v3466
    %v3599 = vunpack.c.h.b16 %v3466
    %v3600 = vunpack.c.l.b16 %v3467
    %v3601 = vunpack.c.h.b16 %v3467
    %v3602 = vunpack.c.l.b16 %v3468
    %v3603 = vunpack.c.h.b16 %v3468
    %v3604 = vunpack.c.l.b16 %v3469
    %v3605 = vunpack.c.h.b16 %v3469
    %v3606 = vunpack.c.l.b16 %v3470
    %v3607 = vunpack.c.h.b16 %v3470
    %v3608 = vunpack.c.l.b16 %v3471
    %v3609 = vunpack.c.h.b16 %v3471
    %v3610 = vunpack.c.l.b16 %v3472
    %v3611 = vunpack.c.h.b16 %v3472
    %v3612 = vunpack.c.l.b16 %v3473
    %v3613 = vunpack.c.h.b16 %v3473
    %v3614 = vunpack.c.l.b16 %v3474
    %v3615 = vunpack.c.h.b16 %v3474
    %v3616 = vunpack.c.l.b16 %v3475
    %v3617 = vunpack.c.h.b16 %v3475
    %v3618 = vunpack.c.l.b16 %v3476
    %v3619 = vunpack.c.h.b16 %v3476
    %v3620 = vunpack.c.l.b16 %v3477
    %v3621 = vunpack.c.h.b16 %v3477
    %v3622 = vunpack.c.l.b16 %v3478
    %v3623 = vunpack.c.h.b16 %v3478
    %v3624 = vunpack.c.l.b16 %v3479
    %v3625 = vunpack.c.h.b16 %v3479
    %v3626 = vunpack.c.l.b16 %v3480
    %v3627 = vunpack.c.h.b16 %v3480
    %v3628 = vunpack.c.l.b16 %v3481
    %v3629 = vunpack.c.h.b16 %v3481
    %v3630 = vunpack.c.l.b16 %v3482
    %v3631 = vunpack.c.h.b16 %v3482
    %v3632 = vunpack.c.l.b16 %v3483
    %v3633 = vunpack.c.h.b16 %v3483
    %v3634 = vunpack.c.l.b16 %v3484
    %v3635 = vunpack.c.h.b16 %v3484
    %v3636 = vunpack.c.l.b16 %v3485
    %v3637 = vunpack.c.h.b16 %v3485
    %v3638 = vunpack.c.l.b16 %v3486
    %v3639 = vunpack.c.h.b16 %v3486
    %v3640 = vunpack.c.l.b16 %v3487
    %v3641 = vunpack.c.h.b16 %v3487
    %v3642 = vunpack.c.l.b16 %v3488
    %v3643 = vunpack.c.h.b16 %v3488
    %v3644 = vunpack.c.l.b16 %v3489
    %v3645 = vunpack.c.h.b16 %v3489
    %v3646 = vunpack.c.l.b16 %v3490
    %v3647 = vunpack.c.h.b16 %v3490
    %v3648 = vunpack.c.l.b16 %v3491
    %v3649 = vunpack.c.h.b16 %v3491
    %v3650 = vunpack.c.l.b16 %v3492
    %v3651 = vunpack.c.h.b16 %v3492
    %v3652 = vunpack.c.l.b16 %v3493
    %v3653 = vunpack.c.h.b16 %v3493
    %v3654 = vunpack.c.l.b16 %v3494
    %v3655 = vunpack.c.h.b16 %v3494
    %v3656 = vunpack.c.l.b16 %v3495
    %v3657 = vunpack.c.h.b16 %v3495
    %v3658 = vunpack.c.l.b16 %v3496
    %v3659 = vunpack.c.h.b16 %v3496
    %v3660 = vunpack.c.l.b16 %v3497
    %v3661 = vunpack.c.h.b16 %v3497
    %v3662 = vunpack.c.l.b16 %v3498
    %v3663 = vunpack.c.h.b16 %v3498
    %v3664 = vunpack.c.l.b16 %v3499
    %v3665 = vunpack.c.h.b16 %v3499
    %v3666 = vunpack.c.l.b16 %v3500
    %v3667 = vunpack.c.h.b16 %v3500
    %v3668 = vunpack.c.l.b16 %v3501
    %v3669 = vunpack.c.h.b16 %v3501
    %v3670 = vunpack.c.l.b16 %v3502
    %v3671 = vunpack.c.h.b16 %v3502
    %v3672 = vunpack.c.l.b16 %v3503
    %v3673 = vunpack.c.h.b16 %v3503
    %v3674 = vunpack.c.l.b16 %v3504
    %v3675 = vunpack.c.h.b16 %v3504
    %v3676 = vunpack.c.l.b16 %v3505
    %v3677 = vunpack.c.h.b16 %v3505
    %v3678 = vunpack.c.l.b16 %v3506
    %v3679 = vunpack.c.h.b16 %v3506
    %v3680 = vunpack.c.l.b16 %v3507
    %v3681 = vunpack.c.h.b16 %v3507
    %v3682 = vunpack.c.l.b16 %v3508
    %v3683 = vunpack.c.h.b16 %v3508
    %v3684 = vunpack.c.l.b16 %v3509
    %v3685 = vunpack.c.h.b16 %v3509
    %v3686 = vunpack.c.l.b16 %v3510
    %v3687 = vunpack.c.h.b16 %v3510
    %v3688 = vunpack.c.l.b16 %v3511
    %v3689 = vunpack.c.h.b16 %v3511
    %v3690 = vunpack.c.l.b16 %v3512
    %v3691 = vunpack.c.h.b16 %v3512
    %v3692 = vunpack.c.l.b16 %v3513
    %v3693 = vunpack.c.h.b16 %v3513
    %v3694 = vunpack.c.l.b16 %v3514
    %v3695 = vunpack.c.h.b16 %v3514
    %v3696 = vunpack.c.l.b16 %v3515
    %v3697 = vunpack.c.h.b16 %v3515
    %v3698 = vunpack.c.l.b16 %v3516
    %v3699 = vunpack.c.h.b16 %v3516
    %v3700 = vunpack.c.l.b16 %v3517
    %v3701 = vunpack.c.h.b16 %v3517
    %v3702 = vunpack.c.l.b16 %v3518
    %v3703 = vunpack.c.h.b16 %v3518
    %v3704 = vunpack.c.l.b16 %v3519
    %v3705 = vunpack.c.h.b16 %v3519
    %v3706 = vunpack.c.l.b16 %v3520
    %v3707 = vunpack.c.h.b16 %v3520
    %v3708 = vunpack.c.l.b16 %v3521
    %v3709 = vunpack.c.h.b16 %v3521
    %v3710 = vunpack.c.l.b16 %v3522
    %v3711 = vunpack.c.h.b16 %v3522
    %v3712 = vunpack.c.l.b16 %v3523
    %v3713 = vunpack.c.h.b16 %v3523
    %v3714 = vunpack.c.l.b16 %v3524
    %v3715 = vunpack.c.h.b16 %v3524
    %v3716 = vunpack.c.l.b16 %v3525
    %v3717 = vunpack.c.h.b16 %v3525
    %v3718 = vpack.c.b16 %v3598, %v3590
    %v3719 = vpack.c.b16 %v3599, %v3591
    %v3720 = vpack.c.b16 %v3600, %v3592
    %v3721 = vpack.c.b16 %v3601, %v3593
    %v3722 = vpack.c.b16 %v3602, %v3594
    %v3723 = vpack.c.b16 %v3603, %v3595
    %v3724 = vpack.c.b16 %v3604, %v3596
    %v3725 = vpack.c.b16 %v3605, %v3597
    %v3726 = vpack.c.b16 %v3614, %v3606
    %v3727 = vpack.c.b16 %v3615, %v3607
    %v3728 = vpack.c.b16 %v3616, %v3608
    %v3729 = vpack.c.b16 %v3617, %v3609
    %v3730 = vpack.c.b16 %v3618, %v3610
    %v3731 = vpack.c.b16 %v3619, %v3611
    %v3732 = vpack.c.b16 %v3620, %v3612
    %v3733 = vpack.c.b16 %v3621, %v3613
    %v3734 = vpack.c.b16 %v3630, %v3622
    %v3735 = vpack.c.b16 %v3631, %v3623
    %v3736 = vpack.c.b16 %v3632, %v3624
    %v3737 = vpack.c.b16 %v3633, %v3625
    %v3738 = vpack.c.b16 %v3634, %v3626
    %v3739 = vpack.c.b16 %v3635, %v3627
    %v3740 = vpack.c.b16 %v3636, %v3628
    %v3741 = vpack.c.b16 %v3637, %v3629
    %v3742 = vpack.c.b16 %v3646, %v3638
    %v3743 = vpack.c.b16 %v3647, %v3639
    %v3744 = vpack.c.b16 %v3648, %v3640
    %v3745 = vpack.c.b16 %v3649, %v3641
    %v3746 = vpack.c.b16 %v3650, %v3642
    %v3747 = vpack.c.b16 %v3651, %v3643
    %v3748 = vpack.c.b16 %v3652, %v3644
    %v3749 = vpack.c.b16 %v3653, %v3645
    %v3750 = vpack.c.b16 %v3662, %v3654
    %v3751 = vpack.c.b16 %v3663, %v3655
    %v3752 = vpack.c.b16 %v3664, %v3656
    %v3753 = vpack.c.b16 %v3665, %v3657
    %v3754 = vpack.c.b16 %v3666, %v3658
    %v3755 = vpack.c.b16 %v3667, %v3659
    %v3756 = vpack.c.b16 %v3668, %v3660
    %v3757 = vpack.c.b16 %v3669, %v3661
    %v3758 = vpack.c.b16 %v3678, %v3670
    %v3759 = vpack.c.b16 %v3679, %v3671
    %v3760 = vpack.c.b16 %v3680, %v3672
    %v3761 = vpack.c.b16 %v3681, %v3673
    %v3762 = vpack.c.b16 %v3682, %v3674
    %v3763 = vpack.c.b16 %v3683, %v3675
    %v3764 = vpack.c.b16 %v3684, %v3676
    %v3765 = vpack.c.b16 %v3685, %v3677
    %v3766 = vpack.c.b16 %v3694, %v3686
    %v3767 = vpack.c.b16 %v3695, %v3687
    %v3768 = vpack.c.b16 %v3696, %v3688
    %v3769 = vpack.c.b16 %v3697, %v3689
    %v3770 = vpack.c.b16 %v3698, %v3690
    %v3771 = vpack.c.b16 %v3699, %v3691
    %v3772 = vpack.c.b16 %v3700, %v3692
    %v3773 = vpack.c.b16 %v3701, %v3693
    %v3774 = vpack.c.b16 %v3710, %v3702
    %v3775 = vpack.c.b16 %v3711, %v3703
    %v3776 = vpack.c.b16 %v3712, %v3704
    %v3777 = vpack.c.b16 %v3713, %v3705
    %v3778 = vpack.c.b16 %v3714, %v3706
    %v3779 = vpack.c.b16 %v3715, %v3707
    %v3780 = vpack.c.b16 %v3716, %v3708
    %v3781 = vpack.c.b16 %v3717, %v3709
    %3846 = vmatprep.subr.bf16.mxu0 %v3775
    %3847 = vmatpush1.bf16.msra.mxu0 %v3774
    %3848 = vmatprep.subr.bf16.mxu0 %v3767
    %3849 = vmatpush1.bf16.msra.mxu0 %v3766
    %3850 = vmatprep.subr.bf16.mxu0 %v3759
    %3851 = vmatpush1.bf16.msra.mxu0 %v3758
    %3852 = vmatprep.subr.bf16.mxu0 %v3751
    %3853 = vmatpush1.bf16.msra.mxu0 %v3750
    %3854 = vmatprep.subr.bf16.mxu0 %v3743
    %3855 = vmatpush1.bf16.msra.mxu0 %v3742
    %3856 = vmatprep.subr.bf16.mxu0 %v3735
    %3857 = vmatpush1.bf16.msra.mxu0 %v3734
    %3858 = vmatprep.subr.bf16.mxu0 %v3727
    %3859 = vmatpush1.bf16.msra.mxu0 %v3726
    %3860 = vmatprep.subr.bf16.mxu0 %v3719
    %3861 = vmatpush1.bf16.msra.mxu0 %v3718
    %3862 = vmatprep.subr.bf16.mxu0 0
    %3863 = vmatpush2.bf16.msra.mxu0 0
    %3864 = vmatprep.subr.bf16.mxu0 0
    %3865 = vmatpush2.bf16.msra.mxu0 0
    %3866 = vmatprep.subr.bf16.mxu0 0
    %3867 = vmatpush2.bf16.msra.mxu0 0
    %3868 = vmatprep.subr.bf16.mxu0 0
    %3869 = vmatpush2.bf16.msra.mxu0 0
    %3870 = vmatprep.subr.bf16.mxu0 0
    %3871 = vmatpush2.bf16.msra.mxu0 0
    %3872 = vmatprep.subr.bf16.mxu0 0
    %3873 = vmatpush2.bf16.msra.mxu0 0
    %3874 = vmatprep.subr.bf16.mxu0 0
    %3875 = vmatpush2.bf16.msra.mxu0 0
    %3876 = vmatprep.subr.bf16.mxu0 0
    %3877 = vmatpush2.bf16.msra.mxu0 0
    %3878 = vmatprep.mubr.bf16.mxu0 0
    %3879 = vmatmul.mubr.bf16.gmra.mxu0 %v3461
    %v3880 = vpop.f32.mrf.mxu0
    %v3881 = vadd.f32 0.0, %v3880
    %v3882 = vpop.f32.mrf.mxu0
    %v3883 = vadd.f32 0.0, %v3882
    %v3884 = vpop.f32.mrf.mxu0
    %v3885 = vpop.f32.mrf.mxu0
    %3886 = vdwg.mxu0
    %3887 = vmatprep.subr.bf16.mxu0 %v3777
    %3888 = vmatpush1.bf16.msra.mxu0 %v3776
    %3889 = vmatprep.subr.bf16.mxu0 %v3769
    %3890 = vmatpush1.bf16.msra.mxu0 %v3768
    %3891 = vmatprep.subr.bf16.mxu0 %v3761
    %3892 = vmatpush1.bf16.msra.mxu0 %v3760
    %3893 = vmatprep.subr.bf16.mxu0 %v3753
    %3894 = vmatpush1.bf16.msra.mxu0 %v3752
    %3895 = vmatprep.subr.bf16.mxu0 %v3745
    %3896 = vmatpush1.bf16.msra.mxu0 %v3744
    %3897 = vmatprep.subr.bf16.mxu0 %v3737
    %3898 = vmatpush1.bf16.msra.mxu0 %v3736
    %3899 = vmatprep.subr.bf16.mxu0 %v3729
    %3900 = vmatpush1.bf16.msra.mxu0 %v3728
    %3901 = vmatprep.subr.bf16.mxu0 %v3721
    %3902 = vmatpush1.bf16.msra.mxu0 %v3720
    %3903 = vmatprep.subr.bf16.mxu0 0
    %3904 = vmatpush2.bf16.msra.mxu0 0
    %3905 = vmatprep.subr.bf16.mxu0 0
    %3906 = vmatpush2.bf16.msra.mxu0 0
    %3907 = vmatprep.subr.bf16.mxu0 0
    %3908 = vmatpush2.bf16.msra.mxu0 0
    %3909 = vmatprep.subr.bf16.mxu0 0
    %3910 = vmatpush2.bf16.msra.mxu0 0
    %3911 = vmatprep.subr.bf16.mxu0 0
    %3912 = vmatpush2.bf16.msra.mxu0 0
    %3913 = vmatprep.subr.bf16.mxu0 0
    %3914 = vmatpush2.bf16.msra.mxu0 0
    %3915 = vmatprep.subr.bf16.mxu0 0
    %3916 = vmatpush2.bf16.msra.mxu0 0
    %3917 = vmatprep.subr.bf16.mxu0 0
    %3918 = vmatpush2.bf16.msra.mxu0 0
    %3919 = vmatprep.mubr.bf16.mxu0 0
    %3920 = vmatmul.mubr.bf16.gmra.mxu0 %v3461
    %v3921 = vpop.f32.mrf.mxu0
    %v3922 = vadd.f32 0.0, %v3921
    %v3923 = vpop.f32.mrf.mxu0
    %v3924 = vadd.f32 0.0, %v3923
    %v3925 = vpop.f32.mrf.mxu0
    %v3926 = vpop.f32.mrf.mxu0
    %3927 = vdwg.mxu0
    %3928 = vmatprep.subr.bf16.mxu0 %v3779
    %3929 = vmatpush1.bf16.msra.mxu0 %v3778
    %3930 = vmatprep.subr.bf16.mxu0 %v3771
    %3931 = vmatpush1.bf16.msra.mxu0 %v3770
    %3932 = vmatprep.subr.bf16.mxu0 %v3763
    %3933 = vmatpush1.bf16.msra.mxu0 %v3762
    %3934 = vmatprep.subr.bf16.mxu0 %v3755
    %3935 = vmatpush1.bf16.msra.mxu0 %v3754
    %3936 = vmatprep.subr.bf16.mxu0 %v3747
    %3937 = vmatpush1.bf16.msra.mxu0 %v3746
    %3938 = vmatprep.subr.bf16.mxu0 %v3739
    %3939 = vmatpush1.bf16.msra.mxu0 %v3738
    %3940 = vmatprep.subr.bf16.mxu0 %v3731
    %3941 = vmatpush1.bf16.msra.mxu0 %v3730
    %3942 = vmatprep.subr.bf16.mxu0 %v3723
    %3943 = vmatpush1.bf16.msra.mxu0 %v3722
    %3944 = vmatprep.subr.bf16.mxu0 0
    %3945 = vmatpush2.bf16.msra.mxu0 0
    %3946 = vmatprep.subr.bf16.mxu0 0
    %3947 = vmatpush2.bf16.msra.mxu0 0
    %3948 = vmatprep.subr.bf16.mxu0 0
    %3949 = vmatpush2.bf16.msra.mxu0 0
    %3950 = vmatprep.subr.bf16.mxu0 0
    %3951 = vmatpush2.bf16.msra.mxu0 0
    %3952 = vmatprep.subr.bf16.mxu0 0
    %3953 = vmatpush2.bf16.msra.mxu0 0
    %3954 = vmatprep.subr.bf16.mxu0 0
    %3955 = vmatpush2.bf16.msra.mxu0 0
    %3956 = vmatprep.subr.bf16.mxu0 0
    %3957 = vmatpush2.bf16.msra.mxu0 0
    %3958 = vmatprep.subr.bf16.mxu0 0
    %3959 = vmatpush2.bf16.msra.mxu0 0
    %3960 = vmatprep.mubr.bf16.mxu0 0
    %3961 = vmatmul.mubr.bf16.gmra.mxu0 %v3461
    %v3962 = vpop.f32.mrf.mxu0
    %v3963 = vadd.f32 0.0, %v3962
    %v3964 = vpop.f32.mrf.mxu0
    %v3965 = vadd.f32 0.0, %v3964
    %v3966 = vpop.f32.mrf.mxu0
    %v3967 = vpop.f32.mrf.mxu0
    %3968 = vdwg.mxu0
    %3969 = vmatprep.subr.bf16.mxu0 %v3781
    %3970 = vmatpush1.bf16.msra.mxu0 %v3780
    %3971 = vmatprep.subr.bf16.mxu0 %v3773
    %3972 = vmatpush1.bf16.msra.mxu0 %v3772
    %3973 = vmatprep.subr.bf16.mxu0 %v3765
    %3974 = vmatpush1.bf16.msra.mxu0 %v3764
    %3975 = vmatprep.subr.bf16.mxu0 %v3757
    %3976 = vmatpush1.bf16.msra.mxu0 %v3756
    %3977 = vmatprep.subr.bf16.mxu0 %v3749
    %3978 = vmatpush1.bf16.msra.mxu0 %v3748
    %3979 = vmatprep.subr.bf16.mxu0 %v3741
    %3980 = vmatpush1.bf16.msra.mxu0 %v3740
    %3981 = vmatprep.subr.bf16.mxu0 %v3733
    %3982 = vmatpush1.bf16.msra.mxu0 %v3732
    %3983 = vmatprep.subr.bf16.mxu0 %v3725
    %3984 = vmatpush1.bf16.msra.mxu0 %v3724
    %3985 = vmatprep.subr.bf16.mxu0 0
    %3986 = vmatpush2.bf16.msra.mxu0 0
    %3987 = vmatprep.subr.bf16.mxu0 0
    %3988 = vmatpush2.bf16.msra.mxu0 0
    %3989 = vmatprep.subr.bf16.mxu0 0
    %3990 = vmatpush2.bf16.msra.mxu0 0
    %3991 = vmatprep.subr.bf16.mxu0 0
    %3992 = vmatpush2.bf16.msra.mxu0 0
    %3993 = vmatprep.subr.bf16.mxu0 0
    %3994 = vmatpush2.bf16.msra.mxu0 0
    %3995 = vmatprep.subr.bf16.mxu0 0
    %3996 = vmatpush2.bf16.msra.mxu0 0
    %3997 = vmatprep.subr.bf16.mxu0 0
    %3998 = vmatpush2.bf16.msra.mxu0 0
    %3999 = vmatprep.subr.bf16.mxu0 0
    %4000 = vmatpush2.bf16.msra.mxu0 0
    %4001 = vmatprep.mubr.bf16.mxu0 0
    %4002 = vmatmul.mubr.bf16.gmra.mxu0 %v3461
    %v4003 = vpop.f32.mrf.mxu0
    %v4004 = vadd.f32 0.0, %v4003
    %v4005 = vpop.f32.mrf.mxu0
    %v4006 = vadd.f32 0.0, %v4005
    %v4007 = vpop.f32.mrf.mxu0
    %v4008 = vpop.f32.mrf.mxu0
    %4009 = vdwg.mxu0
    %v4010 = vmax.f32 %v3881, %v3922
    %v4011 = vmax.f32 %v3883, %v3924
    %v4012 = vmax.f32 %v3963, %v4004
    %v4013 = vmax.f32 %v3965, %v4006
    %v4014 = vmax.f32 %v4010, %v4012
    %v4015 = vmax.f32 %v4011, %v4013
    %v4016 = vadd.f32 %v4014, %v601
    %v4017 = vadd.f32 %v4015, %v605
    %v4018 = vmax.f32 %v4016, 0.0
    %v4019 = vmax.f32 %v4017, 0.0
    %v4020 = vpack.c.bf16 %v4018, %v4018
    %v4021 = vpack.c.bf16 %v4019, %v4019
    %v4024 = vunpack.c.l.b16 %v4020
    %v4025 = vunpack.c.l.b16 %v4021
    %v4026 = vpack.c.b16 %v4025, %v4024
    %4028 = vst [vmem:[#allocation2 + $0x30] sm:$0xff] %v4026
    %v4029 = vld [vmem:[%s0 + $0x1c] sm:$0xf]
    %v4030 = vld [vmem:[%s1] sm:$0xff]
    %v4031 = vld [vmem:[%s1 + $0x8] sm:$0xff]
    %v4032 = vld [vmem:[%s1 + $0x10] sm:$0xff]
    %v4033 = vld [vmem:[%s1 + $0x18] sm:$0xff]
    %v4034 = vld [vmem:[%s1 + $0x20] sm:$0xff]
    %v4035 = vld [vmem:[%s1 + $0x28] sm:$0xff]
    %v4036 = vld [vmem:[%s1 + $0x30] sm:$0xff]
    %v4037 = vld [vmem:[%s1 + $0x38] sm:$0xff]
    %v4038 = vld [vmem:[%s1 + $0x40] sm:$0xff]
    %v4039 = vld [vmem:[%s1 + $0x48] sm:$0xff]
    %v4040 = vld [vmem:[%s1 + $0x50] sm:$0xff]
    %v4041 = vld [vmem:[%s1 + $0x58] sm:$0xff]
    %v4042 = vld [vmem:[%s1 + $0x60] sm:$0xff]
    %v4043 = vld [vmem:[%s1 + $0x68] sm:$0xff]
    %v4044 = vld [vmem:[%s1 + $0x70] sm:$0xff]
    %v4045 = vld [vmem:[%s1 + $0x78] sm:$0xff]
    %v4046 = vld [vmem:[%s1 + $0x80] sm:$0xff]
    %v4047 = vld [vmem:[%s1 + $0x88] sm:$0xff]
    %v4048 = vld [vmem:[%s1 + $0x90] sm:$0xff]
    %v4049 = vld [vmem:[%s1 + $0x98] sm:$0xff]
    %v4050 = vld [vmem:[%s1 + $0xa0] sm:$0xff]
    %v4051 = vld [vmem:[%s1 + $0xa8] sm:$0xff]
    %v4052 = vld [vmem:[%s1 + $0xb0] sm:$0xff]
    %v4053 = vld [vmem:[%s1 + $0xb8] sm:$0xff]
    %v4054 = vld [vmem:[%s1 + $0xc0] sm:$0xff]
    %v4055 = vld [vmem:[%s1 + $0xc8] sm:$0xff]
    %v4056 = vld [vmem:[%s1 + $0xd0] sm:$0xff]
    %v4057 = vld [vmem:[%s1 + $0xd8] sm:$0xff]
    %v4058 = vld [vmem:[%s1 + $0xe0] sm:$0xff]
    %v4059 = vld [vmem:[%s1 + $0xe8] sm:$0xff]
    %v4060 = vld [vmem:[%s1 + $0xf0] sm:$0xff]
    %v4061 = vld [vmem:[%s1 + $0xf8] sm:$0xff]
    %v4062 = vld [vmem:[%s1 + $0x100] sm:$0xff]
    %v4063 = vld [vmem:[%s1 + $0x108] sm:$0xff]
    %v4064 = vld [vmem:[%s1 + $0x110] sm:$0xff]
    %v4065 = vld [vmem:[%s1 + $0x118] sm:$0xff]
    %v4066 = vld [vmem:[%s1 + $0x120] sm:$0xff]
    %v4067 = vld [vmem:[%s1 + $0x128] sm:$0xff]
    %v4068 = vld [vmem:[%s1 + $0x130] sm:$0xff]
    %v4069 = vld [vmem:[%s1 + $0x138] sm:$0xff]
    %v4070 = vld [vmem:[%s1 + $0x140] sm:$0xff]
    %v4071 = vld [vmem:[%s1 + $0x148] sm:$0xff]
    %v4072 = vld [vmem:[%s1 + $0x150] sm:$0xff]
    %v4073 = vld [vmem:[%s1 + $0x158] sm:$0xff]
    %v4074 = vld [vmem:[%s1 + $0x160] sm:$0xff]
    %v4075 = vld [vmem:[%s1 + $0x168] sm:$0xff]
    %v4076 = vld [vmem:[%s1 + $0x170] sm:$0xff]
    %v4077 = vld [vmem:[%s1 + $0x178] sm:$0xff]
    %v4078 = vld [vmem:[%s1 + $0x180] sm:$0xff]
    %v4079 = vld [vmem:[%s1 + $0x188] sm:$0xff]
    %v4080 = vld [vmem:[%s1 + $0x190] sm:$0xff]
    %v4081 = vld [vmem:[%s1 + $0x198] sm:$0xff]
    %v4082 = vld [vmem:[%s1 + $0x1a0] sm:$0xff]
    %v4083 = vld [vmem:[%s1 + $0x1a8] sm:$0xff]
    %v4084 = vld [vmem:[%s1 + $0x1b0] sm:$0xff]
    %v4085 = vld [vmem:[%s1 + $0x1b8] sm:$0xff]
    %v4086 = vld [vmem:[%s1 + $0x1c0] sm:$0xff]
    %v4087 = vld [vmem:[%s1 + $0x1c8] sm:$0xff]
    %v4088 = vld [vmem:[%s1 + $0x1d0] sm:$0xff]
    %v4089 = vld [vmem:[%s1 + $0x1d8] sm:$0xff]
    %v4090 = vld [vmem:[%s1 + $0x1e0] sm:$0xff]
    %v4091 = vld [vmem:[%s1 + $0x1e8] sm:$0xff]
    %v4092 = vld [vmem:[%s1 + $0x1f0] sm:$0xff]
    %v4093 = vld [vmem:[%s1 + $0x1f8] sm:$0xff]
    %v4158 = vunpack.c.l.b16 %v4030
    %v4159 = vunpack.c.h.b16 %v4030
    %v4160 = vunpack.c.l.b16 %v4031
    %v4161 = vunpack.c.h.b16 %v4031
    %v4162 = vunpack.c.l.b16 %v4032
    %v4163 = vunpack.c.h.b16 %v4032
    %v4164 = vunpack.c.l.b16 %v4033
    %v4165 = vunpack.c.h.b16 %v4033
    %v4166 = vunpack.c.l.b16 %v4034
    %v4167 = vunpack.c.h.b16 %v4034
    %v4168 = vunpack.c.l.b16 %v4035
    %v4169 = vunpack.c.h.b16 %v4035
    %v4170 = vunpack.c.l.b16 %v4036
    %v4171 = vunpack.c.h.b16 %v4036
    %v4172 = vunpack.c.l.b16 %v4037
    %v4173 = vunpack.c.h.b16 %v4037
    %v4174 = vunpack.c.l.b16 %v4038
    %v4175 = vunpack.c.h.b16 %v4038
    %v4176 = vunpack.c.l.b16 %v4039
    %v4177 = vunpack.c.h.b16 %v4039
    %v4178 = vunpack.c.l.b16 %v4040
    %v4179 = vunpack.c.h.b16 %v4040
    %v4180 = vunpack.c.l.b16 %v4041
    %v4181 = vunpack.c.h.b16 %v4041
    %v4182 = vunpack.c.l.b16 %v4042
    %v4183 = vunpack.c.h.b16 %v4042
    %v4184 = vunpack.c.l.b16 %v4043
    %v4185 = vunpack.c.h.b16 %v4043
    %v4186 = vunpack.c.l.b16 %v4044
    %v4187 = vunpack.c.h.b16 %v4044
    %v4188 = vunpack.c.l.b16 %v4045
    %v4189 = vunpack.c.h.b16 %v4045
    %v4190 = vunpack.c.l.b16 %v4046
    %v4191 = vunpack.c.h.b16 %v4046
    %v4192 = vunpack.c.l.b16 %v4047
    %v4193 = vunpack.c.h.b16 %v4047
    %v4194 = vunpack.c.l.b16 %v4048
    %v4195 = vunpack.c.h.b16 %v4048
    %v4196 = vunpack.c.l.b16 %v4049
    %v4197 = vunpack.c.h.b16 %v4049
    %v4198 = vunpack.c.l.b16 %v4050
    %v4199 = vunpack.c.h.b16 %v4050
    %v4200 = vunpack.c.l.b16 %v4051
    %v4201 = vunpack.c.h.b16 %v4051
    %v4202 = vunpack.c.l.b16 %v4052
    %v4203 = vunpack.c.h.b16 %v4052
    %v4204 = vunpack.c.l.b16 %v4053
    %v4205 = vunpack.c.h.b16 %v4053
    %v4206 = vunpack.c.l.b16 %v4054
    %v4207 = vunpack.c.h.b16 %v4054
    %v4208 = vunpack.c.l.b16 %v4055
    %v4209 = vunpack.c.h.b16 %v4055
    %v4210 = vunpack.c.l.b16 %v4056
    %v4211 = vunpack.c.h.b16 %v4056
    %v4212 = vunpack.c.l.b16 %v4057
    %v4213 = vunpack.c.h.b16 %v4057
    %v4214 = vunpack.c.l.b16 %v4058
    %v4215 = vunpack.c.h.b16 %v4058
    %v4216 = vunpack.c.l.b16 %v4059
    %v4217 = vunpack.c.h.b16 %v4059
    %v4218 = vunpack.c.l.b16 %v4060
    %v4219 = vunpack.c.h.b16 %v4060
    %v4220 = vunpack.c.l.b16 %v4061
    %v4221 = vunpack.c.h.b16 %v4061
    %v4222 = vunpack.c.l.b16 %v4062
    %v4223 = vunpack.c.h.b16 %v4062
    %v4224 = vunpack.c.l.b16 %v4063
    %v4225 = vunpack.c.h.b16 %v4063
    %v4226 = vunpack.c.l.b16 %v4064
    %v4227 = vunpack.c.h.b16 %v4064
    %v4228 = vunpack.c.l.b16 %v4065
    %v4229 = vunpack.c.h.b16 %v4065
    %v4230 = vunpack.c.l.b16 %v4066
    %v4231 = vunpack.c.h.b16 %v4066
    %v4232 = vunpack.c.l.b16 %v4067
    %v4233 = vunpack.c.h.b16 %v4067
    %v4234 = vunpack.c.l.b16 %v4068
    %v4235 = vunpack.c.h.b16 %v4068
    %v4236 = vunpack.c.l.b16 %v4069
    %v4237 = vunpack.c.h.b16 %v4069
    %v4238 = vunpack.c.l.b16 %v4070
    %v4239 = vunpack.c.h.b16 %v4070
    %v4240 = vunpack.c.l.b16 %v4071
    %v4241 = vunpack.c.h.b16 %v4071
    %v4242 = vunpack.c.l.b16 %v4072
    %v4243 = vunpack.c.h.b16 %v4072
    %v4244 = vunpack.c.l.b16 %v4073
    %v4245 = vunpack.c.h.b16 %v4073
    %v4246 = vunpack.c.l.b16 %v4074
    %v4247 = vunpack.c.h.b16 %v4074
    %v4248 = vunpack.c.l.b16 %v4075
    %v4249 = vunpack.c.h.b16 %v4075
    %v4250 = vunpack.c.l.b16 %v4076
    %v4251 = vunpack.c.h.b16 %v4076
    %v4252 = vunpack.c.l.b16 %v4077
    %v4253 = vunpack.c.h.b16 %v4077
    %v4254 = vunpack.c.l.b16 %v4078
    %v4255 = vunpack.c.h.b16 %v4078
    %v4256 = vunpack.c.l.b16 %v4079
    %v4257 = vunpack.c.h.b16 %v4079
    %v4258 = vunpack.c.l.b16 %v4080
    %v4259 = vunpack.c.h.b16 %v4080
    %v4260 = vunpack.c.l.b16 %v4081
    %v4261 = vunpack.c.h.b16 %v4081
    %v4262 = vunpack.c.l.b16 %v4082
    %v4263 = vunpack.c.h.b16 %v4082
    %v4264 = vunpack.c.l.b16 %v4083
    %v4265 = vunpack.c.h.b16 %v4083
    %v4266 = vunpack.c.l.b16 %v4084
    %v4267 = vunpack.c.h.b16 %v4084
    %v4268 = vunpack.c.l.b16 %v4085
    %v4269 = vunpack.c.h.b16 %v4085
    %v4270 = vunpack.c.l.b16 %v4086
    %v4271 = vunpack.c.h.b16 %v4086
    %v4272 = vunpack.c.l.b16 %v4087
    %v4273 = vunpack.c.h.b16 %v4087
    %v4274 = vunpack.c.l.b16 %v4088
    %v4275 = vunpack.c.h.b16 %v4088
    %v4276 = vunpack.c.l.b16 %v4089
    %v4277 = vunpack.c.h.b16 %v4089
    %v4278 = vunpack.c.l.b16 %v4090
    %v4279 = vunpack.c.h.b16 %v4090
    %v4280 = vunpack.c.l.b16 %v4091
    %v4281 = vunpack.c.h.b16 %v4091
    %v4282 = vunpack.c.l.b16 %v4092
    %v4283 = vunpack.c.h.b16 %v4092
    %v4284 = vunpack.c.l.b16 %v4093
    %v4285 = vunpack.c.h.b16 %v4093
    %v4286 = vpack.c.b16 %v4166, %v4158
    %v4287 = vpack.c.b16 %v4167, %v4159
    %v4288 = vpack.c.b16 %v4168, %v4160
    %v4289 = vpack.c.b16 %v4169, %v4161
    %v4290 = vpack.c.b16 %v4170, %v4162
    %v4291 = vpack.c.b16 %v4171, %v4163
    %v4292 = vpack.c.b16 %v4172, %v4164
    %v4293 = vpack.c.b16 %v4173, %v4165
    %v4294 = vpack.c.b16 %v4182, %v4174
    %v4295 = vpack.c.b16 %v4183, %v4175
    %v4296 = vpack.c.b16 %v4184, %v4176
    %v4297 = vpack.c.b16 %v4185, %v4177
    %v4298 = vpack.c.b16 %v4186, %v4178
    %v4299 = vpack.c.b16 %v4187, %v4179
    %v4300 = vpack.c.b16 %v4188, %v4180
    %v4301 = vpack.c.b16 %v4189, %v4181
    %v4302 = vpack.c.b16 %v4198, %v4190
    %v4303 = vpack.c.b16 %v4199, %v4191
    %v4304 = vpack.c.b16 %v4200, %v4192
    %v4305 = vpack.c.b16 %v4201, %v4193
    %v4306 = vpack.c.b16 %v4202, %v4194
    %v4307 = vpack.c.b16 %v4203, %v4195
    %v4308 = vpack.c.b16 %v4204, %v4196
    %v4309 = vpack.c.b16 %v4205, %v4197
    %v4310 = vpack.c.b16 %v4214, %v4206
    %v4311 = vpack.c.b16 %v4215, %v4207
    %v4312 = vpack.c.b16 %v4216, %v4208
    %v4313 = vpack.c.b16 %v4217, %v4209
    %v4314 = vpack.c.b16 %v4218, %v4210
    %v4315 = vpack.c.b16 %v4219, %v4211
    %v4316 = vpack.c.b16 %v4220, %v4212
    %v4317 = vpack.c.b16 %v4221, %v4213
    %v4318 = vpack.c.b16 %v4230, %v4222
    %v4319 = vpack.c.b16 %v4231, %v4223
    %v4320 = vpack.c.b16 %v4232, %v4224
    %v4321 = vpack.c.b16 %v4233, %v4225
    %v4322 = vpack.c.b16 %v4234, %v4226
    %v4323 = vpack.c.b16 %v4235, %v4227
    %v4324 = vpack.c.b16 %v4236, %v4228
    %v4325 = vpack.c.b16 %v4237, %v4229
    %v4326 = vpack.c.b16 %v4246, %v4238
    %v4327 = vpack.c.b16 %v4247, %v4239
    %v4328 = vpack.c.b16 %v4248, %v4240
    %v4329 = vpack.c.b16 %v4249, %v4241
    %v4330 = vpack.c.b16 %v4250, %v4242
    %v4331 = vpack.c.b16 %v4251, %v4243
    %v4332 = vpack.c.b16 %v4252, %v4244
    %v4333 = vpack.c.b16 %v4253, %v4245
    %v4334 = vpack.c.b16 %v4262, %v4254
    %v4335 = vpack.c.b16 %v4263, %v4255
    %v4336 = vpack.c.b16 %v4264, %v4256
    %v4337 = vpack.c.b16 %v4265, %v4257
    %v4338 = vpack.c.b16 %v4266, %v4258
    %v4339 = vpack.c.b16 %v4267, %v4259
    %v4340 = vpack.c.b16 %v4268, %v4260
    %v4341 = vpack.c.b16 %v4269, %v4261
    %v4342 = vpack.c.b16 %v4278, %v4270
    %v4343 = vpack.c.b16 %v4279, %v4271
    %v4344 = vpack.c.b16 %v4280, %v4272
    %v4345 = vpack.c.b16 %v4281, %v4273
    %v4346 = vpack.c.b16 %v4282, %v4274
    %v4347 = vpack.c.b16 %v4283, %v4275
    %v4348 = vpack.c.b16 %v4284, %v4276
    %v4349 = vpack.c.b16 %v4285, %v4277
    %4414 = vmatprep.subr.bf16.mxu0 %v4343
    %4415 = vmatpush1.bf16.msra.mxu0 %v4342
    %4416 = vmatprep.subr.bf16.mxu0 %v4335
    %4417 = vmatpush1.bf16.msra.mxu0 %v4334
    %4418 = vmatprep.subr.bf16.mxu0 %v4327
    %4419 = vmatpush1.bf16.msra.mxu0 %v4326
    %4420 = vmatprep.subr.bf16.mxu0 %v4319
    %4421 = vmatpush1.bf16.msra.mxu0 %v4318
    %4422 = vmatprep.subr.bf16.mxu0 %v4311
    %4423 = vmatpush1.bf16.msra.mxu0 %v4310
    %4424 = vmatprep.subr.bf16.mxu0 %v4303
    %4425 = vmatpush1.bf16.msra.mxu0 %v4302
    %4426 = vmatprep.subr.bf16.mxu0 %v4295
    %4427 = vmatpush1.bf16.msra.mxu0 %v4294
    %4428 = vmatprep.subr.bf16.mxu0 %v4287
    %4429 = vmatpush1.bf16.msra.mxu0 %v4286
    %4430 = vmatprep.subr.bf16.mxu0 0
    %4431 = vmatpush2.bf16.msra.mxu0 0
    %4432 = vmatprep.subr.bf16.mxu0 0
    %4433 = vmatpush2.bf16.msra.mxu0 0
    %4434 = vmatprep.subr.bf16.mxu0 0
    %4435 = vmatpush2.bf16.msra.mxu0 0
    %4436 = vmatprep.subr.bf16.mxu0 0
    %4437 = vmatpush2.bf16.msra.mxu0 0
    %4438 = vmatprep.subr.bf16.mxu0 0
    %4439 = vmatpush2.bf16.msra.mxu0 0
    %4440 = vmatprep.subr.bf16.mxu0 0
    %4441 = vmatpush2.bf16.msra.mxu0 0
    %4442 = vmatprep.subr.bf16.mxu0 0
    %4443 = vmatpush2.bf16.msra.mxu0 0
    %4444 = vmatprep.subr.bf16.mxu0 0
    %4445 = vmatpush2.bf16.msra.mxu0 0
    %4446 = vmatprep.mubr.bf16.mxu0 0
    %4447 = vmatmul.mubr.bf16.gmra.mxu0 %v4029
    %v4448 = vpop.f32.mrf.mxu0
    %v4449 = vadd.f32 0.0, %v4448
    %v4450 = vpop.f32.mrf.mxu0
    %v4451 = vadd.f32 0.0, %v4450
    %v4452 = vpop.f32.mrf.mxu0
    %v4453 = vpop.f32.mrf.mxu0
    %4454 = vdwg.mxu0
    %4455 = vmatprep.subr.bf16.mxu0 %v4345
    %4456 = vmatpush1.bf16.msra.mxu0 %v4344
    %4457 = vmatprep.subr.bf16.mxu0 %v4337
    %4458 = vmatpush1.bf16.msra.mxu0 %v4336
    %4459 = vmatprep.subr.bf16.mxu0 %v4329
    %4460 = vmatpush1.bf16.msra.mxu0 %v4328
    %4461 = vmatprep.subr.bf16.mxu0 %v4321
    %4462 = vmatpush1.bf16.msra.mxu0 %v4320
    %4463 = vmatprep.subr.bf16.mxu0 %v4313
    %4464 = vmatpush1.bf16.msra.mxu0 %v4312
    %4465 = vmatprep.subr.bf16.mxu0 %v4305
    %4466 = vmatpush1.bf16.msra.mxu0 %v4304
    %4467 = vmatprep.subr.bf16.mxu0 %v4297
    %4468 = vmatpush1.bf16.msra.mxu0 %v4296
    %4469 = vmatprep.subr.bf16.mxu0 %v4289
    %4470 = vmatpush1.bf16.msra.mxu0 %v4288
    %4471 = vmatprep.subr.bf16.mxu0 0
    %4472 = vmatpush2.bf16.msra.mxu0 0
    %4473 = vmatprep.subr.bf16.mxu0 0
    %4474 = vmatpush2.bf16.msra.mxu0 0
    %4475 = vmatprep.subr.bf16.mxu0 0
    %4476 = vmatpush2.bf16.msra.mxu0 0
    %4477 = vmatprep.subr.bf16.mxu0 0
    %4478 = vmatpush2.bf16.msra.mxu0 0
    %4479 = vmatprep.subr.bf16.mxu0 0
    %4480 = vmatpush2.bf16.msra.mxu0 0
    %4481 = vmatprep.subr.bf16.mxu0 0
    %4482 = vmatpush2.bf16.msra.mxu0 0
    %4483 = vmatprep.subr.bf16.mxu0 0
    %4484 = vmatpush2.bf16.msra.mxu0 0
    %4485 = vmatprep.subr.bf16.mxu0 0
    %4486 = vmatpush2.bf16.msra.mxu0 0
    %4487 = vmatprep.mubr.bf16.mxu0 0
    %4488 = vmatmul.mubr.bf16.gmra.mxu0 %v4029
    %v4489 = vpop.f32.mrf.mxu0
    %v4490 = vadd.f32 0.0, %v4489
    %v4491 = vpop.f32.mrf.mxu0
    %v4492 = vadd.f32 0.0, %v4491
    %v4493 = vpop.f32.mrf.mxu0
    %v4494 = vpop.f32.mrf.mxu0
    %4495 = vdwg.mxu0
    %4496 = vmatprep.subr.bf16.mxu0 %v4347
    %4497 = vmatpush1.bf16.msra.mxu0 %v4346
    %4498 = vmatprep.subr.bf16.mxu0 %v4339
    %4499 = vmatpush1.bf16.msra.mxu0 %v4338
    %4500 = vmatprep.subr.bf16.mxu0 %v4331
    %4501 = vmatpush1.bf16.msra.mxu0 %v4330
    %4502 = vmatprep.subr.bf16.mxu0 %v4323
    %4503 = vmatpush1.bf16.msra.mxu0 %v4322
    %4504 = vmatprep.subr.bf16.mxu0 %v4315
    %4505 = vmatpush1.bf16.msra.mxu0 %v4314
    %4506 = vmatprep.subr.bf16.mxu0 %v4307
    %4507 = vmatpush1.bf16.msra.mxu0 %v4306
    %4508 = vmatprep.subr.bf16.mxu0 %v4299
    %4509 = vmatpush1.bf16.msra.mxu0 %v4298
    %4510 = vmatprep.subr.bf16.mxu0 %v4291
    %4511 = vmatpush1.bf16.msra.mxu0 %v4290
    %4512 = vmatprep.subr.bf16.mxu0 0
    %4513 = vmatpush2.bf16.msra.mxu0 0
    %4514 = vmatprep.subr.bf16.mxu0 0
    %4515 = vmatpush2.bf16.msra.mxu0 0
    %4516 = vmatprep.subr.bf16.mxu0 0
    %4517 = vmatpush2.bf16.msra.mxu0 0
    %4518 = vmatprep.subr.bf16.mxu0 0
    %4519 = vmatpush2.bf16.msra.mxu0 0
    %4520 = vmatprep.subr.bf16.mxu0 0
    %4521 = vmatpush2.bf16.msra.mxu0 0
    %4522 = vmatprep.subr.bf16.mxu0 0
    %4523 = vmatpush2.bf16.msra.mxu0 0
    %4524 = vmatprep.subr.bf16.mxu0 0
    %4525 = vmatpush2.bf16.msra.mxu0 0
    %4526 = vmatprep.subr.bf16.mxu0 0
    %4527 = vmatpush2.bf16.msra.mxu0 0
    %4528 = vmatprep.mubr.bf16.mxu0 0
    %4529 = vmatmul.mubr.bf16.gmra.mxu0 %v4029
    %v4530 = vpop.f32.mrf.mxu0
    %v4531 = vadd.f32 0.0, %v4530
    %v4532 = vpop.f32.mrf.mxu0
    %v4533 = vadd.f32 0.0, %v4532
    %v4534 = vpop.f32.mrf.mxu0
    %v4535 = vpop.f32.mrf.mxu0
    %4536 = vdwg.mxu0
    %4537 = vmatprep.subr.bf16.mxu0 %v4349
    %4538 = vmatpush1.bf16.msra.mxu0 %v4348
    %4539 = vmatprep.subr.bf16.mxu0 %v4341
    %4540 = vmatpush1.bf16.msra.mxu0 %v4340
    %4541 = vmatprep.subr.bf16.mxu0 %v4333
    %4542 = vmatpush1.bf16.msra.mxu0 %v4332
    %4543 = vmatprep.subr.bf16.mxu0 %v4325
    %4544 = vmatpush1.bf16.msra.mxu0 %v4324
    %4545 = vmatprep.subr.bf16.mxu0 %v4317
    %4546 = vmatpush1.bf16.msra.mxu0 %v4316
    %4547 = vmatprep.subr.bf16.mxu0 %v4309
    %4548 = vmatpush1.bf16.msra.mxu0 %v4308
    %4549 = vmatprep.subr.bf16.mxu0 %v4301
    %4550 = vmatpush1.bf16.msra.mxu0 %v4300
    %4551 = vmatprep.subr.bf16.mxu0 %v4293
    %4552 = vmatpush1.bf16.msra.mxu0 %v4292
    %4553 = vmatprep.subr.bf16.mxu0 0
    %4554 = vmatpush2.bf16.msra.mxu0 0
    %4555 = vmatprep.subr.bf16.mxu0 0
    %4556 = vmatpush2.bf16.msra.mxu0 0
    %4557 = vmatprep.subr.bf16.mxu0 0
    %4558 = vmatpush2.bf16.msra.mxu0 0
    %4559 = vmatprep.subr.bf16.mxu0 0
    %4560 = vmatpush2.bf16.msra.mxu0 0
    %4561 = vmatprep.subr.bf16.mxu0 0
    %4562 = vmatpush2.bf16.msra.mxu0 0
    %4563 = vmatprep.subr.bf16.mxu0 0
    %4564 = vmatpush2.bf16.msra.mxu0 0
    %4565 = vmatprep.subr.bf16.mxu0 0
    %4566 = vmatpush2.bf16.msra.mxu0 0
    %4567 = vmatprep.subr.bf16.mxu0 0
    %4568 = vmatpush2.bf16.msra.mxu0 0
    %4569 = vmatprep.mubr.bf16.mxu0 0
    %4570 = vmatmul.mubr.bf16.gmra.mxu0 %v4029
    %v4571 = vpop.f32.mrf.mxu0
    %v4572 = vadd.f32 0.0, %v4571
    %v4573 = vpop.f32.mrf.mxu0
    %v4574 = vadd.f32 0.0, %v4573
    %v4575 = vpop.f32.mrf.mxu0
    %v4576 = vpop.f32.mrf.mxu0
    %4577 = vdwg.mxu0
    %v4578 = vmax.f32 %v4449, %v4490
    %v4579 = vmax.f32 %v4451, %v4492
    %v4580 = vmax.f32 %v4531, %v4572
    %v4581 = vmax.f32 %v4533, %v4574
    %v4582 = vmax.f32 %v4578, %v4580
    %v4583 = vmax.f32 %v4579, %v4581
    %v4584 = vadd.f32 %v4582, %v601
    %v4585 = vadd.f32 %v4583, %v605
    %v4586 = vmax.f32 %v4584, 0.0
    %v4587 = vmax.f32 %v4585, 0.0
    %v4588 = vpack.c.bf16 %v4586, %v4586
    %v4589 = vpack.c.bf16 %v4587, %v4587
    %v4592 = vunpack.c.l.b16 %v4588
    %v4593 = vunpack.c.l.b16 %v4589
    %v4594 = vpack.c.b16 %v4593, %v4592
    %4596 = vst [vmem:[#allocation2 + $0x38] sm:$0xff] %v4594
    %v4597 = vld [vmem:[%s0 + $0x20] sm:$0xf]
    %v4598 = vld [vmem:[%s1] sm:$0xff]
    %v4599 = vld [vmem:[%s1 + $0x8] sm:$0xff]
    %v4600 = vld [vmem:[%s1 + $0x10] sm:$0xff]
    %v4601 = vld [vmem:[%s1 + $0x18] sm:$0xff]
    %v4602 = vld [vmem:[%s1 + $0x20] sm:$0xff]
    %v4603 = vld [vmem:[%s1 + $0x28] sm:$0xff]
    %v4604 = vld [vmem:[%s1 + $0x30] sm:$0xff]
    %v4605 = vld [vmem:[%s1 + $0x38] sm:$0xff]
    %v4606 = vld [vmem:[%s1 + $0x40] sm:$0xff]
    %v4607 = vld [vmem:[%s1 + $0x48] sm:$0xff]
    %v4608 = vld [vmem:[%s1 + $0x50] sm:$0xff]
    %v4609 = vld [vmem:[%s1 + $0x58] sm:$0xff]
    %v4610 = vld [vmem:[%s1 + $0x60] sm:$0xff]
    %v4611 = vld [vmem:[%s1 + $0x68] sm:$0xff]
    %v4612 = vld [vmem:[%s1 + $0x70] sm:$0xff]
    %v4613 = vld [vmem:[%s1 + $0x78] sm:$0xff]
    %v4614 = vld [vmem:[%s1 + $0x80] sm:$0xff]
    %v4615 = vld [vmem:[%s1 + $0x88] sm:$0xff]
    %v4616 = vld [vmem:[%s1 + $0x90] sm:$0xff]
    %v4617 = vld [vmem:[%s1 + $0x98] sm:$0xff]
    %v4618 = vld [vmem:[%s1 + $0xa0] sm:$0xff]
    %v4619 = vld [vmem:[%s1 + $0xa8] sm:$0xff]
    %v4620 = vld [vmem:[%s1 + $0xb0] sm:$0xff]
    %v4621 = vld [vmem:[%s1 + $0xb8] sm:$0xff]
    %v4622 = vld [vmem:[%s1 + $0xc0] sm:$0xff]
    %v4623 = vld [vmem:[%s1 + $0xc8] sm:$0xff]
    %v4624 = vld [vmem:[%s1 + $0xd0] sm:$0xff]
    %v4625 = vld [vmem:[%s1 + $0xd8] sm:$0xff]
    %v4626 = vld [vmem:[%s1 + $0xe0] sm:$0xff]
    %v4627 = vld [vmem:[%s1 + $0xe8] sm:$0xff]
    %v4628 = vld [vmem:[%s1 + $0xf0] sm:$0xff]
    %v4629 = vld [vmem:[%s1 + $0xf8] sm:$0xff]
    %v4630 = vld [vmem:[%s1 + $0x100] sm:$0xff]
    %v4631 = vld [vmem:[%s1 + $0x108] sm:$0xff]
    %v4632 = vld [vmem:[%s1 + $0x110] sm:$0xff]
    %v4633 = vld [vmem:[%s1 + $0x118] sm:$0xff]
    %v4634 = vld [vmem:[%s1 + $0x120] sm:$0xff]
    %v4635 = vld [vmem:[%s1 + $0x128] sm:$0xff]
    %v4636 = vld [vmem:[%s1 + $0x130] sm:$0xff]
    %v4637 = vld [vmem:[%s1 + $0x138] sm:$0xff]
    %v4638 = vld [vmem:[%s1 + $0x140] sm:$0xff]
    %v4639 = vld [vmem:[%s1 + $0x148] sm:$0xff]
    %v4640 = vld [vmem:[%s1 + $0x150] sm:$0xff]
    %v4641 = vld [vmem:[%s1 + $0x158] sm:$0xff]
    %v4642 = vld [vmem:[%s1 + $0x160] sm:$0xff]
    %v4643 = vld [vmem:[%s1 + $0x168] sm:$0xff]
    %v4644 = vld [vmem:[%s1 + $0x170] sm:$0xff]
    %v4645 = vld [vmem:[%s1 + $0x178] sm:$0xff]
    %v4646 = vld [vmem:[%s1 + $0x180] sm:$0xff]
    %v4647 = vld [vmem:[%s1 + $0x188] sm:$0xff]
    %v4648 = vld [vmem:[%s1 + $0x190] sm:$0xff]
    %v4649 = vld [vmem:[%s1 + $0x198] sm:$0xff]
    %v4650 = vld [vmem:[%s1 + $0x1a0] sm:$0xff]
    %v4651 = vld [vmem:[%s1 + $0x1a8] sm:$0xff]
    %v4652 = vld [vmem:[%s1 + $0x1b0] sm:$0xff]
    %v4653 = vld [vmem:[%s1 + $0x1b8] sm:$0xff]
    %v4654 = vld [vmem:[%s1 + $0x1c0] sm:$0xff]
    %v4655 = vld [vmem:[%s1 + $0x1c8] sm:$0xff]
    %v4656 = vld [vmem:[%s1 + $0x1d0] sm:$0xff]
    %v4657 = vld [vmem:[%s1 + $0x1d8] sm:$0xff]
    %v4658 = vld [vmem:[%s1 + $0x1e0] sm:$0xff]
    %v4659 = vld [vmem:[%s1 + $0x1e8] sm:$0xff]
    %v4660 = vld [vmem:[%s1 + $0x1f0] sm:$0xff]
    %v4661 = vld [vmem:[%s1 + $0x1f8] sm:$0xff]
    %v4726 = vunpack.c.l.b16 %v4598
    %v4727 = vunpack.c.h.b16 %v4598
    %v4728 = vunpack.c.l.b16 %v4599
    %v4729 = vunpack.c.h.b16 %v4599
    %v4730 = vunpack.c.l.b16 %v4600
    %v4731 = vunpack.c.h.b16 %v4600
    %v4732 = vunpack.c.l.b16 %v4601
    %v4733 = vunpack.c.h.b16 %v4601
    %v4734 = vunpack.c.l.b16 %v4602
    %v4735 = vunpack.c.h.b16 %v4602
    %v4736 = vunpack.c.l.b16 %v4603
    %v4737 = vunpack.c.h.b16 %v4603
    %v4738 = vunpack.c.l.b16 %v4604
    %v4739 = vunpack.c.h.b16 %v4604
    %v4740 = vunpack.c.l.b16 %v4605
    %v4741 = vunpack.c.h.b16 %v4605
    %v4742 = vunpack.c.l.b16 %v4606
    %v4743 = vunpack.c.h.b16 %v4606
    %v4744 = vunpack.c.l.b16 %v4607
    %v4745 = vunpack.c.h.b16 %v4607
    %v4746 = vunpack.c.l.b16 %v4608
    %v4747 = vunpack.c.h.b16 %v4608
    %v4748 = vunpack.c.l.b16 %v4609
    %v4749 = vunpack.c.h.b16 %v4609
    %v4750 = vunpack.c.l.b16 %v4610
    %v4751 = vunpack.c.h.b16 %v4610
    %v4752 = vunpack.c.l.b16 %v4611
    %v4753 = vunpack.c.h.b16 %v4611
    %v4754 = vunpack.c.l.b16 %v4612
    %v4755 = vunpack.c.h.b16 %v4612
    %v4756 = vunpack.c.l.b16 %v4613
    %v4757 = vunpack.c.h.b16 %v4613
    %v4758 = vunpack.c.l.b16 %v4614
    %v4759 = vunpack.c.h.b16 %v4614
    %v4760 = vunpack.c.l.b16 %v4615
    %v4761 = vunpack.c.h.b16 %v4615
    %v4762 = vunpack.c.l.b16 %v4616
    %v4763 = vunpack.c.h.b16 %v4616
    %v4764 = vunpack.c.l.b16 %v4617
    %v4765 = vunpack.c.h.b16 %v4617
    %v4766 = vunpack.c.l.b16 %v4618
    %v4767 = vunpack.c.h.b16 %v4618
    %v4768 = vunpack.c.l.b16 %v4619
    %v4769 = vunpack.c.h.b16 %v4619
    %v4770 = vunpack.c.l.b16 %v4620
    %v4771 = vunpack.c.h.b16 %v4620
    %v4772 = vunpack.c.l.b16 %v4621
    %v4773 = vunpack.c.h.b16 %v4621
    %v4774 = vunpack.c.l.b16 %v4622
    %v4775 = vunpack.c.h.b16 %v4622
    %v4776 = vunpack.c.l.b16 %v4623
    %v4777 = vunpack.c.h.b16 %v4623
    %v4778 = vunpack.c.l.b16 %v4624
    %v4779 = vunpack.c.h.b16 %v4624
    %v4780 = vunpack.c.l.b16 %v4625
    %v4781 = vunpack.c.h.b16 %v4625
    %v4782 = vunpack.c.l.b16 %v4626
    %v4783 = vunpack.c.h.b16 %v4626
    %v4784 = vunpack.c.l.b16 %v4627
    %v4785 = vunpack.c.h.b16 %v4627
    %v4786 = vunpack.c.l.b16 %v4628
    %v4787 = vunpack.c.h.b16 %v4628
    %v4788 = vunpack.c.l.b16 %v4629
    %v4789 = vunpack.c.h.b16 %v4629
    %v4790 = vunpack.c.l.b16 %v4630
    %v4791 = vunpack.c.h.b16 %v4630
    %v4792 = vunpack.c.l.b16 %v4631
    %v4793 = vunpack.c.h.b16 %v4631
    %v4794 = vunpack.c.l.b16 %v4632
    %v4795 = vunpack.c.h.b16 %v4632
    %v4796 = vunpack.c.l.b16 %v4633
    %v4797 = vunpack.c.h.b16 %v4633
    %v4798 = vunpack.c.l.b16 %v4634
    %v4799 = vunpack.c.h.b16 %v4634
    %v4800 = vunpack.c.l.b16 %v4635
    %v4801 = vunpack.c.h.b16 %v4635
    %v4802 = vunpack.c.l.b16 %v4636
    %v4803 = vunpack.c.h.b16 %v4636
    %v4804 = vunpack.c.l.b16 %v4637
    %v4805 = vunpack.c.h.b16 %v4637
    %v4806 = vunpack.c.l.b16 %v4638
    %v4807 = vunpack.c.h.b16 %v4638
    %v4808 = vunpack.c.l.b16 %v4639
    %v4809 = vunpack.c.h.b16 %v4639
    %v4810 = vunpack.c.l.b16 %v4640
    %v4811 = vunpack.c.h.b16 %v4640
    %v4812 = vunpack.c.l.b16 %v4641
    %v4813 = vunpack.c.h.b16 %v4641
    %v4814 = vunpack.c.l.b16 %v4642
    %v4815 = vunpack.c.h.b16 %v4642
    %v4816 = vunpack.c.l.b16 %v4643
    %v4817 = vunpack.c.h.b16 %v4643
    %v4818 = vunpack.c.l.b16 %v4644
    %v4819 = vunpack.c.h.b16 %v4644
    %v4820 = vunpack.c.l.b16 %v4645
    %v4821 = vunpack.c.h.b16 %v4645
    %v4822 = vunpack.c.l.b16 %v4646
    %v4823 = vunpack.c.h.b16 %v4646
    %v4824 = vunpack.c.l.b16 %v4647
    %v4825 = vunpack.c.h.b16 %v4647
    %v4826 = vunpack.c.l.b16 %v4648
    %v4827 = vunpack.c.h.b16 %v4648
    %v4828 = vunpack.c.l.b16 %v4649
    %v4829 = vunpack.c.h.b16 %v4649
    %v4830 = vunpack.c.l.b16 %v4650
    %v4831 = vunpack.c.h.b16 %v4650
    %v4832 = vunpack.c.l.b16 %v4651
    %v4833 = vunpack.c.h.b16 %v4651
    %v4834 = vunpack.c.l.b16 %v4652
    %v4835 = vunpack.c.h.b16 %v4652
    %v4836 = vunpack.c.l.b16 %v4653
    %v4837 = vunpack.c.h.b16 %v4653
    %v4838 = vunpack.c.l.b16 %v4654
    %v4839 = vunpack.c.h.b16 %v4654
    %v4840 = vunpack.c.l.b16 %v4655
    %v4841 = vunpack.c.h.b16 %v4655
    %v4842 = vunpack.c.l.b16 %v4656
    %v4843 = vunpack.c.h.b16 %v4656
    %v4844 = vunpack.c.l.b16 %v4657
    %v4845 = vunpack.c.h.b16 %v4657
    %v4846 = vunpack.c.l.b16 %v4658
    %v4847 = vunpack.c.h.b16 %v4658
    %v4848 = vunpack.c.l.b16 %v4659
    %v4849 = vunpack.c.h.b16 %v4659
    %v4850 = vunpack.c.l.b16 %v4660
    %v4851 = vunpack.c.h.b16 %v4660
    %v4852 = vunpack.c.l.b16 %v4661
    %v4853 = vunpack.c.h.b16 %v4661
    %v4854 = vpack.c.b16 %v4734, %v4726
    %v4855 = vpack.c.b16 %v4735, %v4727
    %v4856 = vpack.c.b16 %v4736, %v4728
    %v4857 = vpack.c.b16 %v4737, %v4729
    %v4858 = vpack.c.b16 %v4738, %v4730
    %v4859 = vpack.c.b16 %v4739, %v4731
    %v4860 = vpack.c.b16 %v4740, %v4732
    %v4861 = vpack.c.b16 %v4741, %v4733
    %v4862 = vpack.c.b16 %v4750, %v4742
    %v4863 = vpack.c.b16 %v4751, %v4743
    %v4864 = vpack.c.b16 %v4752, %v4744
    %v4865 = vpack.c.b16 %v4753, %v4745
    %v4866 = vpack.c.b16 %v4754, %v4746
    %v4867 = vpack.c.b16 %v4755, %v4747
    %v4868 = vpack.c.b16 %v4756, %v4748
    %v4869 = vpack.c.b16 %v4757, %v4749
    %v4870 = vpack.c.b16 %v4766, %v4758
    %v4871 = vpack.c.b16 %v4767, %v4759
    %v4872 = vpack.c.b16 %v4768, %v4760
    %v4873 = vpack.c.b16 %v4769, %v4761
    %v4874 = vpack.c.b16 %v4770, %v4762
    %v4875 = vpack.c.b16 %v4771, %v4763
    %v4876 = vpack.c.b16 %v4772, %v4764
    %v4877 = vpack.c.b16 %v4773, %v4765
    %v4878 = vpack.c.b16 %v4782, %v4774
    %v4879 = vpack.c.b16 %v4783, %v4775
    %v4880 = vpack.c.b16 %v4784, %v4776
    %v4881 = vpack.c.b16 %v4785, %v4777
    %v4882 = vpack.c.b16 %v4786, %v4778
    %v4883 = vpack.c.b16 %v4787, %v4779
    %v4884 = vpack.c.b16 %v4788, %v4780
    %v4885 = vpack.c.b16 %v4789, %v4781
    %v4886 = vpack.c.b16 %v4798, %v4790
    %v4887 = vpack.c.b16 %v4799, %v4791
    %v4888 = vpack.c.b16 %v4800, %v4792
    %v4889 = vpack.c.b16 %v4801, %v4793
    %v4890 = vpack.c.b16 %v4802, %v4794
    %v4891 = vpack.c.b16 %v4803, %v4795
    %v4892 = vpack.c.b16 %v4804, %v4796
    %v4893 = vpack.c.b16 %v4805, %v4797
    %v4894 = vpack.c.b16 %v4814, %v4806
    %v4895 = vpack.c.b16 %v4815, %v4807
    %v4896 = vpack.c.b16 %v4816, %v4808
    %v4897 = vpack.c.b16 %v4817, %v4809
    %v4898 = vpack.c.b16 %v4818, %v4810
    %v4899 = vpack.c.b16 %v4819, %v4811
    %v4900 = vpack.c.b16 %v4820, %v4812
    %v4901 = vpack.c.b16 %v4821, %v4813
    %v4902 = vpack.c.b16 %v4830, %v4822
    %v4903 = vpack.c.b16 %v4831, %v4823
    %v4904 = vpack.c.b16 %v4832, %v4824
    %v4905 = vpack.c.b16 %v4833, %v4825
    %v4906 = vpack.c.b16 %v4834, %v4826
    %v4907 = vpack.c.b16 %v4835, %v4827
    %v4908 = vpack.c.b16 %v4836, %v4828
    %v4909 = vpack.c.b16 %v4837, %v4829
    %v4910 = vpack.c.b16 %v4846, %v4838
    %v4911 = vpack.c.b16 %v4847, %v4839
    %v4912 = vpack.c.b16 %v4848, %v4840
    %v4913 = vpack.c.b16 %v4849, %v4841
    %v4914 = vpack.c.b16 %v4850, %v4842
    %v4915 = vpack.c.b16 %v4851, %v4843
    %v4916 = vpack.c.b16 %v4852, %v4844
    %v4917 = vpack.c.b16 %v4853, %v4845
    %4982 = vmatprep.subr.bf16.mxu0 %v4911
    %4983 = vmatpush1.bf16.msra.mxu0 %v4910
    %4984 = vmatprep.subr.bf16.mxu0 %v4903
    %4985 = vmatpush1.bf16.msra.mxu0 %v4902
    %4986 = vmatprep.subr.bf16.mxu0 %v4895
    %4987 = vmatpush1.bf16.msra.mxu0 %v4894
    %4988 = vmatprep.subr.bf16.mxu0 %v4887
    %4989 = vmatpush1.bf16.msra.mxu0 %v4886
    %4990 = vmatprep.subr.bf16.mxu0 %v4879
    %4991 = vmatpush1.bf16.msra.mxu0 %v4878
    %4992 = vmatprep.subr.bf16.mxu0 %v4871
    %4993 = vmatpush1.bf16.msra.mxu0 %v4870
    %4994 = vmatprep.subr.bf16.mxu0 %v4863
    %4995 = vmatpush1.bf16.msra.mxu0 %v4862
    %4996 = vmatprep.subr.bf16.mxu0 %v4855
    %4997 = vmatpush1.bf16.msra.mxu0 %v4854
    %4998 = vmatprep.subr.bf16.mxu0 0
    %4999 = vmatpush2.bf16.msra.mxu0 0
    %5000 = vmatprep.subr.bf16.mxu0 0
    %5001 = vmatpush2.bf16.msra.mxu0 0
    %5002 = vmatprep.subr.bf16.mxu0 0
    %5003 = vmatpush2.bf16.msra.mxu0 0
    %5004 = vmatprep.subr.bf16.mxu0 0
    %5005 = vmatpush2.bf16.msra.mxu0 0
    %5006 = vmatprep.subr.bf16.mxu0 0
    %5007 = vmatpush2.bf16.msra.mxu0 0
    %5008 = vmatprep.subr.bf16.mxu0 0
    %5009 = vmatpush2.bf16.msra.mxu0 0
    %5010 = vmatprep.subr.bf16.mxu0 0
    %5011 = vmatpush2.bf16.msra.mxu0 0
    %5012 = vmatprep.subr.bf16.mxu0 0
    %5013 = vmatpush2.bf16.msra.mxu0 0
    %5014 = vmatprep.mubr.bf16.mxu0 0
    %5015 = vmatmul.mubr.bf16.gmra.mxu0 %v4597
    %v5016 = vpop.f32.mrf.mxu0
    %v5017 = vadd.f32 0.0, %v5016
    %v5018 = vpop.f32.mrf.mxu0
    %v5019 = vadd.f32 0.0, %v5018
    %v5020 = vpop.f32.mrf.mxu0
    %v5021 = vpop.f32.mrf.mxu0
    %5022 = vdwg.mxu0
    %5023 = vmatprep.subr.bf16.mxu0 %v4913
    %5024 = vmatpush1.bf16.msra.mxu0 %v4912
    %5025 = vmatprep.subr.bf16.mxu0 %v4905
    %5026 = vmatpush1.bf16.msra.mxu0 %v4904
    %5027 = vmatprep.subr.bf16.mxu0 %v4897
    %5028 = vmatpush1.bf16.msra.mxu0 %v4896
    %5029 = vmatprep.subr.bf16.mxu0 %v4889
    %5030 = vmatpush1.bf16.msra.mxu0 %v4888
    %5031 = vmatprep.subr.bf16.mxu0 %v4881
    %5032 = vmatpush1.bf16.msra.mxu0 %v4880
    %5033 = vmatprep.subr.bf16.mxu0 %v4873
    %5034 = vmatpush1.bf16.msra.mxu0 %v4872
    %5035 = vmatprep.subr.bf16.mxu0 %v4865
    %5036 = vmatpush1.bf16.msra.mxu0 %v4864
    %5037 = vmatprep.subr.bf16.mxu0 %v4857
    %5038 = vmatpush1.bf16.msra.mxu0 %v4856
    %5039 = vmatprep.subr.bf16.mxu0 0
    %5040 = vmatpush2.bf16.msra.mxu0 0
    %5041 = vmatprep.subr.bf16.mxu0 0
    %5042 = vmatpush2.bf16.msra.mxu0 0
    %5043 = vmatprep.subr.bf16.mxu0 0
    %5044 = vmatpush2.bf16.msra.mxu0 0
    %5045 = vmatprep.subr.bf16.mxu0 0
    %5046 = vmatpush2.bf16.msra.mxu0 0
    %5047 = vmatprep.subr.bf16.mxu0 0
    %5048 = vmatpush2.bf16.msra.mxu0 0
    %5049 = vmatprep.subr.bf16.mxu0 0
    %5050 = vmatpush2.bf16.msra.mxu0 0
    %5051 = vmatprep.subr.bf16.mxu0 0
    %5052 = vmatpush2.bf16.msra.mxu0 0
    %5053 = vmatprep.subr.bf16.mxu0 0
    %5054 = vmatpush2.bf16.msra.mxu0 0
    %5055 = vmatprep.mubr.bf16.mxu0 0
    %5056 = vmatmul.mubr.bf16.gmra.mxu0 %v4597
    %v5057 = vpop.f32.mrf.mxu0
    %v5058 = vadd.f32 0.0, %v5057
    %v5059 = vpop.f32.mrf.mxu0
    %v5060 = vadd.f32 0.0, %v5059
    %v5061 = vpop.f32.mrf.mxu0
    %v5062 = vpop.f32.mrf.mxu0
    %5063 = vdwg.mxu0
    %5064 = vmatprep.subr.bf16.mxu0 %v4915
    %5065 = vmatpush1.bf16.msra.mxu0 %v4914
    %5066 = vmatprep.subr.bf16.mxu0 %v4907
    %5067 = vmatpush1.bf16.msra.mxu0 %v4906
    %5068 = vmatprep.subr.bf16.mxu0 %v4899
    %5069 = vmatpush1.bf16.msra.mxu0 %v4898
    %5070 = vmatprep.subr.bf16.mxu0 %v4891
    %5071 = vmatpush1.bf16.msra.mxu0 %v4890
    %5072 = vmatprep.subr.bf16.mxu0 %v4883
    %5073 = vmatpush1.bf16.msra.mxu0 %v4882
    %5074 = vmatprep.subr.bf16.mxu0 %v4875
    %5075 = vmatpush1.bf16.msra.mxu0 %v4874
    %5076 = vmatprep.subr.bf16.mxu0 %v4867
    %5077 = vmatpush1.bf16.msra.mxu0 %v4866
    %5078 = vmatprep.subr.bf16.mxu0 %v4859
    %5079 = vmatpush1.bf16.msra.mxu0 %v4858
    %5080 = vmatprep.subr.bf16.mxu0 0
    %5081 = vmatpush2.bf16.msra.mxu0 0
    %5082 = vmatprep.subr.bf16.mxu0 0
    %5083 = vmatpush2.bf16.msra.mxu0 0
    %5084 = vmatprep.subr.bf16.mxu0 0
    %5085 = vmatpush2.bf16.msra.mxu0 0
    %5086 = vmatprep.subr.bf16.mxu0 0
    %5087 = vmatpush2.bf16.msra.mxu0 0
    %5088 = vmatprep.subr.bf16.mxu0 0
    %5089 = vmatpush2.bf16.msra.mxu0 0
    %5090 = vmatprep.subr.bf16.mxu0 0
    %5091 = vmatpush2.bf16.msra.mxu0 0
    %5092 = vmatprep.subr.bf16.mxu0 0
    %5093 = vmatpush2.bf16.msra.mxu0 0
    %5094 = vmatprep.subr.bf16.mxu0 0
    %5095 = vmatpush2.bf16.msra.mxu0 0
    %5096 = vmatprep.mubr.bf16.mxu0 0
    %5097 = vmatmul.mubr.bf16.gmra.mxu0 %v4597
    %v5098 = vpop.f32.mrf.mxu0
    %v5099 = vadd.f32 0.0, %v5098
    %v5100 = vpop.f32.mrf.mxu0
    %v5101 = vadd.f32 0.0, %v5100
    %v5102 = vpop.f32.mrf.mxu0
    %v5103 = vpop.f32.mrf.mxu0
    %5104 = vdwg.mxu0
    %5105 = vmatprep.subr.bf16.mxu0 %v4917
    %5106 = vmatpush1.bf16.msra.mxu0 %v4916
    %5107 = vmatprep.subr.bf16.mxu0 %v4909
    %5108 = vmatpush1.bf16.msra.mxu0 %v4908
    %5109 = vmatprep.subr.bf16.mxu0 %v4901
    %5110 = vmatpush1.bf16.msra.mxu0 %v4900
    %5111 = vmatprep.subr.bf16.mxu0 %v4893
    %5112 = vmatpush1.bf16.msra.mxu0 %v4892
    %5113 = vmatprep.subr.bf16.mxu0 %v4885
    %5114 = vmatpush1.bf16.msra.mxu0 %v4884
    %5115 = vmatprep.subr.bf16.mxu0 %v4877
    %5116 = vmatpush1.bf16.msra.mxu0 %v4876
    %5117 = vmatprep.subr.bf16.mxu0 %v4869
    %5118 = vmatpush1.bf16.msra.mxu0 %v4868
    %5119 = vmatprep.subr.bf16.mxu0 %v4861
    %5120 = vmatpush1.bf16.msra.mxu0 %v4860
    %5121 = vmatprep.subr.bf16.mxu0 0
    %5122 = vmatpush2.bf16.msra.mxu0 0
    %5123 = vmatprep.subr.bf16.mxu0 0
    %5124 = vmatpush2.bf16.msra.mxu0 0
    %5125 = vmatprep.subr.bf16.mxu0 0
    %5126 = vmatpush2.bf16.msra.mxu0 0
    %5127 = vmatprep.subr.bf16.mxu0 0
    %5128 = vmatpush2.bf16.msra.mxu0 0
    %5129 = vmatprep.subr.bf16.mxu0 0
    %5130 = vmatpush2.bf16.msra.mxu0 0
    %5131 = vmatprep.subr.bf16.mxu0 0
    %5132 = vmatpush2.bf16.msra.mxu0 0
    %5133 = vmatprep.subr.bf16.mxu0 0
    %5134 = vmatpush2.bf16.msra.mxu0 0
    %5135 = vmatprep.subr.bf16.mxu0 0
    %5136 = vmatpush2.bf16.msra.mxu0 0
    %5137 = vmatprep.mubr.bf16.mxu0 0
    %5138 = vmatmul.mubr.bf16.gmra.mxu0 %v4597
    %v5139 = vpop.f32.mrf.mxu0
    %v5140 = vadd.f32 0.0, %v5139
    %v5141 = vpop.f32.mrf.mxu0
    %v5142 = vadd.f32 0.0, %v5141
    %v5143 = vpop.f32.mrf.mxu0
    %v5144 = vpop.f32.mrf.mxu0
    %5145 = vdwg.mxu0
    %v5146 = vmax.f32 %v5017, %v5058
    %v5147 = vmax.f32 %v5019, %v5060
    %v5148 = vmax.f32 %v5099, %v5140
    %v5149 = vmax.f32 %v5101, %v5142
    %v5150 = vmax.f32 %v5146, %v5148
    %v5151 = vmax.f32 %v5147, %v5149
    %v5152 = vadd.f32 %v5150, %v601
    %v5153 = vadd.f32 %v5151, %v605
    %v5154 = vmax.f32 %v5152, 0.0
    %v5155 = vmax.f32 %v5153, 0.0
    %v5156 = vpack.c.bf16 %v5154, %v5154
    %v5157 = vpack.c.bf16 %v5155, %v5155
    %v5160 = vunpack.c.l.b16 %v5156
    %v5161 = vunpack.c.l.b16 %v5157
    %v5162 = vpack.c.b16 %v5161, %v5160
    %5164 = vst [vmem:[#allocation2 + $0x40] sm:$0xff] %v5162
    %v5165 = vld [vmem:[%s0 + $0x24] sm:$0xf]
    %v5166 = vld [vmem:[%s1] sm:$0xff]
    %v5167 = vld [vmem:[%s1 + $0x8] sm:$0xff]
    %v5168 = vld [vmem:[%s1 + $0x10] sm:$0xff]
    %v5169 = vld [vmem:[%s1 + $0x18] sm:$0xff]
    %v5170 = vld [vmem:[%s1 + $0x20] sm:$0xff]
    %v5171 = vld [vmem:[%s1 + $0x28] sm:$0xff]
    %v5172 = vld [vmem:[%s1 + $0x30] sm:$0xff]
    %v5173 = vld [vmem:[%s1 + $0x38] sm:$0xff]
    %v5174 = vld [vmem:[%s1 + $0x40] sm:$0xff]
    %v5175 = vld [vmem:[%s1 + $0x48] sm:$0xff]
    %v5176 = vld [vmem:[%s1 + $0x50] sm:$0xff]
    %v5177 = vld [vmem:[%s1 + $0x58] sm:$0xff]
    %v5178 = vld [vmem:[%s1 + $0x60] sm:$0xff]
    %v5179 = vld [vmem:[%s1 + $0x68] sm:$0xff]
    %v5180 = vld [vmem:[%s1 + $0x70] sm:$0xff]
    %v5181 = vld [vmem:[%s1 + $0x78] sm:$0xff]
    %v5182 = vld [vmem:[%s1 + $0x80] sm:$0xff]
    %v5183 = vld [vmem:[%s1 + $0x88] sm:$0xff]
    %v5184 = vld [vmem:[%s1 + $0x90] sm:$0xff]
    %v5185 = vld [vmem:[%s1 + $0x98] sm:$0xff]
    %v5186 = vld [vmem:[%s1 + $0xa0] sm:$0xff]
    %v5187 = vld [vmem:[%s1 + $0xa8] sm:$0xff]
    %v5188 = vld [vmem:[%s1 + $0xb0] sm:$0xff]
    %v5189 = vld [vmem:[%s1 + $0xb8] sm:$0xff]
    %v5190 = vld [vmem:[%s1 + $0xc0] sm:$0xff]
    %v5191 = vld [vmem:[%s1 + $0xc8] sm:$0xff]
    %v5192 = vld [vmem:[%s1 + $0xd0] sm:$0xff]
    %v5193 = vld [vmem:[%s1 + $0xd8] sm:$0xff]
    %v5194 = vld [vmem:[%s1 + $0xe0] sm:$0xff]
    %v5195 = vld [vmem:[%s1 + $0xe8] sm:$0xff]
    %v5196 = vld [vmem:[%s1 + $0xf0] sm:$0xff]
    %v5197 = vld [vmem:[%s1 + $0xf8] sm:$0xff]
    %v5198 = vld [vmem:[%s1 + $0x100] sm:$0xff]
    %v5199 = vld [vmem:[%s1 + $0x108] sm:$0xff]
    %v5200 = vld [vmem:[%s1 + $0x110] sm:$0xff]
    %v5201 = vld [vmem:[%s1 + $0x118] sm:$0xff]
    %v5202 = vld [vmem:[%s1 + $0x120] sm:$0xff]
    %v5203 = vld [vmem:[%s1 + $0x128] sm:$0xff]
    %v5204 = vld [vmem:[%s1 + $0x130] sm:$0xff]
    %v5205 = vld [vmem:[%s1 + $0x138] sm:$0xff]
    %v5206 = vld [vmem:[%s1 + $0x140] sm:$0xff]
    %v5207 = vld [vmem:[%s1 + $0x148] sm:$0xff]
    %v5208 = vld [vmem:[%s1 + $0x150] sm:$0xff]
    %v5209 = vld [vmem:[%s1 + $0x158] sm:$0xff]
    %v5210 = vld [vmem:[%s1 + $0x160] sm:$0xff]
    %v5211 = vld [vmem:[%s1 + $0x168] sm:$0xff]
    %v5212 = vld [vmem:[%s1 + $0x170] sm:$0xff]
    %v5213 = vld [vmem:[%s1 + $0x178] sm:$0xff]
    %v5214 = vld [vmem:[%s1 + $0x180] sm:$0xff]
    %v5215 = vld [vmem:[%s1 + $0x188] sm:$0xff]
    %v5216 = vld [vmem:[%s1 + $0x190] sm:$0xff]
    %v5217 = vld [vmem:[%s1 + $0x198] sm:$0xff]
    %v5218 = vld [vmem:[%s1 + $0x1a0] sm:$0xff]
    %v5219 = vld [vmem:[%s1 + $0x1a8] sm:$0xff]
    %v5220 = vld [vmem:[%s1 + $0x1b0] sm:$0xff]
    %v5221 = vld [vmem:[%s1 + $0x1b8] sm:$0xff]
    %v5222 = vld [vmem:[%s1 + $0x1c0] sm:$0xff]
    %v5223 = vld [vmem:[%s1 + $0x1c8] sm:$0xff]
    %v5224 = vld [vmem:[%s1 + $0x1d0] sm:$0xff]
    %v5225 = vld [vmem:[%s1 + $0x1d8] sm:$0xff]
    %v5226 = vld [vmem:[%s1 + $0x1e0] sm:$0xff]
    %v5227 = vld [vmem:[%s1 + $0x1e8] sm:$0xff]
    %v5228 = vld [vmem:[%s1 + $0x1f0] sm:$0xff]
    %v5229 = vld [vmem:[%s1 + $0x1f8] sm:$0xff]
    %v5294 = vunpack.c.l.b16 %v5166
    %v5295 = vunpack.c.h.b16 %v5166
    %v5296 = vunpack.c.l.b16 %v5167
    %v5297 = vunpack.c.h.b16 %v5167
    %v5298 = vunpack.c.l.b16 %v5168
    %v5299 = vunpack.c.h.b16 %v5168
    %v5300 = vunpack.c.l.b16 %v5169
    %v5301 = vunpack.c.h.b16 %v5169
    %v5302 = vunpack.c.l.b16 %v5170
    %v5303 = vunpack.c.h.b16 %v5170
    %v5304 = vunpack.c.l.b16 %v5171
    %v5305 = vunpack.c.h.b16 %v5171
    %v5306 = vunpack.c.l.b16 %v5172
    %v5307 = vunpack.c.h.b16 %v5172
    %v5308 = vunpack.c.l.b16 %v5173
    %v5309 = vunpack.c.h.b16 %v5173
    %v5310 = vunpack.c.l.b16 %v5174
    %v5311 = vunpack.c.h.b16 %v5174
    %v5312 = vunpack.c.l.b16 %v5175
    %v5313 = vunpack.c.h.b16 %v5175
    %v5314 = vunpack.c.l.b16 %v5176
    %v5315 = vunpack.c.h.b16 %v5176
    %v5316 = vunpack.c.l.b16 %v5177
    %v5317 = vunpack.c.h.b16 %v5177
    %v5318 = vunpack.c.l.b16 %v5178
    %v5319 = vunpack.c.h.b16 %v5178
    %v5320 = vunpack.c.l.b16 %v5179
    %v5321 = vunpack.c.h.b16 %v5179
    %v5322 = vunpack.c.l.b16 %v5180
    %v5323 = vunpack.c.h.b16 %v5180
    %v5324 = vunpack.c.l.b16 %v5181
    %v5325 = vunpack.c.h.b16 %v5181
    %v5326 = vunpack.c.l.b16 %v5182
    %v5327 = vunpack.c.h.b16 %v5182
    %v5328 = vunpack.c.l.b16 %v5183
    %v5329 = vunpack.c.h.b16 %v5183
    %v5330 = vunpack.c.l.b16 %v5184
    %v5331 = vunpack.c.h.b16 %v5184
    %v5332 = vunpack.c.l.b16 %v5185
    %v5333 = vunpack.c.h.b16 %v5185
    %v5334 = vunpack.c.l.b16 %v5186
    %v5335 = vunpack.c.h.b16 %v5186
    %v5336 = vunpack.c.l.b16 %v5187
    %v5337 = vunpack.c.h.b16 %v5187
    %v5338 = vunpack.c.l.b16 %v5188
    %v5339 = vunpack.c.h.b16 %v5188
    %v5340 = vunpack.c.l.b16 %v5189
    %v5341 = vunpack.c.h.b16 %v5189
    %v5342 = vunpack.c.l.b16 %v5190
    %v5343 = vunpack.c.h.b16 %v5190
    %v5344 = vunpack.c.l.b16 %v5191
    %v5345 = vunpack.c.h.b16 %v5191
    %v5346 = vunpack.c.l.b16 %v5192
    %v5347 = vunpack.c.h.b16 %v5192
    %v5348 = vunpack.c.l.b16 %v5193
    %v5349 = vunpack.c.h.b16 %v5193
    %v5350 = vunpack.c.l.b16 %v5194
    %v5351 = vunpack.c.h.b16 %v5194
    %v5352 = vunpack.c.l.b16 %v5195
    %v5353 = vunpack.c.h.b16 %v5195
    %v5354 = vunpack.c.l.b16 %v5196
    %v5355 = vunpack.c.h.b16 %v5196
    %v5356 = vunpack.c.l.b16 %v5197
    %v5357 = vunpack.c.h.b16 %v5197
    %v5358 = vunpack.c.l.b16 %v5198
    %v5359 = vunpack.c.h.b16 %v5198
    %v5360 = vunpack.c.l.b16 %v5199
    %v5361 = vunpack.c.h.b16 %v5199
    %v5362 = vunpack.c.l.b16 %v5200
    %v5363 = vunpack.c.h.b16 %v5200
    %v5364 = vunpack.c.l.b16 %v5201
    %v5365 = vunpack.c.h.b16 %v5201
    %v5366 = vunpack.c.l.b16 %v5202
    %v5367 = vunpack.c.h.b16 %v5202
    %v5368 = vunpack.c.l.b16 %v5203
    %v5369 = vunpack.c.h.b16 %v5203
    %v5370 = vunpack.c.l.b16 %v5204
    %v5371 = vunpack.c.h.b16 %v5204
    %v5372 = vunpack.c.l.b16 %v5205
    %v5373 = vunpack.c.h.b16 %v5205
    %v5374 = vunpack.c.l.b16 %v5206
    %v5375 = vunpack.c.h.b16 %v5206
    %v5376 = vunpack.c.l.b16 %v5207
    %v5377 = vunpack.c.h.b16 %v5207
    %v5378 = vunpack.c.l.b16 %v5208
    %v5379 = vunpack.c.h.b16 %v5208
    %v5380 = vunpack.c.l.b16 %v5209
    %v5381 = vunpack.c.h.b16 %v5209
    %v5382 = vunpack.c.l.b16 %v5210
    %v5383 = vunpack.c.h.b16 %v5210
    %v5384 = vunpack.c.l.b16 %v5211
    %v5385 = vunpack.c.h.b16 %v5211
    %v5386 = vunpack.c.l.b16 %v5212
    %v5387 = vunpack.c.h.b16 %v5212
    %v5388 = vunpack.c.l.b16 %v5213
    %v5389 = vunpack.c.h.b16 %v5213
    %v5390 = vunpack.c.l.b16 %v5214
    %v5391 = vunpack.c.h.b16 %v5214
    %v5392 = vunpack.c.l.b16 %v5215
    %v5393 = vunpack.c.h.b16 %v5215
    %v5394 = vunpack.c.l.b16 %v5216
    %v5395 = vunpack.c.h.b16 %v5216
    %v5396 = vunpack.c.l.b16 %v5217
    %v5397 = vunpack.c.h.b16 %v5217
    %v5398 = vunpack.c.l.b16 %v5218
    %v5399 = vunpack.c.h.b16 %v5218
    %v5400 = vunpack.c.l.b16 %v5219
    %v5401 = vunpack.c.h.b16 %v5219
    %v5402 = vunpack.c.l.b16 %v5220
    %v5403 = vunpack.c.h.b16 %v5220
    %v5404 = vunpack.c.l.b16 %v5221
    %v5405 = vunpack.c.h.b16 %v5221
    %v5406 = vunpack.c.l.b16 %v5222
    %v5407 = vunpack.c.h.b16 %v5222
    %v5408 = vunpack.c.l.b16 %v5223
    %v5409 = vunpack.c.h.b16 %v5223
    %v5410 = vunpack.c.l.b16 %v5224
    %v5411 = vunpack.c.h.b16 %v5224
    %v5412 = vunpack.c.l.b16 %v5225
    %v5413 = vunpack.c.h.b16 %v5225
    %v5414 = vunpack.c.l.b16 %v5226
    %v5415 = vunpack.c.h.b16 %v5226
    %v5416 = vunpack.c.l.b16 %v5227
    %v5417 = vunpack.c.h.b16 %v5227
    %v5418 = vunpack.c.l.b16 %v5228
    %v5419 = vunpack.c.h.b16 %v5228
    %v5420 = vunpack.c.l.b16 %v5229
    %v5421 = vunpack.c.h.b16 %v5229
    %v5422 = vpack.c.b16 %v5302, %v5294
    %v5423 = vpack.c.b16 %v5303, %v5295
    %v5424 = vpack.c.b16 %v5304, %v5296
    %v5425 = vpack.c.b16 %v5305, %v5297
    %v5426 = vpack.c.b16 %v5306, %v5298
    %v5427 = vpack.c.b16 %v5307, %v5299
    %v5428 = vpack.c.b16 %v5308, %v5300
    %v5429 = vpack.c.b16 %v5309, %v5301
    %v5430 = vpack.c.b16 %v5318, %v5310
    %v5431 = vpack.c.b16 %v5319, %v5311
    %v5432 = vpack.c.b16 %v5320, %v5312
    %v5433 = vpack.c.b16 %v5321, %v5313
    %v5434 = vpack.c.b16 %v5322, %v5314
    %v5435 = vpack.c.b16 %v5323, %v5315
    %v5436 = vpack.c.b16 %v5324, %v5316
    %v5437 = vpack.c.b16 %v5325, %v5317
    %v5438 = vpack.c.b16 %v5334, %v5326
    %v5439 = vpack.c.b16 %v5335, %v5327
    %v5440 = vpack.c.b16 %v5336, %v5328
    %v5441 = vpack.c.b16 %v5337, %v5329
    %v5442 = vpack.c.b16 %v5338, %v5330
    %v5443 = vpack.c.b16 %v5339, %v5331
    %v5444 = vpack.c.b16 %v5340, %v5332
    %v5445 = vpack.c.b16 %v5341, %v5333
    %v5446 = vpack.c.b16 %v5350, %v5342
    %v5447 = vpack.c.b16 %v5351, %v5343
    %v5448 = vpack.c.b16 %v5352, %v5344
    %v5449 = vpack.c.b16 %v5353, %v5345
    %v5450 = vpack.c.b16 %v5354, %v5346
    %v5451 = vpack.c.b16 %v5355, %v5347
    %v5452 = vpack.c.b16 %v5356, %v5348
    %v5453 = vpack.c.b16 %v5357, %v5349
    %v5454 = vpack.c.b16 %v5366, %v5358
    %v5455 = vpack.c.b16 %v5367, %v5359
    %v5456 = vpack.c.b16 %v5368, %v5360
    %v5457 = vpack.c.b16 %v5369, %v5361
    %v5458 = vpack.c.b16 %v5370, %v5362
    %v5459 = vpack.c.b16 %v5371, %v5363
    %v5460 = vpack.c.b16 %v5372, %v5364
    %v5461 = vpack.c.b16 %v5373, %v5365
    %v5462 = vpack.c.b16 %v5382, %v5374
    %v5463 = vpack.c.b16 %v5383, %v5375
    %v5464 = vpack.c.b16 %v5384, %v5376
    %v5465 = vpack.c.b16 %v5385, %v5377
    %v5466 = vpack.c.b16 %v5386, %v5378
    %v5467 = vpack.c.b16 %v5387, %v5379
    %v5468 = vpack.c.b16 %v5388, %v5380
    %v5469 = vpack.c.b16 %v5389, %v5381
    %v5470 = vpack.c.b16 %v5398, %v5390
    %v5471 = vpack.c.b16 %v5399, %v5391
    %v5472 = vpack.c.b16 %v5400, %v5392
    %v5473 = vpack.c.b16 %v5401, %v5393
    %v5474 = vpack.c.b16 %v5402, %v5394
    %v5475 = vpack.c.b16 %v5403, %v5395
    %v5476 = vpack.c.b16 %v5404, %v5396
    %v5477 = vpack.c.b16 %v5405, %v5397
    %v5478 = vpack.c.b16 %v5414, %v5406
    %v5479 = vpack.c.b16 %v5415, %v5407
    %v5480 = vpack.c.b16 %v5416, %v5408
    %v5481 = vpack.c.b16 %v5417, %v5409
    %v5482 = vpack.c.b16 %v5418, %v5410
    %v5483 = vpack.c.b16 %v5419, %v5411
    %v5484 = vpack.c.b16 %v5420, %v5412
    %v5485 = vpack.c.b16 %v5421, %v5413
    %5550 = vmatprep.subr.bf16.mxu0 %v5479
    %5551 = vmatpush1.bf16.msra.mxu0 %v5478
    %5552 = vmatprep.subr.bf16.mxu0 %v5471
    %5553 = vmatpush1.bf16.msra.mxu0 %v5470
    %5554 = vmatprep.subr.bf16.mxu0 %v5463
    %5555 = vmatpush1.bf16.msra.mxu0 %v5462
    %5556 = vmatprep.subr.bf16.mxu0 %v5455
    %5557 = vmatpush1.bf16.msra.mxu0 %v5454
    %5558 = vmatprep.subr.bf16.mxu0 %v5447
    %5559 = vmatpush1.bf16.msra.mxu0 %v5446
    %5560 = vmatprep.subr.bf16.mxu0 %v5439
    %5561 = vmatpush1.bf16.msra.mxu0 %v5438
    %5562 = vmatprep.subr.bf16.mxu0 %v5431
    %5563 = vmatpush1.bf16.msra.mxu0 %v5430
    %5564 = vmatprep.subr.bf16.mxu0 %v5423
    %5565 = vmatpush1.bf16.msra.mxu0 %v5422
    %5566 = vmatprep.subr.bf16.mxu0 0
    %5567 = vmatpush2.bf16.msra.mxu0 0
    %5568 = vmatprep.subr.bf16.mxu0 0
    %5569 = vmatpush2.bf16.msra.mxu0 0
    %5570 = vmatprep.subr.bf16.mxu0 0
    %5571 = vmatpush2.bf16.msra.mxu0 0
    %5572 = vmatprep.subr.bf16.mxu0 0
    %5573 = vmatpush2.bf16.msra.mxu0 0
    %5574 = vmatprep.subr.bf16.mxu0 0
    %5575 = vmatpush2.bf16.msra.mxu0 0
    %5576 = vmatprep.subr.bf16.mxu0 0
    %5577 = vmatpush2.bf16.msra.mxu0 0
    %5578 = vmatprep.subr.bf16.mxu0 0
    %5579 = vmatpush2.bf16.msra.mxu0 0
    %5580 = vmatprep.subr.bf16.mxu0 0
    %5581 = vmatpush2.bf16.msra.mxu0 0
    %5582 = vmatprep.mubr.bf16.mxu0 0
    %5583 = vmatmul.mubr.bf16.gmra.mxu0 %v5165
    %v5584 = vpop.f32.mrf.mxu0
    %v5585 = vadd.f32 0.0, %v5584
    %v5586 = vpop.f32.mrf.mxu0
    %v5587 = vadd.f32 0.0, %v5586
    %v5588 = vpop.f32.mrf.mxu0
    %v5589 = vpop.f32.mrf.mxu0
    %5590 = vdwg.mxu0
    %5591 = vmatprep.subr.bf16.mxu0 %v5481
    %5592 = vmatpush1.bf16.msra.mxu0 %v5480
    %5593 = vmatprep.subr.bf16.mxu0 %v5473
    %5594 = vmatpush1.bf16.msra.mxu0 %v5472
    %5595 = vmatprep.subr.bf16.mxu0 %v5465
    %5596 = vmatpush1.bf16.msra.mxu0 %v5464
    %5597 = vmatprep.subr.bf16.mxu0 %v5457
    %5598 = vmatpush1.bf16.msra.mxu0 %v5456
    %5599 = vmatprep.subr.bf16.mxu0 %v5449
    %5600 = vmatpush1.bf16.msra.mxu0 %v5448
    %5601 = vmatprep.subr.bf16.mxu0 %v5441
    %5602 = vmatpush1.bf16.msra.mxu0 %v5440
    %5603 = vmatprep.subr.bf16.mxu0 %v5433
    %5604 = vmatpush1.bf16.msra.mxu0 %v5432
    %5605 = vmatprep.subr.bf16.mxu0 %v5425
    %5606 = vmatpush1.bf16.msra.mxu0 %v5424
    %5607 = vmatprep.subr.bf16.mxu0 0
    %5608 = vmatpush2.bf16.msra.mxu0 0
    %5609 = vmatprep.subr.bf16.mxu0 0
    %5610 = vmatpush2.bf16.msra.mxu0 0
    %5611 = vmatprep.subr.bf16.mxu0 0
    %5612 = vmatpush2.bf16.msra.mxu0 0
    %5613 = vmatprep.subr.bf16.mxu0 0
    %5614 = vmatpush2.bf16.msra.mxu0 0
    %5615 = vmatprep.subr.bf16.mxu0 0
    %5616 = vmatpush2.bf16.msra.mxu0 0
    %5617 = vmatprep.subr.bf16.mxu0 0
    %5618 = vmatpush2.bf16.msra.mxu0 0
    %5619 = vmatprep.subr.bf16.mxu0 0
    %5620 = vmatpush2.bf16.msra.mxu0 0
    %5621 = vmatprep.subr.bf16.mxu0 0
    %5622 = vmatpush2.bf16.msra.mxu0 0
    %5623 = vmatprep.mubr.bf16.mxu0 0
    %5624 = vmatmul.mubr.bf16.gmra.mxu0 %v5165
    %v5625 = vpop.f32.mrf.mxu0
    %v5626 = vadd.f32 0.0, %v5625
    %v5627 = vpop.f32.mrf.mxu0
    %v5628 = vadd.f32 0.0, %v5627
    %v5629 = vpop.f32.mrf.mxu0
    %v5630 = vpop.f32.mrf.mxu0
    %5631 = vdwg.mxu0
    %5632 = vmatprep.subr.bf16.mxu0 %v5483
    %5633 = vmatpush1.bf16.msra.mxu0 %v5482
    %5634 = vmatprep.subr.bf16.mxu0 %v5475
    %5635 = vmatpush1.bf16.msra.mxu0 %v5474
    %5636 = vmatprep.subr.bf16.mxu0 %v5467
    %5637 = vmatpush1.bf16.msra.mxu0 %v5466
    %5638 = vmatprep.subr.bf16.mxu0 %v5459
    %5639 = vmatpush1.bf16.msra.mxu0 %v5458
    %5640 = vmatprep.subr.bf16.mxu0 %v5451
    %5641 = vmatpush1.bf16.msra.mxu0 %v5450
    %5642 = vmatprep.subr.bf16.mxu0 %v5443
    %5643 = vmatpush1.bf16.msra.mxu0 %v5442
    %5644 = vmatprep.subr.bf16.mxu0 %v5435
    %5645 = vmatpush1.bf16.msra.mxu0 %v5434
    %5646 = vmatprep.subr.bf16.mxu0 %v5427
    %5647 = vmatpush1.bf16.msra.mxu0 %v5426
    %5648 = vmatprep.subr.bf16.mxu0 0
    %5649 = vmatpush2.bf16.msra.mxu0 0
    %5650 = vmatprep.subr.bf16.mxu0 0
    %5651 = vmatpush2.bf16.msra.mxu0 0
    %5652 = vmatprep.subr.bf16.mxu0 0
    %5653 = vmatpush2.bf16.msra.mxu0 0
    %5654 = vmatprep.subr.bf16.mxu0 0
    %5655 = vmatpush2.bf16.msra.mxu0 0
    %5656 = vmatprep.subr.bf16.mxu0 0
    %5657 = vmatpush2.bf16.msra.mxu0 0
    %5658 = vmatprep.subr.bf16.mxu0 0
    %5659 = vmatpush2.bf16.msra.mxu0 0
    %5660 = vmatprep.subr.bf16.mxu0 0
    %5661 = vmatpush2.bf16.msra.mxu0 0
    %5662 = vmatprep.subr.bf16.mxu0 0
    %5663 = vmatpush2.bf16.msra.mxu0 0
    %5664 = vmatprep.mubr.bf16.mxu0 0
    %5665 = vmatmul.mubr.bf16.gmra.mxu0 %v5165
    %v5666 = vpop.f32.mrf.mxu0
    %v5667 = vadd.f32 0.0, %v5666
    %v5668 = vpop.f32.mrf.mxu0
    %v5669 = vadd.f32 0.0, %v5668
    %v5670 = vpop.f32.mrf.mxu0
    %v5671 = vpop.f32.mrf.mxu0
    %5672 = vdwg.mxu0
    %5673 = vmatprep.subr.bf16.mxu0 %v5485
    %5674 = vmatpush1.bf16.msra.mxu0 %v5484
    %5675 = vmatprep.subr.bf16.mxu0 %v5477
    %5676 = vmatpush1.bf16.msra.mxu0 %v5476
    %5677 = vmatprep.subr.bf16.mxu0 %v5469
    %5678 = vmatpush1.bf16.msra.mxu0 %v5468
    %5679 = vmatprep.subr.bf16.mxu0 %v5461
    %5680 = vmatpush1.bf16.msra.mxu0 %v5460
    %5681 = vmatprep.subr.bf16.mxu0 %v5453
    %5682 = vmatpush1.bf16.msra.mxu0 %v5452
    %5683 = vmatprep.subr.bf16.mxu0 %v5445
    %5684 = vmatpush1.bf16.msra.mxu0 %v5444
    %5685 = vmatprep.subr.bf16.mxu0 %v5437
    %5686 = vmatpush1.bf16.msra.mxu0 %v5436
    %5687 = vmatprep.subr.bf16.mxu0 %v5429
    %5688 = vmatpush1.bf16.msra.mxu0 %v5428
    %5689 = vmatprep.subr.bf16.mxu0 0
    %5690 = vmatpush2.bf16.msra.mxu0 0
    %5691 = vmatprep.subr.bf16.mxu0 0
    %5692 = vmatpush2.bf16.msra.mxu0 0
    %5693 = vmatprep.subr.bf16.mxu0 0
    %5694 = vmatpush2.bf16.msra.mxu0 0
    %5695 = vmatprep.subr.bf16.mxu0 0
    %5696 = vmatpush2.bf16.msra.mxu0 0
    %5697 = vmatprep.subr.bf16.mxu0 0
    %5698 = vmatpush2.bf16.msra.mxu0 0
    %5699 = vmatprep.subr.bf16.mxu0 0
    %5700 = vmatpush2.bf16.msra.mxu0 0
    %5701 = vmatprep.subr.bf16.mxu0 0
    %5702 = vmatpush2.bf16.msra.mxu0 0
    %5703 = vmatprep.subr.bf16.mxu0 0
    %5704 = vmatpush2.bf16.msra.mxu0 0
    %5705 = vmatprep.mubr.bf16.mxu0 0
    %5706 = vmatmul.mubr.bf16.gmra.mxu0 %v5165
    %v5707 = vpop.f32.mrf.mxu0
    %v5708 = vadd.f32 0.0, %v5707
    %v5709 = vpop.f32.mrf.mxu0
    %v5710 = vadd.f32 0.0, %v5709
    %v5711 = vpop.f32.mrf.mxu0
    %v5712 = vpop.f32.mrf.mxu0
    %5713 = vdwg.mxu0
    %v5714 = vmax.f32 %v5585, %v5626
    %v5715 = vmax.f32 %v5587, %v5628
    %v5716 = vmax.f32 %v5667, %v5708
    %v5717 = vmax.f32 %v5669, %v5710
    %v5718 = vmax.f32 %v5714, %v5716
    %v5719 = vmax.f32 %v5715, %v5717
    %v5720 = vadd.f32 %v5718, %v601
    %v5721 = vadd.f32 %v5719, %v605
    %v5722 = vmax.f32 %v5720, 0.0
    %v5723 = vmax.f32 %v5721, 0.0
    %v5724 = vpack.c.bf16 %v5722, %v5722
    %v5725 = vpack.c.bf16 %v5723, %v5723
    %v5728 = vunpack.c.l.b16 %v5724
    %v5729 = vunpack.c.l.b16 %v5725
    %v5730 = vpack.c.b16 %v5729, %v5728
    %5732 = vst [vmem:[#allocation2 + $0x48] sm:$0xff] %v5730
    %v5733 = vld [vmem:[%s0 + $0x28] sm:$0xf]
    %v5734 = vld [vmem:[%s1] sm:$0xff]
    %v5735 = vld [vmem:[%s1 + $0x8] sm:$0xff]
    %v5736 = vld [vmem:[%s1 + $0x10] sm:$0xff]
    %v5737 = vld [vmem:[%s1 + $0x18] sm:$0xff]
    %v5738 = vld [vmem:[%s1 + $0x20] sm:$0xff]
    %v5739 = vld [vmem:[%s1 + $0x28] sm:$0xff]
    %v5740 = vld [vmem:[%s1 + $0x30] sm:$0xff]
    %v5741 = vld [vmem:[%s1 + $0x38] sm:$0xff]
    %v5742 = vld [vmem:[%s1 + $0x40] sm:$0xff]
    %v5743 = vld [vmem:[%s1 + $0x48] sm:$0xff]
    %v5744 = vld [vmem:[%s1 + $0x50] sm:$0xff]
    %v5745 = vld [vmem:[%s1 + $0x58] sm:$0xff]
    %v5746 = vld [vmem:[%s1 + $0x60] sm:$0xff]
    %v5747 = vld [vmem:[%s1 + $0x68] sm:$0xff]
    %v5748 = vld [vmem:[%s1 + $0x70] sm:$0xff]
    %v5749 = vld [vmem:[%s1 + $0x78] sm:$0xff]
    %v5750 = vld [vmem:[%s1 + $0x80] sm:$0xff]
    %v5751 = vld [vmem:[%s1 + $0x88] sm:$0xff]
    %v5752 = vld [vmem:[%s1 + $0x90] sm:$0xff]
    %v5753 = vld [vmem:[%s1 + $0x98] sm:$0xff]
    %v5754 = vld [vmem:[%s1 + $0xa0] sm:$0xff]
    %v5755 = vld [vmem:[%s1 + $0xa8] sm:$0xff]
    %v5756 = vld [vmem:[%s1 + $0xb0] sm:$0xff]
    %v5757 = vld [vmem:[%s1 + $0xb8] sm:$0xff]
    %v5758 = vld [vmem:[%s1 + $0xc0] sm:$0xff]
    %v5759 = vld [vmem:[%s1 + $0xc8] sm:$0xff]
    %v5760 = vld [vmem:[%s1 + $0xd0] sm:$0xff]
    %v5761 = vld [vmem:[%s1 + $0xd8] sm:$0xff]
    %v5762 = vld [vmem:[%s1 + $0xe0] sm:$0xff]
    %v5763 = vld [vmem:[%s1 + $0xe8] sm:$0xff]
    %v5764 = vld [vmem:[%s1 + $0xf0] sm:$0xff]
    %v5765 = vld [vmem:[%s1 + $0xf8] sm:$0xff]
    %v5766 = vld [vmem:[%s1 + $0x100] sm:$0xff]
    %v5767 = vld [vmem:[%s1 + $0x108] sm:$0xff]
    %v5768 = vld [vmem:[%s1 + $0x110] sm:$0xff]
    %v5769 = vld [vmem:[%s1 + $0x118] sm:$0xff]
    %v5770 = vld [vmem:[%s1 + $0x120] sm:$0xff]
    %v5771 = vld [vmem:[%s1 + $0x128] sm:$0xff]
    %v5772 = vld [vmem:[%s1 + $0x130] sm:$0xff]
    %v5773 = vld [vmem:[%s1 + $0x138] sm:$0xff]
    %v5774 = vld [vmem:[%s1 + $0x140] sm:$0xff]
    %v5775 = vld [vmem:[%s1 + $0x148] sm:$0xff]
    %v5776 = vld [vmem:[%s1 + $0x150] sm:$0xff]
    %v5777 = vld [vmem:[%s1 + $0x158] sm:$0xff]
    %v5778 = vld [vmem:[%s1 + $0x160] sm:$0xff]
    %v5779 = vld [vmem:[%s1 + $0x168] sm:$0xff]
    %v5780 = vld [vmem:[%s1 + $0x170] sm:$0xff]
    %v5781 = vld [vmem:[%s1 + $0x178] sm:$0xff]
    %v5782 = vld [vmem:[%s1 + $0x180] sm:$0xff]
    %v5783 = vld [vmem:[%s1 + $0x188] sm:$0xff]
    %v5784 = vld [vmem:[%s1 + $0x190] sm:$0xff]
    %v5785 = vld [vmem:[%s1 + $0x198] sm:$0xff]
    %v5786 = vld [vmem:[%s1 + $0x1a0] sm:$0xff]
    %v5787 = vld [vmem:[%s1 + $0x1a8] sm:$0xff]
    %v5788 = vld [vmem:[%s1 + $0x1b0] sm:$0xff]
    %v5789 = vld [vmem:[%s1 + $0x1b8] sm:$0xff]
    %v5790 = vld [vmem:[%s1 + $0x1c0] sm:$0xff]
    %v5791 = vld [vmem:[%s1 + $0x1c8] sm:$0xff]
    %v5792 = vld [vmem:[%s1 + $0x1d0] sm:$0xff]
    %v5793 = vld [vmem:[%s1 + $0x1d8] sm:$0xff]
    %v5794 = vld [vmem:[%s1 + $0x1e0] sm:$0xff]
    %v5795 = vld [vmem:[%s1 + $0x1e8] sm:$0xff]
    %v5796 = vld [vmem:[%s1 + $0x1f0] sm:$0xff]
    %v5797 = vld [vmem:[%s1 + $0x1f8] sm:$0xff]
    %v5862 = vunpack.c.l.b16 %v5734
    %v5863 = vunpack.c.h.b16 %v5734
    %v5864 = vunpack.c.l.b16 %v5735
    %v5865 = vunpack.c.h.b16 %v5735
    %v5866 = vunpack.c.l.b16 %v5736
    %v5867 = vunpack.c.h.b16 %v5736
    %v5868 = vunpack.c.l.b16 %v5737
    %v5869 = vunpack.c.h.b16 %v5737
    %v5870 = vunpack.c.l.b16 %v5738
    %v5871 = vunpack.c.h.b16 %v5738
    %v5872 = vunpack.c.l.b16 %v5739
    %v5873 = vunpack.c.h.b16 %v5739
    %v5874 = vunpack.c.l.b16 %v5740
    %v5875 = vunpack.c.h.b16 %v5740
    %v5876 = vunpack.c.l.b16 %v5741
    %v5877 = vunpack.c.h.b16 %v5741
    %v5878 = vunpack.c.l.b16 %v5742
    %v5879 = vunpack.c.h.b16 %v5742
    %v5880 = vunpack.c.l.b16 %v5743
    %v5881 = vunpack.c.h.b16 %v5743
    %v5882 = vunpack.c.l.b16 %v5744
    %v5883 = vunpack.c.h.b16 %v5744
    %v5884 = vunpack.c.l.b16 %v5745
    %v5885 = vunpack.c.h.b16 %v5745
    %v5886 = vunpack.c.l.b16 %v5746
    %v5887 = vunpack.c.h.b16 %v5746
    %v5888 = vunpack.c.l.b16 %v5747
    %v5889 = vunpack.c.h.b16 %v5747
    %v5890 = vunpack.c.l.b16 %v5748
    %v5891 = vunpack.c.h.b16 %v5748
    %v5892 = vunpack.c.l.b16 %v5749
    %v5893 = vunpack.c.h.b16 %v5749
    %v5894 = vunpack.c.l.b16 %v5750
    %v5895 = vunpack.c.h.b16 %v5750
    %v5896 = vunpack.c.l.b16 %v5751
    %v5897 = vunpack.c.h.b16 %v5751
    %v5898 = vunpack.c.l.b16 %v5752
    %v5899 = vunpack.c.h.b16 %v5752
    %v5900 = vunpack.c.l.b16 %v5753
    %v5901 = vunpack.c.h.b16 %v5753
    %v5902 = vunpack.c.l.b16 %v5754
    %v5903 = vunpack.c.h.b16 %v5754
    %v5904 = vunpack.c.l.b16 %v5755
    %v5905 = vunpack.c.h.b16 %v5755
    %v5906 = vunpack.c.l.b16 %v5756
    %v5907 = vunpack.c.h.b16 %v5756
    %v5908 = vunpack.c.l.b16 %v5757
    %v5909 = vunpack.c.h.b16 %v5757
    %v5910 = vunpack.c.l.b16 %v5758
    %v5911 = vunpack.c.h.b16 %v5758
    %v5912 = vunpack.c.l.b16 %v5759
    %v5913 = vunpack.c.h.b16 %v5759
    %v5914 = vunpack.c.l.b16 %v5760
    %v5915 = vunpack.c.h.b16 %v5760
    %v5916 = vunpack.c.l.b16 %v5761
    %v5917 = vunpack.c.h.b16 %v5761
    %v5918 = vunpack.c.l.b16 %v5762
    %v5919 = vunpack.c.h.b16 %v5762
    %v5920 = vunpack.c.l.b16 %v5763
    %v5921 = vunpack.c.h.b16 %v5763
    %v5922 = vunpack.c.l.b16 %v5764
    %v5923 = vunpack.c.h.b16 %v5764
    %v5924 = vunpack.c.l.b16 %v5765
    %v5925 = vunpack.c.h.b16 %v5765
    %v5926 = vunpack.c.l.b16 %v5766
    %v5927 = vunpack.c.h.b16 %v5766
    %v5928 = vunpack.c.l.b16 %v5767
    %v5929 = vunpack.c.h.b16 %v5767
    %v5930 = vunpack.c.l.b16 %v5768
    %v5931 = vunpack.c.h.b16 %v5768
    %v5932 = vunpack.c.l.b16 %v5769
    %v5933 = vunpack.c.h.b16 %v5769
    %v5934 = vunpack.c.l.b16 %v5770
    %v5935 = vunpack.c.h.b16 %v5770
    %v5936 = vunpack.c.l.b16 %v5771
    %v5937 = vunpack.c.h.b16 %v5771
    %v5938 = vunpack.c.l.b16 %v5772
    %v5939 = vunpack.c.h.b16 %v5772
    %v5940 = vunpack.c.l.b16 %v5773
    %v5941 = vunpack.c.h.b16 %v5773
    %v5942 = vunpack.c.l.b16 %v5774
    %v5943 = vunpack.c.h.b16 %v5774
    %v5944 = vunpack.c.l.b16 %v5775
    %v5945 = vunpack.c.h.b16 %v5775
    %v5946 = vunpack.c.l.b16 %v5776
    %v5947 = vunpack.c.h.b16 %v5776
    %v5948 = vunpack.c.l.b16 %v5777
    %v5949 = vunpack.c.h.b16 %v5777
    %v5950 = vunpack.c.l.b16 %v5778
    %v5951 = vunpack.c.h.b16 %v5778
    %v5952 = vunpack.c.l.b16 %v5779
    %v5953 = vunpack.c.h.b16 %v5779
    %v5954 = vunpack.c.l.b16 %v5780
    %v5955 = vunpack.c.h.b16 %v5780
    %v5956 = vunpack.c.l.b16 %v5781
    %v5957 = vunpack.c.h.b16 %v5781
    %v5958 = vunpack.c.l.b16 %v5782
    %v5959 = vunpack.c.h.b16 %v5782
    %v5960 = vunpack.c.l.b16 %v5783
    %v5961 = vunpack.c.h.b16 %v5783
    %v5962 = vunpack.c.l.b16 %v5784
    %v5963 = vunpack.c.h.b16 %v5784
    %v5964 = vunpack.c.l.b16 %v5785
    %v5965 = vunpack.c.h.b16 %v5785
    %v5966 = vunpack.c.l.b16 %v5786
    %v5967 = vunpack.c.h.b16 %v5786
    %v5968 = vunpack.c.l.b16 %v5787
    %v5969 = vunpack.c.h.b16 %v5787
    %v5970 = vunpack.c.l.b16 %v5788
    %v5971 = vunpack.c.h.b16 %v5788
    %v5972 = vunpack.c.l.b16 %v5789
    %v5973 = vunpack.c.h.b16 %v5789
    %v5974 = vunpack.c.l.b16 %v5790
    %v5975 = vunpack.c.h.b16 %v5790
    %v5976 = vunpack.c.l.b16 %v5791
    %v5977 = vunpack.c.h.b16 %v5791
    %v5978 = vunpack.c.l.b16 %v5792
    %v5979 = vunpack.c.h.b16 %v5792
    %v5980 = vunpack.c.l.b16 %v5793
    %v5981 = vunpack.c.h.b16 %v5793
    %v5982 = vunpack.c.l.b16 %v5794
    %v5983 = vunpack.c.h.b16 %v5794
    %v5984 = vunpack.c.l.b16 %v5795
    %v5985 = vunpack.c.h.b16 %v5795
    %v5986 = vunpack.c.l.b16 %v5796
    %v5987 = vunpack.c.h.b16 %v5796
    %v5988 = vunpack.c.l.b16 %v5797
    %v5989 = vunpack.c.h.b16 %v5797
    %v5990 = vpack.c.b16 %v5870, %v5862
    %v5991 = vpack.c.b16 %v5871, %v5863
    %v5992 = vpack.c.b16 %v5872, %v5864
    %v5993 = vpack.c.b16 %v5873, %v5865
    %v5994 = vpack.c.b16 %v5874, %v5866
    %v5995 = vpack.c.b16 %v5875, %v5867
    %v5996 = vpack.c.b16 %v5876, %v5868
    %v5997 = vpack.c.b16 %v5877, %v5869
    %v5998 = vpack.c.b16 %v5886, %v5878
    %v5999 = vpack.c.b16 %v5887, %v5879
    %v6000 = vpack.c.b16 %v5888, %v5880
    %v6001 = vpack.c.b16 %v5889, %v5881
    %v6002 = vpack.c.b16 %v5890, %v5882
    %v6003 = vpack.c.b16 %v5891, %v5883
    %v6004 = vpack.c.b16 %v5892, %v5884
    %v6005 = vpack.c.b16 %v5893, %v5885
    %v6006 = vpack.c.b16 %v5902, %v5894
    %v6007 = vpack.c.b16 %v5903, %v5895
    %v6008 = vpack.c.b16 %v5904, %v5896
    %v6009 = vpack.c.b16 %v5905, %v5897
    %v6010 = vpack.c.b16 %v5906, %v5898
    %v6011 = vpack.c.b16 %v5907, %v5899
    %v6012 = vpack.c.b16 %v5908, %v5900
    %v6013 = vpack.c.b16 %v5909, %v5901
    %v6014 = vpack.c.b16 %v5918, %v5910
    %v6015 = vpack.c.b16 %v5919, %v5911
    %v6016 = vpack.c.b16 %v5920, %v5912
    %v6017 = vpack.c.b16 %v5921, %v5913
    %v6018 = vpack.c.b16 %v5922, %v5914
    %v6019 = vpack.c.b16 %v5923, %v5915
    %v6020 = vpack.c.b16 %v5924, %v5916
    %v6021 = vpack.c.b16 %v5925, %v5917
    %v6022 = vpack.c.b16 %v5934, %v5926
    %v6023 = vpack.c.b16 %v5935, %v5927
    %v6024 = vpack.c.b16 %v5936, %v5928
    %v6025 = vpack.c.b16 %v5937, %v5929
    %v6026 = vpack.c.b16 %v5938, %v5930
    %v6027 = vpack.c.b16 %v5939, %v5931
    %v6028 = vpack.c.b16 %v5940, %v5932
    %v6029 = vpack.c.b16 %v5941, %v5933
    %v6030 = vpack.c.b16 %v5950, %v5942
    %v6031 = vpack.c.b16 %v5951, %v5943
    %v6032 = vpack.c.b16 %v5952, %v5944
    %v6033 = vpack.c.b16 %v5953, %v5945
    %v6034 = vpack.c.b16 %v5954, %v5946
    %v6035 = vpack.c.b16 %v5955, %v5947
    %v6036 = vpack.c.b16 %v5956, %v5948
    %v6037 = vpack.c.b16 %v5957, %v5949
    %v6038 = vpack.c.b16 %v5966, %v5958
    %v6039 = vpack.c.b16 %v5967, %v5959
    %v6040 = vpack.c.b16 %v5968, %v5960
    %v6041 = vpack.c.b16 %v5969, %v5961
    %v6042 = vpack.c.b16 %v5970, %v5962
    %v6043 = vpack.c.b16 %v5971, %v5963
    %v6044 = vpack.c.b16 %v5972, %v5964
    %v6045 = vpack.c.b16 %v5973, %v5965
    %v6046 = vpack.c.b16 %v5982, %v5974
    %v6047 = vpack.c.b16 %v5983, %v5975
    %v6048 = vpack.c.b16 %v5984, %v5976
    %v6049 = vpack.c.b16 %v5985, %v5977
    %v6050 = vpack.c.b16 %v5986, %v5978
    %v6051 = vpack.c.b16 %v5987, %v5979
    %v6052 = vpack.c.b16 %v5988, %v5980
    %v6053 = vpack.c.b16 %v5989, %v5981
    %6118 = vmatprep.subr.bf16.mxu0 %v6047
    %6119 = vmatpush1.bf16.msra.mxu0 %v6046
    %6120 = vmatprep.subr.bf16.mxu0 %v6039
    %6121 = vmatpush1.bf16.msra.mxu0 %v6038
    %6122 = vmatprep.subr.bf16.mxu0 %v6031
    %6123 = vmatpush1.bf16.msra.mxu0 %v6030
    %6124 = vmatprep.subr.bf16.mxu0 %v6023
    %6125 = vmatpush1.bf16.msra.mxu0 %v6022
    %6126 = vmatprep.subr.bf16.mxu0 %v6015
    %6127 = vmatpush1.bf16.msra.mxu0 %v6014
    %6128 = vmatprep.subr.bf16.mxu0 %v6007
    %6129 = vmatpush1.bf16.msra.mxu0 %v6006
    %6130 = vmatprep.subr.bf16.mxu0 %v5999
    %6131 = vmatpush1.bf16.msra.mxu0 %v5998
    %6132 = vmatprep.subr.bf16.mxu0 %v5991
    %6133 = vmatpush1.bf16.msra.mxu0 %v5990
    %6134 = vmatprep.subr.bf16.mxu0 0
    %6135 = vmatpush2.bf16.msra.mxu0 0
    %6136 = vmatprep.subr.bf16.mxu0 0
    %6137 = vmatpush2.bf16.msra.mxu0 0
    %6138 = vmatprep.subr.bf16.mxu0 0
    %6139 = vmatpush2.bf16.msra.mxu0 0
    %6140 = vmatprep.subr.bf16.mxu0 0
    %6141 = vmatpush2.bf16.msra.mxu0 0
    %6142 = vmatprep.subr.bf16.mxu0 0
    %6143 = vmatpush2.bf16.msra.mxu0 0
    %6144 = vmatprep.subr.bf16.mxu0 0
    %6145 = vmatpush2.bf16.msra.mxu0 0
    %6146 = vmatprep.subr.bf16.mxu0 0
    %6147 = vmatpush2.bf16.msra.mxu0 0
    %6148 = vmatprep.subr.bf16.mxu0 0
    %6149 = vmatpush2.bf16.msra.mxu0 0
    %6150 = vmatprep.mubr.bf16.mxu0 0
    %6151 = vmatmul.mubr.bf16.gmra.mxu0 %v5733
    %v6152 = vpop.f32.mrf.mxu0
    %v6153 = vadd.f32 0.0, %v6152
    %v6154 = vpop.f32.mrf.mxu0
    %v6155 = vadd.f32 0.0, %v6154
    %v6156 = vpop.f32.mrf.mxu0
    %v6157 = vpop.f32.mrf.mxu0
    %6158 = vdwg.mxu0
    %6159 = vmatprep.subr.bf16.mxu0 %v6049
    %6160 = vmatpush1.bf16.msra.mxu0 %v6048
    %6161 = vmatprep.subr.bf16.mxu0 %v6041
    %6162 = vmatpush1.bf16.msra.mxu0 %v6040
    %6163 = vmatprep.subr.bf16.mxu0 %v6033
    %6164 = vmatpush1.bf16.msra.mxu0 %v6032
    %6165 = vmatprep.subr.bf16.mxu0 %v6025
    %6166 = vmatpush1.bf16.msra.mxu0 %v6024
    %6167 = vmatprep.subr.bf16.mxu0 %v6017
    %6168 = vmatpush1.bf16.msra.mxu0 %v6016
    %6169 = vmatprep.subr.bf16.mxu0 %v6009
    %6170 = vmatpush1.bf16.msra.mxu0 %v6008
    %6171 = vmatprep.subr.bf16.mxu0 %v6001
    %6172 = vmatpush1.bf16.msra.mxu0 %v6000
    %6173 = vmatprep.subr.bf16.mxu0 %v5993
    %6174 = vmatpush1.bf16.msra.mxu0 %v5992
    %6175 = vmatprep.subr.bf16.mxu0 0
    %6176 = vmatpush2.bf16.msra.mxu0 0
    %6177 = vmatprep.subr.bf16.mxu0 0
    %6178 = vmatpush2.bf16.msra.mxu0 0
    %6179 = vmatprep.subr.bf16.mxu0 0
    %6180 = vmatpush2.bf16.msra.mxu0 0
    %6181 = vmatprep.subr.bf16.mxu0 0
    %6182 = vmatpush2.bf16.msra.mxu0 0
    %6183 = vmatprep.subr.bf16.mxu0 0
    %6184 = vmatpush2.bf16.msra.mxu0 0
    %6185 = vmatprep.subr.bf16.mxu0 0
    %6186 = vmatpush2.bf16.msra.mxu0 0
    %6187 = vmatprep.subr.bf16.mxu0 0
    %6188 = vmatpush2.bf16.msra.mxu0 0
    %6189 = vmatprep.subr.bf16.mxu0 0
    %6190 = vmatpush2.bf16.msra.mxu0 0
    %6191 = vmatprep.mubr.bf16.mxu0 0
    %6192 = vmatmul.mubr.bf16.gmra.mxu0 %v5733
    %v6193 = vpop.f32.mrf.mxu0
    %v6194 = vadd.f32 0.0, %v6193
    %v6195 = vpop.f32.mrf.mxu0
    %v6196 = vadd.f32 0.0, %v6195
    %v6197 = vpop.f32.mrf.mxu0
    %v6198 = vpop.f32.mrf.mxu0
    %6199 = vdwg.mxu0
    %6200 = vmatprep.subr.bf16.mxu0 %v6051
    %6201 = vmatpush1.bf16.msra.mxu0 %v6050
    %6202 = vmatprep.subr.bf16.mxu0 %v6043
    %6203 = vmatpush1.bf16.msra.mxu0 %v6042
    %6204 = vmatprep.subr.bf16.mxu0 %v6035
    %6205 = vmatpush1.bf16.msra.mxu0 %v6034
    %6206 = vmatprep.subr.bf16.mxu0 %v6027
    %6207 = vmatpush1.bf16.msra.mxu0 %v6026
    %6208 = vmatprep.subr.bf16.mxu0 %v6019
    %6209 = vmatpush1.bf16.msra.mxu0 %v6018
    %6210 = vmatprep.subr.bf16.mxu0 %v6011
    %6211 = vmatpush1.bf16.msra.mxu0 %v6010
    %6212 = vmatprep.subr.bf16.mxu0 %v6003
    %6213 = vmatpush1.bf16.msra.mxu0 %v6002
    %6214 = vmatprep.subr.bf16.mxu0 %v5995
    %6215 = vmatpush1.bf16.msra.mxu0 %v5994
    %6216 = vmatprep.subr.bf16.mxu0 0
    %6217 = vmatpush2.bf16.msra.mxu0 0
    %6218 = vmatprep.subr.bf16.mxu0 0
    %6219 = vmatpush2.bf16.msra.mxu0 0
    %6220 = vmatprep.subr.bf16.mxu0 0
    %6221 = vmatpush2.bf16.msra.mxu0 0
    %6222 = vmatprep.subr.bf16.mxu0 0
    %6223 = vmatpush2.bf16.msra.mxu0 0
    %6224 = vmatprep.subr.bf16.mxu0 0
    %6225 = vmatpush2.bf16.msra.mxu0 0
    %6226 = vmatprep.subr.bf16.mxu0 0
    %6227 = vmatpush2.bf16.msra.mxu0 0
    %6228 = vmatprep.subr.bf16.mxu0 0
    %6229 = vmatpush2.bf16.msra.mxu0 0
    %6230 = vmatprep.subr.bf16.mxu0 0
    %6231 = vmatpush2.bf16.msra.mxu0 0
    %6232 = vmatprep.mubr.bf16.mxu0 0
    %6233 = vmatmul.mubr.bf16.gmra.mxu0 %v5733
    %v6234 = vpop.f32.mrf.mxu0
    %v6235 = vadd.f32 0.0, %v6234
    %v6236 = vpop.f32.mrf.mxu0
    %v6237 = vadd.f32 0.0, %v6236
    %v6238 = vpop.f32.mrf.mxu0
    %v6239 = vpop.f32.mrf.mxu0
    %6240 = vdwg.mxu0
    %6241 = vmatprep.subr.bf16.mxu0 %v6053
    %6242 = vmatpush1.bf16.msra.mxu0 %v6052
    %6243 = vmatprep.subr.bf16.mxu0 %v6045
    %6244 = vmatpush1.bf16.msra.mxu0 %v6044
    %6245 = vmatprep.subr.bf16.mxu0 %v6037
    %6246 = vmatpush1.bf16.msra.mxu0 %v6036
    %6247 = vmatprep.subr.bf16.mxu0 %v6029
    %6248 = vmatpush1.bf16.msra.mxu0 %v6028
    %6249 = vmatprep.subr.bf16.mxu0 %v6021
    %6250 = vmatpush1.bf16.msra.mxu0 %v6020
    %6251 = vmatprep.subr.bf16.mxu0 %v6013
    %6252 = vmatpush1.bf16.msra.mxu0 %v6012
    %6253 = vmatprep.subr.bf16.mxu0 %v6005
    %6254 = vmatpush1.bf16.msra.mxu0 %v6004
    %6255 = vmatprep.subr.bf16.mxu0 %v5997
    %6256 = vmatpush1.bf16.msra.mxu0 %v5996
    %6257 = vmatprep.subr.bf16.mxu0 0
    %6258 = vmatpush2.bf16.msra.mxu0 0
    %6259 = vmatprep.subr.bf16.mxu0 0
    %6260 = vmatpush2.bf16.msra.mxu0 0
    %6261 = vmatprep.subr.bf16.mxu0 0
    %6262 = vmatpush2.bf16.msra.mxu0 0
    %6263 = vmatprep.subr.bf16.mxu0 0
    %6264 = vmatpush2.bf16.msra.mxu0 0
    %6265 = vmatprep.subr.bf16.mxu0 0
    %6266 = vmatpush2.bf16.msra.mxu0 0
    %6267 = vmatprep.subr.bf16.mxu0 0
    %6268 = vmatpush2.bf16.msra.mxu0 0
    %6269 = vmatprep.subr.bf16.mxu0 0
    %6270 = vmatpush2.bf16.msra.mxu0 0
    %6271 = vmatprep.subr.bf16.mxu0 0
    %6272 = vmatpush2.bf16.msra.mxu0 0
    %6273 = vmatprep.mubr.bf16.mxu0 0
    %6274 = vmatmul.mubr.bf16.gmra.mxu0 %v5733
    %v6275 = vpop.f32.mrf.mxu0
    %v6276 = vadd.f32 0.0, %v6275
    %v6277 = vpop.f32.mrf.mxu0
    %v6278 = vadd.f32 0.0, %v6277
    %v6279 = vpop.f32.mrf.mxu0
    %v6280 = vpop.f32.mrf.mxu0
    %6281 = vdwg.mxu0
    %v6282 = vmax.f32 %v6153, %v6194
    %v6283 = vmax.f32 %v6155, %v6196
    %v6284 = vmax.f32 %v6235, %v6276
    %v6285 = vmax.f32 %v6237, %v6278
    %v6286 = vmax.f32 %v6282, %v6284
    %v6287 = vmax.f32 %v6283, %v6285
    %v6288 = vadd.f32 %v6286, %v601
    %v6289 = vadd.f32 %v6287, %v605
    %v6290 = vmax.f32 %v6288, 0.0
    %v6291 = vmax.f32 %v6289, 0.0
    %v6292 = vpack.c.bf16 %v6290, %v6290
    %v6293 = vpack.c.bf16 %v6291, %v6291
    %v6296 = vunpack.c.l.b16 %v6292
    %v6297 = vunpack.c.l.b16 %v6293
    %v6298 = vpack.c.b16 %v6297, %v6296
    %6300 = vst [vmem:[#allocation2 + $0x50] sm:$0xff] %v6298
    %v6301 = vld [vmem:[%s0 + $0x2c] sm:$0xf]
    %v6302 = vld [vmem:[%s1] sm:$0xff]
    %v6303 = vld [vmem:[%s1 + $0x8] sm:$0xff]
    %v6304 = vld [vmem:[%s1 + $0x10] sm:$0xff]
    %v6305 = vld [vmem:[%s1 + $0x18] sm:$0xff]
    %v6306 = vld [vmem:[%s1 + $0x20] sm:$0xff]
    %v6307 = vld [vmem:[%s1 + $0x28] sm:$0xff]
    %v6308 = vld [vmem:[%s1 + $0x30] sm:$0xff]
    %v6309 = vld [vmem:[%s1 + $0x38] sm:$0xff]
    %v6310 = vld [vmem:[%s1 + $0x40] sm:$0xff]
    %v6311 = vld [vmem:[%s1 + $0x48] sm:$0xff]
    %v6312 = vld [vmem:[%s1 + $0x50] sm:$0xff]
    %v6313 = vld [vmem:[%s1 + $0x58] sm:$0xff]
    %v6314 = vld [vmem:[%s1 + $0x60] sm:$0xff]
    %v6315 = vld [vmem:[%s1 + $0x68] sm:$0xff]
    %v6316 = vld [vmem:[%s1 + $0x70] sm:$0xff]
    %v6317 = vld [vmem:[%s1 + $0x78] sm:$0xff]
    %v6318 = vld [vmem:[%s1 + $0x80] sm:$0xff]
    %v6319 = vld [vmem:[%s1 + $0x88] sm:$0xff]
    %v6320 = vld [vmem:[%s1 + $0x90] sm:$0xff]
    %v6321 = vld [vmem:[%s1 + $0x98] sm:$0xff]
    %v6322 = vld [vmem:[%s1 + $0xa0] sm:$0xff]
    %v6323 = vld [vmem:[%s1 + $0xa8] sm:$0xff]
    %v6324 = vld [vmem:[%s1 + $0xb0] sm:$0xff]
    %v6325 = vld [vmem:[%s1 + $0xb8] sm:$0xff]
    %v6326 = vld [vmem:[%s1 + $0xc0] sm:$0xff]
    %v6327 = vld [vmem:[%s1 + $0xc8] sm:$0xff]
    %v6328 = vld [vmem:[%s1 + $0xd0] sm:$0xff]
    %v6329 = vld [vmem:[%s1 + $0xd8] sm:$0xff]
    %v6330 = vld [vmem:[%s1 + $0xe0] sm:$0xff]
    %v6331 = vld [vmem:[%s1 + $0xe8] sm:$0xff]
    %v6332 = vld [vmem:[%s1 + $0xf0] sm:$0xff]
    %v6333 = vld [vmem:[%s1 + $0xf8] sm:$0xff]
    %v6334 = vld [vmem:[%s1 + $0x100] sm:$0xff]
    %v6335 = vld [vmem:[%s1 + $0x108] sm:$0xff]
    %v6336 = vld [vmem:[%s1 + $0x110] sm:$0xff]
    %v6337 = vld [vmem:[%s1 + $0x118] sm:$0xff]
    %v6338 = vld [vmem:[%s1 + $0x120] sm:$0xff]
    %v6339 = vld [vmem:[%s1 + $0x128] sm:$0xff]
    %v6340 = vld [vmem:[%s1 + $0x130] sm:$0xff]
    %v6341 = vld [vmem:[%s1 + $0x138] sm:$0xff]
    %v6342 = vld [vmem:[%s1 + $0x140] sm:$0xff]
    %v6343 = vld [vmem:[%s1 + $0x148] sm:$0xff]
    %v6344 = vld [vmem:[%s1 + $0x150] sm:$0xff]
    %v6345 = vld [vmem:[%s1 + $0x158] sm:$0xff]
    %v6346 = vld [vmem:[%s1 + $0x160] sm:$0xff]
    %v6347 = vld [vmem:[%s1 + $0x168] sm:$0xff]
    %v6348 = vld [vmem:[%s1 + $0x170] sm:$0xff]
    %v6349 = vld [vmem:[%s1 + $0x178] sm:$0xff]
    %v6350 = vld [vmem:[%s1 + $0x180] sm:$0xff]
    %v6351 = vld [vmem:[%s1 + $0x188] sm:$0xff]
    %v6352 = vld [vmem:[%s1 + $0x190] sm:$0xff]
    %v6353 = vld [vmem:[%s1 + $0x198] sm:$0xff]
    %v6354 = vld [vmem:[%s1 + $0x1a0] sm:$0xff]
    %v6355 = vld [vmem:[%s1 + $0x1a8] sm:$0xff]
    %v6356 = vld [vmem:[%s1 + $0x1b0] sm:$0xff]
    %v6357 = vld [vmem:[%s1 + $0x1b8] sm:$0xff]
    %v6358 = vld [vmem:[%s1 + $0x1c0] sm:$0xff]
    %v6359 = vld [vmem:[%s1 + $0x1c8] sm:$0xff]
    %v6360 = vld [vmem:[%s1 + $0x1d0] sm:$0xff]
    %v6361 = vld [vmem:[%s1 + $0x1d8] sm:$0xff]
    %v6362 = vld [vmem:[%s1 + $0x1e0] sm:$0xff]
    %v6363 = vld [vmem:[%s1 + $0x1e8] sm:$0xff]
    %v6364 = vld [vmem:[%s1 + $0x1f0] sm:$0xff]
    %v6365 = vld [vmem:[%s1 + $0x1f8] sm:$0xff]
    %v6430 = vunpack.c.l.b16 %v6302
    %v6431 = vunpack.c.h.b16 %v6302
    %v6432 = vunpack.c.l.b16 %v6303
    %v6433 = vunpack.c.h.b16 %v6303
    %v6434 = vunpack.c.l.b16 %v6304
    %v6435 = vunpack.c.h.b16 %v6304
    %v6436 = vunpack.c.l.b16 %v6305
    %v6437 = vunpack.c.h.b16 %v6305
    %v6438 = vunpack.c.l.b16 %v6306
    %v6439 = vunpack.c.h.b16 %v6306
    %v6440 = vunpack.c.l.b16 %v6307
    %v6441 = vunpack.c.h.b16 %v6307
    %v6442 = vunpack.c.l.b16 %v6308
    %v6443 = vunpack.c.h.b16 %v6308
    %v6444 = vunpack.c.l.b16 %v6309
    %v6445 = vunpack.c.h.b16 %v6309
    %v6446 = vunpack.c.l.b16 %v6310
    %v6447 = vunpack.c.h.b16 %v6310
    %v6448 = vunpack.c.l.b16 %v6311
    %v6449 = vunpack.c.h.b16 %v6311
    %v6450 = vunpack.c.l.b16 %v6312
    %v6451 = vunpack.c.h.b16 %v6312
    %v6452 = vunpack.c.l.b16 %v6313
    %v6453 = vunpack.c.h.b16 %v6313
    %v6454 = vunpack.c.l.b16 %v6314
    %v6455 = vunpack.c.h.b16 %v6314
    %v6456 = vunpack.c.l.b16 %v6315
    %v6457 = vunpack.c.h.b16 %v6315
    %v6458 = vunpack.c.l.b16 %v6316
    %v6459 = vunpack.c.h.b16 %v6316
    %v6460 = vunpack.c.l.b16 %v6317
    %v6461 = vunpack.c.h.b16 %v6317
    %v6462 = vunpack.c.l.b16 %v6318
    %v6463 = vunpack.c.h.b16 %v6318
    %v6464 = vunpack.c.l.b16 %v6319
    %v6465 = vunpack.c.h.b16 %v6319
    %v6466 = vunpack.c.l.b16 %v6320
    %v6467 = vunpack.c.h.b16 %v6320
    %v6468 = vunpack.c.l.b16 %v6321
    %v6469 = vunpack.c.h.b16 %v6321
    %v6470 = vunpack.c.l.b16 %v6322
    %v6471 = vunpack.c.h.b16 %v6322
    %v6472 = vunpack.c.l.b16 %v6323
    %v6473 = vunpack.c.h.b16 %v6323
    %v6474 = vunpack.c.l.b16 %v6324
    %v6475 = vunpack.c.h.b16 %v6324
    %v6476 = vunpack.c.l.b16 %v6325
    %v6477 = vunpack.c.h.b16 %v6325
    %v6478 = vunpack.c.l.b16 %v6326
    %v6479 = vunpack.c.h.b16 %v6326
    %v6480 = vunpack.c.l.b16 %v6327
    %v6481 = vunpack.c.h.b16 %v6327
    %v6482 = vunpack.c.l.b16 %v6328
    %v6483 = vunpack.c.h.b16 %v6328
    %v6484 = vunpack.c.l.b16 %v6329
    %v6485 = vunpack.c.h.b16 %v6329
    %v6486 = vunpack.c.l.b16 %v6330
    %v6487 = vunpack.c.h.b16 %v6330
    %v6488 = vunpack.c.l.b16 %v6331
    %v6489 = vunpack.c.h.b16 %v6331
    %v6490 = vunpack.c.l.b16 %v6332
    %v6491 = vunpack.c.h.b16 %v6332
    %v6492 = vunpack.c.l.b16 %v6333
    %v6493 = vunpack.c.h.b16 %v6333
    %v6494 = vunpack.c.l.b16 %v6334
    %v6495 = vunpack.c.h.b16 %v6334
    %v6496 = vunpack.c.l.b16 %v6335
    %v6497 = vunpack.c.h.b16 %v6335
    %v6498 = vunpack.c.l.b16 %v6336
    %v6499 = vunpack.c.h.b16 %v6336
    %v6500 = vunpack.c.l.b16 %v6337
    %v6501 = vunpack.c.h.b16 %v6337
    %v6502 = vunpack.c.l.b16 %v6338
    %v6503 = vunpack.c.h.b16 %v6338
    %v6504 = vunpack.c.l.b16 %v6339
    %v6505 = vunpack.c.h.b16 %v6339
    %v6506 = vunpack.c.l.b16 %v6340
    %v6507 = vunpack.c.h.b16 %v6340
    %v6508 = vunpack.c.l.b16 %v6341
    %v6509 = vunpack.c.h.b16 %v6341
    %v6510 = vunpack.c.l.b16 %v6342
    %v6511 = vunpack.c.h.b16 %v6342
    %v6512 = vunpack.c.l.b16 %v6343
    %v6513 = vunpack.c.h.b16 %v6343
    %v6514 = vunpack.c.l.b16 %v6344
    %v6515 = vunpack.c.h.b16 %v6344
    %v6516 = vunpack.c.l.b16 %v6345
    %v6517 = vunpack.c.h.b16 %v6345
    %v6518 = vunpack.c.l.b16 %v6346
    %v6519 = vunpack.c.h.b16 %v6346
    %v6520 = vunpack.c.l.b16 %v6347
    %v6521 = vunpack.c.h.b16 %v6347
    %v6522 = vunpack.c.l.b16 %v6348
    %v6523 = vunpack.c.h.b16 %v6348
    %v6524 = vunpack.c.l.b16 %v6349
    %v6525 = vunpack.c.h.b16 %v6349
    %v6526 = vunpack.c.l.b16 %v6350
    %v6527 = vunpack.c.h.b16 %v6350
    %v6528 = vunpack.c.l.b16 %v6351
    %v6529 = vunpack.c.h.b16 %v6351
    %v6530 = vunpack.c.l.b16 %v6352
    %v6531 = vunpack.c.h.b16 %v6352
    %v6532 = vunpack.c.l.b16 %v6353
    %v6533 = vunpack.c.h.b16 %v6353
    %v6534 = vunpack.c.l.b16 %v6354
    %v6535 = vunpack.c.h.b16 %v6354
    %v6536 = vunpack.c.l.b16 %v6355
    %v6537 = vunpack.c.h.b16 %v6355
    %v6538 = vunpack.c.l.b16 %v6356
    %v6539 = vunpack.c.h.b16 %v6356
    %v6540 = vunpack.c.l.b16 %v6357
    %v6541 = vunpack.c.h.b16 %v6357
    %v6542 = vunpack.c.l.b16 %v6358
    %v6543 = vunpack.c.h.b16 %v6358
    %v6544 = vunpack.c.l.b16 %v6359
    %v6545 = vunpack.c.h.b16 %v6359
    %v6546 = vunpack.c.l.b16 %v6360
    %v6547 = vunpack.c.h.b16 %v6360
    %v6548 = vunpack.c.l.b16 %v6361
    %v6549 = vunpack.c.h.b16 %v6361
    %v6550 = vunpack.c.l.b16 %v6362
    %v6551 = vunpack.c.h.b16 %v6362
    %v6552 = vunpack.c.l.b16 %v6363
    %v6553 = vunpack.c.h.b16 %v6363
    %v6554 = vunpack.c.l.b16 %v6364
    %v6555 = vunpack.c.h.b16 %v6364
    %v6556 = vunpack.c.l.b16 %v6365
    %v6557 = vunpack.c.h.b16 %v6365
    %v6558 = vpack.c.b16 %v6438, %v6430
    %v6559 = vpack.c.b16 %v6439, %v6431
    %v6560 = vpack.c.b16 %v6440, %v6432
    %v6561 = vpack.c.b16 %v6441, %v6433
    %v6562 = vpack.c.b16 %v6442, %v6434
    %v6563 = vpack.c.b16 %v6443, %v6435
    %v6564 = vpack.c.b16 %v6444, %v6436
    %v6565 = vpack.c.b16 %v6445, %v6437
    %v6566 = vpack.c.b16 %v6454, %v6446
    %v6567 = vpack.c.b16 %v6455, %v6447
    %v6568 = vpack.c.b16 %v6456, %v6448
    %v6569 = vpack.c.b16 %v6457, %v6449
    %v6570 = vpack.c.b16 %v6458, %v6450
    %v6571 = vpack.c.b16 %v6459, %v6451
    %v6572 = vpack.c.b16 %v6460, %v6452
    %v6573 = vpack.c.b16 %v6461, %v6453
    %v6574 = vpack.c.b16 %v6470, %v6462
    %v6575 = vpack.c.b16 %v6471, %v6463
    %v6576 = vpack.c.b16 %v6472, %v6464
    %v6577 = vpack.c.b16 %v6473, %v6465
    %v6578 = vpack.c.b16 %v6474, %v6466
    %v6579 = vpack.c.b16 %v6475, %v6467
    %v6580 = vpack.c.b16 %v6476, %v6468
    %v6581 = vpack.c.b16 %v6477, %v6469
    %v6582 = vpack.c.b16 %v6486, %v6478
    %v6583 = vpack.c.b16 %v6487, %v6479
    %v6584 = vpack.c.b16 %v6488, %v6480
    %v6585 = vpack.c.b16 %v6489, %v6481
    %v6586 = vpack.c.b16 %v6490, %v6482
    %v6587 = vpack.c.b16 %v6491, %v6483
    %v6588 = vpack.c.b16 %v6492, %v6484
    %v6589 = vpack.c.b16 %v6493, %v6485
    %v6590 = vpack.c.b16 %v6502, %v6494
    %v6591 = vpack.c.b16 %v6503, %v6495
    %v6592 = vpack.c.b16 %v6504, %v6496
    %v6593 = vpack.c.b16 %v6505, %v6497
    %v6594 = vpack.c.b16 %v6506, %v6498
    %v6595 = vpack.c.b16 %v6507, %v6499
    %v6596 = vpack.c.b16 %v6508, %v6500
    %v6597 = vpack.c.b16 %v6509, %v6501
    %v6598 = vpack.c.b16 %v6518, %v6510
    %v6599 = vpack.c.b16 %v6519, %v6511
    %v6600 = vpack.c.b16 %v6520, %v6512
    %v6601 = vpack.c.b16 %v6521, %v6513
    %v6602 = vpack.c.b16 %v6522, %v6514
    %v6603 = vpack.c.b16 %v6523, %v6515
    %v6604 = vpack.c.b16 %v6524, %v6516
    %v6605 = vpack.c.b16 %v6525, %v6517
    %v6606 = vpack.c.b16 %v6534, %v6526
    %v6607 = vpack.c.b16 %v6535, %v6527
    %v6608 = vpack.c.b16 %v6536, %v6528
    %v6609 = vpack.c.b16 %v6537, %v6529
    %v6610 = vpack.c.b16 %v6538, %v6530
    %v6611 = vpack.c.b16 %v6539, %v6531
    %v6612 = vpack.c.b16 %v6540, %v6532
    %v6613 = vpack.c.b16 %v6541, %v6533
    %v6614 = vpack.c.b16 %v6550, %v6542
    %v6615 = vpack.c.b16 %v6551, %v6543
    %v6616 = vpack.c.b16 %v6552, %v6544
    %v6617 = vpack.c.b16 %v6553, %v6545
    %v6618 = vpack.c.b16 %v6554, %v6546
    %v6619 = vpack.c.b16 %v6555, %v6547
    %v6620 = vpack.c.b16 %v6556, %v6548
    %v6621 = vpack.c.b16 %v6557, %v6549
    %6686 = vmatprep.subr.bf16.mxu0 %v6615
    %6687 = vmatpush1.bf16.msra.mxu0 %v6614
    %6688 = vmatprep.subr.bf16.mxu0 %v6607
    %6689 = vmatpush1.bf16.msra.mxu0 %v6606
    %6690 = vmatprep.subr.bf16.mxu0 %v6599
    %6691 = vmatpush1.bf16.msra.mxu0 %v6598
    %6692 = vmatprep.subr.bf16.mxu0 %v6591
    %6693 = vmatpush1.bf16.msra.mxu0 %v6590
    %6694 = vmatprep.subr.bf16.mxu0 %v6583
    %6695 = vmatpush1.bf16.msra.mxu0 %v6582
    %6696 = vmatprep.subr.bf16.mxu0 %v6575
    %6697 = vmatpush1.bf16.msra.mxu0 %v6574
    %6698 = vmatprep.subr.bf16.mxu0 %v6567
    %6699 = vmatpush1.bf16.msra.mxu0 %v6566
    %6700 = vmatprep.subr.bf16.mxu0 %v6559
    %6701 = vmatpush1.bf16.msra.mxu0 %v6558
    %6702 = vmatprep.subr.bf16.mxu0 0
    %6703 = vmatpush2.bf16.msra.mxu0 0
    %6704 = vmatprep.subr.bf16.mxu0 0
    %6705 = vmatpush2.bf16.msra.mxu0 0
    %6706 = vmatprep.subr.bf16.mxu0 0
    %6707 = vmatpush2.bf16.msra.mxu0 0
    %6708 = vmatprep.subr.bf16.mxu0 0
    %6709 = vmatpush2.bf16.msra.mxu0 0
    %6710 = vmatprep.subr.bf16.mxu0 0
    %6711 = vmatpush2.bf16.msra.mxu0 0
    %6712 = vmatprep.subr.bf16.mxu0 0
    %6713 = vmatpush2.bf16.msra.mxu0 0
    %6714 = vmatprep.subr.bf16.mxu0 0
    %6715 = vmatpush2.bf16.msra.mxu0 0
    %6716 = vmatprep.subr.bf16.mxu0 0
    %6717 = vmatpush2.bf16.msra.mxu0 0
    %6718 = vmatprep.mubr.bf16.mxu0 0
    %6719 = vmatmul.mubr.bf16.gmra.mxu0 %v6301
    %v6720 = vpop.f32.mrf.mxu0
    %v6721 = vadd.f32 0.0, %v6720
    %v6722 = vpop.f32.mrf.mxu0
    %v6723 = vadd.f32 0.0, %v6722
    %v6724 = vpop.f32.mrf.mxu0
    %v6725 = vpop.f32.mrf.mxu0
    %6726 = vdwg.mxu0
    %6727 = vmatprep.subr.bf16.mxu0 %v6617
    %6728 = vmatpush1.bf16.msra.mxu0 %v6616
    %6729 = vmatprep.subr.bf16.mxu0 %v6609
    %6730 = vmatpush1.bf16.msra.mxu0 %v6608
    %6731 = vmatprep.subr.bf16.mxu0 %v6601
    %6732 = vmatpush1.bf16.msra.mxu0 %v6600
    %6733 = vmatprep.subr.bf16.mxu0 %v6593
    %6734 = vmatpush1.bf16.msra.mxu0 %v6592
    %6735 = vmatprep.subr.bf16.mxu0 %v6585
    %6736 = vmatpush1.bf16.msra.mxu0 %v6584
    %6737 = vmatprep.subr.bf16.mxu0 %v6577
    %6738 = vmatpush1.bf16.msra.mxu0 %v6576
    %6739 = vmatprep.subr.bf16.mxu0 %v6569
    %6740 = vmatpush1.bf16.msra.mxu0 %v6568
    %6741 = vmatprep.subr.bf16.mxu0 %v6561
    %6742 = vmatpush1.bf16.msra.mxu0 %v6560
    %6743 = vmatprep.subr.bf16.mxu0 0
    %6744 = vmatpush2.bf16.msra.mxu0 0
    %6745 = vmatprep.subr.bf16.mxu0 0
    %6746 = vmatpush2.bf16.msra.mxu0 0
    %6747 = vmatprep.subr.bf16.mxu0 0
    %6748 = vmatpush2.bf16.msra.mxu0 0
    %6749 = vmatprep.subr.bf16.mxu0 0
    %6750 = vmatpush2.bf16.msra.mxu0 0
    %6751 = vmatprep.subr.bf16.mxu0 0
    %6752 = vmatpush2.bf16.msra.mxu0 0
    %6753 = vmatprep.subr.bf16.mxu0 0
    %6754 = vmatpush2.bf16.msra.mxu0 0
    %6755 = vmatprep.subr.bf16.mxu0 0
    %6756 = vmatpush2.bf16.msra.mxu0 0
    %6757 = vmatprep.subr.bf16.mxu0 0
    %6758 = vmatpush2.bf16.msra.mxu0 0
    %6759 = vmatprep.mubr.bf16.mxu0 0
    %6760 = vmatmul.mubr.bf16.gmra.mxu0 %v6301
    %v6761 = vpop.f32.mrf.mxu0
    %v6762 = vadd.f32 0.0, %v6761
    %v6763 = vpop.f32.mrf.mxu0
    %v6764 = vadd.f32 0.0, %v6763
    %v6765 = vpop.f32.mrf.mxu0
    %v6766 = vpop.f32.mrf.mxu0
    %6767 = vdwg.mxu0
    %6768 = vmatprep.subr.bf16.mxu0 %v6619
    %6769 = vmatpush1.bf16.msra.mxu0 %v6618
    %6770 = vmatprep.subr.bf16.mxu0 %v6611
    %6771 = vmatpush1.bf16.msra.mxu0 %v6610
    %6772 = vmatprep.subr.bf16.mxu0 %v6603
    %6773 = vmatpush1.bf16.msra.mxu0 %v6602
    %6774 = vmatprep.subr.bf16.mxu0 %v6595
    %6775 = vmatpush1.bf16.msra.mxu0 %v6594
    %6776 = vmatprep.subr.bf16.mxu0 %v6587
    %6777 = vmatpush1.bf16.msra.mxu0 %v6586
    %6778 = vmatprep.subr.bf16.mxu0 %v6579
    %6779 = vmatpush1.bf16.msra.mxu0 %v6578
    %6780 = vmatprep.subr.bf16.mxu0 %v6571
    %6781 = vmatpush1.bf16.msra.mxu0 %v6570
    %6782 = vmatprep.subr.bf16.mxu0 %v6563
    %6783 = vmatpush1.bf16.msra.mxu0 %v6562
    %6784 = vmatprep.subr.bf16.mxu0 0
    %6785 = vmatpush2.bf16.msra.mxu0 0
    %6786 = vmatprep.subr.bf16.mxu0 0
    %6787 = vmatpush2.bf16.msra.mxu0 0
    %6788 = vmatprep.subr.bf16.mxu0 0
    %6789 = vmatpush2.bf16.msra.mxu0 0
    %6790 = vmatprep.subr.bf16.mxu0 0
    %6791 = vmatpush2.bf16.msra.mxu0 0
    %6792 = vmatprep.subr.bf16.mxu0 0
    %6793 = vmatpush2.bf16.msra.mxu0 0
    %6794 = vmatprep.subr.bf16.mxu0 0
    %6795 = vmatpush2.bf16.msra.mxu0 0
    %6796 = vmatprep.subr.bf16.mxu0 0
    %6797 = vmatpush2.bf16.msra.mxu0 0
    %6798 = vmatprep.subr.bf16.mxu0 0
    %6799 = vmatpush2.bf16.msra.mxu0 0
    %6800 = vmatprep.mubr.bf16.mxu0 0
    %6801 = vmatmul.mubr.bf16.gmra.mxu0 %v6301
    %v6802 = vpop.f32.mrf.mxu0
    %v6803 = vadd.f32 0.0, %v6802
    %v6804 = vpop.f32.mrf.mxu0
    %v6805 = vadd.f32 0.0, %v6804
    %v6806 = vpop.f32.mrf.mxu0
    %v6807 = vpop.f32.mrf.mxu0
    %6808 = vdwg.mxu0
    %6809 = vmatprep.subr.bf16.mxu0 %v6621
    %6810 = vmatpush1.bf16.msra.mxu0 %v6620
    %6811 = vmatprep.subr.bf16.mxu0 %v6613
    %6812 = vmatpush1.bf16.msra.mxu0 %v6612
    %6813 = vmatprep.subr.bf16.mxu0 %v6605
    %6814 = vmatpush1.bf16.msra.mxu0 %v6604
    %6815 = vmatprep.subr.bf16.mxu0 %v6597
    %6816 = vmatpush1.bf16.msra.mxu0 %v6596
    %6817 = vmatprep.subr.bf16.mxu0 %v6589
    %6818 = vmatpush1.bf16.msra.mxu0 %v6588
    %6819 = vmatprep.subr.bf16.mxu0 %v6581
    %6820 = vmatpush1.bf16.msra.mxu0 %v6580
    %6821 = vmatprep.subr.bf16.mxu0 %v6573
    %6822 = vmatpush1.bf16.msra.mxu0 %v6572
    %6823 = vmatprep.subr.bf16.mxu0 %v6565
    %6824 = vmatpush1.bf16.msra.mxu0 %v6564
    %6825 = vmatprep.subr.bf16.mxu0 0
    %6826 = vmatpush2.bf16.msra.mxu0 0
    %6827 = vmatprep.subr.bf16.mxu0 0
    %6828 = vmatpush2.bf16.msra.mxu0 0
    %6829 = vmatprep.subr.bf16.mxu0 0
    %6830 = vmatpush2.bf16.msra.mxu0 0
    %6831 = vmatprep.subr.bf16.mxu0 0
    %6832 = vmatpush2.bf16.msra.mxu0 0
    %6833 = vmatprep.subr.bf16.mxu0 0
    %6834 = vmatpush2.bf16.msra.mxu0 0
    %6835 = vmatprep.subr.bf16.mxu0 0
    %6836 = vmatpush2.bf16.msra.mxu0 0
    %6837 = vmatprep.subr.bf16.mxu0 0
    %6838 = vmatpush2.bf16.msra.mxu0 0
    %6839 = vmatprep.subr.bf16.mxu0 0
    %6840 = vmatpush2.bf16.msra.mxu0 0
    %6841 = vmatprep.mubr.bf16.mxu0 0
    %6842 = vmatmul.mubr.bf16.gmra.mxu0 %v6301
    %v6843 = vpop.f32.mrf.mxu0
    %v6844 = vadd.f32 0.0, %v6843
    %v6845 = vpop.f32.mrf.mxu0
    %v6846 = vadd.f32 0.0, %v6845
    %v6847 = vpop.f32.mrf.mxu0
    %v6848 = vpop.f32.mrf.mxu0
    %6849 = vdwg.mxu0
    %v6850 = vmax.f32 %v6721, %v6762
    %v6851 = vmax.f32 %v6723, %v6764
    %v6852 = vmax.f32 %v6803, %v6844
    %v6853 = vmax.f32 %v6805, %v6846
    %v6854 = vmax.f32 %v6850, %v6852
    %v6855 = vmax.f32 %v6851, %v6853
    %v6856 = vadd.f32 %v6854, %v601
    %v6857 = vadd.f32 %v6855, %v605
    %v6858 = vmax.f32 %v6856, 0.0
    %v6859 = vmax.f32 %v6857, 0.0
    %v6860 = vpack.c.bf16 %v6858, %v6858
    %v6861 = vpack.c.bf16 %v6859, %v6859
    %v6864 = vunpack.c.l.b16 %v6860
    %v6865 = vunpack.c.l.b16 %v6861
    %v6866 = vpack.c.b16 %v6865, %v6864
    %6868 = vst [vmem:[#allocation2 + $0x58] sm:$0xff] %v6866
    %v6869 = vld [vmem:[%s0 + $0x30] sm:$0xf]
    %v6870 = vld [vmem:[%s1] sm:$0xff]
    %v6871 = vld [vmem:[%s1 + $0x8] sm:$0xff]
    %v6872 = vld [vmem:[%s1 + $0x10] sm:$0xff]
    %v6873 = vld [vmem:[%s1 + $0x18] sm:$0xff]
    %v6874 = vld [vmem:[%s1 + $0x20] sm:$0xff]
    %v6875 = vld [vmem:[%s1 + $0x28] sm:$0xff]
    %v6876 = vld [vmem:[%s1 + $0x30] sm:$0xff]
    %v6877 = vld [vmem:[%s1 + $0x38] sm:$0xff]
    %v6878 = vld [vmem:[%s1 + $0x40] sm:$0xff]
    %v6879 = vld [vmem:[%s1 + $0x48] sm:$0xff]
    %v6880 = vld [vmem:[%s1 + $0x50] sm:$0xff]
    %v6881 = vld [vmem:[%s1 + $0x58] sm:$0xff]
    %v6882 = vld [vmem:[%s1 + $0x60] sm:$0xff]
    %v6883 = vld [vmem:[%s1 + $0x68] sm:$0xff]
    %v6884 = vld [vmem:[%s1 + $0x70] sm:$0xff]
    %v6885 = vld [vmem:[%s1 + $0x78] sm:$0xff]
    %v6886 = vld [vmem:[%s1 + $0x80] sm:$0xff]
    %v6887 = vld [vmem:[%s1 + $0x88] sm:$0xff]
    %v6888 = vld [vmem:[%s1 + $0x90] sm:$0xff]
    %v6889 = vld [vmem:[%s1 + $0x98] sm:$0xff]
    %v6890 = vld [vmem:[%s1 + $0xa0] sm:$0xff]
    %v6891 = vld [vmem:[%s1 + $0xa8] sm:$0xff]
    %v6892 = vld [vmem:[%s1 + $0xb0] sm:$0xff]
    %v6893 = vld [vmem:[%s1 + $0xb8] sm:$0xff]
    %v6894 = vld [vmem:[%s1 + $0xc0] sm:$0xff]
    %v6895 = vld [vmem:[%s1 + $0xc8] sm:$0xff]
    %v6896 = vld [vmem:[%s1 + $0xd0] sm:$0xff]
    %v6897 = vld [vmem:[%s1 + $0xd8] sm:$0xff]
    %v6898 = vld [vmem:[%s1 + $0xe0] sm:$0xff]
    %v6899 = vld [vmem:[%s1 + $0xe8] sm:$0xff]
    %v6900 = vld [vmem:[%s1 + $0xf0] sm:$0xff]
    %v6901 = vld [vmem:[%s1 + $0xf8] sm:$0xff]
    %v6902 = vld [vmem:[%s1 + $0x100] sm:$0xff]
    %v6903 = vld [vmem:[%s1 + $0x108] sm:$0xff]
    %v6904 = vld [vmem:[%s1 + $0x110] sm:$0xff]
    %v6905 = vld [vmem:[%s1 + $0x118] sm:$0xff]
    %v6906 = vld [vmem:[%s1 + $0x120] sm:$0xff]
    %v6907 = vld [vmem:[%s1 + $0x128] sm:$0xff]
    %v6908 = vld [vmem:[%s1 + $0x130] sm:$0xff]
    %v6909 = vld [vmem:[%s1 + $0x138] sm:$0xff]
    %v6910 = vld [vmem:[%s1 + $0x140] sm:$0xff]
    %v6911 = vld [vmem:[%s1 + $0x148] sm:$0xff]
    %v6912 = vld [vmem:[%s1 + $0x150] sm:$0xff]
    %v6913 = vld [vmem:[%s1 + $0x158] sm:$0xff]
    %v6914 = vld [vmem:[%s1 + $0x160] sm:$0xff]
    %v6915 = vld [vmem:[%s1 + $0x168] sm:$0xff]
    %v6916 = vld [vmem:[%s1 + $0x170] sm:$0xff]
    %v6917 = vld [vmem:[%s1 + $0x178] sm:$0xff]
    %v6918 = vld [vmem:[%s1 + $0x180] sm:$0xff]
    %v6919 = vld [vmem:[%s1 + $0x188] sm:$0xff]
    %v6920 = vld [vmem:[%s1 + $0x190] sm:$0xff]
    %v6921 = vld [vmem:[%s1 + $0x198] sm:$0xff]
    %v6922 = vld [vmem:[%s1 + $0x1a0] sm:$0xff]
    %v6923 = vld [vmem:[%s1 + $0x1a8] sm:$0xff]
    %v6924 = vld [vmem:[%s1 + $0x1b0] sm:$0xff]
    %v6925 = vld [vmem:[%s1 + $0x1b8] sm:$0xff]
    %v6926 = vld [vmem:[%s1 + $0x1c0] sm:$0xff]
    %v6927 = vld [vmem:[%s1 + $0x1c8] sm:$0xff]
    %v6928 = vld [vmem:[%s1 + $0x1d0] sm:$0xff]
    %v6929 = vld [vmem:[%s1 + $0x1d8] sm:$0xff]
    %v6930 = vld [vmem:[%s1 + $0x1e0] sm:$0xff]
    %v6931 = vld [vmem:[%s1 + $0x1e8] sm:$0xff]
    %v6932 = vld [vmem:[%s1 + $0x1f0] sm:$0xff]
    %v6933 = vld [vmem:[%s1 + $0x1f8] sm:$0xff]
    %v6998 = vunpack.c.l.b16 %v6870
    %v6999 = vunpack.c.h.b16 %v6870
    %v7000 = vunpack.c.l.b16 %v6871
    %v7001 = vunpack.c.h.b16 %v6871
    %v7002 = vunpack.c.l.b16 %v6872
    %v7003 = vunpack.c.h.b16 %v6872
    %v7004 = vunpack.c.l.b16 %v6873
    %v7005 = vunpack.c.h.b16 %v6873
    %v7006 = vunpack.c.l.b16 %v6874
    %v7007 = vunpack.c.h.b16 %v6874
    %v7008 = vunpack.c.l.b16 %v6875
    %v7009 = vunpack.c.h.b16 %v6875
    %v7010 = vunpack.c.l.b16 %v6876
    %v7011 = vunpack.c.h.b16 %v6876
    %v7012 = vunpack.c.l.b16 %v6877
    %v7013 = vunpack.c.h.b16 %v6877
    %v7014 = vunpack.c.l.b16 %v6878
    %v7015 = vunpack.c.h.b16 %v6878
    %v7016 = vunpack.c.l.b16 %v6879
    %v7017 = vunpack.c.h.b16 %v6879
    %v7018 = vunpack.c.l.b16 %v6880
    %v7019 = vunpack.c.h.b16 %v6880
    %v7020 = vunpack.c.l.b16 %v6881
    %v7021 = vunpack.c.h.b16 %v6881
    %v7022 = vunpack.c.l.b16 %v6882
    %v7023 = vunpack.c.h.b16 %v6882
    %v7024 = vunpack.c.l.b16 %v6883
    %v7025 = vunpack.c.h.b16 %v6883
    %v7026 = vunpack.c.l.b16 %v6884
    %v7027 = vunpack.c.h.b16 %v6884
    %v7028 = vunpack.c.l.b16 %v6885
    %v7029 = vunpack.c.h.b16 %v6885
    %v7030 = vunpack.c.l.b16 %v6886
    %v7031 = vunpack.c.h.b16 %v6886
    %v7032 = vunpack.c.l.b16 %v6887
    %v7033 = vunpack.c.h.b16 %v6887
    %v7034 = vunpack.c.l.b16 %v6888
    %v7035 = vunpack.c.h.b16 %v6888
    %v7036 = vunpack.c.l.b16 %v6889
    %v7037 = vunpack.c.h.b16 %v6889
    %v7038 = vunpack.c.l.b16 %v6890
    %v7039 = vunpack.c.h.b16 %v6890
    %v7040 = vunpack.c.l.b16 %v6891
    %v7041 = vunpack.c.h.b16 %v6891
    %v7042 = vunpack.c.l.b16 %v6892
    %v7043 = vunpack.c.h.b16 %v6892
    %v7044 = vunpack.c.l.b16 %v6893
    %v7045 = vunpack.c.h.b16 %v6893
    %v7046 = vunpack.c.l.b16 %v6894
    %v7047 = vunpack.c.h.b16 %v6894
    %v7048 = vunpack.c.l.b16 %v6895
    %v7049 = vunpack.c.h.b16 %v6895
    %v7050 = vunpack.c.l.b16 %v6896
    %v7051 = vunpack.c.h.b16 %v6896
    %v7052 = vunpack.c.l.b16 %v6897
    %v7053 = vunpack.c.h.b16 %v6897
    %v7054 = vunpack.c.l.b16 %v6898
    %v7055 = vunpack.c.h.b16 %v6898
    %v7056 = vunpack.c.l.b16 %v6899
    %v7057 = vunpack.c.h.b16 %v6899
    %v7058 = vunpack.c.l.b16 %v6900
    %v7059 = vunpack.c.h.b16 %v6900
    %v7060 = vunpack.c.l.b16 %v6901
    %v7061 = vunpack.c.h.b16 %v6901
    %v7062 = vunpack.c.l.b16 %v6902
    %v7063 = vunpack.c.h.b16 %v6902
    %v7064 = vunpack.c.l.b16 %v6903
    %v7065 = vunpack.c.h.b16 %v6903
    %v7066 = vunpack.c.l.b16 %v6904
    %v7067 = vunpack.c.h.b16 %v6904
    %v7068 = vunpack.c.l.b16 %v6905
    %v7069 = vunpack.c.h.b16 %v6905
    %v7070 = vunpack.c.l.b16 %v6906
    %v7071 = vunpack.c.h.b16 %v6906
    %v7072 = vunpack.c.l.b16 %v6907
    %v7073 = vunpack.c.h.b16 %v6907
    %v7074 = vunpack.c.l.b16 %v6908
    %v7075 = vunpack.c.h.b16 %v6908
    %v7076 = vunpack.c.l.b16 %v6909
    %v7077 = vunpack.c.h.b16 %v6909
    %v7078 = vunpack.c.l.b16 %v6910
    %v7079 = vunpack.c.h.b16 %v6910
    %v7080 = vunpack.c.l.b16 %v6911
    %v7081 = vunpack.c.h.b16 %v6911
    %v7082 = vunpack.c.l.b16 %v6912
    %v7083 = vunpack.c.h.b16 %v6912
    %v7084 = vunpack.c.l.b16 %v6913
    %v7085 = vunpack.c.h.b16 %v6913
    %v7086 = vunpack.c.l.b16 %v6914
    %v7087 = vunpack.c.h.b16 %v6914
    %v7088 = vunpack.c.l.b16 %v6915
    %v7089 = vunpack.c.h.b16 %v6915
    %v7090 = vunpack.c.l.b16 %v6916
    %v7091 = vunpack.c.h.b16 %v6916
    %v7092 = vunpack.c.l.b16 %v6917
    %v7093 = vunpack.c.h.b16 %v6917
    %v7094 = vunpack.c.l.b16 %v6918
    %v7095 = vunpack.c.h.b16 %v6918
    %v7096 = vunpack.c.l.b16 %v6919
    %v7097 = vunpack.c.h.b16 %v6919
    %v7098 = vunpack.c.l.b16 %v6920
    %v7099 = vunpack.c.h.b16 %v6920
    %v7100 = vunpack.c.l.b16 %v6921
    %v7101 = vunpack.c.h.b16 %v6921
    %v7102 = vunpack.c.l.b16 %v6922
    %v7103 = vunpack.c.h.b16 %v6922
    %v7104 = vunpack.c.l.b16 %v6923
    %v7105 = vunpack.c.h.b16 %v6923
    %v7106 = vunpack.c.l.b16 %v6924
    %v7107 = vunpack.c.h.b16 %v6924
    %v7108 = vunpack.c.l.b16 %v6925
    %v7109 = vunpack.c.h.b16 %v6925
    %v7110 = vunpack.c.l.b16 %v6926
    %v7111 = vunpack.c.h.b16 %v6926
    %v7112 = vunpack.c.l.b16 %v6927
    %v7113 = vunpack.c.h.b16 %v6927
    %v7114 = vunpack.c.l.b16 %v6928
    %v7115 = vunpack.c.h.b16 %v6928
    %v7116 = vunpack.c.l.b16 %v6929
    %v7117 = vunpack.c.h.b16 %v6929
    %v7118 = vunpack.c.l.b16 %v6930
    %v7119 = vunpack.c.h.b16 %v6930
    %v7120 = vunpack.c.l.b16 %v6931
    %v7121 = vunpack.c.h.b16 %v6931
    %v7122 = vunpack.c.l.b16 %v6932
    %v7123 = vunpack.c.h.b16 %v6932
    %v7124 = vunpack.c.l.b16 %v6933
    %v7125 = vunpack.c.h.b16 %v6933
    %v7126 = vpack.c.b16 %v7006, %v6998
    %v7127 = vpack.c.b16 %v7007, %v6999
    %v7128 = vpack.c.b16 %v7008, %v7000
    %v7129 = vpack.c.b16 %v7009, %v7001
    %v7130 = vpack.c.b16 %v7010, %v7002
    %v7131 = vpack.c.b16 %v7011, %v7003
    %v7132 = vpack.c.b16 %v7012, %v7004
    %v7133 = vpack.c.b16 %v7013, %v7005
    %v7134 = vpack.c.b16 %v7022, %v7014
    %v7135 = vpack.c.b16 %v7023, %v7015
    %v7136 = vpack.c.b16 %v7024, %v7016
    %v7137 = vpack.c.b16 %v7025, %v7017
    %v7138 = vpack.c.b16 %v7026, %v7018
    %v7139 = vpack.c.b16 %v7027, %v7019
    %v7140 = vpack.c.b16 %v7028, %v7020
    %v7141 = vpack.c.b16 %v7029, %v7021
    %v7142 = vpack.c.b16 %v7038, %v7030
    %v7143 = vpack.c.b16 %v7039, %v7031
    %v7144 = vpack.c.b16 %v7040, %v7032
    %v7145 = vpack.c.b16 %v7041, %v7033
    %v7146 = vpack.c.b16 %v7042, %v7034
    %v7147 = vpack.c.b16 %v7043, %v7035
    %v7148 = vpack.c.b16 %v7044, %v7036
    %v7149 = vpack.c.b16 %v7045, %v7037
    %v7150 = vpack.c.b16 %v7054, %v7046
    %v7151 = vpack.c.b16 %v7055, %v7047
    %v7152 = vpack.c.b16 %v7056, %v7048
    %v7153 = vpack.c.b16 %v7057, %v7049
    %v7154 = vpack.c.b16 %v7058, %v7050
    %v7155 = vpack.c.b16 %v7059, %v7051
    %v7156 = vpack.c.b16 %v7060, %v7052
    %v7157 = vpack.c.b16 %v7061, %v7053
    %v7158 = vpack.c.b16 %v7070, %v7062
    %v7159 = vpack.c.b16 %v7071, %v7063
    %v7160 = vpack.c.b16 %v7072, %v7064
    %v7161 = vpack.c.b16 %v7073, %v7065
    %v7162 = vpack.c.b16 %v7074, %v7066
    %v7163 = vpack.c.b16 %v7075, %v7067
    %v7164 = vpack.c.b16 %v7076, %v7068
    %v7165 = vpack.c.b16 %v7077, %v7069
    %v7166 = vpack.c.b16 %v7086, %v7078
    %v7167 = vpack.c.b16 %v7087, %v7079
    %v7168 = vpack.c.b16 %v7088, %v7080
    %v7169 = vpack.c.b16 %v7089, %v7081
    %v7170 = vpack.c.b16 %v7090, %v7082
    %v7171 = vpack.c.b16 %v7091, %v7083
    %v7172 = vpack.c.b16 %v7092, %v7084
    %v7173 = vpack.c.b16 %v7093, %v7085
    %v7174 = vpack.c.b16 %v7102, %v7094
    %v7175 = vpack.c.b16 %v7103, %v7095
    %v7176 = vpack.c.b16 %v7104, %v7096
    %v7177 = vpack.c.b16 %v7105, %v7097
    %v7178 = vpack.c.b16 %v7106, %v7098
    %v7179 = vpack.c.b16 %v7107, %v7099
    %v7180 = vpack.c.b16 %v7108, %v7100
    %v7181 = vpack.c.b16 %v7109, %v7101
    %v7182 = vpack.c.b16 %v7118, %v7110
    %v7183 = vpack.c.b16 %v7119, %v7111
    %v7184 = vpack.c.b16 %v7120, %v7112
    %v7185 = vpack.c.b16 %v7121, %v7113
    %v7186 = vpack.c.b16 %v7122, %v7114
    %v7187 = vpack.c.b16 %v7123, %v7115
    %v7188 = vpack.c.b16 %v7124, %v7116
    %v7189 = vpack.c.b16 %v7125, %v7117
    %7254 = vmatprep.subr.bf16.mxu0 %v7183
    %7255 = vmatpush1.bf16.msra.mxu0 %v7182
    %7256 = vmatprep.subr.bf16.mxu0 %v7175
    %7257 = vmatpush1.bf16.msra.mxu0 %v7174
    %7258 = vmatprep.subr.bf16.mxu0 %v7167
    %7259 = vmatpush1.bf16.msra.mxu0 %v7166
    %7260 = vmatprep.subr.bf16.mxu0 %v7159
    %7261 = vmatpush1.bf16.msra.mxu0 %v7158
    %7262 = vmatprep.subr.bf16.mxu0 %v7151
    %7263 = vmatpush1.bf16.msra.mxu0 %v7150
    %7264 = vmatprep.subr.bf16.mxu0 %v7143
    %7265 = vmatpush1.bf16.msra.mxu0 %v7142
    %7266 = vmatprep.subr.bf16.mxu0 %v7135
    %7267 = vmatpush1.bf16.msra.mxu0 %v7134
    %7268 = vmatprep.subr.bf16.mxu0 %v7127
    %7269 = vmatpush1.bf16.msra.mxu0 %v7126
    %7270 = vmatprep.subr.bf16.mxu0 0
    %7271 = vmatpush2.bf16.msra.mxu0 0
    %7272 = vmatprep.subr.bf16.mxu0 0
    %7273 = vmatpush2.bf16.msra.mxu0 0
    %7274 = vmatprep.subr.bf16.mxu0 0
    %7275 = vmatpush2.bf16.msra.mxu0 0
    %7276 = vmatprep.subr.bf16.mxu0 0
    %7277 = vmatpush2.bf16.msra.mxu0 0
    %7278 = vmatprep.subr.bf16.mxu0 0
    %7279 = vmatpush2.bf16.msra.mxu0 0
    %7280 = vmatprep.subr.bf16.mxu0 0
    %7281 = vmatpush2.bf16.msra.mxu0 0
    %7282 = vmatprep.subr.bf16.mxu0 0
    %7283 = vmatpush2.bf16.msra.mxu0 0
    %7284 = vmatprep.subr.bf16.mxu0 0
    %7285 = vmatpush2.bf16.msra.mxu0 0
    %7286 = vmatprep.mubr.bf16.mxu0 0
    %7287 = vmatmul.mubr.bf16.gmra.mxu0 %v6869
    %v7288 = vpop.f32.mrf.mxu0
    %v7289 = vadd.f32 0.0, %v7288
    %v7290 = vpop.f32.mrf.mxu0
    %v7291 = vadd.f32 0.0, %v7290
    %v7292 = vpop.f32.mrf.mxu0
    %v7293 = vpop.f32.mrf.mxu0
    %7294 = vdwg.mxu0
    %7295 = vmatprep.subr.bf16.mxu0 %v7185
    %7296 = vmatpush1.bf16.msra.mxu0 %v7184
    %7297 = vmatprep.subr.bf16.mxu0 %v7177
    %7298 = vmatpush1.bf16.msra.mxu0 %v7176
    %7299 = vmatprep.subr.bf16.mxu0 %v7169
    %7300 = vmatpush1.bf16.msra.mxu0 %v7168
    %7301 = vmatprep.subr.bf16.mxu0 %v7161
    %7302 = vmatpush1.bf16.msra.mxu0 %v7160
    %7303 = vmatprep.subr.bf16.mxu0 %v7153
    %7304 = vmatpush1.bf16.msra.mxu0 %v7152
    %7305 = vmatprep.subr.bf16.mxu0 %v7145
    %7306 = vmatpush1.bf16.msra.mxu0 %v7144
    %7307 = vmatprep.subr.bf16.mxu0 %v7137
    %7308 = vmatpush1.bf16.msra.mxu0 %v7136
    %7309 = vmatprep.subr.bf16.mxu0 %v7129
    %7310 = vmatpush1.bf16.msra.mxu0 %v7128
    %7311 = vmatprep.subr.bf16.mxu0 0
    %7312 = vmatpush2.bf16.msra.mxu0 0
    %7313 = vmatprep.subr.bf16.mxu0 0
    %7314 = vmatpush2.bf16.msra.mxu0 0
    %7315 = vmatprep.subr.bf16.mxu0 0
    %7316 = vmatpush2.bf16.msra.mxu0 0
    %7317 = vmatprep.subr.bf16.mxu0 0
    %7318 = vmatpush2.bf16.msra.mxu0 0
    %7319 = vmatprep.subr.bf16.mxu0 0
    %7320 = vmatpush2.bf16.msra.mxu0 0
    %7321 = vmatprep.subr.bf16.mxu0 0
    %7322 = vmatpush2.bf16.msra.mxu0 0
    %7323 = vmatprep.subr.bf16.mxu0 0
    %7324 = vmatpush2.bf16.msra.mxu0 0
    %7325 = vmatprep.subr.bf16.mxu0 0
    %7326 = vmatpush2.bf16.msra.mxu0 0
    %7327 = vmatprep.mubr.bf16.mxu0 0
    %7328 = vmatmul.mubr.bf16.gmra.mxu0 %v6869
    %v7329 = vpop.f32.mrf.mxu0
    %v7330 = vadd.f32 0.0, %v7329
    %v7331 = vpop.f32.mrf.mxu0
    %v7332 = vadd.f32 0.0, %v7331
    %v7333 = vpop.f32.mrf.mxu0
    %v7334 = vpop.f32.mrf.mxu0
    %7335 = vdwg.mxu0
    %7336 = vmatprep.subr.bf16.mxu0 %v7187
    %7337 = vmatpush1.bf16.msra.mxu0 %v7186
    %7338 = vmatprep.subr.bf16.mxu0 %v7179
    %7339 = vmatpush1.bf16.msra.mxu0 %v7178
    %7340 = vmatprep.subr.bf16.mxu0 %v7171
    %7341 = vmatpush1.bf16.msra.mxu0 %v7170
    %7342 = vmatprep.subr.bf16.mxu0 %v7163
    %7343 = vmatpush1.bf16.msra.mxu0 %v7162
    %7344 = vmatprep.subr.bf16.mxu0 %v7155
    %7345 = vmatpush1.bf16.msra.mxu0 %v7154
    %7346 = vmatprep.subr.bf16.mxu0 %v7147
    %7347 = vmatpush1.bf16.msra.mxu0 %v7146
    %7348 = vmatprep.subr.bf16.mxu0 %v7139
    %7349 = vmatpush1.bf16.msra.mxu0 %v7138
    %7350 = vmatprep.subr.bf16.mxu0 %v7131
    %7351 = vmatpush1.bf16.msra.mxu0 %v7130
    %7352 = vmatprep.subr.bf16.mxu0 0
    %7353 = vmatpush2.bf16.msra.mxu0 0
    %7354 = vmatprep.subr.bf16.mxu0 0
    %7355 = vmatpush2.bf16.msra.mxu0 0
    %7356 = vmatprep.subr.bf16.mxu0 0
    %7357 = vmatpush2.bf16.msra.mxu0 0
    %7358 = vmatprep.subr.bf16.mxu0 0
    %7359 = vmatpush2.bf16.msra.mxu0 0
    %7360 = vmatprep.subr.bf16.mxu0 0
    %7361 = vmatpush2.bf16.msra.mxu0 0
    %7362 = vmatprep.subr.bf16.mxu0 0
    %7363 = vmatpush2.bf16.msra.mxu0 0
    %7364 = vmatprep.subr.bf16.mxu0 0
    %7365 = vmatpush2.bf16.msra.mxu0 0
    %7366 = vmatprep.subr.bf16.mxu0 0
    %7367 = vmatpush2.bf16.msra.mxu0 0
    %7368 = vmatprep.mubr.bf16.mxu0 0
    %7369 = vmatmul.mubr.bf16.gmra.mxu0 %v6869
    %v7370 = vpop.f32.mrf.mxu0
    %v7371 = vadd.f32 0.0, %v7370
    %v7372 = vpop.f32.mrf.mxu0
    %v7373 = vadd.f32 0.0, %v7372
    %v7374 = vpop.f32.mrf.mxu0
    %v7375 = vpop.f32.mrf.mxu0
    %7376 = vdwg.mxu0
    %7377 = vmatprep.subr.bf16.mxu0 %v7189
    %7378 = vmatpush1.bf16.msra.mxu0 %v7188
    %7379 = vmatprep.subr.bf16.mxu0 %v7181
    %7380 = vmatpush1.bf16.msra.mxu0 %v7180
    %7381 = vmatprep.subr.bf16.mxu0 %v7173
    %7382 = vmatpush1.bf16.msra.mxu0 %v7172
    %7383 = vmatprep.subr.bf16.mxu0 %v7165
    %7384 = vmatpush1.bf16.msra.mxu0 %v7164
    %7385 = vmatprep.subr.bf16.mxu0 %v7157
    %7386 = vmatpush1.bf16.msra.mxu0 %v7156
    %7387 = vmatprep.subr.bf16.mxu0 %v7149
    %7388 = vmatpush1.bf16.msra.mxu0 %v7148
    %7389 = vmatprep.subr.bf16.mxu0 %v7141
    %7390 = vmatpush1.bf16.msra.mxu0 %v7140
    %7391 = vmatprep.subr.bf16.mxu0 %v7133
    %7392 = vmatpush1.bf16.msra.mxu0 %v7132
    %7393 = vmatprep.subr.bf16.mxu0 0
    %7394 = vmatpush2.bf16.msra.mxu0 0
    %7395 = vmatprep.subr.bf16.mxu0 0
    %7396 = vmatpush2.bf16.msra.mxu0 0
    %7397 = vmatprep.subr.bf16.mxu0 0
    %7398 = vmatpush2.bf16.msra.mxu0 0
    %7399 = vmatprep.subr.bf16.mxu0 0
    %7400 = vmatpush2.bf16.msra.mxu0 0
    %7401 = vmatprep.subr.bf16.mxu0 0
    %7402 = vmatpush2.bf16.msra.mxu0 0
    %7403 = vmatprep.subr.bf16.mxu0 0
    %7404 = vmatpush2.bf16.msra.mxu0 0
    %7405 = vmatprep.subr.bf16.mxu0 0
    %7406 = vmatpush2.bf16.msra.mxu0 0
    %7407 = vmatprep.subr.bf16.mxu0 0
    %7408 = vmatpush2.bf16.msra.mxu0 0
    %7409 = vmatprep.mubr.bf16.mxu0 0
    %7410 = vmatmul.mubr.bf16.gmra.mxu0 %v6869
    %v7411 = vpop.f32.mrf.mxu0
    %v7412 = vadd.f32 0.0, %v7411
    %v7413 = vpop.f32.mrf.mxu0
    %v7414 = vadd.f32 0.0, %v7413
    %v7415 = vpop.f32.mrf.mxu0
    %v7416 = vpop.f32.mrf.mxu0
    %7417 = vdwg.mxu0
    %v7418 = vmax.f32 %v7289, %v7330
    %v7419 = vmax.f32 %v7291, %v7332
    %v7420 = vmax.f32 %v7371, %v7412
    %v7421 = vmax.f32 %v7373, %v7414
    %v7422 = vmax.f32 %v7418, %v7420
    %v7423 = vmax.f32 %v7419, %v7421
    %v7424 = vadd.f32 %v7422, %v601
    %v7425 = vadd.f32 %v7423, %v605
    %v7426 = vmax.f32 %v7424, 0.0
    %v7427 = vmax.f32 %v7425, 0.0
    %v7428 = vpack.c.bf16 %v7426, %v7426
    %v7429 = vpack.c.bf16 %v7427, %v7427
    %v7432 = vunpack.c.l.b16 %v7428
    %v7433 = vunpack.c.l.b16 %v7429
    %v7434 = vpack.c.b16 %v7433, %v7432
    %7436 = vst [vmem:[#allocation2 + $0x60] sm:$0xff] %v7434
    %v7437 = vld [vmem:[#allocation2] sm:$0xff]
    %v7438 = vld [vmem:[#allocation2 + $0x8] sm:$0xff]
    %v7439 = vld [vmem:[#allocation2 + $0x10] sm:$0xff]
    %v7440 = vld [vmem:[#allocation2 + $0x18] sm:$0xff]
    %v7441 = vld [vmem:[#allocation2 + $0x20] sm:$0xff]
    %v7442 = vld [vmem:[#allocation2 + $0x28] sm:$0xff]
    %v7443 = vld [vmem:[#allocation2 + $0x30] sm:$0xff]
    %v7444 = vld [vmem:[#allocation2 + $0x38] sm:$0xff]
    %v7445 = vld [vmem:[#allocation2 + $0x40] sm:$0xff]
    %v7446 = vld [vmem:[#allocation2 + $0x48] sm:$0xff]
    %v7447 = vld [vmem:[#allocation2 + $0x50] sm:$0xff]
    %v7448 = vld [vmem:[#allocation2 + $0x58] sm:$0xff]
    %v7449 = vld [vmem:[#allocation2 + $0x60] sm:$0xff]
    %v7450 = vld [vmem:[#allocation3] sm:$0xf]
    %v7451 = vld [vmem:[#allocation3 + $0x4] sm:$0xf]
    %v7452 = vld [vmem:[#allocation3 + $0x8] sm:$0xf]
    %v7453 = vld [vmem:[#allocation3 + $0xc] sm:$0xf]
    %v7454 = vld [vmem:[#allocation3 + $0x10] sm:$0xf]
    %v7455 = vld [vmem:[#allocation3 + $0x14] sm:$0xf]
    %v7456 = vld [vmem:[#allocation3 + $0x18] sm:$0xf]
    %v7457 = vld [vmem:[#allocation3 + $0x1c] sm:$0xf]
    %v7458 = vld [vmem:[#allocation3 + $0x20] sm:$0xf]
    %v7459 = vld [vmem:[#allocation3 + $0x24] sm:$0xf]
    %v7460 = vld [vmem:[#allocation3 + $0x28] sm:$0xf]
    %v7461 = vld [vmem:[#allocation3 + $0x2c] sm:$0xf]
    %v7462 = vld [vmem:[#allocation3 + $0x30] sm:$0xf]
    %v7463 = vld [vmem:[#allocation3 + $0x34] sm:$0xf]
    %v7464 = vld [vmem:[#allocation3 + $0x38] sm:$0xf]
    %v7465 = vld [vmem:[#allocation3 + $0x3c] sm:$0xf]
    %v7466 = vld [vmem:[#allocation3 + $0x40] sm:$0xf]
    %v7467 = vld [vmem:[#allocation3 + $0x44] sm:$0xf]
    %v7468 = vld [vmem:[#allocation3 + $0x48] sm:$0xf]
    %v7469 = vld [vmem:[#allocation3 + $0x4c] sm:$0xf]
    %v7470 = vld [vmem:[#allocation3 + $0x50] sm:$0xf]
    %v7471 = vld [vmem:[#allocation3 + $0x54] sm:$0xf]
    %v7472 = vld [vmem:[#allocation3 + $0x58] sm:$0xf]
    %v7473 = vld [vmem:[#allocation3 + $0x5c] sm:$0xf]
    %v7474 = vld [vmem:[#allocation3 + $0x60] sm:$0xf]
    %v7475 = vld [vmem:[#allocation3 + $0x64] sm:$0xf]
    %v7476 = vld [vmem:[#allocation3 + $0x68] sm:$0xf]
    %v7477 = vld [vmem:[#allocation3 + $0x6c] sm:$0xf]
    %v7478 = vld [vmem:[#allocation3 + $0x70] sm:$0xf]
    %v7479 = vld [vmem:[#allocation3 + $0x74] sm:$0xf]
    %v7480 = vld [vmem:[#allocation3 + $0x78] sm:$0xf]
    %v7481 = vld [vmem:[#allocation3 + $0x7c] sm:$0xf]
    %v7482 = vld [vmem:[#allocation3 + $0x80] sm:$0xf]
    %v7483 = vld [vmem:[#allocation3 + $0x84] sm:$0xf]
    %v7484 = vld [vmem:[#allocation3 + $0x88] sm:$0xf]
    %v7485 = vld [vmem:[#allocation3 + $0x8c] sm:$0xf]
    %v7486 = vld [vmem:[#allocation3 + $0x90] sm:$0xf]
    %v7487 = vld [vmem:[#allocation3 + $0x94] sm:$0xf]
    %v7488 = vld [vmem:[#allocation3 + $0x98] sm:$0xf]
    %v7489 = vld [vmem:[#allocation3 + $0x9c] sm:$0xf]
    %v7490 = vld [vmem:[#allocation3 + $0xa0] sm:$0xf]
    %v7491 = vld [vmem:[#allocation3 + $0xa4] sm:$0xf]
    %v7492 = vld [vmem:[#allocation3 + $0xa8] sm:$0xf]
    %v7493 = vld [vmem:[#allocation3 + $0xac] sm:$0xf]
    %v7494 = vld [vmem:[#allocation3 + $0xb0] sm:$0xf]
    %v7495 = vld [vmem:[#allocation3 + $0xb4] sm:$0xf]
    %v7496 = vld [vmem:[#allocation3 + $0xb8] sm:$0xf]
    %v7497 = vld [vmem:[#allocation3 + $0xbc] sm:$0xf]
    %v7498 = vld [vmem:[#allocation3 + $0xc0] sm:$0xf]
    %v7499 = vld [vmem:[#allocation3 + $0xc4] sm:$0xf]
    %v7500 = vld [vmem:[#allocation3 + $0xc8] sm:$0xf]
    %v7501 = vld [vmem:[#allocation3 + $0xcc] sm:$0xf]
    %v7502 = vld [vmem:[#allocation3 + $0xd0] sm:$0xf]
    %v7503 = vld [vmem:[#allocation3 + $0xd4] sm:$0xf]
    %v7504 = vld [vmem:[#allocation3 + $0xd8] sm:$0xf]
    %v7505 = vld [vmem:[#allocation3 + $0xdc] sm:$0xf]
    %v7506 = vld [vmem:[#allocation3 + $0xe0] sm:$0xf]
    %v7507 = vld [vmem:[#allocation3 + $0xe4] sm:$0xf]
    %v7508 = vld [vmem:[#allocation3 + $0xe8] sm:$0xf]
    %v7509 = vld [vmem:[#allocation3 + $0xec] sm:$0xf]
    %v7510 = vld [vmem:[#allocation3 + $0xf0] sm:$0xf]
    %v7511 = vld [vmem:[#allocation3 + $0xf4] sm:$0xf]
    %v7512 = vld [vmem:[#allocation3 + $0xf8] sm:$0xf]
    %v7513 = vld [vmem:[#allocation3 + $0xfc] sm:$0xf]
    %v7514 = vld [vmem:[#allocation3 + $0x100] sm:$0xf]
    %v7515 = vld [vmem:[#allocation3 + $0x104] sm:$0xf]
    %v7516 = vld [vmem:[#allocation3 + $0x108] sm:$0xf]
    %v7517 = vld [vmem:[#allocation3 + $0x10c] sm:$0xf]
    %v7518 = vld [vmem:[#allocation3 + $0x110] sm:$0xf]
    %v7519 = vld [vmem:[#allocation3 + $0x114] sm:$0xf]
    %v7520 = vld [vmem:[#allocation3 + $0x118] sm:$0xf]
    %v7521 = vld [vmem:[#allocation3 + $0x11c] sm:$0xf]
    %v7522 = vld [vmem:[#allocation3 + $0x120] sm:$0xf]
    %v7523 = vld [vmem:[#allocation3 + $0x124] sm:$0xf]
    %v7524 = vld [vmem:[#allocation3 + $0x128] sm:$0xf]
    %v7525 = vld [vmem:[#allocation3 + $0x12c] sm:$0xf]
    %v7526 = vld [vmem:[#allocation3 + $0x130] sm:$0xf]
    %v7527 = vld [vmem:[#allocation3 + $0x134] sm:$0xf]
    %v7528 = vld [vmem:[#allocation3 + $0x138] sm:$0xf]
    %v7529 = vld [vmem:[#allocation3 + $0x13c] sm:$0xf]
    %v7530 = vld [vmem:[#allocation3 + $0x140] sm:$0xf]
    %v7531 = vld [vmem:[#allocation3 + $0x144] sm:$0xf]
    %v7532 = vld [vmem:[#allocation3 + $0x148] sm:$0xf]
    %v7533 = vld [vmem:[#allocation3 + $0x14c] sm:$0xf]
    %v7534 = vld [vmem:[#allocation3 + $0x150] sm:$0xf]
    %v7535 = vld [vmem:[#allocation3 + $0x154] sm:$0xf]
    %v7536 = vld [vmem:[#allocation3 + $0x158] sm:$0xf]
    %v7537 = vld [vmem:[#allocation3 + $0x15c] sm:$0xf]
    %v7538 = vld [vmem:[#allocation3 + $0x160] sm:$0xf]
    %v7539 = vld [vmem:[#allocation3 + $0x164] sm:$0xf]
    %v7540 = vld [vmem:[#allocation3 + $0x168] sm:$0xf]
    %v7541 = vld [vmem:[#allocation3 + $0x16c] sm:$0xf]
    %v7542 = vld [vmem:[#allocation3 + $0x170] sm:$0xf]
    %v7543 = vld [vmem:[#allocation3 + $0x174] sm:$0xf]
    %v7544 = vld [vmem:[#allocation3 + $0x178] sm:$0xf]
    %v7545 = vld [vmem:[#allocation3 + $0x17c] sm:$0xf]
    %v7546 = vld [vmem:[#allocation3 + $0x180] sm:$0xf]
    %v7547 = vld [vmem:[#allocation3 + $0x184] sm:$0xf]
    %v7548 = vld [vmem:[#allocation3 + $0x188] sm:$0xf]
    %v7549 = vld [vmem:[#allocation3 + $0x18c] sm:$0xf]
    %v7550 = vld [vmem:[#allocation3 + $0x190] sm:$0xf]
    %v7551 = vld [vmem:[#allocation3 + $0x194] sm:$0xf]
    %v7552 = vld [vmem:[#allocation3 + $0x198] sm:$0xf]
    %v7553 = vld [vmem:[#allocation3 + $0x19c] sm:$0xf]
    %v7554 = vld [vmem:[#allocation3 + $0x1a0] sm:$0xf]
    %v7555 = vld [vmem:[#allocation3 + $0x1a4] sm:$0xf]
    %v7556 = vld [vmem:[#allocation3 + $0x1a8] sm:$0xf]
    %v7557 = vld [vmem:[#allocation3 + $0x1ac] sm:$0xf]
    %v7558 = vld [vmem:[#allocation3 + $0x1b0] sm:$0xf]
    %v7559 = vld [vmem:[#allocation3 + $0x1b4] sm:$0xf]
    %v7560 = vld [vmem:[#allocation3 + $0x1b8] sm:$0xf]
    %v7561 = vld [vmem:[#allocation3 + $0x1bc] sm:$0xf]
    %v7562 = vld [vmem:[#allocation3 + $0x1c0] sm:$0xf]
    %v7563 = vld [vmem:[#allocation3 + $0x1c4] sm:$0xf]
    %v7564 = vld [vmem:[#allocation3 + $0x1c8] sm:$0xf]
    %v7565 = vld [vmem:[#allocation3 + $0x1cc] sm:$0xf]
    %v7566 = vld [vmem:[#allocation3 + $0x1d0] sm:$0xf]
    %v7567 = vld [vmem:[#allocation3 + $0x1d4] sm:$0xf]
    %v7568 = vld [vmem:[#allocation3 + $0x1d8] sm:$0xf]
    %v7569 = vld [vmem:[#allocation3 + $0x1dc] sm:$0xf]
    %v7570 = vld [vmem:[#allocation3 + $0x1e0] sm:$0xf]
    %v7571 = vld [vmem:[#allocation3 + $0x1e4] sm:$0xf]
    %v7572 = vld [vmem:[#allocation3 + $0x1e8] sm:$0xf]
    %v7573 = vld [vmem:[#allocation3 + $0x1ec] sm:$0xf]
    %v7574 = vld [vmem:[#allocation3 + $0x1f0] sm:$0xf]
    %v7575 = vld [vmem:[#allocation3 + $0x1f4] sm:$0xf]
    %v7576 = vld [vmem:[#allocation3 + $0x1f8] sm:$0xf]
    %v7577 = vld [vmem:[#allocation3 + $0x1fc] sm:$0xf]
    %v7578 = vld [vmem:[#allocation3 + $0x200] sm:$0xf]
    %v7579 = vld [vmem:[#allocation3 + $0x204] sm:$0xf]
    %v7580 = vld [vmem:[#allocation3 + $0x208] sm:$0xf]
    %v7581 = vld [vmem:[#allocation3 + $0x20c] sm:$0xf]
    %v7582 = vld [vmem:[#allocation3 + $0x210] sm:$0xf]
    %v7583 = vld [vmem:[#allocation3 + $0x214] sm:$0xf]
    %v7584 = vld [vmem:[#allocation3 + $0x218] sm:$0xf]
    %v7585 = vld [vmem:[#allocation3 + $0x21c] sm:$0xf]
    %v7586 = vld [vmem:[#allocation3 + $0x220] sm:$0xf]
    %v7587 = vld [vmem:[#allocation3 + $0x224] sm:$0xf]
    %v7588 = vld [vmem:[#allocation3 + $0x228] sm:$0xf]
    %v7589 = vld [vmem:[#allocation3 + $0x22c] sm:$0xf]
    %v7590 = vld [vmem:[#allocation3 + $0x230] sm:$0xf]
    %v7591 = vld [vmem:[#allocation3 + $0x234] sm:$0xf]
    %v7592 = vld [vmem:[#allocation3 + $0x238] sm:$0xf]
    %v7593 = vld [vmem:[#allocation3 + $0x23c] sm:$0xf]
    %v7594 = vld [vmem:[#allocation3 + $0x240] sm:$0xf]
    %v7595 = vld [vmem:[#allocation3 + $0x244] sm:$0xf]
    %v7596 = vld [vmem:[#allocation3 + $0x248] sm:$0xf]
    %v7597 = vld [vmem:[#allocation3 + $0x24c] sm:$0xf]
    %v7598 = vld [vmem:[#allocation3 + $0x250] sm:$0xf]
    %v7599 = vld [vmem:[#allocation3 + $0x254] sm:$0xf]
    %v7600 = vld [vmem:[#allocation3 + $0x258] sm:$0xf]
    %v7601 = vld [vmem:[#allocation3 + $0x25c] sm:$0xf]
    %v7602 = vld [vmem:[#allocation3 + $0x260] sm:$0xf]
    %v7603 = vld [vmem:[#allocation3 + $0x264] sm:$0xf]
    %v7604 = vld [vmem:[#allocation3 + $0x268] sm:$0xf]
    %v7605 = vld [vmem:[#allocation3 + $0x26c] sm:$0xf]
    %v7606 = vld [vmem:[#allocation3 + $0x270] sm:$0xf]
    %v7607 = vld [vmem:[#allocation3 + $0x274] sm:$0xf]
    %v7608 = vld [vmem:[#allocation3 + $0x278] sm:$0xf]
    %v7609 = vld [vmem:[#allocation3 + $0x27c] sm:$0xf]
    %v7610 = vld [vmem:[#allocation3 + $0x280] sm:$0xf]
    %v7611 = vld [vmem:[#allocation3 + $0x284] sm:$0xf]
    %v7612 = vld [vmem:[#allocation3 + $0x288] sm:$0xf]
    %v7613 = vld [vmem:[#allocation3 + $0x28c] sm:$0xf]
    %v7614 = vld [vmem:[#allocation3 + $0x290] sm:$0xf]
    %v7615 = vld [vmem:[#allocation3 + $0x294] sm:$0xf]
    %v7616 = vld [vmem:[#allocation3 + $0x298] sm:$0xf]
    %v7617 = vld [vmem:[#allocation3 + $0x29c] sm:$0xf]
    %v7618 = vld [vmem:[#allocation3 + $0x2a0] sm:$0xf]
    %v7619 = vld [vmem:[#allocation3 + $0x2a4] sm:$0xf]
    %v7620 = vld [vmem:[#allocation3 + $0x2a8] sm:$0xf]
    %v7621 = vld [vmem:[#allocation3 + $0x2ac] sm:$0xf]
    %v7622 = vld [vmem:[#allocation3 + $0x2b0] sm:$0xf]
    %v7623 = vld [vmem:[#allocation3 + $0x2b4] sm:$0xf]
    %v7624 = vld [vmem:[#allocation3 + $0x2b8] sm:$0xf]
    %v7625 = vld [vmem:[#allocation3 + $0x2bc] sm:$0xf]
    %v7626 = vld [vmem:[#allocation3 + $0x2c0] sm:$0xf]
    %v7627 = vld [vmem:[#allocation3 + $0x2c4] sm:$0xf]
    %v7628 = vld [vmem:[#allocation3 + $0x2c8] sm:$0xf]
    %v7629 = vld [vmem:[#allocation3 + $0x2cc] sm:$0xf]
    %v7630 = vld [vmem:[#allocation3 + $0x2d0] sm:$0xf]
    %v7631 = vld [vmem:[#allocation3 + $0x2d4] sm:$0xf]
    %v7632 = vld [vmem:[#allocation3 + $0x2d8] sm:$0xf]
    %v7633 = vld [vmem:[#allocation3 + $0x2dc] sm:$0xf]
    %v7634 = vld [vmem:[#allocation3 + $0x2e0] sm:$0xf]
    %v7635 = vld [vmem:[#allocation3 + $0x2e4] sm:$0xf]
    %v7636 = vld [vmem:[#allocation3 + $0x2e8] sm:$0xf]
    %v7637 = vld [vmem:[#allocation3 + $0x2ec] sm:$0xf]
    %v7638 = vld [vmem:[#allocation3 + $0x2f0] sm:$0xf]
    %v7639 = vld [vmem:[#allocation3 + $0x2f4] sm:$0xf]
    %v7640 = vld [vmem:[#allocation3 + $0x2f8] sm:$0xf]
    %v7641 = vld [vmem:[#allocation3 + $0x2fc] sm:$0xf]
    %v7642 = vld [vmem:[#allocation3 + $0x300] sm:$0xf]
    %v7643 = vld [vmem:[#allocation3 + $0x304] sm:$0xf]
    %v7644 = vld [vmem:[#allocation3 + $0x308] sm:$0xf]
    %v7645 = vld [vmem:[#allocation3 + $0x30c] sm:$0xf]
    %v7646 = vld [vmem:[#allocation3 + $0x310] sm:$0xf]
    %v7647 = vld [vmem:[#allocation3 + $0x314] sm:$0xf]
    %v7648 = vld [vmem:[#allocation3 + $0x318] sm:$0xf]
    %v7649 = vld [vmem:[#allocation3 + $0x31c] sm:$0xf]
    %v7650 = vld [vmem:[#allocation3 + $0x320] sm:$0xf]
    %v7651 = vld [vmem:[#allocation3 + $0x324] sm:$0xf]
    %v7652 = vld [vmem:[#allocation3 + $0x328] sm:$0xf]
    %v7653 = vld [vmem:[#allocation3 + $0x32c] sm:$0xf]
    %v7654 = vld [vmem:[#allocation3 + $0x330] sm:$0xf]
    %v7655 = vld [vmem:[#allocation3 + $0x334] sm:$0xf]
    %v7656 = vld [vmem:[#allocation3 + $0x338] sm:$0xf]
    %v7657 = vld [vmem:[#allocation3 + $0x33c] sm:$0xf]
    %v7658 = vld [vmem:[#allocation3 + $0x340] sm:$0xf]
    %v7659 = vld [vmem:[#allocation3 + $0x344] sm:$0xf]
    %v7660 = vld [vmem:[#allocation3 + $0x348] sm:$0xf]
    %v7661 = vld [vmem:[#allocation3 + $0x34c] sm:$0xf]
    %v7662 = vld [vmem:[#allocation3 + $0x350] sm:$0xf]
    %v7663 = vld [vmem:[#allocation3 + $0x354] sm:$0xf]
    %v7664 = vld [vmem:[#allocation3 + $0x358] sm:$0xf]
    %v7665 = vld [vmem:[#allocation3 + $0x35c] sm:$0xf]
    %v7666 = vld [vmem:[#allocation3 + $0x360] sm:$0xf]
    %v7667 = vld [vmem:[#allocation3 + $0x364] sm:$0xf]
    %v7668 = vld [vmem:[#allocation3 + $0x368] sm:$0xf]
    %v7669 = vld [vmem:[#allocation3 + $0x36c] sm:$0xf]
    %v7670 = vld [vmem:[#allocation3 + $0x370] sm:$0xf]
    %v7671 = vld [vmem:[#allocation3 + $0x374] sm:$0xf]
    %v7672 = vld [vmem:[#allocation3 + $0x378] sm:$0xf]
    %v7673 = vld [vmem:[#allocation3 + $0x37c] sm:$0xf]
    %v7674 = vld [vmem:[#allocation3 + $0x380] sm:$0xf]
    %v7675 = vld [vmem:[#allocation3 + $0x384] sm:$0xf]
    %v7676 = vld [vmem:[#allocation3 + $0x388] sm:$0xf]
    %v7677 = vld [vmem:[#allocation3 + $0x38c] sm:$0xf]
    %v7678 = vld [vmem:[#allocation3 + $0x390] sm:$0xf]
    %v7679 = vld [vmem:[#allocation3 + $0x394] sm:$0xf]
    %v7680 = vld [vmem:[#allocation3 + $0x398] sm:$0xf]
    %v7681 = vld [vmem:[#allocation3 + $0x39c] sm:$0xf]
    %v7682 = vld [vmem:[#allocation3 + $0x3a0] sm:$0xf]
    %v7683 = vld [vmem:[#allocation3 + $0x3a4] sm:$0xf]
    %v7684 = vld [vmem:[#allocation3 + $0x3a8] sm:$0xf]
    %v7685 = vld [vmem:[#allocation3 + $0x3ac] sm:$0xf]
    %v7686 = vld [vmem:[#allocation3 + $0x3b0] sm:$0xf]
    %v7687 = vld [vmem:[#allocation3 + $0x3b4] sm:$0xf]
    %v7688 = vld [vmem:[#allocation3 + $0x3b8] sm:$0xf]
    %v7689 = vld [vmem:[#allocation3 + $0x3bc] sm:$0xf]
    %v7690 = vld [vmem:[#allocation3 + $0x3c0] sm:$0xf]
    %v7691 = vld [vmem:[#allocation3 + $0x3c4] sm:$0xf]
    %v7692 = vld [vmem:[#allocation3 + $0x3c8] sm:$0xf]
    %v7693 = vld [vmem:[#allocation3 + $0x3cc] sm:$0xf]
    %v7694 = vld [vmem:[#allocation3 + $0x3d0] sm:$0xf]
    %v7695 = vld [vmem:[#allocation3 + $0x3d4] sm:$0xf]
    %v7696 = vld [vmem:[#allocation3 + $0x3d8] sm:$0xf]
    %v7697 = vld [vmem:[#allocation3 + $0x3dc] sm:$0xf]
    %v7698 = vld [vmem:[#allocation3 + $0x3e0] sm:$0xf]
    %v7699 = vld [vmem:[#allocation3 + $0x3e4] sm:$0xf]
    %v7700 = vld [vmem:[#allocation3 + $0x3e8] sm:$0xf]
    %v7701 = vld [vmem:[#allocation3 + $0x3ec] sm:$0xf]
    %v7702 = vld [vmem:[#allocation3 + $0x3f0] sm:$0xf]
    %v7703 = vld [vmem:[#allocation3 + $0x3f4] sm:$0xf]
    %v7704 = vld [vmem:[#allocation3 + $0x3f8] sm:$0xf]
    %v7705 = vld [vmem:[#allocation3 + $0x3fc] sm:$0xf]
    %v7706 = vld [vmem:[#allocation3 + $0x400] sm:$0xf]
    %v7707 = vld [vmem:[#allocation3 + $0x404] sm:$0xf]
    %v7708 = vld [vmem:[#allocation3 + $0x408] sm:$0xf]
    %v7709 = vld [vmem:[#allocation3 + $0x40c] sm:$0xf]
    %v7710 = vld [vmem:[#allocation3 + $0x410] sm:$0xf]
    %v7711 = vld [vmem:[#allocation3 + $0x414] sm:$0xf]
    %v7712 = vld [vmem:[#allocation3 + $0x418] sm:$0xf]
    %v7713 = vld [vmem:[#allocation3 + $0x41c] sm:$0xf]
    %v7714 = vld [vmem:[#allocation3 + $0x420] sm:$0xf]
    %v7715 = vld [vmem:[#allocation3 + $0x424] sm:$0xf]
    %v7716 = vld [vmem:[#allocation3 + $0x428] sm:$0xf]
    %v7717 = vld [vmem:[#allocation3 + $0x42c] sm:$0xf]
    %v7718 = vld [vmem:[#allocation3 + $0x430] sm:$0xf]
    %v7719 = vld [vmem:[#allocation3 + $0x434] sm:$0xf]
    %v7720 = vld [vmem:[#allocation3 + $0x438] sm:$0xf]
    %v7721 = vld [vmem:[#allocation3 + $0x43c] sm:$0xf]
    %v7722 = vld [vmem:[#allocation3 + $0x440] sm:$0xf]
    %v7723 = vld [vmem:[#allocation3 + $0x444] sm:$0xf]
    %v7724 = vld [vmem:[#allocation3 + $0x448] sm:$0xf]
    %v7725 = vld [vmem:[#allocation3 + $0x44c] sm:$0xf]
    %v7726 = vld [vmem:[#allocation3 + $0x450] sm:$0xf]
    %v7727 = vld [vmem:[#allocation3 + $0x454] sm:$0xf]
    %v7728 = vld [vmem:[#allocation3 + $0x458] sm:$0xf]
    %v7729 = vld [vmem:[#allocation3 + $0x45c] sm:$0xf]
    %v7730 = vld [vmem:[#allocation3 + $0x460] sm:$0xf]
    %v7731 = vld [vmem:[#allocation3 + $0x464] sm:$0xf]
    %v7732 = vld [vmem:[#allocation3 + $0x468] sm:$0xf]
    %v7733 = vld [vmem:[#allocation3 + $0x46c] sm:$0xf]
    %v7734 = vld [vmem:[#allocation3 + $0x470] sm:$0xf]
    %v7735 = vld [vmem:[#allocation3 + $0x474] sm:$0xf]
    %v7736 = vld [vmem:[#allocation3 + $0x478] sm:$0xf]
    %v7737 = vld [vmem:[#allocation3 + $0x47c] sm:$0xf]
    %v7738 = vld [vmem:[#allocation3 + $0x480] sm:$0xf]
    %v7739 = vld [vmem:[#allocation3 + $0x484] sm:$0xf]
    %v7740 = vld [vmem:[#allocation3 + $0x488] sm:$0xf]
    %v7741 = vld [vmem:[#allocation3 + $0x48c] sm:$0xf]
    %v7742 = vld [vmem:[#allocation3 + $0x490] sm:$0xf]
    %v7743 = vld [vmem:[#allocation3 + $0x494] sm:$0xf]
    %v7744 = vld [vmem:[#allocation3 + $0x498] sm:$0xf]
    %v7745 = vld [vmem:[#allocation3 + $0x49c] sm:$0xf]
    %v7746 = vld [vmem:[#allocation3 + $0x4a0] sm:$0xf]
    %v7747 = vld [vmem:[#allocation3 + $0x4a4] sm:$0xf]
    %v7748 = vld [vmem:[#allocation3 + $0x4a8] sm:$0xf]
    %v7749 = vld [vmem:[#allocation3 + $0x4ac] sm:$0xf]
    %v7750 = vld [vmem:[#allocation3 + $0x4b0] sm:$0xf]
    %v7751 = vld [vmem:[#allocation3 + $0x4b4] sm:$0xf]
    %v7752 = vld [vmem:[#allocation3 + $0x4b8] sm:$0xf]
    %v7753 = vld [vmem:[#allocation3 + $0x4bc] sm:$0xf]
    %v7754 = vld [vmem:[#allocation3 + $0x4c0] sm:$0xf]
    %v7755 = vld [vmem:[#allocation3 + $0x4c4] sm:$0xf]
    %v7756 = vld [vmem:[#allocation3 + $0x4c8] sm:$0xf]
    %v7757 = vld [vmem:[#allocation3 + $0x4cc] sm:$0xf]
    %v7758 = vld [vmem:[#allocation3 + $0x4d0] sm:$0xf]
    %v7759 = vld [vmem:[#allocation3 + $0x4d4] sm:$0xf]
    %v7760 = vld [vmem:[#allocation3 + $0x4d8] sm:$0xf]
    %v7761 = vld [vmem:[#allocation3 + $0x4dc] sm:$0xf]
    %v7762 = vld [vmem:[#allocation3 + $0x4e0] sm:$0xf]
    %v7763 = vld [vmem:[#allocation3 + $0x4e4] sm:$0xf]
    %v7764 = vld [vmem:[#allocation3 + $0x4e8] sm:$0xf]
    %v7765 = vld [vmem:[#allocation3 + $0x4ec] sm:$0xf]
    %v7766 = vld [vmem:[#allocation3 + $0x4f0] sm:$0xf]
    %v7767 = vld [vmem:[#allocation3 + $0x4f4] sm:$0xf]
    %v7768 = vld [vmem:[#allocation3 + $0x4f8] sm:$0xf]
    %v7769 = vld [vmem:[#allocation3 + $0x4fc] sm:$0xf]
    %v7770 = vld [vmem:[#allocation3 + $0x500] sm:$0xf]
    %v7771 = vld [vmem:[#allocation3 + $0x504] sm:$0xf]
    %v7772 = vld [vmem:[#allocation3 + $0x508] sm:$0xf]
    %v7773 = vld [vmem:[#allocation3 + $0x50c] sm:$0xf]
    %v7774 = vld [vmem:[#allocation3 + $0x510] sm:$0xf]
    %v7775 = vld [vmem:[#allocation3 + $0x514] sm:$0xf]
    %v7776 = vld [vmem:[#allocation3 + $0x518] sm:$0xf]
    %v7777 = vld [vmem:[#allocation3 + $0x51c] sm:$0xf]
    %v7778 = vld [vmem:[#allocation3 + $0x520] sm:$0xf]
    %v7779 = vld [vmem:[#allocation3 + $0x524] sm:$0xf]
    %v7780 = vld [vmem:[#allocation3 + $0x528] sm:$0xf]
    %v7781 = vld [vmem:[#allocation3 + $0x52c] sm:$0xf]
    %v7782 = vld [vmem:[#allocation3 + $0x530] sm:$0xf]
    %v7783 = vld [vmem:[#allocation3 + $0x534] sm:$0xf]
    %v7784 = vld [vmem:[#allocation3 + $0x538] sm:$0xf]
    %v7785 = vld [vmem:[#allocation3 + $0x53c] sm:$0xf]
    %v7786 = vld [vmem:[#allocation3 + $0x540] sm:$0xf]
    %v7787 = vld [vmem:[#allocation3 + $0x544] sm:$0xf]
    %v7788 = vld [vmem:[#allocation3 + $0x548] sm:$0xf]
    %v7789 = vld [vmem:[#allocation3 + $0x54c] sm:$0xf]
    %v7790 = vld [vmem:[#allocation3 + $0x550] sm:$0xf]
    %v7791 = vld [vmem:[#allocation3 + $0x554] sm:$0xf]
    %v7792 = vld [vmem:[#allocation3 + $0x558] sm:$0xf]
    %v7793 = vld [vmem:[#allocation3 + $0x55c] sm:$0xf]
    %v7794 = vld [vmem:[#allocation3 + $0x560] sm:$0xf]
    %v7795 = vld [vmem:[#allocation3 + $0x564] sm:$0xf]
    %v7796 = vld [vmem:[#allocation3 + $0x568] sm:$0xf]
    %v7797 = vld [vmem:[#allocation3 + $0x56c] sm:$0xf]
    %v7798 = vld [vmem:[#allocation3 + $0x570] sm:$0xf]
    %v7799 = vld [vmem:[#allocation3 + $0x574] sm:$0xf]
    %v7800 = vld [vmem:[#allocation3 + $0x578] sm:$0xf]
    %v7801 = vld [vmem:[#allocation3 + $0x57c] sm:$0xf]
    %v7802 = vld [vmem:[#allocation3 + $0x580] sm:$0xf]
    %v7803 = vld [vmem:[#allocation3 + $0x584] sm:$0xf]
    %v7804 = vld [vmem:[#allocation3 + $0x588] sm:$0xf]
    %v7805 = vld [vmem:[#allocation3 + $0x58c] sm:$0xf]
    %v7806 = vld [vmem:[#allocation3 + $0x590] sm:$0xf]
    %v7807 = vld [vmem:[#allocation3 + $0x594] sm:$0xf]
    %v7808 = vld [vmem:[#allocation3 + $0x598] sm:$0xf]
    %v7809 = vld [vmem:[#allocation3 + $0x59c] sm:$0xf]
    %v7810 = vld [vmem:[#allocation3 + $0x5a0] sm:$0xf]
    %v7811 = vld [vmem:[#allocation3 + $0x5a4] sm:$0xf]
    %v7812 = vld [vmem:[#allocation3 + $0x5a8] sm:$0xf]
    %v7813 = vld [vmem:[#allocation3 + $0x5ac] sm:$0xf]
    %v7814 = vld [vmem:[#allocation3 + $0x5b0] sm:$0xf]
    %v7815 = vld [vmem:[#allocation3 + $0x5b4] sm:$0xf]
    %v7816 = vld [vmem:[#allocation3 + $0x5b8] sm:$0xf]
    %v7817 = vld [vmem:[#allocation3 + $0x5bc] sm:$0xf]
    %v7818 = vld [vmem:[#allocation3 + $0x5c0] sm:$0xf]
    %v7819 = vld [vmem:[#allocation3 + $0x5c4] sm:$0xf]
    %v7820 = vld [vmem:[#allocation3 + $0x5c8] sm:$0xf]
    %v7821 = vld [vmem:[#allocation3 + $0x5cc] sm:$0xf]
    %v7822 = vld [vmem:[#allocation3 + $0x5d0] sm:$0xf]
    %v7823 = vld [vmem:[#allocation3 + $0x5d4] sm:$0xf]
    %v7824 = vld [vmem:[#allocation3 + $0x5d8] sm:$0xf]
    %v7825 = vld [vmem:[#allocation3 + $0x5dc] sm:$0xf]
    %v7826 = vld [vmem:[#allocation3 + $0x5e0] sm:$0xf]
    %v7827 = vld [vmem:[#allocation3 + $0x5e4] sm:$0xf]
    %v7828 = vld [vmem:[#allocation3 + $0x5e8] sm:$0xf]
    %v7829 = vld [vmem:[#allocation3 + $0x5ec] sm:$0xf]
    %v7830 = vld [vmem:[#allocation3 + $0x5f0] sm:$0xf]
    %v7831 = vld [vmem:[#allocation3 + $0x5f4] sm:$0xf]
    %v7832 = vld [vmem:[#allocation3 + $0x5f8] sm:$0xf]
    %v7833 = vld [vmem:[#allocation3 + $0x5fc] sm:$0xf]
    %v7834 = vld [vmem:[#allocation3 + $0x600] sm:$0xf]
    %v7835 = vld [vmem:[#allocation3 + $0x604] sm:$0xf]
    %v7836 = vld [vmem:[#allocation3 + $0x608] sm:$0xf]
    %v7837 = vld [vmem:[#allocation3 + $0x60c] sm:$0xf]
    %v7838 = vld [vmem:[#allocation3 + $0x610] sm:$0xf]
    %v7839 = vld [vmem:[#allocation3 + $0x614] sm:$0xf]
    %v7840 = vld [vmem:[#allocation3 + $0x618] sm:$0xf]
    %v7841 = vld [vmem:[#allocation3 + $0x61c] sm:$0xf]
    %v7842 = vld [vmem:[#allocation3 + $0x620] sm:$0xf]
    %v7843 = vld [vmem:[#allocation3 + $0x624] sm:$0xf]
    %v7844 = vld [vmem:[#allocation3 + $0x628] sm:$0xf]
    %v7845 = vld [vmem:[#allocation3 + $0x62c] sm:$0xf]
    %v7846 = vld [vmem:[#allocation3 + $0x630] sm:$0xf]
    %v7847 = vld [vmem:[#allocation3 + $0x634] sm:$0xf]
    %v7848 = vld [vmem:[#allocation3 + $0x638] sm:$0xf]
    %v7849 = vld [vmem:[#allocation3 + $0x63c] sm:$0xf]
    %v7850 = vld [vmem:[#allocation3 + $0x640] sm:$0xf]
    %v7851 = vld [vmem:[#allocation3 + $0x644] sm:$0xf]
    %v7852 = vld [vmem:[#allocation3 + $0x648] sm:$0xf]
    %v7853 = vld [vmem:[#allocation3 + $0x64c] sm:$0xf]
    %v7854 = vld [vmem:[#allocation3 + $0x650] sm:$0xf]
    %v7855 = vld [vmem:[#allocation3 + $0x654] sm:$0xf]
    %v7856 = vld [vmem:[#allocation3 + $0x658] sm:$0xf]
    %v7857 = vld [vmem:[#allocation3 + $0x65c] sm:$0xf]
    %v7858 = vld [vmem:[#allocation3 + $0x660] sm:$0xf]
    %v7859 = vld [vmem:[#allocation3 + $0x664] sm:$0xf]
    %v7860 = vld [vmem:[#allocation3 + $0x668] sm:$0xf]
    %v7861 = vld [vmem:[#allocation3 + $0x66c] sm:$0xf]
    %v7862 = vld [vmem:[#allocation3 + $0x670] sm:$0xf]
    %v7863 = vld [vmem:[#allocation3 + $0x674] sm:$0xf]
    %v7864 = vld [vmem:[#allocation3 + $0x678] sm:$0xf]
    %v7865 = vld [vmem:[#allocation3 + $0x67c] sm:$0xf]
    %v7866 = vld [vmem:[%s4] sm:$0x1]
    %v7868 = vlaneseq
    %v7869 = vshrl.u32 %v7868, 7
    %v7870 = vsub.s32 0, %v7869
    %v7871 = vrot.slane %v7866, %v7870
    %v7886 = vunpack.c.l.b16 %v7437
    %v7887 = vunpack.c.h.b16 %v7437
    %v7888 = vunpack.c.l.b16 %v7438
    %v7889 = vunpack.c.h.b16 %v7438
    %v7890 = vunpack.c.l.b16 %v7439
    %v7891 = vunpack.c.h.b16 %v7439
    %v7892 = vunpack.c.l.b16 %v7440
    %v7893 = vunpack.c.h.b16 %v7440
    %v7894 = vunpack.c.l.b16 %v7441
    %v7895 = vunpack.c.h.b16 %v7441
    %v7896 = vunpack.c.l.b16 %v7442
    %v7897 = vunpack.c.h.b16 %v7442
    %v7898 = vunpack.c.l.b16 %v7443
    %v7899 = vunpack.c.h.b16 %v7443
    %v7900 = vunpack.c.l.b16 %v7444
    %v7901 = vunpack.c.h.b16 %v7444
    %v7902 = vunpack.c.l.b16 %v7445
    %v7903 = vunpack.c.h.b16 %v7445
    %v7904 = vunpack.c.l.b16 %v7446
    %v7905 = vunpack.c.h.b16 %v7446
    %v7906 = vunpack.c.l.b16 %v7447
    %v7907 = vunpack.c.h.b16 %v7447
    %v7908 = vunpack.c.l.b16 %v7448
    %v7909 = vunpack.c.h.b16 %v7448
    %v7910 = vunpack.c.l.b16 %v7449
    %v7911 = vunpack.c.h.b16 %v7449
    %v7912 = vpack.c.b16 %v7886, %v7886
    %v7913 = vpack.c.b16 %v7887, %v7887
    %v7914 = vpack.c.b16 %v7888, %v7888
    %v7915 = vpack.c.b16 %v7889, %v7889
    %v7916 = vpack.c.b16 %v7890, %v7890
    %v7917 = vpack.c.b16 %v7891, %v7891
    %v7918 = vpack.c.b16 %v7892, %v7892
    %v7919 = vpack.c.b16 %v7893, %v7893
    %v7920 = vpack.c.b16 %v7894, %v7894
    %v7921 = vpack.c.b16 %v7895, %v7895
    %v7922 = vpack.c.b16 %v7896, %v7896
    %v7923 = vpack.c.b16 %v7897, %v7897
    %v7924 = vpack.c.b16 %v7898, %v7898
    %v7925 = vpack.c.b16 %v7899, %v7899
    %v7926 = vpack.c.b16 %v7900, %v7900
    %v7927 = vpack.c.b16 %v7901, %v7901
    %v7928 = vpack.c.b16 %v7902, %v7902
    %v7929 = vpack.c.b16 %v7903, %v7903
    %v7930 = vpack.c.b16 %v7904, %v7904
    %v7931 = vpack.c.b16 %v7905, %v7905
    %v7932 = vpack.c.b16 %v7906, %v7906
    %v7933 = vpack.c.b16 %v7907, %v7907
    %v7934 = vpack.c.b16 %v7908, %v7908
    %v7935 = vpack.c.b16 %v7909, %v7909
    %v7936 = vpack.c.b16 %v7910, %v7910
    %v7937 = vpack.c.b16 %v7911, %v7911
    %v8380 = vunpack.c.l.b16 %v7450
    %v8381 = vunpack.c.l.b16 %v7451
    %v8382 = vunpack.c.l.b16 %v7452
    %v8383 = vunpack.c.l.b16 %v7453
    %v8384 = vunpack.c.l.b16 %v7454
    %v8385 = vunpack.c.l.b16 %v7455
    %v8386 = vunpack.c.l.b16 %v7456
    %v8387 = vunpack.c.l.b16 %v7457
    %v8388 = vunpack.c.l.b16 %v7458
    %v8389 = vunpack.c.l.b16 %v7459
    %v8390 = vunpack.c.l.b16 %v7460
    %v8391 = vunpack.c.l.b16 %v7461
    %v8392 = vunpack.c.l.b16 %v7462
    %v8393 = vunpack.c.l.b16 %v7463
    %v8394 = vunpack.c.l.b16 %v7464
    %v8395 = vunpack.c.l.b16 %v7465
    %v8396 = vunpack.c.l.b16 %v7466
    %v8397 = vunpack.c.l.b16 %v7467
    %v8398 = vunpack.c.l.b16 %v7468
    %v8399 = vunpack.c.l.b16 %v7469
    %v8400 = vunpack.c.l.b16 %v7470
    %v8401 = vunpack.c.l.b16 %v7471
    %v8402 = vunpack.c.l.b16 %v7472
    %v8403 = vunpack.c.l.b16 %v7473
    %v8404 = vunpack.c.l.b16 %v7474
    %v8405 = vunpack.c.l.b16 %v7475
    %v8406 = vunpack.c.l.b16 %v7476
    %v8407 = vunpack.c.l.b16 %v7477
    %v8408 = vunpack.c.l.b16 %v7478
    %v8409 = vunpack.c.l.b16 %v7479
    %v8410 = vunpack.c.l.b16 %v7480
    %v8411 = vunpack.c.l.b16 %v7481
    %v8412 = vunpack.c.l.b16 %v7482
    %v8413 = vunpack.c.l.b16 %v7483
    %v8414 = vunpack.c.l.b16 %v7484
    %v8415 = vunpack.c.l.b16 %v7485
    %v8416 = vunpack.c.l.b16 %v7486
    %v8417 = vunpack.c.l.b16 %v7487
    %v8418 = vunpack.c.l.b16 %v7488
    %v8419 = vunpack.c.l.b16 %v7489
    %v8420 = vunpack.c.l.b16 %v7490
    %v8421 = vunpack.c.l.b16 %v7491
    %v8422 = vunpack.c.l.b16 %v7492
    %v8423 = vunpack.c.l.b16 %v7493
    %v8424 = vunpack.c.l.b16 %v7494
    %v8425 = vunpack.c.l.b16 %v7495
    %v8426 = vunpack.c.l.b16 %v7496
    %v8427 = vunpack.c.l.b16 %v7497
    %v8428 = vunpack.c.l.b16 %v7498
    %v8429 = vunpack.c.l.b16 %v7499
    %v8430 = vunpack.c.l.b16 %v7500
    %v8431 = vunpack.c.l.b16 %v7501
    %v8432 = vunpack.c.l.b16 %v7502
    %v8433 = vunpack.c.l.b16 %v7503
    %v8434 = vunpack.c.l.b16 %v7504
    %v8435 = vunpack.c.l.b16 %v7505
    %v8436 = vunpack.c.l.b16 %v7506
    %v8437 = vunpack.c.l.b16 %v7507
    %v8438 = vunpack.c.l.b16 %v7508
    %v8439 = vunpack.c.l.b16 %v7509
    %v8440 = vunpack.c.l.b16 %v7510
    %v8441 = vunpack.c.l.b16 %v7511
    %v8442 = vunpack.c.l.b16 %v7512
    %v8443 = vunpack.c.l.b16 %v7513
    %v8444 = vunpack.c.l.b16 %v7514
    %v8445 = vunpack.c.l.b16 %v7515
    %v8446 = vunpack.c.l.b16 %v7516
    %v8447 = vunpack.c.l.b16 %v7517
    %v8448 = vunpack.c.l.b16 %v7518
    %v8449 = vunpack.c.l.b16 %v7519
    %v8450 = vunpack.c.l.b16 %v7520
    %v8451 = vunpack.c.l.b16 %v7521
    %v8452 = vunpack.c.l.b16 %v7522
    %v8453 = vunpack.c.l.b16 %v7523
    %v8454 = vunpack.c.l.b16 %v7524
    %v8455 = vunpack.c.l.b16 %v7525
    %v8456 = vunpack.c.l.b16 %v7526
    %v8457 = vunpack.c.l.b16 %v7527
    %v8458 = vunpack.c.l.b16 %v7528
    %v8459 = vunpack.c.l.b16 %v7529
    %v8460 = vunpack.c.l.b16 %v7530
    %v8461 = vunpack.c.l.b16 %v7531
    %v8462 = vunpack.c.l.b16 %v7532
    %v8463 = vunpack.c.l.b16 %v7533
    %v8464 = vunpack.c.l.b16 %v7534
    %v8465 = vunpack.c.l.b16 %v7535
    %v8466 = vunpack.c.l.b16 %v7536
    %v8467 = vunpack.c.l.b16 %v7537
    %v8468 = vunpack.c.l.b16 %v7538
    %v8469 = vunpack.c.l.b16 %v7539
    %v8470 = vunpack.c.l.b16 %v7540
    %v8471 = vunpack.c.l.b16 %v7541
    %v8472 = vunpack.c.l.b16 %v7542
    %v8473 = vunpack.c.l.b16 %v7543
    %v8474 = vunpack.c.l.b16 %v7544
    %v8475 = vunpack.c.l.b16 %v7545
    %v8476 = vunpack.c.l.b16 %v7546
    %v8477 = vunpack.c.l.b16 %v7547
    %v8478 = vunpack.c.l.b16 %v7548
    %v8479 = vunpack.c.l.b16 %v7549
    %v8480 = vunpack.c.l.b16 %v7550
    %v8481 = vunpack.c.l.b16 %v7551
    %v8482 = vunpack.c.l.b16 %v7552
    %v8483 = vunpack.c.l.b16 %v7553
    %v8484 = vunpack.c.l.b16 %v7554
    %v8485 = vunpack.c.l.b16 %v7555
    %v8486 = vunpack.c.l.b16 %v7556
    %v8487 = vunpack.c.l.b16 %v7557
    %v8488 = vunpack.c.l.b16 %v7558
    %v8489 = vunpack.c.l.b16 %v7559
    %v8490 = vunpack.c.l.b16 %v7560
    %v8491 = vunpack.c.l.b16 %v7561
    %v8492 = vunpack.c.l.b16 %v7562
    %v8493 = vunpack.c.l.b16 %v7563
    %v8494 = vunpack.c.l.b16 %v7564
    %v8495 = vunpack.c.l.b16 %v7565
    %v8496 = vunpack.c.l.b16 %v7566
    %v8497 = vunpack.c.l.b16 %v7567
    %v8498 = vunpack.c.l.b16 %v7568
    %v8499 = vunpack.c.l.b16 %v7569
    %v8500 = vunpack.c.l.b16 %v7570
    %v8501 = vunpack.c.l.b16 %v7571
    %v8502 = vunpack.c.l.b16 %v7572
    %v8503 = vunpack.c.l.b16 %v7573
    %v8504 = vunpack.c.l.b16 %v7574
    %v8505 = vunpack.c.l.b16 %v7575
    %v8506 = vunpack.c.l.b16 %v7576
    %v8507 = vunpack.c.l.b16 %v7577
    %v8508 = vunpack.c.l.b16 %v7578
    %v8509 = vunpack.c.l.b16 %v7579
    %v8510 = vunpack.c.l.b16 %v7580
    %v8511 = vunpack.c.l.b16 %v7581
    %v8512 = vunpack.c.l.b16 %v7582
    %v8513 = vunpack.c.l.b16 %v7583
    %v8514 = vunpack.c.l.b16 %v7584
    %v8515 = vunpack.c.l.b16 %v7585
    %v8516 = vunpack.c.l.b16 %v7586
    %v8517 = vunpack.c.l.b16 %v7587
    %v8518 = vunpack.c.l.b16 %v7588
    %v8519 = vunpack.c.l.b16 %v7589
    %v8520 = vunpack.c.l.b16 %v7590
    %v8521 = vunpack.c.l.b16 %v7591
    %v8522 = vunpack.c.l.b16 %v7592
    %v8523 = vunpack.c.l.b16 %v7593
    %v8524 = vunpack.c.l.b16 %v7594
    %v8525 = vunpack.c.l.b16 %v7595
    %v8526 = vunpack.c.l.b16 %v7596
    %v8527 = vunpack.c.l.b16 %v7597
    %v8528 = vunpack.c.l.b16 %v7598
    %v8529 = vunpack.c.l.b16 %v7599
    %v8530 = vunpack.c.l.b16 %v7600
    %v8531 = vunpack.c.l.b16 %v7601
    %v8532 = vunpack.c.l.b16 %v7602
    %v8533 = vunpack.c.l.b16 %v7603
    %v8534 = vunpack.c.l.b16 %v7604
    %v8535 = vunpack.c.l.b16 %v7605
    %v8536 = vunpack.c.l.b16 %v7606
    %v8537 = vunpack.c.l.b16 %v7607
    %v8538 = vunpack.c.l.b16 %v7608
    %v8539 = vunpack.c.l.b16 %v7609
    %v8540 = vunpack.c.l.b16 %v7610
    %v8541 = vunpack.c.l.b16 %v7611
    %v8542 = vunpack.c.l.b16 %v7612
    %v8543 = vunpack.c.l.b16 %v7613
    %v8544 = vunpack.c.l.b16 %v7614
    %v8545 = vunpack.c.l.b16 %v7615
    %v8546 = vunpack.c.l.b16 %v7616
    %v8547 = vunpack.c.l.b16 %v7617
    %v8548 = vunpack.c.l.b16 %v7618
    %v8549 = vunpack.c.l.b16 %v7619
    %v8550 = vunpack.c.l.b16 %v7620
    %v8551 = vunpack.c.l.b16 %v7621
    %v8552 = vunpack.c.l.b16 %v7622
    %v8553 = vunpack.c.l.b16 %v7623
    %v8554 = vunpack.c.l.b16 %v7624
    %v8555 = vunpack.c.l.b16 %v7625
    %v8556 = vunpack.c.l.b16 %v7626
    %v8557 = vunpack.c.l.b16 %v7627
    %v8558 = vunpack.c.l.b16 %v7628
    %v8559 = vunpack.c.l.b16 %v7629
    %v8560 = vunpack.c.l.b16 %v7630
    %v8561 = vunpack.c.l.b16 %v7631
    %v8562 = vunpack.c.l.b16 %v7632
    %v8563 = vunpack.c.l.b16 %v7633
    %v8564 = vunpack.c.l.b16 %v7634
    %v8565 = vunpack.c.l.b16 %v7635
    %v8566 = vunpack.c.l.b16 %v7636
    %v8567 = vunpack.c.l.b16 %v7637
    %v8568 = vunpack.c.l.b16 %v7638
    %v8569 = vunpack.c.l.b16 %v7639
    %v8570 = vunpack.c.l.b16 %v7640
    %v8571 = vunpack.c.l.b16 %v7641
    %v8572 = vunpack.c.l.b16 %v7642
    %v8573 = vunpack.c.l.b16 %v7643
    %v8574 = vunpack.c.l.b16 %v7644
    %v8575 = vunpack.c.l.b16 %v7645
    %v8576 = vunpack.c.l.b16 %v7646
    %v8577 = vunpack.c.l.b16 %v7647
    %v8578 = vunpack.c.l.b16 %v7648
    %v8579 = vunpack.c.l.b16 %v7649
    %v8580 = vunpack.c.l.b16 %v7650
    %v8581 = vunpack.c.l.b16 %v7651
    %v8582 = vunpack.c.l.b16 %v7652
    %v8583 = vunpack.c.l.b16 %v7653
    %v8584 = vunpack.c.l.b16 %v7654
    %v8585 = vunpack.c.l.b16 %v7655
    %v8586 = vunpack.c.l.b16 %v7656
    %v8587 = vunpack.c.l.b16 %v7657
    %v8588 = vunpack.c.l.b16 %v7658
    %v8589 = vunpack.c.l.b16 %v7659
    %v8590 = vunpack.c.l.b16 %v7660
    %v8591 = vunpack.c.l.b16 %v7661
    %v8592 = vunpack.c.l.b16 %v7662
    %v8593 = vunpack.c.l.b16 %v7663
    %v8594 = vunpack.c.l.b16 %v7664
    %v8595 = vunpack.c.l.b16 %v7665
    %v8596 = vunpack.c.l.b16 %v7666
    %v8597 = vunpack.c.l.b16 %v7667
    %v8598 = vunpack.c.l.b16 %v7668
    %v8599 = vunpack.c.l.b16 %v7669
    %v8600 = vunpack.c.l.b16 %v7670
    %v8601 = vunpack.c.l.b16 %v7671
    %v8602 = vunpack.c.l.b16 %v7672
    %v8603 = vunpack.c.l.b16 %v7673
    %v8604 = vunpack.c.l.b16 %v7674
    %v8605 = vunpack.c.l.b16 %v7675
    %v8606 = vunpack.c.l.b16 %v7676
    %v8607 = vunpack.c.l.b16 %v7677
    %v8608 = vunpack.c.l.b16 %v7678
    %v8609 = vunpack.c.l.b16 %v7679
    %v8610 = vunpack.c.l.b16 %v7680
    %v8611 = vunpack.c.l.b16 %v7681
    %v8612 = vunpack.c.l.b16 %v7682
    %v8613 = vunpack.c.l.b16 %v7683
    %v8614 = vunpack.c.l.b16 %v7684
    %v8615 = vunpack.c.l.b16 %v7685
    %v8616 = vunpack.c.l.b16 %v7686
    %v8617 = vunpack.c.l.b16 %v7687
    %v8618 = vunpack.c.l.b16 %v7688
    %v8619 = vunpack.c.l.b16 %v7689
    %v8620 = vunpack.c.l.b16 %v7690
    %v8621 = vunpack.c.l.b16 %v7691
    %v8622 = vunpack.c.l.b16 %v7692
    %v8623 = vunpack.c.l.b16 %v7693
    %v8624 = vunpack.c.l.b16 %v7694
    %v8625 = vunpack.c.l.b16 %v7695
    %v8626 = vunpack.c.l.b16 %v7696
    %v8627 = vunpack.c.l.b16 %v7697
    %v8628 = vunpack.c.l.b16 %v7698
    %v8629 = vunpack.c.l.b16 %v7699
    %v8630 = vunpack.c.l.b16 %v7700
    %v8631 = vunpack.c.l.b16 %v7701
    %v8632 = vunpack.c.l.b16 %v7702
    %v8633 = vunpack.c.l.b16 %v7703
    %v8634 = vunpack.c.l.b16 %v7704
    %v8635 = vunpack.c.l.b16 %v7705
    %v8636 = vunpack.c.l.b16 %v7706
    %v8637 = vunpack.c.l.b16 %v7707
    %v8638 = vunpack.c.l.b16 %v7708
    %v8639 = vunpack.c.l.b16 %v7709
    %v8640 = vunpack.c.l.b16 %v7710
    %v8641 = vunpack.c.l.b16 %v7711
    %v8642 = vunpack.c.l.b16 %v7712
    %v8643 = vunpack.c.l.b16 %v7713
    %v8644 = vunpack.c.l.b16 %v7714
    %v8645 = vunpack.c.l.b16 %v7715
    %v8646 = vunpack.c.l.b16 %v7716
    %v8647 = vunpack.c.l.b16 %v7717
    %v8648 = vunpack.c.l.b16 %v7718
    %v8649 = vunpack.c.l.b16 %v7719
    %v8650 = vunpack.c.l.b16 %v7720
    %v8651 = vunpack.c.l.b16 %v7721
    %v8652 = vunpack.c.l.b16 %v7722
    %v8653 = vunpack.c.l.b16 %v7723
    %v8654 = vunpack.c.l.b16 %v7724
    %v8655 = vunpack.c.l.b16 %v7725
    %v8656 = vunpack.c.l.b16 %v7726
    %v8657 = vunpack.c.l.b16 %v7727
    %v8658 = vunpack.c.l.b16 %v7728
    %v8659 = vunpack.c.l.b16 %v7729
    %v8660 = vunpack.c.l.b16 %v7730
    %v8661 = vunpack.c.l.b16 %v7731
    %v8662 = vunpack.c.l.b16 %v7732
    %v8663 = vunpack.c.l.b16 %v7733
    %v8664 = vunpack.c.l.b16 %v7734
    %v8665 = vunpack.c.l.b16 %v7735
    %v8666 = vunpack.c.l.b16 %v7736
    %v8667 = vunpack.c.l.b16 %v7737
    %v8668 = vunpack.c.l.b16 %v7738
    %v8669 = vunpack.c.l.b16 %v7739
    %v8670 = vunpack.c.l.b16 %v7740
    %v8671 = vunpack.c.l.b16 %v7741
    %v8672 = vunpack.c.l.b16 %v7742
    %v8673 = vunpack.c.l.b16 %v7743
    %v8674 = vunpack.c.l.b16 %v7744
    %v8675 = vunpack.c.l.b16 %v7745
    %v8676 = vunpack.c.l.b16 %v7746
    %v8677 = vunpack.c.l.b16 %v7747
    %v8678 = vunpack.c.l.b16 %v7748
    %v8679 = vunpack.c.l.b16 %v7749
    %v8680 = vunpack.c.l.b16 %v7750
    %v8681 = vunpack.c.l.b16 %v7751
    %v8682 = vunpack.c.l.b16 %v7752
    %v8683 = vunpack.c.l.b16 %v7753
    %v8684 = vunpack.c.l.b16 %v7754
    %v8685 = vunpack.c.l.b16 %v7755
    %v8686 = vunpack.c.l.b16 %v7756
    %v8687 = vunpack.c.l.b16 %v7757
    %v8688 = vunpack.c.l.b16 %v7758
    %v8689 = vunpack.c.l.b16 %v7759
    %v8690 = vunpack.c.l.b16 %v7760
    %v8691 = vunpack.c.l.b16 %v7761
    %v8692 = vunpack.c.l.b16 %v7762
    %v8693 = vunpack.c.l.b16 %v7763
    %v8694 = vunpack.c.l.b16 %v7764
    %v8695 = vunpack.c.l.b16 %v7765
    %v8696 = vunpack.c.l.b16 %v7766
    %v8697 = vunpack.c.l.b16 %v7767
    %v8698 = vunpack.c.l.b16 %v7768
    %v8699 = vunpack.c.l.b16 %v7769
    %v8700 = vunpack.c.l.b16 %v7770
    %v8701 = vunpack.c.l.b16 %v7771
    %v8702 = vunpack.c.l.b16 %v7772
    %v8703 = vunpack.c.l.b16 %v7773
    %v8704 = vunpack.c.l.b16 %v7774
    %v8705 = vunpack.c.l.b16 %v7775
    %v8706 = vunpack.c.l.b16 %v7776
    %v8707 = vunpack.c.l.b16 %v7777
    %v8708 = vunpack.c.l.b16 %v7778
    %v8709 = vunpack.c.l.b16 %v7779
    %v8710 = vunpack.c.l.b16 %v7780
    %v8711 = vunpack.c.l.b16 %v7781
    %v8712 = vunpack.c.l.b16 %v7782
    %v8713 = vunpack.c.l.b16 %v7783
    %v8714 = vunpack.c.l.b16 %v7784
    %v8715 = vunpack.c.l.b16 %v7785
    %v8716 = vunpack.c.l.b16 %v7786
    %v8717 = vunpack.c.l.b16 %v7787
    %v8718 = vunpack.c.l.b16 %v7788
    %v8719 = vunpack.c.l.b16 %v7789
    %v8720 = vunpack.c.l.b16 %v7790
    %v8721 = vunpack.c.l.b16 %v7791
    %v8722 = vunpack.c.l.b16 %v7792
    %v8723 = vunpack.c.l.b16 %v7793
    %v8724 = vunpack.c.l.b16 %v7794
    %v8725 = vunpack.c.l.b16 %v7795
    %v8726 = vunpack.c.l.b16 %v7796
    %v8727 = vunpack.c.l.b16 %v7797
    %v8728 = vunpack.c.l.b16 %v7798
    %v8729 = vunpack.c.l.b16 %v7799
    %v8730 = vunpack.c.l.b16 %v7800
    %v8731 = vunpack.c.l.b16 %v7801
    %v8732 = vunpack.c.l.b16 %v7802
    %v8733 = vunpack.c.l.b16 %v7803
    %v8734 = vunpack.c.l.b16 %v7804
    %v8735 = vunpack.c.l.b16 %v7805
    %v8736 = vunpack.c.l.b16 %v7806
    %v8737 = vunpack.c.l.b16 %v7807
    %v8738 = vunpack.c.l.b16 %v7808
    %v8739 = vunpack.c.l.b16 %v7809
    %v8740 = vunpack.c.l.b16 %v7810
    %v8741 = vunpack.c.l.b16 %v7811
    %v8742 = vunpack.c.l.b16 %v7812
    %v8743 = vunpack.c.l.b16 %v7813
    %v8744 = vunpack.c.l.b16 %v7814
    %v8745 = vunpack.c.l.b16 %v7815
    %v8746 = vunpack.c.l.b16 %v7816
    %v8747 = vunpack.c.l.b16 %v7817
    %v8748 = vunpack.c.l.b16 %v7818
    %v8749 = vunpack.c.l.b16 %v7819
    %v8750 = vunpack.c.l.b16 %v7820
    %v8751 = vunpack.c.l.b16 %v7821
    %v8752 = vunpack.c.l.b16 %v7822
    %v8753 = vunpack.c.l.b16 %v7823
    %v8754 = vunpack.c.l.b16 %v7824
    %v8755 = vunpack.c.l.b16 %v7825
    %v8756 = vunpack.c.l.b16 %v7826
    %v8757 = vunpack.c.l.b16 %v7827
    %v8758 = vunpack.c.l.b16 %v7828
    %v8759 = vunpack.c.l.b16 %v7829
    %v8760 = vunpack.c.l.b16 %v7830
    %v8761 = vunpack.c.l.b16 %v7831
    %v8762 = vunpack.c.l.b16 %v7832
    %v8763 = vunpack.c.l.b16 %v7833
    %v8764 = vunpack.c.l.b16 %v7834
    %v8765 = vunpack.c.l.b16 %v7835
    %v8766 = vunpack.c.l.b16 %v7836
    %v8767 = vunpack.c.l.b16 %v7837
    %v8768 = vunpack.c.l.b16 %v7838
    %v8769 = vunpack.c.l.b16 %v7839
    %v8770 = vunpack.c.l.b16 %v7840
    %v8771 = vunpack.c.l.b16 %v7841
    %v8772 = vunpack.c.l.b16 %v7842
    %v8773 = vunpack.c.l.b16 %v7843
    %v8774 = vunpack.c.l.b16 %v7844
    %v8775 = vunpack.c.l.b16 %v7845
    %v8776 = vunpack.c.l.b16 %v7846
    %v8777 = vunpack.c.l.b16 %v7847
    %v8778 = vunpack.c.l.b16 %v7848
    %v8779 = vunpack.c.l.b16 %v7849
    %v8780 = vunpack.c.l.b16 %v7850
    %v8781 = vunpack.c.l.b16 %v7851
    %v8782 = vunpack.c.l.b16 %v7852
    %v8783 = vunpack.c.l.b16 %v7853
    %v8784 = vunpack.c.l.b16 %v7854
    %v8785 = vunpack.c.l.b16 %v7855
    %v8786 = vunpack.c.l.b16 %v7856
    %v8787 = vunpack.c.l.b16 %v7857
    %v8788 = vunpack.c.l.b16 %v7858
    %v8789 = vunpack.c.l.b16 %v7859
    %v8790 = vunpack.c.l.b16 %v7860
    %v8791 = vunpack.c.l.b16 %v7861
    %v8792 = vunpack.c.l.b16 %v7862
    %v8793 = vunpack.c.l.b16 %v7863
    %v8794 = vunpack.c.l.b16 %v7864
    %v8795 = vunpack.c.l.b16 %v7865
    %v8796 = vpack.c.b16 %v8381, %v8380
    %v8797 = vpack.c.b16 %v8383, %v8382
    %v8798 = vpack.c.b16 %v8385, %v8384
    %v8799 = vpack.c.b16 %v8387, %v8386
    %v8800 = vpack.c.b16 %v8389, %v8388
    %v8801 = vpack.c.b16 %v8391, %v8390
    %v8802 = vpack.c.b16 %v8393, %v8392
    %v8803 = vpack.c.b16 %v8395, %v8394
    %v8804 = vpack.c.b16 %v8397, %v8396
    %v8805 = vpack.c.b16 %v8399, %v8398
    %v8806 = vpack.c.b16 %v8401, %v8400
    %v8807 = vpack.c.b16 %v8403, %v8402
    %v8808 = vpack.c.b16 %v8405, %v8404
    %v8809 = vpack.c.b16 %v8407, %v8406
    %v8810 = vpack.c.b16 %v8409, %v8408
    %v8811 = vpack.c.b16 %v8411, %v8410
    %v8812 = vpack.c.b16 %v8413, %v8412
    %v8813 = vpack.c.b16 %v8415, %v8414
    %v8814 = vpack.c.b16 %v8417, %v8416
    %v8815 = vpack.c.b16 %v8419, %v8418
    %v8816 = vpack.c.b16 %v8421, %v8420
    %v8817 = vpack.c.b16 %v8423, %v8422
    %v8818 = vpack.c.b16 %v8425, %v8424
    %v8819 = vpack.c.b16 %v8427, %v8426
    %v8820 = vpack.c.b16 %v8429, %v8428
    %v8821 = vpack.c.b16 %v8431, %v8430
    %v8822 = vpack.c.b16 %v8433, %v8432
    %v8823 = vpack.c.b16 %v8435, %v8434
    %v8824 = vpack.c.b16 %v8437, %v8436
    %v8825 = vpack.c.b16 %v8439, %v8438
    %v8826 = vpack.c.b16 %v8441, %v8440
    %v8827 = vpack.c.b16 %v8443, %v8442
    %v8828 = vpack.c.b16 %v8445, %v8444
    %v8829 = vpack.c.b16 %v8447, %v8446
    %v8830 = vpack.c.b16 %v8449, %v8448
    %v8831 = vpack.c.b16 %v8451, %v8450
    %v8832 = vpack.c.b16 %v8453, %v8452
    %v8833 = vpack.c.b16 %v8455, %v8454
    %v8834 = vpack.c.b16 %v8457, %v8456
    %v8835 = vpack.c.b16 %v8459, %v8458
    %v8836 = vpack.c.b16 %v8461, %v8460
    %v8837 = vpack.c.b16 %v8463, %v8462
    %v8838 = vpack.c.b16 %v8465, %v8464
    %v8839 = vpack.c.b16 %v8467, %v8466
    %v8840 = vpack.c.b16 %v8469, %v8468
    %v8841 = vpack.c.b16 %v8471, %v8470
    %v8842 = vpack.c.b16 %v8473, %v8472
    %v8843 = vpack.c.b16 %v8475, %v8474
    %v8844 = vpack.c.b16 %v8477, %v8476
    %v8845 = vpack.c.b16 %v8479, %v8478
    %v8846 = vpack.c.b16 %v8481, %v8480
    %v8847 = vpack.c.b16 %v8483, %v8482
    %v8848 = vpack.c.b16 %v8485, %v8484
    %v8849 = vpack.c.b16 %v8487, %v8486
    %v8850 = vpack.c.b16 %v8489, %v8488
    %v8851 = vpack.c.b16 %v8491, %v8490
    %v8852 = vpack.c.b16 %v8493, %v8492
    %v8853 = vpack.c.b16 %v8495, %v8494
    %v8854 = vpack.c.b16 %v8497, %v8496
    %v8855 = vpack.c.b16 %v8499, %v8498
    %v8856 = vpack.c.b16 %v8501, %v8500
    %v8857 = vpack.c.b16 %v8503, %v8502
    %v8858 = vpack.c.b16 %v8505, %v8504
    %v8859 = vpack.c.b16 %v8507, %v8506
    %v8860 = vpack.c.b16 %v8509, %v8508
    %v8861 = vpack.c.b16 %v8511, %v8510
    %v8862 = vpack.c.b16 %v8513, %v8512
    %v8863 = vpack.c.b16 %v8515, %v8514
    %v8864 = vpack.c.b16 %v8517, %v8516
    %v8865 = vpack.c.b16 %v8519, %v8518
    %v8866 = vpack.c.b16 %v8521, %v8520
    %v8867 = vpack.c.b16 %v8523, %v8522
    %v8868 = vpack.c.b16 %v8525, %v8524
    %v8869 = vpack.c.b16 %v8527, %v8526
    %v8870 = vpack.c.b16 %v8529, %v8528
    %v8871 = vpack.c.b16 %v8531, %v8530
    %v8872 = vpack.c.b16 %v8533, %v8532
    %v8873 = vpack.c.b16 %v8535, %v8534
    %v8874 = vpack.c.b16 %v8537, %v8536
    %v8875 = vpack.c.b16 %v8539, %v8538
    %v8876 = vpack.c.b16 %v8541, %v8540
    %v8877 = vpack.c.b16 %v8543, %v8542
    %v8878 = vpack.c.b16 %v8545, %v8544
    %v8879 = vpack.c.b16 %v8547, %v8546
    %v8880 = vpack.c.b16 %v8549, %v8548
    %v8881 = vpack.c.b16 %v8551, %v8550
    %v8882 = vpack.c.b16 %v8553, %v8552
    %v8883 = vpack.c.b16 %v8555, %v8554
    %v8884 = vpack.c.b16 %v8557, %v8556
    %v8885 = vpack.c.b16 %v8559, %v8558
    %v8886 = vpack.c.b16 %v8561, %v8560
    %v8887 = vpack.c.b16 %v8563, %v8562
    %v8888 = vpack.c.b16 %v8565, %v8564
    %v8889 = vpack.c.b16 %v8567, %v8566
    %v8890 = vpack.c.b16 %v8569, %v8568
    %v8891 = vpack.c.b16 %v8571, %v8570
    %v8892 = vpack.c.b16 %v8573, %v8572
    %v8893 = vpack.c.b16 %v8575, %v8574
    %v8894 = vpack.c.b16 %v8577, %v8576
    %v8895 = vpack.c.b16 %v8579, %v8578
    %v8896 = vpack.c.b16 %v8581, %v8580
    %v8897 = vpack.c.b16 %v8583, %v8582
    %v8898 = vpack.c.b16 %v8585, %v8584
    %v8899 = vpack.c.b16 %v8587, %v8586
    %v8900 = vpack.c.b16 %v8589, %v8588
    %v8901 = vpack.c.b16 %v8591, %v8590
    %v8902 = vpack.c.b16 %v8593, %v8592
    %v8903 = vpack.c.b16 %v8595, %v8594
    %v8904 = vpack.c.b16 %v8597, %v8596
    %v8905 = vpack.c.b16 %v8599, %v8598
    %v8906 = vpack.c.b16 %v8601, %v8600
    %v8907 = vpack.c.b16 %v8603, %v8602
    %v8908 = vpack.c.b16 %v8605, %v8604
    %v8909 = vpack.c.b16 %v8607, %v8606
    %v8910 = vpack.c.b16 %v8609, %v8608
    %v8911 = vpack.c.b16 %v8611, %v8610
    %v8912 = vpack.c.b16 %v8613, %v8612
    %v8913 = vpack.c.b16 %v8615, %v8614
    %v8914 = vpack.c.b16 %v8617, %v8616
    %v8915 = vpack.c.b16 %v8619, %v8618
    %v8916 = vpack.c.b16 %v8621, %v8620
    %v8917 = vpack.c.b16 %v8623, %v8622
    %v8918 = vpack.c.b16 %v8625, %v8624
    %v8919 = vpack.c.b16 %v8627, %v8626
    %v8920 = vpack.c.b16 %v8629, %v8628
    %v8921 = vpack.c.b16 %v8631, %v8630
    %v8922 = vpack.c.b16 %v8633, %v8632
    %v8923 = vpack.c.b16 %v8635, %v8634
    %v8924 = vpack.c.b16 %v8637, %v8636
    %v8925 = vpack.c.b16 %v8639, %v8638
    %v8926 = vpack.c.b16 %v8641, %v8640
    %v8927 = vpack.c.b16 %v8643, %v8642
    %v8928 = vpack.c.b16 %v8645, %v8644
    %v8929 = vpack.c.b16 %v8647, %v8646
    %v8930 = vpack.c.b16 %v8649, %v8648
    %v8931 = vpack.c.b16 %v8651, %v8650
    %v8932 = vpack.c.b16 %v8653, %v8652
    %v8933 = vpack.c.b16 %v8655, %v8654
    %v8934 = vpack.c.b16 %v8657, %v8656
    %v8935 = vpack.c.b16 %v8659, %v8658
    %v8936 = vpack.c.b16 %v8661, %v8660
    %v8937 = vpack.c.b16 %v8663, %v8662
    %v8938 = vpack.c.b16 %v8665, %v8664
    %v8939 = vpack.c.b16 %v8667, %v8666
    %v8940 = vpack.c.b16 %v8669, %v8668
    %v8941 = vpack.c.b16 %v8671, %v8670
    %v8942 = vpack.c.b16 %v8673, %v8672
    %v8943 = vpack.c.b16 %v8675, %v8674
    %v8944 = vpack.c.b16 %v8677, %v8676
    %v8945 = vpack.c.b16 %v8679, %v8678
    %v8946 = vpack.c.b16 %v8681, %v8680
    %v8947 = vpack.c.b16 %v8683, %v8682
    %v8948 = vpack.c.b16 %v8685, %v8684
    %v8949 = vpack.c.b16 %v8687, %v8686
    %v8950 = vpack.c.b16 %v8689, %v8688
    %v8951 = vpack.c.b16 %v8691, %v8690
    %v8952 = vpack.c.b16 %v8693, %v8692
    %v8953 = vpack.c.b16 %v8695, %v8694
    %v8954 = vpack.c.b16 %v8697, %v8696
    %v8955 = vpack.c.b16 %v8699, %v8698
    %v8956 = vpack.c.b16 %v8701, %v8700
    %v8957 = vpack.c.b16 %v8703, %v8702
    %v8958 = vpack.c.b16 %v8705, %v8704
    %v8959 = vpack.c.b16 %v8707, %v8706
    %v8960 = vpack.c.b16 %v8709, %v8708
    %v8961 = vpack.c.b16 %v8711, %v8710
    %v8962 = vpack.c.b16 %v8713, %v8712
    %v8963 = vpack.c.b16 %v8715, %v8714
    %v8964 = vpack.c.b16 %v8717, %v8716
    %v8965 = vpack.c.b16 %v8719, %v8718
    %v8966 = vpack.c.b16 %v8721, %v8720
    %v8967 = vpack.c.b16 %v8723, %v8722
    %v8968 = vpack.c.b16 %v8725, %v8724
    %v8969 = vpack.c.b16 %v8727, %v8726
    %v8970 = vpack.c.b16 %v8729, %v8728
    %v8971 = vpack.c.b16 %v8731, %v8730
    %v8972 = vpack.c.b16 %v8733, %v8732
    %v8973 = vpack.c.b16 %v8735, %v8734
    %v8974 = vpack.c.b16 %v8737, %v8736
    %v8975 = vpack.c.b16 %v8739, %v8738
    %v8976 = vpack.c.b16 %v8741, %v8740
    %v8977 = vpack.c.b16 %v8743, %v8742
    %v8978 = vpack.c.b16 %v8745, %v8744
    %v8979 = vpack.c.b16 %v8747, %v8746
    %v8980 = vpack.c.b16 %v8749, %v8748
    %v8981 = vpack.c.b16 %v8751, %v8750
    %v8982 = vpack.c.b16 %v8753, %v8752
    %v8983 = vpack.c.b16 %v8755, %v8754
    %v8984 = vpack.c.b16 %v8757, %v8756
    %v8985 = vpack.c.b16 %v8759, %v8758
    %v8986 = vpack.c.b16 %v8761, %v8760
    %v8987 = vpack.c.b16 %v8763, %v8762
    %v8988 = vpack.c.b16 %v8765, %v8764
    %v8989 = vpack.c.b16 %v8767, %v8766
    %v8990 = vpack.c.b16 %v8769, %v8768
    %v8991 = vpack.c.b16 %v8771, %v8770
    %v8992 = vpack.c.b16 %v8773, %v8772
    %v8993 = vpack.c.b16 %v8775, %v8774
    %v8994 = vpack.c.b16 %v8777, %v8776
    %v8995 = vpack.c.b16 %v8779, %v8778
    %v8996 = vpack.c.b16 %v8781, %v8780
    %v8997 = vpack.c.b16 %v8783, %v8782
    %v8998 = vpack.c.b16 %v8785, %v8784
    %v8999 = vpack.c.b16 %v8787, %v8786
    %v9000 = vpack.c.b16 %v8789, %v8788
    %v9001 = vpack.c.b16 %v8791, %v8790
    %v9002 = vpack.c.b16 %v8793, %v8792
    %v9003 = vpack.c.b16 %v8795, %v8794
    %9212 = vmatprep.subr.bf16.mxu0 0
    %9213 = vmatpush1.bf16.msra.mxu0 %v8803
    %9214 = vmatprep.subr.bf16.mxu0 0
    %9215 = vmatpush1.bf16.msra.mxu0 %v8802
    %9216 = vmatprep.subr.bf16.mxu0 0
    %9217 = vmatpush1.bf16.msra.mxu0 %v8801
    %9218 = vmatprep.subr.bf16.mxu0 0
    %9219 = vmatpush1.bf16.msra.mxu0 %v8800
    %9220 = vmatprep.subr.bf16.mxu0 0
    %9221 = vmatpush1.bf16.msra.mxu0 %v8799
    %9222 = vmatprep.subr.bf16.mxu0 0
    %9223 = vmatpush1.bf16.msra.mxu0 %v8798
    %9224 = vmatprep.subr.bf16.mxu0 0
    %9225 = vmatpush1.bf16.msra.mxu0 %v8797
    %9226 = vmatprep.subr.bf16.mxu0 0
    %9227 = vmatpush1.bf16.msra.mxu0 %v8796
    %9228 = vmatprep.subr.bf16.mxu0 0
    %9229 = vmatpush2.bf16.msra.mxu0 %v8811
    %9230 = vmatprep.subr.bf16.mxu0 0
    %9231 = vmatpush2.bf16.msra.mxu0 %v8810
    %9232 = vmatprep.subr.bf16.mxu0 0
    %9233 = vmatpush2.bf16.msra.mxu0 %v8809
    %9234 = vmatprep.subr.bf16.mxu0 0
    %9235 = vmatpush2.bf16.msra.mxu0 %v8808
    %9236 = vmatprep.subr.bf16.mxu0 0
    %9237 = vmatpush2.bf16.msra.mxu0 %v8807
    %9238 = vmatprep.subr.bf16.mxu0 0
    %9239 = vmatpush2.bf16.msra.mxu0 %v8806
    %9240 = vmatprep.subr.bf16.mxu0 0
    %9241 = vmatpush2.bf16.msra.mxu0 %v8805
    %9242 = vmatprep.subr.bf16.mxu0 0
    %9243 = vmatpush2.bf16.msra.mxu0 %v8804
    %9244 = vmatprep.mubr.bf16.mxu0 %v7913
    %9245 = vmatmul.mubr.bf16.gmra.mxu0 %v7912
    %v9246 = vpop.f32.mrf.mxu0
    %v9247 = vadd.f32 %v7871, %v9246
    %v9248 = vpop.f32.mrf.mxu0
    %v9249 = vpop.f32.mrf.mxu0
    %v9250 = vpop.f32.mrf.mxu0
    %9251 = vdwg.mxu0
    %9252 = vmatprep.subr.bf16.mxu0 0
    %9253 = vmatpush1.bf16.msra.mxu0 %v8819
    %9254 = vmatprep.subr.bf16.mxu0 0
    %9255 = vmatpush1.bf16.msra.mxu0 %v8818
    %9256 = vmatprep.subr.bf16.mxu0 0
    %9257 = vmatpush1.bf16.msra.mxu0 %v8817
    %9258 = vmatprep.subr.bf16.mxu0 0
    %9259 = vmatpush1.bf16.msra.mxu0 %v8816
    %9260 = vmatprep.subr.bf16.mxu0 0
    %9261 = vmatpush1.bf16.msra.mxu0 %v8815
    %9262 = vmatprep.subr.bf16.mxu0 0
    %9263 = vmatpush1.bf16.msra.mxu0 %v8814
    %9264 = vmatprep.subr.bf16.mxu0 0
    %9265 = vmatpush1.bf16.msra.mxu0 %v8813
    %9266 = vmatprep.subr.bf16.mxu0 0
    %9267 = vmatpush1.bf16.msra.mxu0 %v8812
    %9268 = vmatprep.subr.bf16.mxu0 0
    %9269 = vmatpush2.bf16.msra.mxu0 %v8827
    %9270 = vmatprep.subr.bf16.mxu0 0
    %9271 = vmatpush2.bf16.msra.mxu0 %v8826
    %9272 = vmatprep.subr.bf16.mxu0 0
    %9273 = vmatpush2.bf16.msra.mxu0 %v8825
    %9274 = vmatprep.subr.bf16.mxu0 0
    %9275 = vmatpush2.bf16.msra.mxu0 %v8824
    %9276 = vmatprep.subr.bf16.mxu0 0
    %9277 = vmatpush2.bf16.msra.mxu0 %v8823
    %9278 = vmatprep.subr.bf16.mxu0 0
    %9279 = vmatpush2.bf16.msra.mxu0 %v8822
    %9280 = vmatprep.subr.bf16.mxu0 0
    %9281 = vmatpush2.bf16.msra.mxu0 %v8821
    %9282 = vmatprep.subr.bf16.mxu0 0
    %9283 = vmatpush2.bf16.msra.mxu0 %v8820
    %9284 = vmatprep.mubr.bf16.mxu0 %v7915
    %9285 = vmatmul.mubr.bf16.gmra.mxu0 %v7914
    %v9286 = vpop.f32.mrf.mxu0
    %v9287 = vadd.f32 %v9247, %v9286
    %v9288 = vpop.f32.mrf.mxu0
    %v9289 = vpop.f32.mrf.mxu0
    %v9290 = vpop.f32.mrf.mxu0
    %9291 = vdwg.mxu0
    %9292 = vmatprep.subr.bf16.mxu0 0
    %9293 = vmatpush1.bf16.msra.mxu0 %v8835
    %9294 = vmatprep.subr.bf16.mxu0 0
    %9295 = vmatpush1.bf16.msra.mxu0 %v8834
    %9296 = vmatprep.subr.bf16.mxu0 0
    %9297 = vmatpush1.bf16.msra.mxu0 %v8833
    %9298 = vmatprep.subr.bf16.mxu0 0
    %9299 = vmatpush1.bf16.msra.mxu0 %v8832
    %9300 = vmatprep.subr.bf16.mxu0 0
    %9301 = vmatpush1.bf16.msra.mxu0 %v8831
    %9302 = vmatprep.subr.bf16.mxu0 0
    %9303 = vmatpush1.bf16.msra.mxu0 %v8830
    %9304 = vmatprep.subr.bf16.mxu0 0
    %9305 = vmatpush1.bf16.msra.mxu0 %v8829
    %9306 = vmatprep.subr.bf16.mxu0 0
    %9307 = vmatpush1.bf16.msra.mxu0 %v8828
    %9308 = vmatprep.subr.bf16.mxu0 0
    %9309 = vmatpush2.bf16.msra.mxu0 %v8843
    %9310 = vmatprep.subr.bf16.mxu0 0
    %9311 = vmatpush2.bf16.msra.mxu0 %v8842
    %9312 = vmatprep.subr.bf16.mxu0 0
    %9313 = vmatpush2.bf16.msra.mxu0 %v8841
    %9314 = vmatprep.subr.bf16.mxu0 0
    %9315 = vmatpush2.bf16.msra.mxu0 %v8840
    %9316 = vmatprep.subr.bf16.mxu0 0
    %9317 = vmatpush2.bf16.msra.mxu0 %v8839
    %9318 = vmatprep.subr.bf16.mxu0 0
    %9319 = vmatpush2.bf16.msra.mxu0 %v8838
    %9320 = vmatprep.subr.bf16.mxu0 0
    %9321 = vmatpush2.bf16.msra.mxu0 %v8837
    %9322 = vmatprep.subr.bf16.mxu0 0
    %9323 = vmatpush2.bf16.msra.mxu0 %v8836
    %9324 = vmatprep.mubr.bf16.mxu0 %v7917
    %9325 = vmatmul.mubr.bf16.gmra.mxu0 %v7916
    %v9326 = vpop.f32.mrf.mxu0
    %v9327 = vadd.f32 %v9287, %v9326
    %v9328 = vpop.f32.mrf.mxu0
    %v9329 = vpop.f32.mrf.mxu0
    %v9330 = vpop.f32.mrf.mxu0
    %9331 = vdwg.mxu0
    %9332 = vmatprep.subr.bf16.mxu0 0
    %9333 = vmatpush1.bf16.msra.mxu0 %v8851
    %9334 = vmatprep.subr.bf16.mxu0 0
    %9335 = vmatpush1.bf16.msra.mxu0 %v8850
    %9336 = vmatprep.subr.bf16.mxu0 0
    %9337 = vmatpush1.bf16.msra.mxu0 %v8849
    %9338 = vmatprep.subr.bf16.mxu0 0
    %9339 = vmatpush1.bf16.msra.mxu0 %v8848
    %9340 = vmatprep.subr.bf16.mxu0 0
    %9341 = vmatpush1.bf16.msra.mxu0 %v8847
    %9342 = vmatprep.subr.bf16.mxu0 0
    %9343 = vmatpush1.bf16.msra.mxu0 %v8846
    %9344 = vmatprep.subr.bf16.mxu0 0
    %9345 = vmatpush1.bf16.msra.mxu0 %v8845
    %9346 = vmatprep.subr.bf16.mxu0 0
    %9347 = vmatpush1.bf16.msra.mxu0 %v8844
    %9348 = vmatprep.subr.bf16.mxu0 0
    %9349 = vmatpush2.bf16.msra.mxu0 %v8859
    %9350 = vmatprep.subr.bf16.mxu0 0
    %9351 = vmatpush2.bf16.msra.mxu0 %v8858
    %9352 = vmatprep.subr.bf16.mxu0 0
    %9353 = vmatpush2.bf16.msra.mxu0 %v8857
    %9354 = vmatprep.subr.bf16.mxu0 0
    %9355 = vmatpush2.bf16.msra.mxu0 %v8856
    %9356 = vmatprep.subr.bf16.mxu0 0
    %9357 = vmatpush2.bf16.msra.mxu0 %v8855
    %9358 = vmatprep.subr.bf16.mxu0 0
    %9359 = vmatpush2.bf16.msra.mxu0 %v8854
    %9360 = vmatprep.subr.bf16.mxu0 0
    %9361 = vmatpush2.bf16.msra.mxu0 %v8853
    %9362 = vmatprep.subr.bf16.mxu0 0
    %9363 = vmatpush2.bf16.msra.mxu0 %v8852
    %9364 = vmatprep.mubr.bf16.mxu0 %v7919
    %9365 = vmatmul.mubr.bf16.gmra.mxu0 %v7918
    %v9366 = vpop.f32.mrf.mxu0
    %v9367 = vadd.f32 %v9327, %v9366
    %v9368 = vpop.f32.mrf.mxu0
    %v9369 = vpop.f32.mrf.mxu0
    %v9370 = vpop.f32.mrf.mxu0
    %9371 = vdwg.mxu0
    %9372 = vmatprep.subr.bf16.mxu0 0
    %9373 = vmatpush1.bf16.msra.mxu0 %v8867
    %9374 = vmatprep.subr.bf16.mxu0 0
    %9375 = vmatpush1.bf16.msra.mxu0 %v8866
    %9376 = vmatprep.subr.bf16.mxu0 0
    %9377 = vmatpush1.bf16.msra.mxu0 %v8865
    %9378 = vmatprep.subr.bf16.mxu0 0
    %9379 = vmatpush1.bf16.msra.mxu0 %v8864
    %9380 = vmatprep.subr.bf16.mxu0 0
    %9381 = vmatpush1.bf16.msra.mxu0 %v8863
    %9382 = vmatprep.subr.bf16.mxu0 0
    %9383 = vmatpush1.bf16.msra.mxu0 %v8862
    %9384 = vmatprep.subr.bf16.mxu0 0
    %9385 = vmatpush1.bf16.msra.mxu0 %v8861
    %9386 = vmatprep.subr.bf16.mxu0 0
    %9387 = vmatpush1.bf16.msra.mxu0 %v8860
    %9388 = vmatprep.subr.bf16.mxu0 0
    %9389 = vmatpush2.bf16.msra.mxu0 %v8875
    %9390 = vmatprep.subr.bf16.mxu0 0
    %9391 = vmatpush2.bf16.msra.mxu0 %v8874
    %9392 = vmatprep.subr.bf16.mxu0 0
    %9393 = vmatpush2.bf16.msra.mxu0 %v8873
    %9394 = vmatprep.subr.bf16.mxu0 0
    %9395 = vmatpush2.bf16.msra.mxu0 %v8872
    %9396 = vmatprep.subr.bf16.mxu0 0
    %9397 = vmatpush2.bf16.msra.mxu0 %v8871
    %9398 = vmatprep.subr.bf16.mxu0 0
    %9399 = vmatpush2.bf16.msra.mxu0 %v8870
    %9400 = vmatprep.subr.bf16.mxu0 0
    %9401 = vmatpush2.bf16.msra.mxu0 %v8869
    %9402 = vmatprep.subr.bf16.mxu0 0
    %9403 = vmatpush2.bf16.msra.mxu0 %v8868
    %9404 = vmatprep.mubr.bf16.mxu0 %v7921
    %9405 = vmatmul.mubr.bf16.gmra.mxu0 %v7920
    %v9406 = vpop.f32.mrf.mxu0
    %v9407 = vadd.f32 %v9367, %v9406
    %v9408 = vpop.f32.mrf.mxu0
    %v9409 = vpop.f32.mrf.mxu0
    %v9410 = vpop.f32.mrf.mxu0
    %9411 = vdwg.mxu0
    %9412 = vmatprep.subr.bf16.mxu0 0
    %9413 = vmatpush1.bf16.msra.mxu0 %v8883
    %9414 = vmatprep.subr.bf16.mxu0 0
    %9415 = vmatpush1.bf16.msra.mxu0 %v8882
    %9416 = vmatprep.subr.bf16.mxu0 0
    %9417 = vmatpush1.bf16.msra.mxu0 %v8881
    %9418 = vmatprep.subr.bf16.mxu0 0
    %9419 = vmatpush1.bf16.msra.mxu0 %v8880
    %9420 = vmatprep.subr.bf16.mxu0 0
    %9421 = vmatpush1.bf16.msra.mxu0 %v8879
    %9422 = vmatprep.subr.bf16.mxu0 0
    %9423 = vmatpush1.bf16.msra.mxu0 %v8878
    %9424 = vmatprep.subr.bf16.mxu0 0
    %9425 = vmatpush1.bf16.msra.mxu0 %v8877
    %9426 = vmatprep.subr.bf16.mxu0 0
    %9427 = vmatpush1.bf16.msra.mxu0 %v8876
    %9428 = vmatprep.subr.bf16.mxu0 0
    %9429 = vmatpush2.bf16.msra.mxu0 %v8891
    %9430 = vmatprep.subr.bf16.mxu0 0
    %9431 = vmatpush2.bf16.msra.mxu0 %v8890
    %9432 = vmatprep.subr.bf16.mxu0 0
    %9433 = vmatpush2.bf16.msra.mxu0 %v8889
    %9434 = vmatprep.subr.bf16.mxu0 0
    %9435 = vmatpush2.bf16.msra.mxu0 %v8888
    %9436 = vmatprep.subr.bf16.mxu0 0
    %9437 = vmatpush2.bf16.msra.mxu0 %v8887
    %9438 = vmatprep.subr.bf16.mxu0 0
    %9439 = vmatpush2.bf16.msra.mxu0 %v8886
    %9440 = vmatprep.subr.bf16.mxu0 0
    %9441 = vmatpush2.bf16.msra.mxu0 %v8885
    %9442 = vmatprep.subr.bf16.mxu0 0
    %9443 = vmatpush2.bf16.msra.mxu0 %v8884
    %9444 = vmatprep.mubr.bf16.mxu0 %v7923
    %9445 = vmatmul.mubr.bf16.gmra.mxu0 %v7922
    %v9446 = vpop.f32.mrf.mxu0
    %v9447 = vadd.f32 %v9407, %v9446
    %v9448 = vpop.f32.mrf.mxu0
    %v9449 = vpop.f32.mrf.mxu0
    %v9450 = vpop.f32.mrf.mxu0
    %9451 = vdwg.mxu0
    %9452 = vmatprep.subr.bf16.mxu0 0
    %9453 = vmatpush1.bf16.msra.mxu0 %v8899
    %9454 = vmatprep.subr.bf16.mxu0 0
    %9455 = vmatpush1.bf16.msra.mxu0 %v8898
    %9456 = vmatprep.subr.bf16.mxu0 0
    %9457 = vmatpush1.bf16.msra.mxu0 %v8897
    %9458 = vmatprep.subr.bf16.mxu0 0
    %9459 = vmatpush1.bf16.msra.mxu0 %v8896
    %9460 = vmatprep.subr.bf16.mxu0 0
    %9461 = vmatpush1.bf16.msra.mxu0 %v8895
    %9462 = vmatprep.subr.bf16.mxu0 0
    %9463 = vmatpush1.bf16.msra.mxu0 %v8894
    %9464 = vmatprep.subr.bf16.mxu0 0
    %9465 = vmatpush1.bf16.msra.mxu0 %v8893
    %9466 = vmatprep.subr.bf16.mxu0 0
    %9467 = vmatpush1.bf16.msra.mxu0 %v8892
    %9468 = vmatprep.subr.bf16.mxu0 0
    %9469 = vmatpush2.bf16.msra.mxu0 %v8907
    %9470 = vmatprep.subr.bf16.mxu0 0
    %9471 = vmatpush2.bf16.msra.mxu0 %v8906
    %9472 = vmatprep.subr.bf16.mxu0 0
    %9473 = vmatpush2.bf16.msra.mxu0 %v8905
    %9474 = vmatprep.subr.bf16.mxu0 0
    %9475 = vmatpush2.bf16.msra.mxu0 %v8904
    %9476 = vmatprep.subr.bf16.mxu0 0
    %9477 = vmatpush2.bf16.msra.mxu0 %v8903
    %9478 = vmatprep.subr.bf16.mxu0 0
    %9479 = vmatpush2.bf16.msra.mxu0 %v8902
    %9480 = vmatprep.subr.bf16.mxu0 0
    %9481 = vmatpush2.bf16.msra.mxu0 %v8901
    %9482 = vmatprep.subr.bf16.mxu0 0
    %9483 = vmatpush2.bf16.msra.mxu0 %v8900
    %9484 = vmatprep.mubr.bf16.mxu0 %v7925
    %9485 = vmatmul.mubr.bf16.gmra.mxu0 %v7924
    %v9486 = vpop.f32.mrf.mxu0
    %v9487 = vadd.f32 %v9447, %v9486
    %v9488 = vpop.f32.mrf.mxu0
    %v9489 = vpop.f32.mrf.mxu0
    %v9490 = vpop.f32.mrf.mxu0
    %9491 = vdwg.mxu0
    %9492 = vmatprep.subr.bf16.mxu0 0
    %9493 = vmatpush1.bf16.msra.mxu0 %v8915
    %9494 = vmatprep.subr.bf16.mxu0 0
    %9495 = vmatpush1.bf16.msra.mxu0 %v8914
    %9496 = vmatprep.subr.bf16.mxu0 0
    %9497 = vmatpush1.bf16.msra.mxu0 %v8913
    %9498 = vmatprep.subr.bf16.mxu0 0
    %9499 = vmatpush1.bf16.msra.mxu0 %v8912
    %9500 = vmatprep.subr.bf16.mxu0 0
    %9501 = vmatpush1.bf16.msra.mxu0 %v8911
    %9502 = vmatprep.subr.bf16.mxu0 0
    %9503 = vmatpush1.bf16.msra.mxu0 %v8910
    %9504 = vmatprep.subr.bf16.mxu0 0
    %9505 = vmatpush1.bf16.msra.mxu0 %v8909
    %9506 = vmatprep.subr.bf16.mxu0 0
    %9507 = vmatpush1.bf16.msra.mxu0 %v8908
    %9508 = vmatprep.subr.bf16.mxu0 0
    %9509 = vmatpush2.bf16.msra.mxu0 %v8923
    %9510 = vmatprep.subr.bf16.mxu0 0
    %9511 = vmatpush2.bf16.msra.mxu0 %v8922
    %9512 = vmatprep.subr.bf16.mxu0 0
    %9513 = vmatpush2.bf16.msra.mxu0 %v8921
    %9514 = vmatprep.subr.bf16.mxu0 0
    %9515 = vmatpush2.bf16.msra.mxu0 %v8920
    %9516 = vmatprep.subr.bf16.mxu0 0
    %9517 = vmatpush2.bf16.msra.mxu0 %v8919
    %9518 = vmatprep.subr.bf16.mxu0 0
    %9519 = vmatpush2.bf16.msra.mxu0 %v8918
    %9520 = vmatprep.subr.bf16.mxu0 0
    %9521 = vmatpush2.bf16.msra.mxu0 %v8917
    %9522 = vmatprep.subr.bf16.mxu0 0
    %9523 = vmatpush2.bf16.msra.mxu0 %v8916
    %9524 = vmatprep.mubr.bf16.mxu0 %v7927
    %9525 = vmatmul.mubr.bf16.gmra.mxu0 %v7926
    %v9526 = vpop.f32.mrf.mxu0
    %v9527 = vadd.f32 %v9487, %v9526
    %v9528 = vpop.f32.mrf.mxu0
    %v9529 = vpop.f32.mrf.mxu0
    %v9530 = vpop.f32.mrf.mxu0
    %9531 = vdwg.mxu0
    %9532 = vmatprep.subr.bf16.mxu0 0
    %9533 = vmatpush1.bf16.msra.mxu0 %v8931
    %9534 = vmatprep.subr.bf16.mxu0 0
    %9535 = vmatpush1.bf16.msra.mxu0 %v8930
    %9536 = vmatprep.subr.bf16.mxu0 0
    %9537 = vmatpush1.bf16.msra.mxu0 %v8929
    %9538 = vmatprep.subr.bf16.mxu0 0
    %9539 = vmatpush1.bf16.msra.mxu0 %v8928
    %9540 = vmatprep.subr.bf16.mxu0 0
    %9541 = vmatpush1.bf16.msra.mxu0 %v8927
    %9542 = vmatprep.subr.bf16.mxu0 0
    %9543 = vmatpush1.bf16.msra.mxu0 %v8926
    %9544 = vmatprep.subr.bf16.mxu0 0
    %9545 = vmatpush1.bf16.msra.mxu0 %v8925
    %9546 = vmatprep.subr.bf16.mxu0 0
    %9547 = vmatpush1.bf16.msra.mxu0 %v8924
    %9548 = vmatprep.subr.bf16.mxu0 0
    %9549 = vmatpush2.bf16.msra.mxu0 %v8939
    %9550 = vmatprep.subr.bf16.mxu0 0
    %9551 = vmatpush2.bf16.msra.mxu0 %v8938
    %9552 = vmatprep.subr.bf16.mxu0 0
    %9553 = vmatpush2.bf16.msra.mxu0 %v8937
    %9554 = vmatprep.subr.bf16.mxu0 0
    %9555 = vmatpush2.bf16.msra.mxu0 %v8936
    %9556 = vmatprep.subr.bf16.mxu0 0
    %9557 = vmatpush2.bf16.msra.mxu0 %v8935
    %9558 = vmatprep.subr.bf16.mxu0 0
    %9559 = vmatpush2.bf16.msra.mxu0 %v8934
    %9560 = vmatprep.subr.bf16.mxu0 0
    %9561 = vmatpush2.bf16.msra.mxu0 %v8933
    %9562 = vmatprep.subr.bf16.mxu0 0
    %9563 = vmatpush2.bf16.msra.mxu0 %v8932
    %9564 = vmatprep.mubr.bf16.mxu0 %v7929
    %9565 = vmatmul.mubr.bf16.gmra.mxu0 %v7928
    %v9566 = vpop.f32.mrf.mxu0
    %v9567 = vadd.f32 %v9527, %v9566
    %v9568 = vpop.f32.mrf.mxu0
    %v9569 = vpop.f32.mrf.mxu0
    %v9570 = vpop.f32.mrf.mxu0
    %9571 = vdwg.mxu0
    %9572 = vmatprep.subr.bf16.mxu0 0
    %9573 = vmatpush1.bf16.msra.mxu0 %v8947
    %9574 = vmatprep.subr.bf16.mxu0 0
    %9575 = vmatpush1.bf16.msra.mxu0 %v8946
    %9576 = vmatprep.subr.bf16.mxu0 0
    %9577 = vmatpush1.bf16.msra.mxu0 %v8945
    %9578 = vmatprep.subr.bf16.mxu0 0
    %9579 = vmatpush1.bf16.msra.mxu0 %v8944
    %9580 = vmatprep.subr.bf16.mxu0 0
    %9581 = vmatpush1.bf16.msra.mxu0 %v8943
    %9582 = vmatprep.subr.bf16.mxu0 0
    %9583 = vmatpush1.bf16.msra.mxu0 %v8942
    %9584 = vmatprep.subr.bf16.mxu0 0
    %9585 = vmatpush1.bf16.msra.mxu0 %v8941
    %9586 = vmatprep.subr.bf16.mxu0 0
    %9587 = vmatpush1.bf16.msra.mxu0 %v8940
    %9588 = vmatprep.subr.bf16.mxu0 0
    %9589 = vmatpush2.bf16.msra.mxu0 %v8955
    %9590 = vmatprep.subr.bf16.mxu0 0
    %9591 = vmatpush2.bf16.msra.mxu0 %v8954
    %9592 = vmatprep.subr.bf16.mxu0 0
    %9593 = vmatpush2.bf16.msra.mxu0 %v8953
    %9594 = vmatprep.subr.bf16.mxu0 0
    %9595 = vmatpush2.bf16.msra.mxu0 %v8952
    %9596 = vmatprep.subr.bf16.mxu0 0
    %9597 = vmatpush2.bf16.msra.mxu0 %v8951
    %9598 = vmatprep.subr.bf16.mxu0 0
    %9599 = vmatpush2.bf16.msra.mxu0 %v8950
    %9600 = vmatprep.subr.bf16.mxu0 0
    %9601 = vmatpush2.bf16.msra.mxu0 %v8949
    %9602 = vmatprep.subr.bf16.mxu0 0
    %9603 = vmatpush2.bf16.msra.mxu0 %v8948
    %9604 = vmatprep.mubr.bf16.mxu0 %v7931
    %9605 = vmatmul.mubr.bf16.gmra.mxu0 %v7930
    %v9606 = vpop.f32.mrf.mxu0
    %v9607 = vadd.f32 %v9567, %v9606
    %v9608 = vpop.f32.mrf.mxu0
    %v9609 = vpop.f32.mrf.mxu0
    %v9610 = vpop.f32.mrf.mxu0
    %9611 = vdwg.mxu0
    %9612 = vmatprep.subr.bf16.mxu0 0
    %9613 = vmatpush1.bf16.msra.mxu0 %v8963
    %9614 = vmatprep.subr.bf16.mxu0 0
    %9615 = vmatpush1.bf16.msra.mxu0 %v8962
    %9616 = vmatprep.subr.bf16.mxu0 0
    %9617 = vmatpush1.bf16.msra.mxu0 %v8961
    %9618 = vmatprep.subr.bf16.mxu0 0
    %9619 = vmatpush1.bf16.msra.mxu0 %v8960
    %9620 = vmatprep.subr.bf16.mxu0 0
    %9621 = vmatpush1.bf16.msra.mxu0 %v8959
    %9622 = vmatprep.subr.bf16.mxu0 0
    %9623 = vmatpush1.bf16.msra.mxu0 %v8958
    %9624 = vmatprep.subr.bf16.mxu0 0
    %9625 = vmatpush1.bf16.msra.mxu0 %v8957
    %9626 = vmatprep.subr.bf16.mxu0 0
    %9627 = vmatpush1.bf16.msra.mxu0 %v8956
    %9628 = vmatprep.subr.bf16.mxu0 0
    %9629 = vmatpush2.bf16.msra.mxu0 %v8971
    %9630 = vmatprep.subr.bf16.mxu0 0
    %9631 = vmatpush2.bf16.msra.mxu0 %v8970
    %9632 = vmatprep.subr.bf16.mxu0 0
    %9633 = vmatpush2.bf16.msra.mxu0 %v8969
    %9634 = vmatprep.subr.bf16.mxu0 0
    %9635 = vmatpush2.bf16.msra.mxu0 %v8968
    %9636 = vmatprep.subr.bf16.mxu0 0
    %9637 = vmatpush2.bf16.msra.mxu0 %v8967
    %9638 = vmatprep.subr.bf16.mxu0 0
    %9639 = vmatpush2.bf16.msra.mxu0 %v8966
    %9640 = vmatprep.subr.bf16.mxu0 0
    %9641 = vmatpush2.bf16.msra.mxu0 %v8965
    %9642 = vmatprep.subr.bf16.mxu0 0
    %9643 = vmatpush2.bf16.msra.mxu0 %v8964
    %9644 = vmatprep.mubr.bf16.mxu0 %v7933
    %9645 = vmatmul.mubr.bf16.gmra.mxu0 %v7932
    %v9646 = vpop.f32.mrf.mxu0
    %v9647 = vadd.f32 %v9607, %v9646
    %v9648 = vpop.f32.mrf.mxu0
    %v9649 = vpop.f32.mrf.mxu0
    %v9650 = vpop.f32.mrf.mxu0
    %9651 = vdwg.mxu0
    %9652 = vmatprep.subr.bf16.mxu0 0
    %9653 = vmatpush1.bf16.msra.mxu0 %v8979
    %9654 = vmatprep.subr.bf16.mxu0 0
    %9655 = vmatpush1.bf16.msra.mxu0 %v8978
    %9656 = vmatprep.subr.bf16.mxu0 0
    %9657 = vmatpush1.bf16.msra.mxu0 %v8977
    %9658 = vmatprep.subr.bf16.mxu0 0
    %9659 = vmatpush1.bf16.msra.mxu0 %v8976
    %9660 = vmatprep.subr.bf16.mxu0 0
    %9661 = vmatpush1.bf16.msra.mxu0 %v8975
    %9662 = vmatprep.subr.bf16.mxu0 0
    %9663 = vmatpush1.bf16.msra.mxu0 %v8974
    %9664 = vmatprep.subr.bf16.mxu0 0
    %9665 = vmatpush1.bf16.msra.mxu0 %v8973
    %9666 = vmatprep.subr.bf16.mxu0 0
    %9667 = vmatpush1.bf16.msra.mxu0 %v8972
    %9668 = vmatprep.subr.bf16.mxu0 0
    %9669 = vmatpush2.bf16.msra.mxu0 %v8987
    %9670 = vmatprep.subr.bf16.mxu0 0
    %9671 = vmatpush2.bf16.msra.mxu0 %v8986
    %9672 = vmatprep.subr.bf16.mxu0 0
    %9673 = vmatpush2.bf16.msra.mxu0 %v8985
    %9674 = vmatprep.subr.bf16.mxu0 0
    %9675 = vmatpush2.bf16.msra.mxu0 %v8984
    %9676 = vmatprep.subr.bf16.mxu0 0
    %9677 = vmatpush2.bf16.msra.mxu0 %v8983
    %9678 = vmatprep.subr.bf16.mxu0 0
    %9679 = vmatpush2.bf16.msra.mxu0 %v8982
    %9680 = vmatprep.subr.bf16.mxu0 0
    %9681 = vmatpush2.bf16.msra.mxu0 %v8981
    %9682 = vmatprep.subr.bf16.mxu0 0
    %9683 = vmatpush2.bf16.msra.mxu0 %v8980
    %9684 = vmatprep.mubr.bf16.mxu0 %v7935
    %9685 = vmatmul.mubr.bf16.gmra.mxu0 %v7934
    %v9686 = vpop.f32.mrf.mxu0
    %v9687 = vadd.f32 %v9647, %v9686
    %v9688 = vpop.f32.mrf.mxu0
    %v9689 = vpop.f32.mrf.mxu0
    %v9690 = vpop.f32.mrf.mxu0
    %9691 = vdwg.mxu0
    %9692 = vmatprep.subr.bf16.mxu0 0
    %9693 = vmatpush1.bf16.msra.mxu0 %v8995
    %9694 = vmatprep.subr.bf16.mxu0 0
    %9695 = vmatpush1.bf16.msra.mxu0 %v8994
    %9696 = vmatprep.subr.bf16.mxu0 0
    %9697 = vmatpush1.bf16.msra.mxu0 %v8993
    %9698 = vmatprep.subr.bf16.mxu0 0
    %9699 = vmatpush1.bf16.msra.mxu0 %v8992
    %9700 = vmatprep.subr.bf16.mxu0 0
    %9701 = vmatpush1.bf16.msra.mxu0 %v8991
    %9702 = vmatprep.subr.bf16.mxu0 0
    %9703 = vmatpush1.bf16.msra.mxu0 %v8990
    %9704 = vmatprep.subr.bf16.mxu0 0
    %9705 = vmatpush1.bf16.msra.mxu0 %v8989
    %9706 = vmatprep.subr.bf16.mxu0 0
    %9707 = vmatpush1.bf16.msra.mxu0 %v8988
    %9708 = vmatprep.subr.bf16.mxu0 0
    %9709 = vmatpush2.bf16.msra.mxu0 %v9003
    %9710 = vmatprep.subr.bf16.mxu0 0
    %9711 = vmatpush2.bf16.msra.mxu0 %v9002
    %9712 = vmatprep.subr.bf16.mxu0 0
    %9713 = vmatpush2.bf16.msra.mxu0 %v9001
    %9714 = vmatprep.subr.bf16.mxu0 0
    %9715 = vmatpush2.bf16.msra.mxu0 %v9000
    %9716 = vmatprep.subr.bf16.mxu0 0
    %9717 = vmatpush2.bf16.msra.mxu0 %v8999
    %9718 = vmatprep.subr.bf16.mxu0 0
    %9719 = vmatpush2.bf16.msra.mxu0 %v8998
    %9720 = vmatprep.subr.bf16.mxu0 0
    %9721 = vmatpush2.bf16.msra.mxu0 %v8997
    %9722 = vmatprep.subr.bf16.mxu0 0
    %9723 = vmatpush2.bf16.msra.mxu0 %v8996
    %9724 = vmatprep.mubr.bf16.mxu0 %v7937
    %9725 = vmatmul.mubr.bf16.gmra.mxu0 %v7936
    %v9726 = vpop.f32.mrf.mxu0
    %v9727 = vadd.f32 %v9687, %v9726
    %v9728 = vpop.f32.mrf.mxu0
    %v9729 = vpop.f32.mrf.mxu0
    %v9730 = vpop.f32.mrf.mxu0
    %9731 = vdwg.mxu0
    %v9732 = vmax.f32 %v9727, 0.0
    %v9733 = vpack.c.bf16 %v9732, %v9732
    %v9734 = vld [vmem:[%s5] sm:$0xf]
    %v9735 = vld [vmem:[%s5 + $0x4] sm:$0xf]
    %v9736 = vld [vmem:[%s5 + $0x8] sm:$0xf]
    %v9737 = vld [vmem:[%s5 + $0xc] sm:$0xf]
    %v9738 = vld [vmem:[%s5 + $0x10] sm:$0xf]
    %v9739 = vld [vmem:[%s5 + $0x14] sm:$0xf]
    %v9740 = vld [vmem:[%s5 + $0x18] sm:$0xf]
    %v9741 = vld [vmem:[%s5 + $0x1c] sm:$0xf]
    %v9742 = vld [vmem:[%s5 + $0x20] sm:$0xf]
    %v9743 = vld [vmem:[%s5 + $0x24] sm:$0xf]
    %v9744 = vld [vmem:[%s5 + $0x28] sm:$0xf]
    %v9745 = vld [vmem:[%s5 + $0x2c] sm:$0xf]
    %v9746 = vld [vmem:[%s5 + $0x30] sm:$0xf]
    %v9747 = vld [vmem:[%s5 + $0x34] sm:$0xf]
    %v9748 = vld [vmem:[%s5 + $0x38] sm:$0xf]
    %v9749 = vld [vmem:[%s5 + $0x3c] sm:$0xf]
    %v9750 = vld [vmem:[%s6] sm:$0x1]
    %v9752 = vlaneseq
    %v9753 = vshrl.u32 %v9752, 7
    %v9754 = vsub.s32 0, %v9753
    %v9755 = vrot.slane %v9750, %v9754
    %v9773 = vunpack.c.l.b16 %v9734
    %v9774 = vunpack.c.l.b16 %v9735
    %v9775 = vunpack.c.l.b16 %v9736
    %v9776 = vunpack.c.l.b16 %v9737
    %v9777 = vunpack.c.l.b16 %v9738
    %v9778 = vunpack.c.l.b16 %v9739
    %v9779 = vunpack.c.l.b16 %v9740
    %v9780 = vunpack.c.l.b16 %v9741
    %v9781 = vunpack.c.l.b16 %v9742
    %v9782 = vunpack.c.l.b16 %v9743
    %v9783 = vunpack.c.l.b16 %v9744
    %v9784 = vunpack.c.l.b16 %v9745
    %v9785 = vunpack.c.l.b16 %v9746
    %v9786 = vunpack.c.l.b16 %v9747
    %v9787 = vunpack.c.l.b16 %v9748
    %v9788 = vunpack.c.l.b16 %v9749
    %v9789 = vpack.c.b16 %v9774, %v9773
    %v9790 = vpack.c.b16 %v9776, %v9775
    %v9791 = vpack.c.b16 %v9778, %v9777
    %v9792 = vpack.c.b16 %v9780, %v9779
    %v9793 = vpack.c.b16 %v9782, %v9781
    %v9794 = vpack.c.b16 %v9784, %v9783
    %v9795 = vpack.c.b16 %v9786, %v9785
    %v9796 = vpack.c.b16 %v9788, %v9787
    %9805 = vmatprep.subr.bf16.mxu0 0
    %9806 = vmatpush1.bf16.msra.mxu0 %v9796
    %9807 = vmatprep.subr.bf16.mxu0 0
    %9808 = vmatpush1.bf16.msra.mxu0 %v9795
    %9809 = vmatprep.subr.bf16.mxu0 0
    %9810 = vmatpush1.bf16.msra.mxu0 %v9794
    %9811 = vmatprep.subr.bf16.mxu0 0
    %9812 = vmatpush1.bf16.msra.mxu0 %v9793
    %9813 = vmatprep.subr.bf16.mxu0 0
    %9814 = vmatpush1.bf16.msra.mxu0 %v9792
    %9815 = vmatprep.subr.bf16.mxu0 0
    %9816 = vmatpush1.bf16.msra.mxu0 %v9791
    %9817 = vmatprep.subr.bf16.mxu0 0
    %9818 = vmatpush1.bf16.msra.mxu0 %v9790
    %9819 = vmatprep.subr.bf16.mxu0 0
    %9820 = vmatpush1.bf16.msra.mxu0 %v9789
    %9821 = vmatprep.subr.bf16.mxu0 0
    %9822 = vmatpush2.bf16.msra.mxu0 0
    %9823 = vmatprep.subr.bf16.mxu0 0
    %9824 = vmatpush2.bf16.msra.mxu0 0
    %9825 = vmatprep.subr.bf16.mxu0 0
    %9826 = vmatpush2.bf16.msra.mxu0 0
    %9827 = vmatprep.subr.bf16.mxu0 0
    %9828 = vmatpush2.bf16.msra.mxu0 0
    %9829 = vmatprep.subr.bf16.mxu0 0
    %9830 = vmatpush2.bf16.msra.mxu0 0
    %9831 = vmatprep.subr.bf16.mxu0 0
    %9832 = vmatpush2.bf16.msra.mxu0 0
    %9833 = vmatprep.subr.bf16.mxu0 0
    %9834 = vmatpush2.bf16.msra.mxu0 0
    %9835 = vmatprep.subr.bf16.mxu0 0
    %9836 = vmatpush2.bf16.msra.mxu0 0
    %9837 = vmatprep.mubr.bf16.mxu0 0
    %9838 = vmatmul.mubr.bf16.gmra.mxu0 %v9733
    %v9839 = vpop.f32.mrf.mxu0
    %v9840 = vadd.f32 %v9755, %v9839
    %v9841 = vpop.f32.mrf.mxu0
    %v9842 = vpop.f32.mrf.mxu0
    %v9843 = vpop.f32.mrf.mxu0
    %9844 = vdwg.mxu0
    %vm9845 = vcmask 80896
    %v9846 = vsel %vm9845, %v9840, -inf
    %9847 = vmax.xlane.f32.xlu0 %v9846
    %v9848 = vpop.xlane.xlu0 %9847
    %v9849 = vsub.f32 %v9840, %v9848
    %v9850 = vmul.f32 %v9849, 1.442695
    %v9851 = vpow.pop %v9850
    %v9852 = vsel %vm9845, %v9851, 0.0
    %9853 = vadd.xlane.f32.xlu0 %v9852
    %v9854 = vpop.xlane.xlu0 %9853
    %v9855 = vrcp.pop %v9854
    %v9856 = vmul.f32 %v9851, %v9855
    %9857 = vst.msk [vmem:[%s7] sm:$0xff] %vm9845, %v9856
    // Predicated region
    $region34: #{forward.1} parent=1 // pred_check
      _
    $region35: #{forward.1} parent=1 // pred_check_branch
      %9859 = sbr.rel (0) target = $region37
    $region36: #{forward.1} parent=1 // pred_region
      _
    $region37: #{forward.1} parent=1 // pred_fallthru
      _
    // Predicated region
    $region38: #{forward.1} parent=1 // pred_check
      _
    $region39: #{forward.1} parent=1 // pred_check_branch
      %9861 = sbr.rel (0) target = $region41
    $region40: #{forward.1} parent=1 // pred_region
      _
    $region41: #{forward.1} parent=1 // pred_fallthru
      _
    %9862 = vsyncpa [#allocation4], 1

</llo_original>
